<compile_context>
chip_gen: v5e
topology: v5e:2x2
jax: 0.10.0
libtpu: 0.0.40
codegen_flags: <defaults>
</compile_context>

<pallas_src>
import jax
import jax.numpy as jnp
import numpy as np
from jax import lax
from jax.experimental import pallas as pl
from jax.experimental.pallas import tpu as pltpu

# ----- DualPathBlock config (block_type='proj' -> has_proj=True, key_stride=1, b=False) -----
IN_CHS    = 32
NUM_1X1_A = 32
NUM_3X3_B = 32
NUM_1X1_C = 32
INC       = 16
GROUPS    = 4
EPS       = 1e-3

PACK_C    = 128                      # lane-dense packed output width (multiple of 128)
C_DENSE   = 3 * INC                  # 48
C_OUT     = NUM_1X1_C + C_DENSE      # 80 useful channels inside the 128-wide pack


def _dpn_kernel(x_ref,
                sw_ref, tw_ref,            # bn_w scale/shift  (projection branch)
                sa_ref, ta_ref,            # bn_a scale/shift
                tb_ref, tc_ref,            # bn_b / bn_c shifts (scales folded into weights)
                wa_ref,                    # (Cin, Ca)        c1x1_a weight * sb        (bf16)
                wb_ref,                    # (9*Ca, Cb)       block-diag 3x3 weight*sc  (bf16)
                wpc_ref,                   # (Cin+Cb, 128)    fused [wproj ; wc] packed (bf16)
                out_ref,                   # (nb, H, W, 128)  packed output             (bf16)
                pad_ref, patch_ref):       # scratch: bf16 padded activation + im2col buffer
    NB, H, W, Cin = x_ref.shape
    M = NB * H * W
    Ca = NUM_1X1_A

    x = x_ref[...].reshape(M, Cin)                       # f32

    # BN + ReLU on the VPU in f32; cast to bf16 only at the MXU boundary.
    yw = jnp.maximum(x * sw_ref[...] + tw_ref[...], 0.0).astype(jnp.bfloat16)
    ya = jnp.maximum(x * sa_ref[...] + ta_ref[...], 0.0).astype(jnp.bfloat16)

    # --- c1x1_a (bn_b's scale is pre-folded into wa's output columns) ---
    a = jnp.dot(ya, wa_ref[...], preferred_element_type=jnp.float32)
    zb = jnp.maximum(a + tb_ref[...], 0.0).astype(jnp.bfloat16)   # single cast, bf16 from here

    # --- c3x3_b: grouped 3x3, stride 1, pad 1, as ONE im2col matmul (K = 9*Ca) ---
    # Re-zero only the 1-pixel halo strips (every step: scratch is per-core under the
    # megacore split); the interior is fully overwritten each step.
    pad_ref[:, 0:1, :, :]         = jnp.zeros((NB, 1, W + 2, Ca), jnp.bfloat16)
    pad_ref[:, H + 1:H + 2, :, :] = jnp.zeros((NB, 1, W + 2, Ca), jnp.bfloat16)
    pad_ref[:, :, 0:1, :]         = jnp.zeros((NB, H + 2, 1, Ca), jnp.bfloat16)
    pad_ref[:, :, W + 1:W + 2, :] = jnp.zeros((NB, H + 2, 1, Ca), jnp.bfloat16)
    pad_ref[:, 1:H + 1, 1:W + 1, :] = zb.reshape(NB, H, W, Ca)

    for t in range(9):                                   # static unroll: 9 tap gathers (bf16)
        kh, kw = t // 3, t % 3
        patch_ref[:, t * Ca:(t + 1) * Ca] = (
            pad_ref[:, kh:kh + H, kw:kw + W, :].reshape(M, Ca))

    acc = jnp.dot(patch_ref[...], wb_ref[...], preferred_element_type=jnp.float32)
    zc = jnp.maximum(acc + tc_ref[...], 0.0).astype(jnp.bfloat16)

    # --- fused projection + c1x1_c: ONE K=64 matmul into the packed, lane-dense output
    #       lanes [0:32]   = x_s1 + out1   (residual path; add fused into accumulation)
    #       lanes [32:64]  = x_s2          (dense path, first 2*inc channels)
    #       lanes [64:80]  = out2          (dense path, last inc channels)
    #       lanes [80:128] = zero padding  (dropped in the wrapper)
    lhs = jnp.concatenate([yw, zc], axis=-1)             # (M, Cin + Cb) bf16
    packed = jnp.dot(lhs, wpc_ref[...], preferred_element_type=jnp.float32)
    out_ref[...] = packed.reshape(NB, H, W, PACK_C).astype(out_ref.dtype)


def _vmem_bytes_per_step(nb, H, W):
    """Rough per-grid-step VMEM estimate (double-buffered tiles + scratch + live f32)."""
    m = nb * H * W
    in_tile  = nb * H * W * IN_CHS * 4                   # f32 input tile
    out_tile = nb * H * W * PACK_C * 2                   # bf16 output tile
    pad      = nb * (H + 2) * (W + 2) * NUM_1X1_A * 2    # bf16 pad scratch
    patch    = m * 9 * NUM_1X1_A * 2                     # bf16 im2col scratch
    live_f32 = 3 * m * PACK_C * 4                        # matmul accumulators / temporaries
    return 2 * (in_tile + out_tile) + pad + patch + live_f32


def _auto_block_n(N, H, W, target_rows=1024, vmem_budget=20 << 20):
    """Largest nb dividing N with nb*H*W <= ~2*target_rows, per-step VMEM under budget,
    and (when N >= 2) at least 2 grid steps so both v7x TensorCores get work."""
    best = 1
    for nb in range(1, N + 1):
        if N % nb:
            continue
        if N >= 2 and N // nb < 2:
            continue
        if _vmem_bytes_per_step(nb, H, W) > vmem_budget:
            continue
        if nb * H * W <= 2 * target_rows:
            best = nb
    return best


def dual_path_block_proj(x_nchw, params, block_n=None, return_packed=False):
    """NCHW in, (resid, dense) NCHW out by default.
    Folds BN to scale/shift, folds post-matmul BN scales into upstream weights, packs the
    projection + c1x1_c weights into one fused 128-lane RHS (all wrapper glue), then runs
    the batch-tiled kernel.  With return_packed=True the packed NHWC bf16 tensor is
    returned directly (skip the slice + NCHW transposes when chaining DPN blocks)."""
    x = jnp.transpose(x_nchw, (0, 2, 3, 1)).astype(jnp.float32)   # -> NHWC
    N, H, W, Cin = x.shape
    nb = _auto_block_n(N, H, W) if block_n is None else block_n
    assert N % nb == 0

    def bn_affine(p):
        gamma, beta, mean, var = p
        scale = gamma / jnp.sqrt(var + EPS)
        shift = beta - mean * scale
        return scale[None, :], shift[None, :]

    sw, tw = bn_affine(params["bn_w"])
    sa, ta = bn_affine(params["bn_a"])
    sb, tb = bn_affine(params["bn_b"])
    sc, tc = bn_affine(params["bn_c"])

    bf16 = jnp.bfloat16
    # Fold post-matmul BN scales into the upstream weights' output channels.
    wa_f = (params["w_a"] * sb).astype(bf16)                                   # (Cin, Ca)
    wb_f = (params["w_b_blockdiag"] * sc).reshape(
        9 * NUM_1X1_A, NUM_3X3_B).astype(bf16)                                 # (288, Cb)

    # Pack projection / c1x1_c weights into 128 output columns and stack them into ONE
    # fused RHS so the kernel does a single K=64 matmul producing the lane-dense output
    # (residual add fuses into the MXU accumulation).
    wproj_pack = jnp.zeros((Cin, PACK_C), jnp.float32)
    wproj_pack = wproj_pack.at[:, :NUM_1X1_C + 2 * INC].set(params["w_proj"])
    wc_pack = jnp.zeros((NUM_3X3_B, PACK_C), jnp.float32)
    wc_pack = wc_pack.at[:, :NUM_1X1_C].set(params["w_c"][:, :NUM_1X1_C])
    wc_pack = wc_pack.at[:, NUM_1X1_C + 2 * INC:C_OUT].set(params["w_c"][:, NUM_1X1_C:])
    wpc = jnp.concatenate([wproj_pack, wc_pack], axis=0).astype(bf16)          # (64, 128)

    def full(shape):
        return pl.BlockSpec(shape, lambda i: (0,) * len(shape))

    # Actual MXU work per output row (includes the 48 zero pad lanes the MXU does compute).
    flops = 2 * N * H * W * (IN_CHS * NUM_1X1_A
                             + 9 * NUM_1X1_A * NUM_3X3_B
                             + (IN_CHS + NUM_3X3_B) * PACK_C)
    weight_bytes = 2 * (IN_CHS * NUM_1X1_A + 9 * NUM_1X1_A * NUM_3X3_B
                        + (IN_CHS + NUM_3X3_B) * PACK_C)
    param_bytes = 4 * (4 * IN_CHS + NUM_1X1_A + NUM_3X3_B)
    bytes_accessed = (4 * N * H * W * IN_CHS           # f32 input read
                      + 2 * N * H * W * PACK_C         # bf16 packed output write
                      + weight_bytes + param_bytes)

    vmem_est = _vmem_bytes_per_step(nb, H, W)
    vmem_limit = int(min(48 << 20, max(32 << 20, 2 * vmem_est)))

    packed = pl.pallas_call(
        _dpn_kernel,
        out_shape=jax.ShapeDtypeStruct((N, H, W, PACK_C), jnp.bfloat16),
        grid_spec=pltpu.PrefetchScalarGridSpec(
            num_scalar_prefetch=0,
            grid=(N // nb,),
            in_specs=[
                pl.BlockSpec((nb, H, W, Cin), lambda i: (i, 0, 0, 0)),   # x
                full((1, IN_CHS)), full((1, IN_CHS)),                    # sw, tw
                full((1, IN_CHS)), full((1, IN_CHS)),                    # sa, ta
                full((1, NUM_1X1_A)), full((1, NUM_3X3_B)),              # tb, tc
                full((IN_CHS, NUM_1X1_A)),                               # wa * sb
                full((9 * NUM_1X1_A, NUM_3X3_B)),                        # wb * sc (im2col)
                full((IN_CHS + NUM_3X3_B, PACK_C)),                      # fused [wproj ; wc]
            ],
            out_specs=pl.BlockSpec((nb, H, W, PACK_C), lambda i: (i, 0, 0, 0)),
            scratch_shapes=[
                pltpu.VMEM((nb, H + 2, W + 2, NUM_1X1_A), jnp.bfloat16),  # padded act (bf16)
                pltpu.VMEM((nb * H * W, 9 * NUM_1X1_A), jnp.bfloat16),    # im2col buffer
            ]),
        compiler_params=pltpu.CompilerParams(
            dimension_semantics=("parallel",),
            vmem_limit_bytes=vmem_limit),
        cost_estimate=pl.CostEstimate(flops=flops, transcendentals=0,
                                      bytes_accessed=bytes_accessed),
    )(x, sw, tw, sa, ta, tb, tc, wa_f, wb_f, wpc)

    if return_packed:
        return packed        # NHWC, bf16, lanes [0:32]=resid, [32:80]=dense, [80:128]=pad

    resid = packed[..., :NUM_1X1_C].astype(jnp.float32)
    dense = packed[..., NUM_1X1_C:C_OUT].astype(jnp.float32)
    # back to the PyTorch NCHW convention (network-boundary only; see return_packed)
    return (jnp.transpose(resid, (0, 3, 1, 2)),
            jnp.transpose(dense, (0, 3, 1, 2)))


def init_params(key):
    """Deterministic synthetic parameters matching the module's __init__ shapes."""
    ks = jax.random.split(key, 8)

    def bn(k, c):
        k1, k2, k3, k4 = jax.random.split(k, 4)
        gamma = jax.random.uniform(k1, (c,), jnp.float32, 0.5, 1.5)
        beta = 0.1 * jax.random.normal(k2, (c,), jnp.float32)
        mean = 0.1 * jax.random.normal(k3, (c,), jnp.float32)
        var = jax.random.uniform(k4, (c,), jnp.float32, 0.5, 1.5)
        return (gamma, beta, mean, var)

    C_WS = NUM_1X1_C + 2 * INC
    ig = NUM_1X1_A // GROUPS
    og = NUM_3X3_B // GROUPS

    params = {
        "bn_w": bn(ks[0], IN_CHS),
        "w_proj": 0.1 * jax.random.normal(ks[1], (IN_CHS, C_WS), jnp.float32),
        "bn_a": bn(ks[2], IN_CHS),
        "w_a": 0.1 * jax.random.normal(ks[3], (IN_CHS, NUM_1X1_A), jnp.float32),
        "bn_b": bn(ks[4], NUM_1X1_A),
        # grouped 3x3 weight in (kh, kw, group, in_per_group, out_per_group) form
        "w_b_grouped": 0.1 * jax.random.normal(
            ks[5], (3, 3, GROUPS, ig, og), jnp.float32),
        "bn_c": bn(ks[6], NUM_3X3_B),
        "w_c": 0.1 * jax.random.normal(ks[7], (NUM_3X3_B, NUM_1X1_C + INC), jnp.float32),
    }

    # Block-diagonal (Ca, Cb) per-tap weights for the kernel (grouping baked in).
    wb_bd = jnp.zeros((3, 3, NUM_1X1_A, NUM_3X3_B), jnp.float32)
    for g in range(GROUPS):
        wb_bd = wb_bd.at[:, :, g * ig:(g + 1) * ig, g * og:(g + 1) * og].set(
            params["w_b_grouped"][:, :, g])
    params["w_b_blockdiag"] = wb_bd.reshape(9, NUM_1X1_A, NUM_3X3_B)

    # HWIO form for the lax.conv reference (feature_group_count).
    params["w_b_hwio"] = jnp.transpose(
        params["w_b_grouped"], (0, 1, 3, 2, 4)).reshape(3, 3, ig, NUM_3X3_B)
    return params


def reference_forward(x_nchw, params):
    """Pure-JAX (f32, HIGHEST precision) reference of DualPathBlock('proj', b=False)."""
    hp = lax.Precision.HIGHEST
    x = jnp.transpose(x_nchw, (0, 2, 3, 1)).astype(jnp.float32)

    def bn_relu(v, p):
        gamma, beta, mean, var = p
        return jnp.maximum((v - mean) / jnp.sqrt(var + EPS) * gamma + beta, 0.0)

    y = bn_relu(x, params["bn_w"])
    x_s = jnp.einsum("nhwc,cd->nhwd", y, params["w_proj"], precision=hp)
    x_s1, x_s2 = x_s[..., :NUM_1X1_C], x_s[..., NUM_1X1_C:]

    y = bn_relu(x, params["bn_a"])
    a = jnp.einsum("nhwc,cd->nhwd", y, params["w_a"], precision=hp)

    z = bn_relu(a, params["bn_b"])
    conv = lax.conv_general_dilated(
        z, params["w_b_hwio"], window_strides=(1, 1), padding=((1, 1), (1, 1)),
        dimension_numbers=("NHWC", "HWIO", "NHWC"),
        feature_group_count=GROUPS, precision=hp)

    z = bn_relu(conv, params["bn_c"])
    c = jnp.einsum("nhwc,cd->nhwd", z, params["w_c"], precision=hp)
    out1, out2 = c[..., :NUM_1X1_C], c[..., NUM_1X1_C:]

    resid = x_s1 + out1
    dense = jnp.concatenate([x_s2, out2], axis=-1)
    return (jnp.transpose(resid, (0, 3, 1, 2)),
            jnp.transpose(dense, (0, 3, 1, 2)))


if __name__ == "__main__":
    key = jax.random.PRNGKey(0)
    kx, kp = jax.random.split(key)
    # PyTorch-convention NCHW input: batch=4, channels=IN_CHS, spatial 16x16.
    # Auto block_n -> nb=2: 512 rows per grid step, grid=(2,) (both v7x TCs busy).
    x = jax.random.normal(kx, (4, IN_CHS, 16, 16), jnp.float32)
    params = init_params(kp)

    resid, dense = dual_path_block_proj(x, params)
    resid, dense = jax.block_until_ready((resid, dense))

    r_ref, d_ref = reference_forward(x, params)
    # bf16 MXU operands + bf16 packed output (f32 accumulation) -> looser tolerance.
    np.testing.assert_allclose(np.asarray(resid), np.asarray(r_ref), rtol=2e-2, atol=2e-2)
    np.testing.assert_allclose(np.asarray(dense), np.asarray(d_ref), rtol=2e-2, atol=2e-2)

    print("KERNEL_OK")
</pallas_src>

<mosaic_0001>
module attributes {stable_mosaic.version = 11 : i64} {
  func.func @_dpn_kernel(%arg0: i32, %arg1: memref<2x16x16x32xf32, #tpu.memory_space<vmem>>, %arg2: memref<1x32xf32, #tpu.memory_space<vmem>>, %arg3: memref<1x32xf32, #tpu.memory_space<vmem>>, %arg4: memref<1x32xf32, #tpu.memory_space<vmem>>, %arg5: memref<1x32xf32, #tpu.memory_space<vmem>>, %arg6: memref<1x32xf32, #tpu.memory_space<vmem>>, %arg7: memref<1x32xf32, #tpu.memory_space<vmem>>, %arg8: memref<32x32xbf16, #tpu.memory_space<vmem>>, %arg9: memref<288x32xbf16, #tpu.memory_space<vmem>>, %arg10: memref<64x128xbf16, #tpu.memory_space<vmem>>, %arg11: memref<2x16x16x128xbf16, #tpu.memory_space<vmem>>, %arg12: memref<2x18x18x32xbf16, #tpu.memory_space<vmem>>, %arg13: memref<512x288xbf16, #tpu.memory_space<vmem>>) attributes {dimension_semantics = [#tpu.dimension_semantics<parallel>], iteration_bounds = array<i64: 2>, scalar_prefetch = 0 : i64, scratch_operands = 2 : i64, tpu.core_type = #tpu.core_type<tc>, window_params = [{transform_indices = @transform_0, window_bounds = array<i64: 2, 16, 16, 32>}, {pipeline_mode = #tpu.pipeline_mode<synchronous>, transform_indices = @transform_1, window_bounds = array<i64: 1, 32>}, {pipeline_mode = #tpu.pipeline_mode<synchronous>, transform_indices = @transform_2, window_bounds = array<i64: 1, 32>}, {pipeline_mode = #tpu.pipeline_mode<synchronous>, transform_indices = @transform_3, window_bounds = array<i64: 1, 32>}, {pipeline_mode = #tpu.pipeline_mode<synchronous>, transform_indices = @transform_4, window_bounds = array<i64: 1, 32>}, {pipeline_mode = #tpu.pipeline_mode<synchronous>, transform_indices = @transform_5, window_bounds = array<i64: 1, 32>}, {pipeline_mode = #tpu.pipeline_mode<synchronous>, transform_indices = @transform_6, window_bounds = array<i64: 1, 32>}, {pipeline_mode = #tpu.pipeline_mode<synchronous>, transform_indices = @transform_7, window_bounds = array<i64: 32, 32>}, {pipeline_mode = #tpu.pipeline_mode<synchronous>, transform_indices = @transform_8, window_bounds = array<i64: 288, 32>}, {pipeline_mode = #tpu.pipeline_mode<synchronous>, transform_indices = @transform_9, window_bounds = array<i64: 64, 128>}, {transform_indices = @transform_10, window_bounds = array<i64: 2, 16, 16, 128>}]} {
    %c0 = arith.constant 0 : index
    %c0_0 = arith.constant 0 : index
    %c0_1 = arith.constant 0 : index
    %c0_2 = arith.constant 0 : index
    %0 = vector.load %arg1[%c0, %c0_0, %c0_1, %c0_2] : memref<2x16x16x32xf32, #tpu.memory_space<vmem>>, vector<2x16x16x32xf32>
    %1 = vector.shape_cast %0 : vector<2x16x16x32xf32> to vector<512x32xf32>
    %c0_3 = arith.constant 0 : index
    %c0_4 = arith.constant 0 : index
    %2 = vector.load %arg2[%c0_3, %c0_4] : memref<1x32xf32, #tpu.memory_space<vmem>>, vector<1x32xf32>
    %3 = vector.broadcast %2 : vector<1x32xf32> to vector<512x32xf32>
    %4 = arith.mulf %1, %3 : vector<512x32xf32>
    %c0_5 = arith.constant 0 : index
    %c0_6 = arith.constant 0 : index
    %5 = vector.load %arg3[%c0_5, %c0_6] : memref<1x32xf32, #tpu.memory_space<vmem>>, vector<1x32xf32>
    %6 = vector.broadcast %5 : vector<1x32xf32> to vector<512x32xf32>
    %7 = arith.addf %4, %6 : vector<512x32xf32>
    %cst = arith.constant 0.000000e+00 : f32
    %8 = vector.broadcast %cst : f32 to vector<512x32xf32>
    %9 = arith.maximumf %7, %8 : vector<512x32xf32>
    %10 = arith.truncf %9 : vector<512x32xf32> to vector<512x32xbf16>
    %c0_7 = arith.constant 0 : index
    %c0_8 = arith.constant 0 : index
    %11 = vector.load %arg4[%c0_7, %c0_8] : memref<1x32xf32, #tpu.memory_space<vmem>>, vector<1x32xf32>
    %12 = vector.broadcast %11 : vector<1x32xf32> to vector<512x32xf32>
    %13 = arith.mulf %1, %12 : vector<512x32xf32>
    %c0_9 = arith.constant 0 : index
    %c0_10 = arith.constant 0 : index
    %14 = vector.load %arg5[%c0_9, %c0_10] : memref<1x32xf32, #tpu.memory_space<vmem>>, vector<1x32xf32>
    %15 = vector.broadcast %14 : vector<1x32xf32> to vector<512x32xf32>
    %16 = arith.addf %13, %15 : vector<512x32xf32>
    %cst_11 = arith.constant 0.000000e+00 : f32
    %17 = vector.broadcast %cst_11 : f32 to vector<512x32xf32>
    %18 = arith.maximumf %16, %17 : vector<512x32xf32>
    %19 = arith.truncf %18 : vector<512x32xf32> to vector<512x32xbf16>
    %c0_12 = arith.constant 0 : index
    %c0_13 = arith.constant 0 : index
    %20 = vector.load %arg8[%c0_12, %c0_13] : memref<32x32xbf16, #tpu.memory_space<vmem>>, vector<32x32xbf16>
    %cst_14 = arith.constant dense<0.000000e+00> : vector<512x32xf32>
    %21 = tpu.matmul %19, %20, %cst_14 {dimension_numbers = #tpu.dot_dimension_numbers<[1], [0], [0], [1], [0, 0, 1, 1], [], []>} : vector<512x32xbf16>, vector<32x32xbf16>, vector<512x32xf32> -> vector<512x32xf32>
    %c0_15 = arith.constant 0 : index
    %c0_16 = arith.constant 0 : index
    %22 = vector.load %arg6[%c0_15, %c0_16] : memref<1x32xf32, #tpu.memory_space<vmem>>, vector<1x32xf32>
    %23 = vector.broadcast %22 : vector<1x32xf32> to vector<512x32xf32>
    %24 = arith.addf %21, %23 : vector<512x32xf32>
    %cst_17 = arith.constant 0.000000e+00 : f32
    %25 = vector.broadcast %cst_17 : f32 to vector<512x32xf32>
    %26 = arith.maximumf %24, %25 : vector<512x32xf32>
    %27 = arith.truncf %26 : vector<512x32xf32> to vector<512x32xbf16>
    %cst_18 = arith.constant 0.000000e+00 : bf16
    %28 = vector.broadcast %cst_18 : bf16 to vector<2x1x18x32xbf16>
    %c0_19 = arith.constant 0 : index
    %c0_20 = arith.constant 0 : index
    %c0_21 = arith.constant 0 : index
    %c0_22 = arith.constant 0 : index
    %29 = vector.load %arg12[%c0_19, %c0_20, %c0_21, %c0_22] : memref<2x18x18x32xbf16, #tpu.memory_space<vmem>>, vector<2x1x18x32xbf16>
    tpu.vector_store %arg12[%c0_19, %c0_20, %c0_21, %c0_22], %28 {strides = array<i32>} : memref<2x18x18x32xbf16, #tpu.memory_space<vmem>>, vector<2x1x18x32xbf16>,
    %cst_23 = arith.constant 0.000000e+00 : bf16
    %30 = vector.broadcast %cst_23 : bf16 to vector<2x1x18x32xbf16>
    %c0_24 = arith.constant 0 : index
    %c17 = arith.constant 17 : index
    %c0_25 = arith.constant 0 : index
    %c0_26 = arith.constant 0 : index
    %31 = vector.load %arg12[%c0_24, %c17, %c0_25, %c0_26] : memref<2x18x18x32xbf16, #tpu.memory_space<vmem>>, vector<2x1x18x32xbf16>
    tpu.vector_store %arg12[%c0_24, %c17, %c0_25, %c0_26], %30 {strides = array<i32>} : memref<2x18x18x32xbf16, #tpu.memory_space<vmem>>, vector<2x1x18x32xbf16>,
    %cst_27 = arith.constant 0.000000e+00 : bf16
    %32 = vector.broadcast %cst_27 : bf16 to vector<2x18x1x32xbf16>
    %c0_28 = arith.constant 0 : index
    %c0_29 = arith.constant 0 : index
    %c0_30 = arith.constant 0 : index
    %c0_31 = arith.constant 0 : index
    %33 = vector.load %arg12[%c0_28, %c0_29, %c0_30, %c0_31] : memref<2x18x18x32xbf16, #tpu.memory_space<vmem>>, vector<2x18x1x32xbf16>
    tpu.vector_store %arg12[%c0_28, %c0_29, %c0_30, %c0_31], %32 {strides = array<i32>} : memref<2x18x18x32xbf16, #tpu.memory_space<vmem>>, vector<2x18x1x32xbf16>,
    %cst_32 = arith.constant 0.000000e+00 : bf16
    %34 = vector.broadcast %cst_32 : bf16 to vector<2x18x1x32xbf16>
    %c0_33 = arith.constant 0 : index
    %c0_34 = arith.constant 0 : index
    %c17_35 = arith.constant 17 : index
    %c0_36 = arith.constant 0 : index
    %35 = vector.load %arg12[%c0_33, %c0_34, %c17_35, %c0_36] : memref<2x18x18x32xbf16, #tpu.memory_space<vmem>>, vector<2x18x1x32xbf16>
    tpu.vector_store %arg12[%c0_33, %c0_34, %c17_35, %c0_36], %34 {strides = array<i32>} : memref<2x18x18x32xbf16, #tpu.memory_space<vmem>>, vector<2x18x1x32xbf16>,
    %36 = vector.shape_cast %27 : vector<512x32xbf16> to vector<2x16x16x32xbf16>
    %c0_37 = arith.constant 0 : index
    %c1 = arith.constant 1 : index
    %c1_38 = arith.constant 1 : index
    %c0_39 = arith.constant 0 : index
    %37 = vector.load %arg12[%c0_37, %c1, %c1_38, %c0_39] : memref<2x18x18x32xbf16, #tpu.memory_space<vmem>>, vector<2x16x16x32xbf16>
    tpu.vector_store %arg12[%c0_37, %c1, %c1_38, %c0_39], %36 {strides = array<i32>} : memref<2x18x18x32xbf16, #tpu.memory_space<vmem>>, vector<2x16x16x32xbf16>,
    %c0_40 = arith.constant 0 : index
    %c0_41 = arith.constant 0 : index
    %c0_42 = arith.constant 0 : index
    %c0_43 = arith.constant 0 : index
    %38 = vector.load %arg12[%c0_40, %c0_41, %c0_42, %c0_43] : memref<2x18x18x32xbf16, #tpu.memory_space<vmem>>, vector<2x16x16x32xbf16>
    %39 = vector.shape_cast %38 : vector<2x16x16x32xbf16> to vector<512x32xbf16>
    %c0_44 = arith.constant 0 : index
    %c0_45 = arith.constant 0 : index
    %40 = vector.load %arg13[%c0_44, %c0_45] : memref<512x288xbf16, #tpu.memory_space<vmem>>, vector<512x32xbf16>
    tpu.vector_store %arg13[%c0_44, %c0_45], %39 {strides = array<i32>} : memref<512x288xbf16, #tpu.memory_space<vmem>>, vector<512x32xbf16>,
    %c0_46 = arith.constant 0 : index
    %c0_47 = arith.constant 0 : index
    %c1_48 = arith.constant 1 : index
    %c0_49 = arith.constant 0 : index
    %41 = vector.load %arg12[%c0_46, %c0_47, %c1_48, %c0_49] : memref<2x18x18x32xbf16, #tpu.memory_space<vmem>>, vector<2x16x16x32xbf16>
    %42 = vector.shape_cast %41 : vector<2x16x16x32xbf16> to vector<512x32xbf16>
    %c0_50 = arith.constant 0 : index
    %c32 = arith.constant 32 : index
    %43 = vector.load %arg13[%c0_50, %c32] : memref<512x288xbf16, #tpu.memory_space<vmem>>, vector<512x32xbf16>
    tpu.vector_store %arg13[%c0_50, %c32], %42 {strides = array<i32>} : memref<512x288xbf16, #tpu.memory_space<vmem>>, vector<512x32xbf16>,
    %c0_51 = arith.constant 0 : index
    %c0_52 = arith.constant 0 : index
    %c2 = arith.constant 2 : index
    %c0_53 = arith.constant 0 : index
    %44 = vector.load %arg12[%c0_51, %c0_52, %c2, %c0_53] : memref<2x18x18x32xbf16, #tpu.memory_space<vmem>>, vector<2x16x16x32xbf16>
    %45 = vector.shape_cast %44 : vector<2x16x16x32xbf16> to vector<512x32xbf16>
    %c0_54 = arith.constant 0 : index
    %c64 = arith.constant 64 : index
    %46 = vector.load %arg13[%c0_54, %c64] : memref<512x288xbf16, #tpu.memory_space<vmem>>, vector<512x32xbf16>
    tpu.vector_store %arg13[%c0_54, %c64], %45 {strides = array<i32>} : memref<512x288xbf16, #tpu.memory_space<vmem>>, vector<512x32xbf16>,
    %c0_55 = arith.constant 0 : index
    %c1_56 = arith.constant 1 : index
    %c0_57 = arith.constant 0 : index
    %c0_58 = arith.constant 0 : index
    %47 = vector.load %arg12[%c0_55, %c1_56, %c0_57, %c0_58] : memref<2x18x18x32xbf16, #tpu.memory_space<vmem>>, vector<2x16x16x32xbf16>
    %48 = vector.shape_cast %47 : vector<2x16x16x32xbf16> to vector<512x32xbf16>
    %c0_59 = arith.constant 0 : index
    %c96 = arith.constant 96 : index
    %49 = vector.load %arg13[%c0_59, %c96] : memref<512x288xbf16, #tpu.memory_space<vmem>>, vector<512x32xbf16>
    tpu.vector_store %arg13[%c0_59, %c96], %48 {strides = array<i32>} : memref<512x288xbf16, #tpu.memory_space<vmem>>, vector<512x32xbf16>,
    %c0_60 = arith.constant 0 : index
    %c1_61 = arith.constant 1 : index
    %c1_62 = arith.constant 1 : index
    %c0_63 = arith.constant 0 : index
    %50 = vector.load %arg12[%c0_60, %c1_61, %c1_62, %c0_63] : memref<2x18x18x32xbf16, #tpu.memory_space<vmem>>, vector<2x16x16x32xbf16>
    %51 = vector.shape_cast %50 : vector<2x16x16x32xbf16> to vector<512x32xbf16>
    %c0_64 = arith.constant 0 : index
    %c128 = arith.constant 128 : index
    %52 = vector.load %arg13[%c0_64, %c128] : memref<512x288xbf16, #tpu.memory_space<vmem>>, vector<512x32xbf16>
    tpu.vector_store %arg13[%c0_64, %c128], %51 {strides = array<i32>} : memref<512x288xbf16, #tpu.memory_space<vmem>>, vector<512x32xbf16>,
    %c0_65 = arith.constant 0 : index
    %c1_66 = arith.constant 1 : index
    %c2_67 = arith.constant 2 : index
    %c0_68 = arith.constant 0 : index
    %53 = vector.load %arg12[%c0_65, %c1_66, %c2_67, %c0_68] : memref<2x18x18x32xbf16, #tpu.memory_space<vmem>>, vector<2x16x16x32xbf16>
    %54 = vector.shape_cast %53 : vector<2x16x16x32xbf16> to vector<512x32xbf16>
    %c0_69 = arith.constant 0 : index
    %c160 = arith.constant 160 : index
    %55 = vector.load %arg13[%c0_69, %c160] : memref<512x288xbf16, #tpu.memory_space<vmem>>, vector<512x32xbf16>
    tpu.vector_store %arg13[%c0_69, %c160], %54 {strides = array<i32>} : memref<512x288xbf16, #tpu.memory_space<vmem>>, vector<512x32xbf16>,
    %c0_70 = arith.constant 0 : index
    %c2_71 = arith.constant 2 : index
    %c0_72 = arith.constant 0 : index
    %c0_73 = arith.constant 0 : index
    %56 = vector.load %arg12[%c0_70, %c2_71, %c0_72, %c0_73] : memref<2x18x18x32xbf16, #tpu.memory_space<vmem>>, vector<2x16x16x32xbf16>
    %57 = vector.shape_cast %56 : vector<2x16x16x32xbf16> to vector<512x32xbf16>
    %c0_74 = arith.constant 0 : index
    %c192 = arith.constant 192 : index
    %58 = vector.load %arg13[%c0_74, %c192] : memref<512x288xbf16, #tpu.memory_space<vmem>>, vector<512x32xbf16>
    tpu.vector_store %arg13[%c0_74, %c192], %57 {strides = array<i32>} : memref<512x288xbf16, #tpu.memory_space<vmem>>, vector<512x32xbf16>,
    %c0_75 = arith.constant 0 : index
    %c2_76 = arith.constant 2 : index
    %c1_77 = arith.constant 1 : index
    %c0_78 = arith.constant 0 : index
    %59 = vector.load %arg12[%c0_75, %c2_76, %c1_77, %c0_78] : memref<2x18x18x32xbf16, #tpu.memory_space<vmem>>, vector<2x16x16x32xbf16>
    %60 = vector.shape_cast %59 : vector<2x16x16x32xbf16> to vector<512x32xbf16>
    %c0_79 = arith.constant 0 : index
    %c224 = arith.constant 224 : index
    %61 = vector.load %arg13[%c0_79, %c224] : memref<512x288xbf16, #tpu.memory_space<vmem>>, vector<512x32xbf16>
    tpu.vector_store %arg13[%c0_79, %c224], %60 {strides = array<i32>} : memref<512x288xbf16, #tpu.memory_space<vmem>>, vector<512x32xbf16>,
    %c0_80 = arith.constant 0 : index
    %c2_81 = arith.constant 2 : index
    %c2_82 = arith.constant 2 : index
    %c0_83 = arith.constant 0 : index
    %62 = vector.load %arg12[%c0_80, %c2_81, %c2_82, %c0_83] : memref<2x18x18x32xbf16, #tpu.memory_space<vmem>>, vector<2x16x16x32xbf16>
    %63 = vector.shape_cast %62 : vector<2x16x16x32xbf16> to vector<512x32xbf16>
    %c0_84 = arith.constant 0 : index
    %c256 = arith.constant 256 : index
    %64 = vector.load %arg13[%c0_84, %c256] : memref<512x288xbf16, #tpu.memory_space<vmem>>, vector<512x32xbf16>
    tpu.vector_store %arg13[%c0_84, %c256], %63 {strides = array<i32>} : memref<512x288xbf16, #tpu.memory_space<vmem>>, vector<512x32xbf16>,
    %c0_85 = arith.constant 0 : index
    %c0_86 = arith.constant 0 : index
    %65 = vector.load %arg13[%c0_85, %c0_86] : memref<512x288xbf16, #tpu.memory_space<vmem>>, vector<512x288xbf16>
    %c0_87 = arith.constant 0 : index
    %c0_88 = arith.constant 0 : index
    %66 = vector.load %arg9[%c0_87, %c0_88] : memref<288x32xbf16, #tpu.memory_space<vmem>>, vector<288x32xbf16>
    %cst_89 = arith.constant dense<0.000000e+00> : vector<512x32xf32>
    %67 = tpu.matmul %65, %66, %cst_89 {dimension_numbers = #tpu.dot_dimension_numbers<[1], [0], [0], [1], [0, 0, 1, 1], [], []>} : vector<512x288xbf16>, vector<288x32xbf16>, vector<512x32xf32> -> vector<512x32xf32>
    %c0_90 = arith.constant 0 : index
    %c0_91 = arith.constant 0 : index
    %68 = vector.load %arg7[%c0_90, %c0_91] : memref<1x32xf32, #tpu.memory_space<vmem>>, vector<1x32xf32>
    %69 = vector.broadcast %68 : vector<1x32xf32> to vector<512x32xf32>
    %70 = arith.addf %67, %69 : vector<512x32xf32>
    %cst_92 = arith.constant 0.000000e+00 : f32
    %71 = vector.broadcast %cst_92 : f32 to vector<512x32xf32>
    %72 = arith.maximumf %70, %71 : vector<512x32xf32>
    %73 = arith.truncf %72 : vector<512x32xf32> to vector<512x32xbf16>
    %74 = tpu.concatenate %10, %73 in 1 : vector<512x32xbf16>, vector<512x32xbf16> -> vector<512x64xbf16>
    %c0_93 = arith.constant 0 : index
    %c0_94 = arith.constant 0 : index
    %75 = vector.load %arg10[%c0_93, %c0_94] : memref<64x128xbf16, #tpu.memory_space<vmem>>, vector<64x128xbf16>
    %cst_95 = arith.constant dense<0.000000e+00> : vector<512x128xf32>
    %76 = tpu.matmul %74, %75, %cst_95 {dimension_numbers = #tpu.dot_dimension_numbers<[1], [0], [0], [1], [0, 0, 1, 1], [], []>} : vector<512x64xbf16>, vector<64x128xbf16>, vector<512x128xf32> -> vector<512x128xf32>
    %77 = vector.shape_cast %76 : vector<512x128xf32> to vector<2x16x16x128xf32>
    %78 = arith.truncf %77 : vector<2x16x16x128xf32> to vector<2x16x16x128xbf16>
    %c0_96 = arith.constant 0 : index
    %c0_97 = arith.constant 0 : index
    %c0_98 = arith.constant 0 : index
    %c0_99 = arith.constant 0 : index
    %79 = vector.load %arg11[%c0_96, %c0_97, %c0_98, %c0_99] : memref<2x16x16x128xbf16, #tpu.memory_space<vmem>>, vector<2x16x16x128xbf16>
    tpu.vector_store %arg11[%c0_96, %c0_97, %c0_98, %c0_99], %78 {strides = array<i32>} : memref<2x16x16x128xbf16, #tpu.memory_space<vmem>>, vector<2x16x16x128xbf16>,
    return
  }
  func.func @transform_0(%arg0: i32) -> (i32, i32, i32, i32) {
    %c0_i32 = arith.constant 0 : i32
    %c0_i32_0 = arith.constant 0 : i32
    %c0_i32_1 = arith.constant 0 : i32
    %c0_i32_2 = arith.constant 0 : i32
    return %arg0, %c0_i32, %c0_i32_0, %c0_i32_1 : i32, i32, i32, i32
  }
  func.func @transform_1(%arg0: i32) -> (i32, i32) {
    %c0_i32 = arith.constant 0 : i32
    %c0_i32_0 = arith.constant 0 : i32
    %c0_i32_1 = arith.constant 0 : i32
    return %c0_i32, %c0_i32_0 : i32, i32
  }
  func.func @transform_2(%arg0: i32) -> (i32, i32) {
    %c0_i32 = arith.constant 0 : i32
    %c0_i32_0 = arith.constant 0 : i32
    %c0_i32_1 = arith.constant 0 : i32
    return %c0_i32, %c0_i32_0 : i32, i32
  }
  func.func @transform_3(%arg0: i32) -> (i32, i32) {
    %c0_i32 = arith.constant 0 : i32
    %c0_i32_0 = arith.constant 0 : i32
    %c0_i32_1 = arith.constant 0 : i32
    return %c0_i32, %c0_i32_0 : i32, i32
  }
  func.func @transform_4(%arg0: i32) -> (i32, i32) {
    %c0_i32 = arith.constant 0 : i32
    %c0_i32_0 = arith.constant 0 : i32
    %c0_i32_1 = arith.constant 0 : i32
    return %c0_i32, %c0_i32_0 : i32, i32
  }
  func.func @transform_5(%arg0: i32) -> (i32, i32) {
    %c0_i32 = arith.constant 0 : i32
    %c0_i32_0 = arith.constant 0 : i32
    %c0_i32_1 = arith.constant 0 : i32
    return %c0_i32, %c0_i32_0 : i32, i32
  }
  func.func @transform_6(%arg0: i32) -> (i32, i32) {
    %c0_i32 = arith.constant 0 : i32
    %c0_i32_0 = arith.constant 0 : i32
    %c0_i32_1 = arith.constant 0 : i32
    return %c0_i32, %c0_i32_0 : i32, i32
  }
  func.func @transform_7(%arg0: i32) -> (i32, i32) {
    %c0_i32 = arith.constant 0 : i32
    %c0_i32_0 = arith.constant 0 : i32
    %c0_i32_1 = arith.constant 0 : i32
    return %c0_i32, %c0_i32_0 : i32, i32
  }
  func.func @transform_8(%arg0: i32) -> (i32, i32) {
    %c0_i32 = arith.constant 0 : i32
    %c0_i32_0 = arith.constant 0 : i32
    %c0_i32_1 = arith.constant 0 : i32
    return %c0_i32, %c0_i32_0 : i32, i32
  }
  func.func @transform_9(%arg0: i32) -> (i32, i32) {
    %c0_i32 = arith.constant 0 : i32
    %c0_i32_0 = arith.constant 0 : i32
    %c0_i32_1 = arith.constant 0 : i32
    return %c0_i32, %c0_i32_0 : i32, i32
  }
  func.func @transform_10(%arg0: i32) -> (i32, i32, i32, i32) {
    %c0_i32 = arith.constant 0 : i32
    %c0_i32_0 = arith.constant 0 : i32
    %c0_i32_1 = arith.constant 0 : i32
    %c0_i32_2 = arith.constant 0 : i32
    return %arg0, %c0_i32, %c0_i32_0, %c0_i32_1 : i32, i32, i32, i32
  }
}

</mosaic_0001>

<llo_original>
// kernel: tpu_custom_call.1
$region0: #{tpu_custom_call.1}
  #allocation0 [shape = 'u32[]', space=smem, size = 0x4, offset = 0x4, fixed_abs, tag = 'smem constant byte address 0x4 - core index']
  #allocation1 [shape = 'u32[72,128]{1,0:T(1,128)}', space=vmem, size = 0x9000, scoped, tag = 'internal scratch']
  #allocation2 [shape = 'bf16[2,18,18,32]{3,2,1,0:T(8,128)(2,1)}', space=vmem, size = 0x36000, scoped, tag = 'scratch operand']
  #allocation3 [shape = 'bf16[512,288]{1,0:T(8,128)(2,1)}', space=vmem, size = 0x60000, scoped, tag = 'scratch operand']
  %s0 = inlined_call_operand.hbm [shape: f32[4,16,16,32], index: 0, kind: input, shape index: {}]
  %s1 = inlined_call_operand.vmem [shape: f32[1,32], index: 1, kind: input, shape index: {}]
  %s2 = inlined_call_operand.vmem [shape: f32[1,32], index: 2, kind: input, shape index: {}]
  %s3 = inlined_call_operand.vmem [shape: f32[1,32], index: 3, kind: input, shape index: {}]
  %s4 = inlined_call_operand.vmem [shape: f32[1,32], index: 4, kind: input, shape index: {}]
  %s5 = inlined_call_operand.vmem [shape: f32[1,32], index: 5, kind: input, shape index: {}]
  %s6 = inlined_call_operand.vmem [shape: f32[1,32], index: 6, kind: input, shape index: {}]
  %s7 = inlined_call_operand.vmem [shape: bf16[32,32], index: 7, kind: input, shape index: {}]
  %s8 = inlined_call_operand.vmem [shape: bf16[288,32], index: 8, kind: input, shape index: {}]
  %s9 = inlined_call_operand.vmem [shape: bf16[64,128], index: 9, kind: input, shape index: {}]
  %s10 = inlined_call_operand.hbm [shape: bf16[4,16,16,128], index: 10, kind: output, shape index: {}]
  %s11 = sld [smem:[#allocation0]]
  $region77: #{tpu_custom_call.1} parent=0
    _
  %s13 = ssub.s32 1, %s11
  %s14 = scalar_select 0, %s13, %s11
  $region1: #{tpu_custom_call.1} parent=0
    #allocation4 [shape = 'u8[524288]{0}', space=vmem, size = 0x80000, scoped, tag = 'input window, operand 0']
    #allocation5 [shape = 's32[2]{0}', space=sflag, size = 0x8, scoped, tag = 'scoped memory for tpu_custom_call.1']
    #allocation6 [shape = 's32[2]{0}', space=sflag, size = 0x8, scoped, tag = 'scoped memory for tpu_custom_call.1']
    #allocation7 [shape = 'u8[262144]{0}', space=vmem, size = 0x40000, scoped, tag = 'output window, operand 0']
    %15 = vsyncpa [#allocation5], 0
    %s16 = scalar_lea.sflag [#allocation5], 1
    %17 = vsyncpa %s16, 0
    %18 = vsyncpa [#allocation6], 0
    %s19 = scalar_lea.sflag [#allocation6], 1
    %20 = vsyncpa %s19, 0
    loop: start=0, step=1, limit=4
    $region2: #{tpu_custom_call.1} parent=1 // loop_pre_header
      _
    $region3: #{tpu_custom_call.1} parent=1 // loop_header
      %s22 = sphi 0, %s26
      %p23 = scmp.ge.s32.totalorder %s22, 4
      %s32 = sphi 0, %s34
      %s35 = sphi 0, %s32
      %s36 = sphi 0, %s35
      %s52 = sphi 0, %s36
      %s56 = sphi 0, %s56
      %s58 = sphi 0, %s56
      %s59 = sphi 0, %s58
      %s73 = sphi 0, %s59
      %s77 = sphi 0, %s77
      %s79 = sphi 0, %s77
      %s80 = sphi 0, %s79
      %s94 = sphi 0, %s80
      %s98 = sphi 0, %s98
      %s100 = sphi 0, %s98
      %s101 = sphi 0, %s100
      %s115 = sphi 0, %s101
      %s119 = sphi 0, %s119
      %s121 = sphi 0, %s119
      %s122 = sphi 0, %s121
      %s136 = sphi 0, %s122
      %s140 = sphi 0, %s140
      %s142 = sphi 0, %s140
      %s143 = sphi 0, %s142
      %s157 = sphi 0, %s143
      %s161 = sphi 0, %s161
      %s163 = sphi 0, %s161
      %s164 = sphi 0, %s163
      %s178 = sphi 0, %s164
      %s182 = sphi 0, %s182
      %s184 = sphi 0, %s182
      %s185 = sphi 0, %s184
      %s199 = sphi 0, %s185
      %s203 = sphi 0, %s203
      %s205 = sphi 0, %s203
      %s206 = sphi 0, %s205
      %s220 = sphi 0, %s206
      %s224 = sphi 0, %s224
      %s226 = sphi 0, %s224
      %s227 = sphi 0, %s226
      %s241 = sphi 0, %s227
      %s247 = sphi 0, %s249
      %s250 = sphi 0, %s247
      %s251 = sphi 0, %s250
      %s267 = sphi 0, %s251
    $region4: #{tpu_custom_call.1} parent=1 // loop_header_branch
      %25 = sbr.rel (%p23) target = $region8
    $region5: #{tpu_custom_call.1} parent=1 // loop_body
      %s27 = ssub.s32 %s22, 1
      %s28 = ssub.s32 %s22, 2
      %s29 = sadd.s32 %s22, 1
      %s30 = ssub.s32 %s22, %s29
      %p31 = scmp.eq.s32.totalorder %s30, 0
      %s33 = sadd.s32 %s32, 1
      %s34 = scalar_select %p31, %s32, %s33
      %p37 = pneg %p31
      %p38 = scmp.eq.s32.totalorder %s22, 1
      %p39 = por %p37, %p38
      %p40 = scmp.ne.s32.totalorder %s32, %s35
      %p41 = scmp.eq.s32.totalorder %s22, 0
      %p42 = por %p40, %p41
      %p43 = scmp.ne.s32.totalorder %s32, %s35
      %p44 = scmp.eq.s32.totalorder %s27, 1
      %p45 = por %p43, %p44
      %p46 = scmp.ne.s32.totalorder %s35, %s36
      %p47 = scmp.eq.s32.totalorder %s27, 0
      %p48 = por %p46, %p47
      %p49 = scmp.ne.s32.totalorder %s35, %s36
      %p50 = scmp.eq.s32.totalorder %s28, 1
      %p51 = por %p49, %p50
      %p53 = scmp.ne.s32.totalorder %s36, %s52
      %p54 = scmp.eq.s32.totalorder %s28, 0
      %p55 = por %p53, %p54
      %s57 = sadd.s32 %s56, 1
      %p60 = scmp.eq.s32.totalorder %s22, 1
      %p61 = scmp.ne.s32.totalorder %s56, %s58
      %p62 = scmp.eq.s32.totalorder %s22, 0
      %p63 = por %p61, %p62
      %p64 = scmp.ne.s32.totalorder %s56, %s58
      %p65 = scmp.eq.s32.totalorder %s27, 1
      %p66 = por %p64, %p65
      %p67 = scmp.ne.s32.totalorder %s58, %s59
      %p68 = scmp.eq.s32.totalorder %s27, 0
      %p69 = por %p67, %p68
      %p70 = scmp.ne.s32.totalorder %s58, %s59
      %p71 = scmp.eq.s32.totalorder %s28, 1
      %p72 = por %p70, %p71
      %p74 = scmp.ne.s32.totalorder %s59, %s73
      %p75 = scmp.eq.s32.totalorder %s28, 0
      %p76 = por %p74, %p75
      %s78 = sadd.s32 %s77, 1
      %p81 = scmp.eq.s32.totalorder %s22, 1
      %p82 = scmp.ne.s32.totalorder %s77, %s79
      %p83 = scmp.eq.s32.totalorder %s22, 0
      %p84 = por %p82, %p83
      %p85 = scmp.ne.s32.totalorder %s77, %s79
      %p86 = scmp.eq.s32.totalorder %s27, 1
      %p87 = por %p85, %p86
      %p88 = scmp.ne.s32.totalorder %s79, %s80
      %p89 = scmp.eq.s32.totalorder %s27, 0
      %p90 = por %p88, %p89
      %p91 = scmp.ne.s32.totalorder %s79, %s80
      %p92 = scmp.eq.s32.totalorder %s28, 1
      %p93 = por %p91, %p92
      %p95 = scmp.ne.s32.totalorder %s80, %s94
      %p96 = scmp.eq.s32.totalorder %s28, 0
      %p97 = por %p95, %p96
      %s99 = sadd.s32 %s98, 1
      %p102 = scmp.eq.s32.totalorder %s22, 1
      %p103 = scmp.ne.s32.totalorder %s98, %s100
      %p104 = scmp.eq.s32.totalorder %s22, 0
      %p105 = por %p103, %p104
      %p106 = scmp.ne.s32.totalorder %s98, %s100
      %p107 = scmp.eq.s32.totalorder %s27, 1
      %p108 = por %p106, %p107
      %p109 = scmp.ne.s32.totalorder %s100, %s101
      %p110 = scmp.eq.s32.totalorder %s27, 0
      %p111 = por %p109, %p110
      %p112 = scmp.ne.s32.totalorder %s100, %s101
      %p113 = scmp.eq.s32.totalorder %s28, 1
      %p114 = por %p112, %p113
      %p116 = scmp.ne.s32.totalorder %s101, %s115
      %p117 = scmp.eq.s32.totalorder %s28, 0
      %p118 = por %p116, %p117
      %s120 = sadd.s32 %s119, 1
      %p123 = scmp.eq.s32.totalorder %s22, 1
      %p124 = scmp.ne.s32.totalorder %s119, %s121
      %p125 = scmp.eq.s32.totalorder %s22, 0
      %p126 = por %p124, %p125
      %p127 = scmp.ne.s32.totalorder %s119, %s121
      %p128 = scmp.eq.s32.totalorder %s27, 1
      %p129 = por %p127, %p128
      %p130 = scmp.ne.s32.totalorder %s121, %s122
      %p131 = scmp.eq.s32.totalorder %s27, 0
      %p132 = por %p130, %p131
      %p133 = scmp.ne.s32.totalorder %s121, %s122
      %p134 = scmp.eq.s32.totalorder %s28, 1
      %p135 = por %p133, %p134
      %p137 = scmp.ne.s32.totalorder %s122, %s136
      %p138 = scmp.eq.s32.totalorder %s28, 0
      %p139 = por %p137, %p138
      %s141 = sadd.s32 %s140, 1
      %p144 = scmp.eq.s32.totalorder %s22, 1
      %p145 = scmp.ne.s32.totalorder %s140, %s142
      %p146 = scmp.eq.s32.totalorder %s22, 0
      %p147 = por %p145, %p146
      %p148 = scmp.ne.s32.totalorder %s140, %s142
      %p149 = scmp.eq.s32.totalorder %s27, 1
      %p150 = por %p148, %p149
      %p151 = scmp.ne.s32.totalorder %s142, %s143
      %p152 = scmp.eq.s32.totalorder %s27, 0
      %p153 = por %p151, %p152
      %p154 = scmp.ne.s32.totalorder %s142, %s143
      %p155 = scmp.eq.s32.totalorder %s28, 1
      %p156 = por %p154, %p155
      %p158 = scmp.ne.s32.totalorder %s143, %s157
      %p159 = scmp.eq.s32.totalorder %s28, 0
      %p160 = por %p158, %p159
      %s162 = sadd.s32 %s161, 1
      %p165 = scmp.eq.s32.totalorder %s22, 1
      %p166 = scmp.ne.s32.totalorder %s161, %s163
      %p167 = scmp.eq.s32.totalorder %s22, 0
      %p168 = por %p166, %p167
      %p169 = scmp.ne.s32.totalorder %s161, %s163
      %p170 = scmp.eq.s32.totalorder %s27, 1
      %p171 = por %p169, %p170
      %p172 = scmp.ne.s32.totalorder %s163, %s164
      %p173 = scmp.eq.s32.totalorder %s27, 0
      %p174 = por %p172, %p173
      %p175 = scmp.ne.s32.totalorder %s163, %s164
      %p176 = scmp.eq.s32.totalorder %s28, 1
      %p177 = por %p175, %p176
      %p179 = scmp.ne.s32.totalorder %s164, %s178
      %p180 = scmp.eq.s32.totalorder %s28, 0
      %p181 = por %p179, %p180
      %s183 = sadd.s32 %s182, 1
      %p186 = scmp.eq.s32.totalorder %s22, 1
      %p187 = scmp.ne.s32.totalorder %s182, %s184
      %p188 = scmp.eq.s32.totalorder %s22, 0
      %p189 = por %p187, %p188
      %p190 = scmp.ne.s32.totalorder %s182, %s184
      %p191 = scmp.eq.s32.totalorder %s27, 1
      %p192 = por %p190, %p191
      %p193 = scmp.ne.s32.totalorder %s184, %s185
      %p194 = scmp.eq.s32.totalorder %s27, 0
      %p195 = por %p193, %p194
      %p196 = scmp.ne.s32.totalorder %s184, %s185
      %p197 = scmp.eq.s32.totalorder %s28, 1
      %p198 = por %p196, %p197
      %p200 = scmp.ne.s32.totalorder %s185, %s199
      %p201 = scmp.eq.s32.totalorder %s28, 0
      %p202 = por %p200, %p201
      %s204 = sadd.s32 %s203, 1
      %p207 = scmp.eq.s32.totalorder %s22, 1
      %p208 = scmp.ne.s32.totalorder %s203, %s205
      %p209 = scmp.eq.s32.totalorder %s22, 0
      %p210 = por %p208, %p209
      %p211 = scmp.ne.s32.totalorder %s203, %s205
      %p212 = scmp.eq.s32.totalorder %s27, 1
      %p213 = por %p211, %p212
      %p214 = scmp.ne.s32.totalorder %s205, %s206
      %p215 = scmp.eq.s32.totalorder %s27, 0
      %p216 = por %p214, %p215
      %p217 = scmp.ne.s32.totalorder %s205, %s206
      %p218 = scmp.eq.s32.totalorder %s28, 1
      %p219 = por %p217, %p218
      %p221 = scmp.ne.s32.totalorder %s206, %s220
      %p222 = scmp.eq.s32.totalorder %s28, 0
      %p223 = por %p221, %p222
      %s225 = sadd.s32 %s224, 1
      %p228 = scmp.eq.s32.totalorder %s22, 1
      %p229 = scmp.ne.s32.totalorder %s224, %s226
      %p230 = scmp.eq.s32.totalorder %s22, 0
      %p231 = por %p229, %p230
      %p232 = scmp.ne.s32.totalorder %s224, %s226
      %p233 = scmp.eq.s32.totalorder %s27, 1
      %p234 = por %p232, %p233
      %p235 = scmp.ne.s32.totalorder %s226, %s227
      %p236 = scmp.eq.s32.totalorder %s27, 0
      %p237 = por %p235, %p236
      %p238 = scmp.ne.s32.totalorder %s226, %s227
      %p239 = scmp.eq.s32.totalorder %s28, 1
      %p240 = por %p238, %p239
      %p242 = scmp.ne.s32.totalorder %s227, %s241
      %p243 = scmp.eq.s32.totalorder %s28, 0
      %p244 = por %p242, %p243
      %s245 = ssub.s32 %s22, %s29
      %p246 = scmp.eq.s32.totalorder %s245, 0
      %s248 = sadd.s32 %s247, 1
      %s249 = scalar_select %p246, %s247, %s248
      %p252 = pneg %p246
      %p253 = scmp.eq.s32.totalorder %s22, 1
      %p254 = por %p252, %p253
      %p255 = scmp.ne.s32.totalorder %s247, %s250
      %p256 = scmp.eq.s32.totalorder %s22, 0
      %p257 = por %p255, %p256
      %p258 = scmp.ne.s32.totalorder %s247, %s250
      %p259 = scmp.eq.s32.totalorder %s27, 1
      %p260 = por %p258, %p259
      %p261 = scmp.ne.s32.totalorder %s250, %s251
      %p262 = scmp.eq.s32.totalorder %s27, 0
      %p263 = por %p261, %p262
      %p264 = scmp.ne.s32.totalorder %s250, %s251
      %p265 = scmp.eq.s32.totalorder %s28, 1
      %p266 = por %p264, %p265
      %p268 = scmp.ne.s32.totalorder %s251, %s267
      %p269 = scmp.eq.s32.totalorder %s28, 0
      %p270 = por %p268, %p269
      %p271 = scmp.le.s32.totalorder 1, %s22
      %p272 = scmp.lt.s32.totalorder %s22, 3
      %p273 = pnand %p271, %p272
      %p274 = pneg %p273
      // Predicated region
      $region9: #{tpu_custom_call.1} parent=5 // pred_check
        _
      $region10: #{tpu_custom_call.1} parent=5 // pred_check_branch
        %276 = sbr.rel (%p273) target = $region12
      $region11: #{tpu_custom_call.1} parent=5 // pred_region
        %s277 = ssub.s32 %s22, 1
        // Predicated region
        $region13: #{tpu_custom_call.1} parent=11 // pred_check
          %p278 = pneg %p69
        $region14: #{tpu_custom_call.1} parent=11 // pred_check_branch
          %280 = sbr.rel (%p278) target = $region16
        $region15: #{tpu_custom_call.1} parent=11 // pred_region
          _
        $region16: #{tpu_custom_call.1} parent=11 // pred_fallthru
          _
        // Predicated region
        $region17: #{tpu_custom_call.1} parent=11 // pred_check
          %p281 = pneg %p90
        $region18: #{tpu_custom_call.1} parent=11 // pred_check_branch
          %283 = sbr.rel (%p281) target = $region20
        $region19: #{tpu_custom_call.1} parent=11 // pred_region
          _
        $region20: #{tpu_custom_call.1} parent=11 // pred_fallthru
          _
        // Predicated region
        $region21: #{tpu_custom_call.1} parent=11 // pred_check
          %p284 = pneg %p111
        $region22: #{tpu_custom_call.1} parent=11 // pred_check_branch
          %286 = sbr.rel (%p284) target = $region24
        $region23: #{tpu_custom_call.1} parent=11 // pred_region
          _
        $region24: #{tpu_custom_call.1} parent=11 // pred_fallthru
          _
        // Predicated region
        $region25: #{tpu_custom_call.1} parent=11 // pred_check
          %p287 = pneg %p132
        $region26: #{tpu_custom_call.1} parent=11 // pred_check_branch
          %289 = sbr.rel (%p287) target = $region28
        $region27: #{tpu_custom_call.1} parent=11 // pred_region
          _
        $region28: #{tpu_custom_call.1} parent=11 // pred_fallthru
          _
        // Predicated region
        $region29: #{tpu_custom_call.1} parent=11 // pred_check
          %p290 = pneg %p153
        $region30: #{tpu_custom_call.1} parent=11 // pred_check_branch
          %292 = sbr.rel (%p290) target = $region32
        $region31: #{tpu_custom_call.1} parent=11 // pred_region
          _
        $region32: #{tpu_custom_call.1} parent=11 // pred_fallthru
          _
        // Predicated region
        $region33: #{tpu_custom_call.1} parent=11 // pred_check
          %p293 = pneg %p174
        $region34: #{tpu_custom_call.1} parent=11 // pred_check_branch
          %295 = sbr.rel (%p293) target = $region36
        $region35: #{tpu_custom_call.1} parent=11 // pred_region
          _
        $region36: #{tpu_custom_call.1} parent=11 // pred_fallthru
          _
        // Predicated region
        $region37: #{tpu_custom_call.1} parent=11 // pred_check
          %p296 = pneg %p195
        $region38: #{tpu_custom_call.1} parent=11 // pred_check_branch
          %298 = sbr.rel (%p296) target = $region40
        $region39: #{tpu_custom_call.1} parent=11 // pred_region
          _
        $region40: #{tpu_custom_call.1} parent=11 // pred_fallthru
          _
        // Predicated region
        $region41: #{tpu_custom_call.1} parent=11 // pred_check
          %p299 = pneg %p216
        $region42: #{tpu_custom_call.1} parent=11 // pred_check_branch
          %301 = sbr.rel (%p299) target = $region44
        $region43: #{tpu_custom_call.1} parent=11 // pred_region
          _
        $region44: #{tpu_custom_call.1} parent=11 // pred_fallthru
          _
        // Predicated region
        $region45: #{tpu_custom_call.1} parent=11 // pred_check
          %p302 = pneg %p237
        $region46: #{tpu_custom_call.1} parent=11 // pred_check_branch
          %304 = sbr.rel (%p302) target = $region48
        $region47: #{tpu_custom_call.1} parent=11 // pred_region
          _
        $region48: #{tpu_custom_call.1} parent=11 // pred_fallthru
          _
      $region12: #{tpu_custom_call.1} parent=5 // pred_fallthru
        _
      %p305 = scmp.lt.s32.totalorder %s22, 2
      // Predicated region
      $region49: #{tpu_custom_call.1} parent=5 // pred_check
        %p306 = pneg %p305
      $region50: #{tpu_custom_call.1} parent=5 // pred_check_branch
        %308 = sbr.rel (%p306) target = $region52
      $region51: #{tpu_custom_call.1} parent=5 // pred_region
        // Predicated region
        $region53: #{tpu_custom_call.1} parent=51 // pred_check
          %p309 = pneg %p42
        $region54: #{tpu_custom_call.1} parent=51 // pred_check_branch
          %311 = sbr.rel (%p309) target = $region56
        $region55: #{tpu_custom_call.1} parent=51 // pred_region
          %s312 = sand.u32 %s32, 1
          %s313 = scalar_lea.sflag [#allocation5], %s312
          %s314 = sand.u32 %s32, 1
          %s315 = smul.addr %s314, 512
          %s316 = scalar_lea.vmem [#allocation4], %s315
          %s317 = smul.u32 2, %s22
          %319 = vsyncadd %s313, 0
          %s320 = smul.addr %s317, 32
          %s321 = smul.addr %s320, 8
          %s322 = scalar_lea.hbm %s0, %s321
          %s323 = sshll.u32 %s322, 4
          %s324 = int_to_ptr.hbm [resolvable:$true] %s323
          %s325 = sshll.u32 %s316, 4
          %s326 = int_to_ptr.vmem [resolvable:$true] %s325
          %331 = dma.hbm_to_vmem [thread:$0]  %s324, 8192, %s326, %s313, 128, 128, 8
        $region56: #{tpu_custom_call.1} parent=51 // pred_fallthru
          _
      $region52: #{tpu_custom_call.1} parent=5 // pred_fallthru
        _
      %p332 = scmp.le.s32.totalorder 1, %s22
      %p333 = scmp.lt.s32.totalorder %s22, 3
      %p334 = pnand %p332, %p333
      %p335 = pneg %p334
      // Predicated region
      $region57: #{tpu_custom_call.1} parent=5 // pred_check
        _
      $region58: #{tpu_custom_call.1} parent=5 // pred_check_branch
        %337 = sbr.rel (%p334) target = $region60
      $region59: #{tpu_custom_call.1} parent=5 // pred_region
        %s338 = ssub.s32 %s22, 1
        %s339 = sand.u32 %s35, 1
        %s340 = scalar_lea.sflag [#allocation5], %s339
        %s341 = sand.u32 %s35, 1
        %s342 = smul.addr %s341, 512
        %s343 = scalar_lea.vmem [#allocation4], %s342
        // Predicated region
        $region61: #{tpu_custom_call.1} parent=59 // pred_check
          %p344 = pneg %p48
        $region62: #{tpu_custom_call.1} parent=59 // pred_check_branch
          %346 = sbr.rel (%p344) target = $region64
        $region63: #{tpu_custom_call.1} parent=59 // pred_region
          %348 = dma.done %s340, 8192
        $region64: #{tpu_custom_call.1} parent=59 // pred_fallthru
          _
        %s349 = sand.u32 %s35, 1
        %s350 = scalar_lea.sflag [#allocation5], %s349
        %s351 = sand.u32 %s35, 1
        %s352 = smul.addr %s351, 512
        %s353 = scalar_lea.vmem [#allocation4], %s352
        %p354 = pneg %p48
        %p355 = pneg %p45
        %p356 = pneg %p69
        %p357 = pneg %p66
        %p358 = pneg %p90
        %p359 = pneg %p87
        %p360 = pneg %p111
        %p361 = pneg %p108
        %p362 = pneg %p132
        %p363 = pneg %p129
        %p364 = pneg %p153
        %p365 = pneg %p150
        %p366 = pneg %p174
        %p367 = pneg %p171
        %p368 = pneg %p195
        %p369 = pneg %p192
        %p370 = pneg %p216
        %p371 = pneg %p213
        %p372 = pneg %p237
        %p373 = pneg %p234
        %p374 = pneg %p263
        %p375 = pneg %p260
        %s376 = sand.u32 %s250, 1
        %s377 = scalar_lea.sflag [#allocation6], %s376
        %s378 = sand.u32 %s250, 1
        %s379 = smul.addr %s378, 256
        %s380 = scalar_lea.vmem [#allocation7], %s379
        %s381 = smul.u32 2, %s27
        %s382 = smul.u32 2, %s27
        %v384 = vld [vmem:[%s343] sm:$0xff]
        %v385 = vld [vmem:[%s343 + $0x8] sm:$0xff]
        %v386 = vld [vmem:[%s343 + $0x10] sm:$0xff]
        %v387 = vld [vmem:[%s343 + $0x18] sm:$0xff]
        %v388 = vld [vmem:[%s343 + $0x20] sm:$0xff]
        %v389 = vld [vmem:[%s343 + $0x28] sm:$0xff]
        %v390 = vld [vmem:[%s343 + $0x30] sm:$0xff]
        %v391 = vld [vmem:[%s343 + $0x38] sm:$0xff]
        %v392 = vld [vmem:[%s343 + $0x40] sm:$0xff]
        %v393 = vld [vmem:[%s343 + $0x48] sm:$0xff]
        %v394 = vld [vmem:[%s343 + $0x50] sm:$0xff]
        %v395 = vld [vmem:[%s343 + $0x58] sm:$0xff]
        %v396 = vld [vmem:[%s343 + $0x60] sm:$0xff]
        %v397 = vld [vmem:[%s343 + $0x68] sm:$0xff]
        %v398 = vld [vmem:[%s343 + $0x70] sm:$0xff]
        %v399 = vld [vmem:[%s343 + $0x78] sm:$0xff]
        %v400 = vld [vmem:[%s343 + $0x80] sm:$0xff]
        %v401 = vld [vmem:[%s343 + $0x88] sm:$0xff]
        %v402 = vld [vmem:[%s343 + $0x90] sm:$0xff]
        %v403 = vld [vmem:[%s343 + $0x98] sm:$0xff]
        %v404 = vld [vmem:[%s343 + $0xa0] sm:$0xff]
        %v405 = vld [vmem:[%s343 + $0xa8] sm:$0xff]
        %v406 = vld [vmem:[%s343 + $0xb0] sm:$0xff]
        %v407 = vld [vmem:[%s343 + $0xb8] sm:$0xff]
        %v408 = vld [vmem:[%s343 + $0xc0] sm:$0xff]
        %v409 = vld [vmem:[%s343 + $0xc8] sm:$0xff]
        %v410 = vld [vmem:[%s343 + $0xd0] sm:$0xff]
        %v411 = vld [vmem:[%s343 + $0xd8] sm:$0xff]
        %v412 = vld [vmem:[%s343 + $0xe0] sm:$0xff]
        %v413 = vld [vmem:[%s343 + $0xe8] sm:$0xff]
        %v414 = vld [vmem:[%s343 + $0xf0] sm:$0xff]
        %v415 = vld [vmem:[%s343 + $0xf8] sm:$0xff]
        %v416 = vld [vmem:[%s343 + $0x100] sm:$0xff]
        %v417 = vld [vmem:[%s343 + $0x108] sm:$0xff]
        %v418 = vld [vmem:[%s343 + $0x110] sm:$0xff]
        %v419 = vld [vmem:[%s343 + $0x118] sm:$0xff]
        %v420 = vld [vmem:[%s343 + $0x120] sm:$0xff]
        %v421 = vld [vmem:[%s343 + $0x128] sm:$0xff]
        %v422 = vld [vmem:[%s343 + $0x130] sm:$0xff]
        %v423 = vld [vmem:[%s343 + $0x138] sm:$0xff]
        %v424 = vld [vmem:[%s343 + $0x140] sm:$0xff]
        %v425 = vld [vmem:[%s343 + $0x148] sm:$0xff]
        %v426 = vld [vmem:[%s343 + $0x150] sm:$0xff]
        %v427 = vld [vmem:[%s343 + $0x158] sm:$0xff]
        %v428 = vld [vmem:[%s343 + $0x160] sm:$0xff]
        %v429 = vld [vmem:[%s343 + $0x168] sm:$0xff]
        %v430 = vld [vmem:[%s343 + $0x170] sm:$0xff]
        %v431 = vld [vmem:[%s343 + $0x178] sm:$0xff]
        %v432 = vld [vmem:[%s343 + $0x180] sm:$0xff]
        %v433 = vld [vmem:[%s343 + $0x188] sm:$0xff]
        %v434 = vld [vmem:[%s343 + $0x190] sm:$0xff]
        %v435 = vld [vmem:[%s343 + $0x198] sm:$0xff]
        %v436 = vld [vmem:[%s343 + $0x1a0] sm:$0xff]
        %v437 = vld [vmem:[%s343 + $0x1a8] sm:$0xff]
        %v438 = vld [vmem:[%s343 + $0x1b0] sm:$0xff]
        %v439 = vld [vmem:[%s343 + $0x1b8] sm:$0xff]
        %v440 = vld [vmem:[%s343 + $0x1c0] sm:$0xff]
        %v441 = vld [vmem:[%s343 + $0x1c8] sm:$0xff]
        %v442 = vld [vmem:[%s343 + $0x1d0] sm:$0xff]
        %v443 = vld [vmem:[%s343 + $0x1d8] sm:$0xff]
        %v444 = vld [vmem:[%s343 + $0x1e0] sm:$0xff]
        %v445 = vld [vmem:[%s343 + $0x1e8] sm:$0xff]
        %v446 = vld [vmem:[%s343 + $0x1f0] sm:$0xff]
        %v447 = vld [vmem:[%s343 + $0x1f8] sm:$0xff]
        %v448 = vld [vmem:[%s1] sm:$0x1]
        %v450 = vperm.slane %v448, 0
        %v452 = vmul.f32 %v384, %v450
        %v453 = vmul.f32 %v385, %v450
        %v454 = vmul.f32 %v386, %v450
        %v455 = vmul.f32 %v387, %v450
        %v456 = vmul.f32 %v388, %v450
        %v457 = vmul.f32 %v389, %v450
        %v458 = vmul.f32 %v390, %v450
        %v459 = vmul.f32 %v391, %v450
        %v460 = vmul.f32 %v392, %v450
        %v461 = vmul.f32 %v393, %v450
        %v462 = vmul.f32 %v394, %v450
        %v463 = vmul.f32 %v395, %v450
        %v464 = vmul.f32 %v396, %v450
        %v465 = vmul.f32 %v397, %v450
        %v466 = vmul.f32 %v398, %v450
        %v467 = vmul.f32 %v399, %v450
        %v468 = vmul.f32 %v400, %v450
        %v469 = vmul.f32 %v401, %v450
        %v470 = vmul.f32 %v402, %v450
        %v471 = vmul.f32 %v403, %v450
        %v472 = vmul.f32 %v404, %v450
        %v473 = vmul.f32 %v405, %v450
        %v474 = vmul.f32 %v406, %v450
        %v475 = vmul.f32 %v407, %v450
        %v476 = vmul.f32 %v408, %v450
        %v477 = vmul.f32 %v409, %v450
        %v478 = vmul.f32 %v410, %v450
        %v479 = vmul.f32 %v411, %v450
        %v480 = vmul.f32 %v412, %v450
        %v481 = vmul.f32 %v413, %v450
        %v482 = vmul.f32 %v414, %v450
        %v483 = vmul.f32 %v415, %v450
        %v484 = vmul.f32 %v416, %v450
        %v485 = vmul.f32 %v417, %v450
        %v486 = vmul.f32 %v418, %v450
        %v487 = vmul.f32 %v419, %v450
        %v488 = vmul.f32 %v420, %v450
        %v489 = vmul.f32 %v421, %v450
        %v490 = vmul.f32 %v422, %v450
        %v491 = vmul.f32 %v423, %v450
        %v492 = vmul.f32 %v424, %v450
        %v493 = vmul.f32 %v425, %v450
        %v494 = vmul.f32 %v426, %v450
        %v495 = vmul.f32 %v427, %v450
        %v496 = vmul.f32 %v428, %v450
        %v497 = vmul.f32 %v429, %v450
        %v498 = vmul.f32 %v430, %v450
        %v499 = vmul.f32 %v431, %v450
        %v500 = vmul.f32 %v432, %v450
        %v501 = vmul.f32 %v433, %v450
        %v502 = vmul.f32 %v434, %v450
        %v503 = vmul.f32 %v435, %v450
        %v504 = vmul.f32 %v436, %v450
        %v505 = vmul.f32 %v437, %v450
        %v506 = vmul.f32 %v438, %v450
        %v507 = vmul.f32 %v439, %v450
        %v508 = vmul.f32 %v440, %v450
        %v509 = vmul.f32 %v441, %v450
        %v510 = vmul.f32 %v442, %v450
        %v511 = vmul.f32 %v443, %v450
        %v512 = vmul.f32 %v444, %v450
        %v513 = vmul.f32 %v445, %v450
        %v514 = vmul.f32 %v446, %v450
        %v515 = vmul.f32 %v447, %v450
        %v516 = vld [vmem:[%s2] sm:$0x1]
        %v518 = vperm.slane %v516, 0
        %v520 = vadd.f32 %v452, %v518
        %v521 = vadd.f32 %v453, %v518
        %v522 = vadd.f32 %v454, %v518
        %v523 = vadd.f32 %v455, %v518
        %v524 = vadd.f32 %v456, %v518
        %v525 = vadd.f32 %v457, %v518
        %v526 = vadd.f32 %v458, %v518
        %v527 = vadd.f32 %v459, %v518
        %v528 = vadd.f32 %v460, %v518
        %v529 = vadd.f32 %v461, %v518
        %v530 = vadd.f32 %v462, %v518
        %v531 = vadd.f32 %v463, %v518
        %v532 = vadd.f32 %v464, %v518
        %v533 = vadd.f32 %v465, %v518
        %v534 = vadd.f32 %v466, %v518
        %v535 = vadd.f32 %v467, %v518
        %v536 = vadd.f32 %v468, %v518
        %v537 = vadd.f32 %v469, %v518
        %v538 = vadd.f32 %v470, %v518
        %v539 = vadd.f32 %v471, %v518
        %v540 = vadd.f32 %v472, %v518
        %v541 = vadd.f32 %v473, %v518
        %v542 = vadd.f32 %v474, %v518
        %v543 = vadd.f32 %v475, %v518
        %v544 = vadd.f32 %v476, %v518
        %v545 = vadd.f32 %v477, %v518
        %v546 = vadd.f32 %v478, %v518
        %v547 = vadd.f32 %v479, %v518
        %v548 = vadd.f32 %v480, %v518
        %v549 = vadd.f32 %v481, %v518
        %v550 = vadd.f32 %v482, %v518
        %v551 = vadd.f32 %v483, %v518
        %v552 = vadd.f32 %v484, %v518
        %v553 = vadd.f32 %v485, %v518
        %v554 = vadd.f32 %v486, %v518
        %v555 = vadd.f32 %v487, %v518
        %v556 = vadd.f32 %v488, %v518
        %v557 = vadd.f32 %v489, %v518
        %v558 = vadd.f32 %v490, %v518
        %v559 = vadd.f32 %v491, %v518
        %v560 = vadd.f32 %v492, %v518
        %v561 = vadd.f32 %v493, %v518
        %v562 = vadd.f32 %v494, %v518
        %v563 = vadd.f32 %v495, %v518
        %v564 = vadd.f32 %v496, %v518
        %v565 = vadd.f32 %v497, %v518
        %v566 = vadd.f32 %v498, %v518
        %v567 = vadd.f32 %v499, %v518
        %v568 = vadd.f32 %v500, %v518
        %v569 = vadd.f32 %v501, %v518
        %v570 = vadd.f32 %v502, %v518
        %v571 = vadd.f32 %v503, %v518
        %v572 = vadd.f32 %v504, %v518
        %v573 = vadd.f32 %v505, %v518
        %v574 = vadd.f32 %v506, %v518
        %v575 = vadd.f32 %v507, %v518
        %v576 = vadd.f32 %v508, %v518
        %v577 = vadd.f32 %v509, %v518
        %v578 = vadd.f32 %v510, %v518
        %v579 = vadd.f32 %v511, %v518
        %v580 = vadd.f32 %v512, %v518
        %v581 = vadd.f32 %v513, %v518
        %v582 = vadd.f32 %v514, %v518
        %v583 = vadd.f32 %v515, %v518
        %v584 = vmax.f32 %v520, 0.0
        %v585 = vmax.f32 %v521, 0.0
        %v586 = vmax.f32 %v522, 0.0
        %v587 = vmax.f32 %v523, 0.0
        %v588 = vmax.f32 %v524, 0.0
        %v589 = vmax.f32 %v525, 0.0
        %v590 = vmax.f32 %v526, 0.0
        %v591 = vmax.f32 %v527, 0.0
        %v592 = vmax.f32 %v528, 0.0
        %v593 = vmax.f32 %v529, 0.0
        %v594 = vmax.f32 %v530, 0.0
        %v595 = vmax.f32 %v531, 0.0
        %v596 = vmax.f32 %v532, 0.0
        %v597 = vmax.f32 %v533, 0.0
        %v598 = vmax.f32 %v534, 0.0
        %v599 = vmax.f32 %v535, 0.0
        %v600 = vmax.f32 %v536, 0.0
        %v601 = vmax.f32 %v537, 0.0
        %v602 = vmax.f32 %v538, 0.0
        %v603 = vmax.f32 %v539, 0.0
        %v604 = vmax.f32 %v540, 0.0
        %v605 = vmax.f32 %v541, 0.0
        %v606 = vmax.f32 %v542, 0.0
        %v607 = vmax.f32 %v543, 0.0
        %v608 = vmax.f32 %v544, 0.0
        %v609 = vmax.f32 %v545, 0.0
        %v610 = vmax.f32 %v546, 0.0
        %v611 = vmax.f32 %v547, 0.0
        %v612 = vmax.f32 %v548, 0.0
        %v613 = vmax.f32 %v549, 0.0
        %v614 = vmax.f32 %v550, 0.0
        %v615 = vmax.f32 %v551, 0.0
        %v616 = vmax.f32 %v552, 0.0
        %v617 = vmax.f32 %v553, 0.0
        %v618 = vmax.f32 %v554, 0.0
        %v619 = vmax.f32 %v555, 0.0
        %v620 = vmax.f32 %v556, 0.0
        %v621 = vmax.f32 %v557, 0.0
        %v622 = vmax.f32 %v558, 0.0
        %v623 = vmax.f32 %v559, 0.0
        %v624 = vmax.f32 %v560, 0.0
        %v625 = vmax.f32 %v561, 0.0
        %v626 = vmax.f32 %v562, 0.0
        %v627 = vmax.f32 %v563, 0.0
        %v628 = vmax.f32 %v564, 0.0
        %v629 = vmax.f32 %v565, 0.0
        %v630 = vmax.f32 %v566, 0.0
        %v631 = vmax.f32 %v567, 0.0
        %v632 = vmax.f32 %v568, 0.0
        %v633 = vmax.f32 %v569, 0.0
        %v634 = vmax.f32 %v570, 0.0
        %v635 = vmax.f32 %v571, 0.0
        %v636 = vmax.f32 %v572, 0.0
        %v637 = vmax.f32 %v573, 0.0
        %v638 = vmax.f32 %v574, 0.0
        %v639 = vmax.f32 %v575, 0.0
        %v640 = vmax.f32 %v576, 0.0
        %v641 = vmax.f32 %v577, 0.0
        %v642 = vmax.f32 %v578, 0.0
        %v643 = vmax.f32 %v579, 0.0
        %v644 = vmax.f32 %v580, 0.0
        %v645 = vmax.f32 %v581, 0.0
        %v646 = vmax.f32 %v582, 0.0
        %v647 = vmax.f32 %v583, 0.0
        %v648 = vpack.c.bf16 %v584, %v584
        %v649 = vpack.c.bf16 %v585, %v585
        %v650 = vpack.c.bf16 %v586, %v586
        %v651 = vpack.c.bf16 %v587, %v587
        %v652 = vpack.c.bf16 %v588, %v588
        %v653 = vpack.c.bf16 %v589, %v589
        %v654 = vpack.c.bf16 %v590, %v590
        %v655 = vpack.c.bf16 %v591, %v591
        %v656 = vpack.c.bf16 %v592, %v592
        %v657 = vpack.c.bf16 %v593, %v593
        %v658 = vpack.c.bf16 %v594, %v594
        %v659 = vpack.c.bf16 %v595, %v595
        %v660 = vpack.c.bf16 %v596, %v596
        %v661 = vpack.c.bf16 %v597, %v597
        %v662 = vpack.c.bf16 %v598, %v598
        %v663 = vpack.c.bf16 %v599, %v599
        %v664 = vpack.c.bf16 %v600, %v600
        %v665 = vpack.c.bf16 %v601, %v601
        %v666 = vpack.c.bf16 %v602, %v602
        %v667 = vpack.c.bf16 %v603, %v603
        %v668 = vpack.c.bf16 %v604, %v604
        %v669 = vpack.c.bf16 %v605, %v605
        %v670 = vpack.c.bf16 %v606, %v606
        %v671 = vpack.c.bf16 %v607, %v607
        %v672 = vpack.c.bf16 %v608, %v608
        %v673 = vpack.c.bf16 %v609, %v609
        %v674 = vpack.c.bf16 %v610, %v610
        %v675 = vpack.c.bf16 %v611, %v611
        %v676 = vpack.c.bf16 %v612, %v612
        %v677 = vpack.c.bf16 %v613, %v613
        %v678 = vpack.c.bf16 %v614, %v614
        %v679 = vpack.c.bf16 %v615, %v615
        %v680 = vpack.c.bf16 %v616, %v616
        %v681 = vpack.c.bf16 %v617, %v617
        %v682 = vpack.c.bf16 %v618, %v618
        %v683 = vpack.c.bf16 %v619, %v619
        %v684 = vpack.c.bf16 %v620, %v620
        %v685 = vpack.c.bf16 %v621, %v621
        %v686 = vpack.c.bf16 %v622, %v622
        %v687 = vpack.c.bf16 %v623, %v623
        %v688 = vpack.c.bf16 %v624, %v624
        %v689 = vpack.c.bf16 %v625, %v625
        %v690 = vpack.c.bf16 %v626, %v626
        %v691 = vpack.c.bf16 %v627, %v627
        %v692 = vpack.c.bf16 %v628, %v628
        %v693 = vpack.c.bf16 %v629, %v629
        %v694 = vpack.c.bf16 %v630, %v630
        %v695 = vpack.c.bf16 %v631, %v631
        %v696 = vpack.c.bf16 %v632, %v632
        %v697 = vpack.c.bf16 %v633, %v633
        %v698 = vpack.c.bf16 %v634, %v634
        %v699 = vpack.c.bf16 %v635, %v635
        %v700 = vpack.c.bf16 %v636, %v636
        %v701 = vpack.c.bf16 %v637, %v637
        %v702 = vpack.c.bf16 %v638, %v638
        %v703 = vpack.c.bf16 %v639, %v639
        %v704 = vpack.c.bf16 %v640, %v640
        %v705 = vpack.c.bf16 %v641, %v641
        %v706 = vpack.c.bf16 %v642, %v642
        %v707 = vpack.c.bf16 %v643, %v643
        %v708 = vpack.c.bf16 %v644, %v644
        %v709 = vpack.c.bf16 %v645, %v645
        %v710 = vpack.c.bf16 %v646, %v646
        %v711 = vpack.c.bf16 %v647, %v647
        %v712 = vld [vmem:[%s3] sm:$0x1]
        %v714 = vperm.slane %v712, 0
        %v716 = vmul.f32 %v384, %v714
        %v717 = vmul.f32 %v385, %v714
        %v718 = vmul.f32 %v386, %v714
        %v719 = vmul.f32 %v387, %v714
        %v720 = vmul.f32 %v388, %v714
        %v721 = vmul.f32 %v389, %v714
        %v722 = vmul.f32 %v390, %v714
        %v723 = vmul.f32 %v391, %v714
        %v724 = vmul.f32 %v392, %v714
        %v725 = vmul.f32 %v393, %v714
        %v726 = vmul.f32 %v394, %v714
        %v727 = vmul.f32 %v395, %v714
        %v728 = vmul.f32 %v396, %v714
        %v729 = vmul.f32 %v397, %v714
        %v730 = vmul.f32 %v398, %v714
        %v731 = vmul.f32 %v399, %v714
        %v732 = vmul.f32 %v400, %v714
        %v733 = vmul.f32 %v401, %v714
        %v734 = vmul.f32 %v402, %v714
        %v735 = vmul.f32 %v403, %v714
        %v736 = vmul.f32 %v404, %v714
        %v737 = vmul.f32 %v405, %v714
        %v738 = vmul.f32 %v406, %v714
        %v739 = vmul.f32 %v407, %v714
        %v740 = vmul.f32 %v408, %v714
        %v741 = vmul.f32 %v409, %v714
        %v742 = vmul.f32 %v410, %v714
        %v743 = vmul.f32 %v411, %v714
        %v744 = vmul.f32 %v412, %v714
        %v745 = vmul.f32 %v413, %v714
        %v746 = vmul.f32 %v414, %v714
        %v747 = vmul.f32 %v415, %v714
        %v748 = vmul.f32 %v416, %v714
        %v749 = vmul.f32 %v417, %v714
        %v750 = vmul.f32 %v418, %v714
        %v751 = vmul.f32 %v419, %v714
        %v752 = vmul.f32 %v420, %v714
        %v753 = vmul.f32 %v421, %v714
        %v754 = vmul.f32 %v422, %v714
        %v755 = vmul.f32 %v423, %v714
        %v756 = vmul.f32 %v424, %v714
        %v757 = vmul.f32 %v425, %v714
        %v758 = vmul.f32 %v426, %v714
        %v759 = vmul.f32 %v427, %v714
        %v760 = vmul.f32 %v428, %v714
        %v761 = vmul.f32 %v429, %v714
        %v762 = vmul.f32 %v430, %v714
        %v763 = vmul.f32 %v431, %v714
        %v764 = vmul.f32 %v432, %v714
        %v765 = vmul.f32 %v433, %v714
        %v766 = vmul.f32 %v434, %v714
        %v767 = vmul.f32 %v435, %v714
        %v768 = vmul.f32 %v436, %v714
        %v769 = vmul.f32 %v437, %v714
        %v770 = vmul.f32 %v438, %v714
        %v771 = vmul.f32 %v439, %v714
        %v772 = vmul.f32 %v440, %v714
        %v773 = vmul.f32 %v441, %v714
        %v774 = vmul.f32 %v442, %v714
        %v775 = vmul.f32 %v443, %v714
        %v776 = vmul.f32 %v444, %v714
        %v777 = vmul.f32 %v445, %v714
        %v778 = vmul.f32 %v446, %v714
        %v779 = vmul.f32 %v447, %v714
        %v780 = vld [vmem:[%s4] sm:$0x1]
        %v782 = vperm.slane %v780, 0
        %v784 = vadd.f32 %v716, %v782
        %v785 = vadd.f32 %v717, %v782
        %v786 = vadd.f32 %v718, %v782
        %v787 = vadd.f32 %v719, %v782
        %v788 = vadd.f32 %v720, %v782
        %v789 = vadd.f32 %v721, %v782
        %v790 = vadd.f32 %v722, %v782
        %v791 = vadd.f32 %v723, %v782
        %v792 = vadd.f32 %v724, %v782
        %v793 = vadd.f32 %v725, %v782
        %v794 = vadd.f32 %v726, %v782
        %v795 = vadd.f32 %v727, %v782
        %v796 = vadd.f32 %v728, %v782
        %v797 = vadd.f32 %v729, %v782
        %v798 = vadd.f32 %v730, %v782
        %v799 = vadd.f32 %v731, %v782
        %v800 = vadd.f32 %v732, %v782
        %v801 = vadd.f32 %v733, %v782
        %v802 = vadd.f32 %v734, %v782
        %v803 = vadd.f32 %v735, %v782
        %v804 = vadd.f32 %v736, %v782
        %v805 = vadd.f32 %v737, %v782
        %v806 = vadd.f32 %v738, %v782
        %v807 = vadd.f32 %v739, %v782
        %v808 = vadd.f32 %v740, %v782
        %v809 = vadd.f32 %v741, %v782
        %v810 = vadd.f32 %v742, %v782
        %v811 = vadd.f32 %v743, %v782
        %v812 = vadd.f32 %v744, %v782
        %v813 = vadd.f32 %v745, %v782
        %v814 = vadd.f32 %v746, %v782
        %v815 = vadd.f32 %v747, %v782
        %v816 = vadd.f32 %v748, %v782
        %v817 = vadd.f32 %v749, %v782
        %v818 = vadd.f32 %v750, %v782
        %v819 = vadd.f32 %v751, %v782
        %v820 = vadd.f32 %v752, %v782
        %v821 = vadd.f32 %v753, %v782
        %v822 = vadd.f32 %v754, %v782
        %v823 = vadd.f32 %v755, %v782
        %v824 = vadd.f32 %v756, %v782
        %v825 = vadd.f32 %v757, %v782
        %v826 = vadd.f32 %v758, %v782
        %v827 = vadd.f32 %v759, %v782
        %v828 = vadd.f32 %v760, %v782
        %v829 = vadd.f32 %v761, %v782
        %v830 = vadd.f32 %v762, %v782
        %v831 = vadd.f32 %v763, %v782
        %v832 = vadd.f32 %v764, %v782
        %v833 = vadd.f32 %v765, %v782
        %v834 = vadd.f32 %v766, %v782
        %v835 = vadd.f32 %v767, %v782
        %v836 = vadd.f32 %v768, %v782
        %v837 = vadd.f32 %v769, %v782
        %v838 = vadd.f32 %v770, %v782
        %v839 = vadd.f32 %v771, %v782
        %v840 = vadd.f32 %v772, %v782
        %v841 = vadd.f32 %v773, %v782
        %v842 = vadd.f32 %v774, %v782
        %v843 = vadd.f32 %v775, %v782
        %v844 = vadd.f32 %v776, %v782
        %v845 = vadd.f32 %v777, %v782
        %v846 = vadd.f32 %v778, %v782
        %v847 = vadd.f32 %v779, %v782
        %v848 = vmax.f32 %v784, 0.0
        %v849 = vmax.f32 %v785, 0.0
        %v850 = vmax.f32 %v786, 0.0
        %v851 = vmax.f32 %v787, 0.0
        %v852 = vmax.f32 %v788, 0.0
        %v853 = vmax.f32 %v789, 0.0
        %v854 = vmax.f32 %v790, 0.0
        %v855 = vmax.f32 %v791, 0.0
        %v856 = vmax.f32 %v792, 0.0
        %v857 = vmax.f32 %v793, 0.0
        %v858 = vmax.f32 %v794, 0.0
        %v859 = vmax.f32 %v795, 0.0
        %v860 = vmax.f32 %v796, 0.0
        %v861 = vmax.f32 %v797, 0.0
        %v862 = vmax.f32 %v798, 0.0
        %v863 = vmax.f32 %v799, 0.0
        %v864 = vmax.f32 %v800, 0.0
        %v865 = vmax.f32 %v801, 0.0
        %v866 = vmax.f32 %v802, 0.0
        %v867 = vmax.f32 %v803, 0.0
        %v868 = vmax.f32 %v804, 0.0
        %v869 = vmax.f32 %v805, 0.0
        %v870 = vmax.f32 %v806, 0.0
        %v871 = vmax.f32 %v807, 0.0
        %v872 = vmax.f32 %v808, 0.0
        %v873 = vmax.f32 %v809, 0.0
        %v874 = vmax.f32 %v810, 0.0
        %v875 = vmax.f32 %v811, 0.0
        %v876 = vmax.f32 %v812, 0.0
        %v877 = vmax.f32 %v813, 0.0
        %v878 = vmax.f32 %v814, 0.0
        %v879 = vmax.f32 %v815, 0.0
        %v880 = vmax.f32 %v816, 0.0
        %v881 = vmax.f32 %v817, 0.0
        %v882 = vmax.f32 %v818, 0.0
        %v883 = vmax.f32 %v819, 0.0
        %v884 = vmax.f32 %v820, 0.0
        %v885 = vmax.f32 %v821, 0.0
        %v886 = vmax.f32 %v822, 0.0
        %v887 = vmax.f32 %v823, 0.0
        %v888 = vmax.f32 %v824, 0.0
        %v889 = vmax.f32 %v825, 0.0
        %v890 = vmax.f32 %v826, 0.0
        %v891 = vmax.f32 %v827, 0.0
        %v892 = vmax.f32 %v828, 0.0
        %v893 = vmax.f32 %v829, 0.0
        %v894 = vmax.f32 %v830, 0.0
        %v895 = vmax.f32 %v831, 0.0
        %v896 = vmax.f32 %v832, 0.0
        %v897 = vmax.f32 %v833, 0.0
        %v898 = vmax.f32 %v834, 0.0
        %v899 = vmax.f32 %v835, 0.0
        %v900 = vmax.f32 %v836, 0.0
        %v901 = vmax.f32 %v837, 0.0
        %v902 = vmax.f32 %v838, 0.0
        %v903 = vmax.f32 %v839, 0.0
        %v904 = vmax.f32 %v840, 0.0
        %v905 = vmax.f32 %v841, 0.0
        %v906 = vmax.f32 %v842, 0.0
        %v907 = vmax.f32 %v843, 0.0
        %v908 = vmax.f32 %v844, 0.0
        %v909 = vmax.f32 %v845, 0.0
        %v910 = vmax.f32 %v846, 0.0
        %v911 = vmax.f32 %v847, 0.0
        %v912 = vpack.c.bf16 %v849, %v848
        %v913 = vpack.c.bf16 %v851, %v850
        %v914 = vpack.c.bf16 %v853, %v852
        %v915 = vpack.c.bf16 %v855, %v854
        %v916 = vpack.c.bf16 %v857, %v856
        %v917 = vpack.c.bf16 %v859, %v858
        %v918 = vpack.c.bf16 %v861, %v860
        %v919 = vpack.c.bf16 %v863, %v862
        %v920 = vpack.c.bf16 %v865, %v864
        %v921 = vpack.c.bf16 %v867, %v866
        %v922 = vpack.c.bf16 %v869, %v868
        %v923 = vpack.c.bf16 %v871, %v870
        %v924 = vpack.c.bf16 %v873, %v872
        %v925 = vpack.c.bf16 %v875, %v874
        %v926 = vpack.c.bf16 %v877, %v876
        %v927 = vpack.c.bf16 %v879, %v878
        %v928 = vpack.c.bf16 %v881, %v880
        %v929 = vpack.c.bf16 %v883, %v882
        %v930 = vpack.c.bf16 %v885, %v884
        %v931 = vpack.c.bf16 %v887, %v886
        %v932 = vpack.c.bf16 %v889, %v888
        %v933 = vpack.c.bf16 %v891, %v890
        %v934 = vpack.c.bf16 %v893, %v892
        %v935 = vpack.c.bf16 %v895, %v894
        %v936 = vpack.c.bf16 %v897, %v896
        %v937 = vpack.c.bf16 %v899, %v898
        %v938 = vpack.c.bf16 %v901, %v900
        %v939 = vpack.c.bf16 %v903, %v902
        %v940 = vpack.c.bf16 %v905, %v904
        %v941 = vpack.c.bf16 %v907, %v906
        %v942 = vpack.c.bf16 %v909, %v908
        %v943 = vpack.c.bf16 %v911, %v910
        %v944 = vld [vmem:[%s7] sm:$0xf]
        %v945 = vld [vmem:[%s7 + $0x4] sm:$0xf]
        %v946 = vld [vmem:[%s7 + $0x8] sm:$0xf]
        %v947 = vld [vmem:[%s7 + $0xc] sm:$0xf]
        %v948 = vld [vmem:[%s5] sm:$0x1]
        %v950 = vperm.slane %v948, 0
        %v956 = vunpack.c.l.b16 %v944
        %v957 = vunpack.c.l.b16 %v945
        %v958 = vunpack.c.l.b16 %v946
        %v959 = vunpack.c.l.b16 %v947
        %v960 = vpack.c.b16 %v957, %v956
        %v961 = vpack.c.b16 %v959, %v958
        %vm964 = vcmask 261120
        %v966 = vsel %vm964, %v912, 0
        %v969 = vsel %vm964, %v913, 0
        %v972 = vsel %vm964, %v914, 0
        %v975 = vsel %vm964, %v915, 0
        %v978 = vsel %vm964, %v916, 0
        %v981 = vsel %vm964, %v917, 0
        %v984 = vsel %vm964, %v918, 0
        %v987 = vsel %vm964, %v919, 0
        %v990 = vsel %vm964, %v920, 0
        %v993 = vsel %vm964, %v921, 0
        %v996 = vsel %vm964, %v922, 0
        %v999 = vsel %vm964, %v923, 0
        %v1002 = vsel %vm964, %v924, 0
        %v1005 = vsel %vm964, %v925, 0
        %v1008 = vsel %vm964, %v926, 0
        %v1011 = vsel %vm964, %v927, 0
        %v1014 = vsel %vm964, %v928, 0
        %v1017 = vsel %vm964, %v929, 0
        %v1020 = vsel %vm964, %v930, 0
        %v1023 = vsel %vm964, %v931, 0
        %v1026 = vsel %vm964, %v932, 0
        %v1029 = vsel %vm964, %v933, 0
        %v1032 = vsel %vm964, %v934, 0
        %v1035 = vsel %vm964, %v935, 0
        %v1038 = vsel %vm964, %v936, 0
        %v1041 = vsel %vm964, %v937, 0
        %v1044 = vsel %vm964, %v938, 0
        %v1047 = vsel %vm964, %v939, 0
        %v1050 = vsel %vm964, %v940, 0
        %v1053 = vsel %vm964, %v941, 0
        %v1056 = vsel %vm964, %v942, 0
        %v1059 = vsel %vm964, %v943, 0
        %1061 = vmatpush.bf16.msra.mxu0 0
        %1062 = vmatpush.bf16.msra.mxu0 0
        %1063 = vmatpush.bf16.msra.mxu0 0
        %1064 = vmatpush.bf16.msra.mxu0 0
        %1065 = vmatpush.bf16.msra.mxu0 0
        %1066 = vmatpush.bf16.msra.mxu0 0
        %1067 = vmatpush.bf16.msra.mxu0 %v961
        %1068 = vmatpush.bf16.msra.mxu0 %v960
        %1069 = vmatmul.bf16.gmra.mxu0 %v966
        %v1070 = vpop.f32.mrf.mxu0
        %v1071 = vadd.f32 %v950, %v1070
        %v1072 = vpop.f32.mrf.mxu0
        %v1073 = vadd.f32 %v950, %v1072
        %1074 = vmatmul.bf16.gmra.mxu0 %v969
        %v1075 = vpop.f32.mrf.mxu0
        %v1076 = vadd.f32 %v950, %v1075
        %v1077 = vpop.f32.mrf.mxu0
        %v1078 = vadd.f32 %v950, %v1077
        %1079 = vmatmul.bf16.gmra.mxu0 %v972
        %v1080 = vpop.f32.mrf.mxu0
        %v1081 = vadd.f32 %v950, %v1080
        %v1082 = vpop.f32.mrf.mxu0
        %v1083 = vadd.f32 %v950, %v1082
        %1084 = vmatmul.bf16.gmra.mxu0 %v975
        %v1085 = vpop.f32.mrf.mxu0
        %v1086 = vadd.f32 %v950, %v1085
        %v1087 = vpop.f32.mrf.mxu0
        %v1088 = vadd.f32 %v950, %v1087
        %1089 = vmatmul.bf16.gmra.mxu0 %v978
        %v1090 = vpop.f32.mrf.mxu0
        %v1091 = vadd.f32 %v950, %v1090
        %v1092 = vpop.f32.mrf.mxu0
        %v1093 = vadd.f32 %v950, %v1092
        %1094 = vmatmul.bf16.gmra.mxu0 %v981
        %v1095 = vpop.f32.mrf.mxu0
        %v1096 = vadd.f32 %v950, %v1095
        %v1097 = vpop.f32.mrf.mxu0
        %v1098 = vadd.f32 %v950, %v1097
        %1099 = vmatmul.bf16.gmra.mxu0 %v984
        %v1100 = vpop.f32.mrf.mxu0
        %v1101 = vadd.f32 %v950, %v1100
        %v1102 = vpop.f32.mrf.mxu0
        %v1103 = vadd.f32 %v950, %v1102
        %1104 = vmatmul.bf16.gmra.mxu0 %v987
        %v1105 = vpop.f32.mrf.mxu0
        %v1106 = vadd.f32 %v950, %v1105
        %v1107 = vpop.f32.mrf.mxu0
        %v1108 = vadd.f32 %v950, %v1107
        %1109 = vmatmul.bf16.gmra.mxu0 %v990
        %v1110 = vpop.f32.mrf.mxu0
        %v1111 = vadd.f32 %v950, %v1110
        %v1112 = vpop.f32.mrf.mxu0
        %v1113 = vadd.f32 %v950, %v1112
        %1114 = vmatmul.bf16.gmra.mxu0 %v993
        %v1115 = vpop.f32.mrf.mxu0
        %v1116 = vadd.f32 %v950, %v1115
        %v1117 = vpop.f32.mrf.mxu0
        %v1118 = vadd.f32 %v950, %v1117
        %1119 = vmatmul.bf16.gmra.mxu0 %v996
        %v1120 = vpop.f32.mrf.mxu0
        %v1121 = vadd.f32 %v950, %v1120
        %v1122 = vpop.f32.mrf.mxu0
        %v1123 = vadd.f32 %v950, %v1122
        %1124 = vmatmul.bf16.gmra.mxu0 %v999
        %v1125 = vpop.f32.mrf.mxu0
        %v1126 = vadd.f32 %v950, %v1125
        %v1127 = vpop.f32.mrf.mxu0
        %v1128 = vadd.f32 %v950, %v1127
        %1129 = vmatmul.bf16.gmra.mxu0 %v1002
        %v1130 = vpop.f32.mrf.mxu0
        %v1131 = vadd.f32 %v950, %v1130
        %v1132 = vpop.f32.mrf.mxu0
        %v1133 = vadd.f32 %v950, %v1132
        %1134 = vmatmul.bf16.gmra.mxu0 %v1005
        %v1135 = vpop.f32.mrf.mxu0
        %v1136 = vadd.f32 %v950, %v1135
        %v1137 = vpop.f32.mrf.mxu0
        %v1138 = vadd.f32 %v950, %v1137
        %1139 = vmatmul.bf16.gmra.mxu0 %v1008
        %v1140 = vpop.f32.mrf.mxu0
        %v1141 = vadd.f32 %v950, %v1140
        %v1142 = vpop.f32.mrf.mxu0
        %v1143 = vadd.f32 %v950, %v1142
        %1144 = vmatmul.bf16.gmra.mxu0 %v1011
        %v1145 = vpop.f32.mrf.mxu0
        %v1146 = vadd.f32 %v950, %v1145
        %v1147 = vpop.f32.mrf.mxu0
        %v1148 = vadd.f32 %v950, %v1147
        %1149 = vmatmul.bf16.gmra.mxu0 %v1014
        %v1150 = vpop.f32.mrf.mxu0
        %v1151 = vadd.f32 %v950, %v1150
        %v1152 = vpop.f32.mrf.mxu0
        %v1153 = vadd.f32 %v950, %v1152
        %1154 = vmatmul.bf16.gmra.mxu0 %v1017
        %v1155 = vpop.f32.mrf.mxu0
        %v1156 = vadd.f32 %v950, %v1155
        %v1157 = vpop.f32.mrf.mxu0
        %v1158 = vadd.f32 %v950, %v1157
        %1159 = vmatmul.bf16.gmra.mxu0 %v1020
        %v1160 = vpop.f32.mrf.mxu0
        %v1161 = vadd.f32 %v950, %v1160
        %v1162 = vpop.f32.mrf.mxu0
        %v1163 = vadd.f32 %v950, %v1162
        %1164 = vmatmul.bf16.gmra.mxu0 %v1023
        %v1165 = vpop.f32.mrf.mxu0
        %v1166 = vadd.f32 %v950, %v1165
        %v1167 = vpop.f32.mrf.mxu0
        %v1168 = vadd.f32 %v950, %v1167
        %1169 = vmatmul.bf16.gmra.mxu0 %v1026
        %v1170 = vpop.f32.mrf.mxu0
        %v1171 = vadd.f32 %v950, %v1170
        %v1172 = vpop.f32.mrf.mxu0
        %v1173 = vadd.f32 %v950, %v1172
        %1174 = vmatmul.bf16.gmra.mxu0 %v1029
        %v1175 = vpop.f32.mrf.mxu0
        %v1176 = vadd.f32 %v950, %v1175
        %v1177 = vpop.f32.mrf.mxu0
        %v1178 = vadd.f32 %v950, %v1177
        %1179 = vmatmul.bf16.gmra.mxu0 %v1032
        %v1180 = vpop.f32.mrf.mxu0
        %v1181 = vadd.f32 %v950, %v1180
        %v1182 = vpop.f32.mrf.mxu0
        %v1183 = vadd.f32 %v950, %v1182
        %1184 = vmatmul.bf16.gmra.mxu0 %v1035
        %v1185 = vpop.f32.mrf.mxu0
        %v1186 = vadd.f32 %v950, %v1185
        %v1187 = vpop.f32.mrf.mxu0
        %v1188 = vadd.f32 %v950, %v1187
        %1189 = vmatmul.bf16.gmra.mxu0 %v1038
        %v1190 = vpop.f32.mrf.mxu0
        %v1191 = vadd.f32 %v950, %v1190
        %v1192 = vpop.f32.mrf.mxu0
        %v1193 = vadd.f32 %v950, %v1192
        %1194 = vmatmul.bf16.gmra.mxu0 %v1041
        %v1195 = vpop.f32.mrf.mxu0
        %v1196 = vadd.f32 %v950, %v1195
        %v1197 = vpop.f32.mrf.mxu0
        %v1198 = vadd.f32 %v950, %v1197
        %1199 = vmatmul.bf16.gmra.mxu0 %v1044
        %v1200 = vpop.f32.mrf.mxu0
        %v1201 = vadd.f32 %v950, %v1200
        %v1202 = vpop.f32.mrf.mxu0
        %v1203 = vadd.f32 %v950, %v1202
        %1204 = vmatmul.bf16.gmra.mxu0 %v1047
        %v1205 = vpop.f32.mrf.mxu0
        %v1206 = vadd.f32 %v950, %v1205
        %v1207 = vpop.f32.mrf.mxu0
        %v1208 = vadd.f32 %v950, %v1207
        %1209 = vmatmul.bf16.gmra.mxu0 %v1050
        %v1210 = vpop.f32.mrf.mxu0
        %v1211 = vadd.f32 %v950, %v1210
        %v1212 = vpop.f32.mrf.mxu0
        %v1213 = vadd.f32 %v950, %v1212
        %1214 = vmatmul.bf16.gmra.mxu0 %v1053
        %v1215 = vpop.f32.mrf.mxu0
        %v1216 = vadd.f32 %v950, %v1215
        %v1217 = vpop.f32.mrf.mxu0
        %v1218 = vadd.f32 %v950, %v1217
        %1219 = vmatmul.bf16.gmra.mxu0 %v1056
        %v1220 = vpop.f32.mrf.mxu0
        %v1221 = vadd.f32 %v950, %v1220
        %v1222 = vpop.f32.mrf.mxu0
        %v1223 = vadd.f32 %v950, %v1222
        %1224 = vmatmul.bf16.gmra.mxu0 %v1059
        %v1225 = vpop.f32.mrf.mxu0
        %v1226 = vadd.f32 %v950, %v1225
        %v1227 = vpop.f32.mrf.mxu0
        %v1228 = vadd.f32 %v950, %v1227
        %1229 = vdwg.mxu0
        %v1230 = vmax.f32 %v1071, 0.0
        %v1231 = vmax.f32 %v1073, 0.0
        %v1232 = vmax.f32 %v1076, 0.0
        %v1233 = vmax.f32 %v1078, 0.0
        %v1234 = vmax.f32 %v1081, 0.0
        %v1235 = vmax.f32 %v1083, 0.0
        %v1236 = vmax.f32 %v1086, 0.0
        %v1237 = vmax.f32 %v1088, 0.0
        %v1238 = vmax.f32 %v1091, 0.0
        %v1239 = vmax.f32 %v1093, 0.0
        %v1240 = vmax.f32 %v1096, 0.0
        %v1241 = vmax.f32 %v1098, 0.0
        %v1242 = vmax.f32 %v1101, 0.0
        %v1243 = vmax.f32 %v1103, 0.0
        %v1244 = vmax.f32 %v1106, 0.0
        %v1245 = vmax.f32 %v1108, 0.0
        %v1246 = vmax.f32 %v1111, 0.0
        %v1247 = vmax.f32 %v1113, 0.0
        %v1248 = vmax.f32 %v1116, 0.0
        %v1249 = vmax.f32 %v1118, 0.0
        %v1250 = vmax.f32 %v1121, 0.0
        %v1251 = vmax.f32 %v1123, 0.0
        %v1252 = vmax.f32 %v1126, 0.0
        %v1253 = vmax.f32 %v1128, 0.0
        %v1254 = vmax.f32 %v1131, 0.0
        %v1255 = vmax.f32 %v1133, 0.0
        %v1256 = vmax.f32 %v1136, 0.0
        %v1257 = vmax.f32 %v1138, 0.0
        %v1258 = vmax.f32 %v1141, 0.0
        %v1259 = vmax.f32 %v1143, 0.0
        %v1260 = vmax.f32 %v1146, 0.0
        %v1261 = vmax.f32 %v1148, 0.0
        %v1262 = vmax.f32 %v1151, 0.0
        %v1263 = vmax.f32 %v1153, 0.0
        %v1264 = vmax.f32 %v1156, 0.0
        %v1265 = vmax.f32 %v1158, 0.0
        %v1266 = vmax.f32 %v1161, 0.0
        %v1267 = vmax.f32 %v1163, 0.0
        %v1268 = vmax.f32 %v1166, 0.0
        %v1269 = vmax.f32 %v1168, 0.0
        %v1270 = vmax.f32 %v1171, 0.0
        %v1271 = vmax.f32 %v1173, 0.0
        %v1272 = vmax.f32 %v1176, 0.0
        %v1273 = vmax.f32 %v1178, 0.0
        %v1274 = vmax.f32 %v1181, 0.0
        %v1275 = vmax.f32 %v1183, 0.0
        %v1276 = vmax.f32 %v1186, 0.0
        %v1277 = vmax.f32 %v1188, 0.0
        %v1278 = vmax.f32 %v1191, 0.0
        %v1279 = vmax.f32 %v1193, 0.0
        %v1280 = vmax.f32 %v1196, 0.0
        %v1281 = vmax.f32 %v1198, 0.0
        %v1282 = vmax.f32 %v1201, 0.0
        %v1283 = vmax.f32 %v1203, 0.0
        %v1284 = vmax.f32 %v1206, 0.0
        %v1285 = vmax.f32 %v1208, 0.0
        %v1286 = vmax.f32 %v1211, 0.0
        %v1287 = vmax.f32 %v1213, 0.0
        %v1288 = vmax.f32 %v1216, 0.0
        %v1289 = vmax.f32 %v1218, 0.0
        %v1290 = vmax.f32 %v1221, 0.0
        %v1291 = vmax.f32 %v1223, 0.0
        %v1292 = vmax.f32 %v1226, 0.0
        %v1293 = vmax.f32 %v1228, 0.0
        %v1294 = vpack.c.bf16 %v1230, %v1230
        %v1295 = vpack.c.bf16 %v1231, %v1231
        %v1296 = vpack.c.bf16 %v1232, %v1232
        %v1297 = vpack.c.bf16 %v1233, %v1233
        %v1298 = vpack.c.bf16 %v1234, %v1234
        %v1299 = vpack.c.bf16 %v1235, %v1235
        %v1300 = vpack.c.bf16 %v1236, %v1236
        %v1301 = vpack.c.bf16 %v1237, %v1237
        %v1302 = vpack.c.bf16 %v1238, %v1238
        %v1303 = vpack.c.bf16 %v1239, %v1239
        %v1304 = vpack.c.bf16 %v1240, %v1240
        %v1305 = vpack.c.bf16 %v1241, %v1241
        %v1306 = vpack.c.bf16 %v1242, %v1242
        %v1307 = vpack.c.bf16 %v1243, %v1243
        %v1308 = vpack.c.bf16 %v1244, %v1244
        %v1309 = vpack.c.bf16 %v1245, %v1245
        %v1310 = vpack.c.bf16 %v1246, %v1246
        %v1311 = vpack.c.bf16 %v1247, %v1247
        %v1312 = vpack.c.bf16 %v1248, %v1248
        %v1313 = vpack.c.bf16 %v1249, %v1249
        %v1314 = vpack.c.bf16 %v1250, %v1250
        %v1315 = vpack.c.bf16 %v1251, %v1251
        %v1316 = vpack.c.bf16 %v1252, %v1252
        %v1317 = vpack.c.bf16 %v1253, %v1253
        %v1318 = vpack.c.bf16 %v1254, %v1254
        %v1319 = vpack.c.bf16 %v1255, %v1255
        %v1320 = vpack.c.bf16 %v1256, %v1256
        %v1321 = vpack.c.bf16 %v1257, %v1257
        %v1322 = vpack.c.bf16 %v1258, %v1258
        %v1323 = vpack.c.bf16 %v1259, %v1259
        %v1324 = vpack.c.bf16 %v1260, %v1260
        %v1325 = vpack.c.bf16 %v1261, %v1261
        %v1326 = vpack.c.bf16 %v1262, %v1262
        %v1327 = vpack.c.bf16 %v1263, %v1263
        %v1328 = vpack.c.bf16 %v1264, %v1264
        %v1329 = vpack.c.bf16 %v1265, %v1265
        %v1330 = vpack.c.bf16 %v1266, %v1266
        %v1331 = vpack.c.bf16 %v1267, %v1267
        %v1332 = vpack.c.bf16 %v1268, %v1268
        %v1333 = vpack.c.bf16 %v1269, %v1269
        %v1334 = vpack.c.bf16 %v1270, %v1270
        %v1335 = vpack.c.bf16 %v1271, %v1271
        %v1336 = vpack.c.bf16 %v1272, %v1272
        %v1337 = vpack.c.bf16 %v1273, %v1273
        %v1338 = vpack.c.bf16 %v1274, %v1274
        %v1339 = vpack.c.bf16 %v1275, %v1275
        %v1340 = vpack.c.bf16 %v1276, %v1276
        %v1341 = vpack.c.bf16 %v1277, %v1277
        %v1342 = vpack.c.bf16 %v1278, %v1278
        %v1343 = vpack.c.bf16 %v1279, %v1279
        %v1344 = vpack.c.bf16 %v1280, %v1280
        %v1345 = vpack.c.bf16 %v1281, %v1281
        %v1346 = vpack.c.bf16 %v1282, %v1282
        %v1347 = vpack.c.bf16 %v1283, %v1283
        %v1348 = vpack.c.bf16 %v1284, %v1284
        %v1349 = vpack.c.bf16 %v1285, %v1285
        %v1350 = vpack.c.bf16 %v1286, %v1286
        %v1351 = vpack.c.bf16 %v1287, %v1287
        %v1352 = vpack.c.bf16 %v1288, %v1288
        %v1353 = vpack.c.bf16 %v1289, %v1289
        %v1354 = vpack.c.bf16 %v1290, %v1290
        %v1355 = vpack.c.bf16 %v1291, %v1291
        %v1356 = vpack.c.bf16 %v1292, %v1292
        %v1357 = vpack.c.bf16 %v1293, %v1293
        %vm1358 = vcmask 257024
        %1359 = vst.msk [vmem:[#allocation2] sm:$0xf] %vm1358, 0
        %1360 = vst.msk [vmem:[#allocation2 + $0x4] sm:$0xf] %vm1358, 0
        %vm1361 = vcmask 253952
        %1362 = vst.msk [vmem:[#allocation2 + $0x8] sm:$0x1] %vm1361, 0
        %1363 = vst.msk [vmem:[#allocation2 + $0xd8] sm:$0xf] %vm1358, 0
        %1364 = vst.msk [vmem:[#allocation2 + $0xdc] sm:$0xf] %vm1358, 0
        %1365 = vst.msk [vmem:[#allocation2 + $0xe0] sm:$0x1] %vm1361, 0
        %s1366 = scalar_lea.vmem [#allocation2], 204
        %1367 = vst.msk [vmem:[%s1366] sm:$0xf] %vm1358, 0
        %1368 = vst.msk [vmem:[%s1366 + $0x4] sm:$0xf] %vm1358, 0
        %1369 = vst.msk [vmem:[%s1366 + $0x8] sm:$0x1] %vm1361, 0
        %1370 = vst.msk [vmem:[%s1366 + $0xd8] sm:$0xf] %vm1358, 0
        %1371 = vst.msk [vmem:[%s1366 + $0xdc] sm:$0xf] %vm1358, 0
        %1372 = vst.msk [vmem:[%s1366 + $0xe0] sm:$0x1] %vm1361, 0
        %vm1373 = vcmask 253952
        %vm1374 = vsmask.f32 256
        %vm1375 = vmand %vm1373, %vm1374
        %v1376 = vld [vmem:[#allocation2] sm:$0x1]
        %v1377 = vsel %vm1375, 0, %v1376
        %1378 = vst [vmem:[#allocation2] sm:$0x1] %v1377
        %v1379 = vld [vmem:[#allocation2 + $0xc] sm:$0x1]
        %v1380 = vsel %vm1375, 0, %v1379
        %1381 = vst [vmem:[#allocation2 + $0xc] sm:$0x1] %v1380
        %v1382 = vld [vmem:[#allocation2 + $0x18] sm:$0x1]
        %v1383 = vsel %vm1375, 0, %v1382
        %1384 = vst [vmem:[#allocation2 + $0x18] sm:$0x1] %v1383
        %v1385 = vld [vmem:[#allocation2 + $0x24] sm:$0x1]
        %v1386 = vsel %vm1375, 0, %v1385
        %1387 = vst [vmem:[#allocation2 + $0x24] sm:$0x1] %v1386
        %v1388 = vld [vmem:[#allocation2 + $0x30] sm:$0x1]
        %v1389 = vsel %vm1375, 0, %v1388
        %1390 = vst [vmem:[#allocation2 + $0x30] sm:$0x1] %v1389
        %v1391 = vld [vmem:[#allocation2 + $0x3c] sm:$0x1]
        %v1392 = vsel %vm1375, 0, %v1391
        %1393 = vst [vmem:[#allocation2 + $0x3c] sm:$0x1] %v1392
        %v1394 = vld [vmem:[#allocation2 + $0x48] sm:$0x1]
        %v1395 = vsel %vm1375, 0, %v1394
        %1396 = vst [vmem:[#allocation2 + $0x48] sm:$0x1] %v1395
        %v1397 = vld [vmem:[#allocation2 + $0x54] sm:$0x1]
        %v1398 = vsel %vm1375, 0, %v1397
        %1399 = vst [vmem:[#allocation2 + $0x54] sm:$0x1] %v1398
        %v1400 = vld [vmem:[#allocation2 + $0x60] sm:$0x1]
        %v1401 = vsel %vm1375, 0, %v1400
        %1402 = vst [vmem:[#allocation2 + $0x60] sm:$0x1] %v1401
        %v1403 = vld [vmem:[#allocation2 + $0x6c] sm:$0x1]
        %v1404 = vsel %vm1375, 0, %v1403
        %1405 = vst [vmem:[#allocation2 + $0x6c] sm:$0x1] %v1404
        %v1406 = vld [vmem:[#allocation2 + $0x78] sm:$0x1]
        %v1407 = vsel %vm1375, 0, %v1406
        %1408 = vst [vmem:[#allocation2 + $0x78] sm:$0x1] %v1407
        %v1409 = vld [vmem:[#allocation2 + $0x84] sm:$0x1]
        %v1410 = vsel %vm1375, 0, %v1409
        %1411 = vst [vmem:[#allocation2 + $0x84] sm:$0x1] %v1410
        %v1412 = vld [vmem:[#allocation2 + $0x90] sm:$0x1]
        %v1413 = vsel %vm1375, 0, %v1412
        %1414 = vst [vmem:[#allocation2 + $0x90] sm:$0x1] %v1413
        %v1415 = vld [vmem:[#allocation2 + $0x9c] sm:$0x1]
        %v1416 = vsel %vm1375, 0, %v1415
        %1417 = vst [vmem:[#allocation2 + $0x9c] sm:$0x1] %v1416
        %v1418 = vld [vmem:[#allocation2 + $0xa8] sm:$0x1]
        %v1419 = vsel %vm1375, 0, %v1418
        %1420 = vst [vmem:[#allocation2 + $0xa8] sm:$0x1] %v1419
        %v1421 = vld [vmem:[#allocation2 + $0xb4] sm:$0x1]
        %v1422 = vsel %vm1375, 0, %v1421
        %1423 = vst [vmem:[#allocation2 + $0xb4] sm:$0x1] %v1422
        %v1424 = vld [vmem:[#allocation2 + $0xc0] sm:$0x1]
        %v1425 = vsel %vm1375, 0, %v1424
        %1426 = vst [vmem:[#allocation2 + $0xc0] sm:$0x1] %v1425
        %v1427 = vld [vmem:[#allocation2 + $0xcc] sm:$0x1]
        %v1428 = vsel %vm1375, 0, %v1427
        %1429 = vst [vmem:[#allocation2 + $0xcc] sm:$0x1] %v1428
        %v1430 = vld [vmem:[#allocation2 + $0xd8] sm:$0x1]
        %v1431 = vsel %vm1375, 0, %v1430
        %1432 = vst [vmem:[#allocation2 + $0xd8] sm:$0x1] %v1431
        %v1433 = vld [vmem:[#allocation2 + $0xe4] sm:$0x1]
        %v1434 = vsel %vm1375, 0, %v1433
        %1435 = vst [vmem:[#allocation2 + $0xe4] sm:$0x1] %v1434
        %v1436 = vld [vmem:[#allocation2 + $0xf0] sm:$0x1]
        %v1437 = vsel %vm1375, 0, %v1436
        %1438 = vst [vmem:[#allocation2 + $0xf0] sm:$0x1] %v1437
        %v1439 = vld [vmem:[#allocation2 + $0xfc] sm:$0x1]
        %v1440 = vsel %vm1375, 0, %v1439
        %1441 = vst [vmem:[#allocation2 + $0xfc] sm:$0x1] %v1440
        %v1442 = vld [vmem:[#allocation2 + $0x108] sm:$0x1]
        %v1443 = vsel %vm1375, 0, %v1442
        %1444 = vst [vmem:[#allocation2 + $0x108] sm:$0x1] %v1443
        %v1445 = vld [vmem:[#allocation2 + $0x114] sm:$0x1]
        %v1446 = vsel %vm1375, 0, %v1445
        %1447 = vst [vmem:[#allocation2 + $0x114] sm:$0x1] %v1446
        %v1448 = vld [vmem:[#allocation2 + $0x120] sm:$0x1]
        %v1449 = vsel %vm1375, 0, %v1448
        %1450 = vst [vmem:[#allocation2 + $0x120] sm:$0x1] %v1449
        %v1451 = vld [vmem:[#allocation2 + $0x12c] sm:$0x1]
        %v1452 = vsel %vm1375, 0, %v1451
        %1453 = vst [vmem:[#allocation2 + $0x12c] sm:$0x1] %v1452
        %v1454 = vld [vmem:[#allocation2 + $0x138] sm:$0x1]
        %v1455 = vsel %vm1375, 0, %v1454
        %1456 = vst [vmem:[#allocation2 + $0x138] sm:$0x1] %v1455
        %v1457 = vld [vmem:[#allocation2 + $0x144] sm:$0x1]
        %v1458 = vsel %vm1375, 0, %v1457
        %1459 = vst [vmem:[#allocation2 + $0x144] sm:$0x1] %v1458
        %v1460 = vld [vmem:[#allocation2 + $0x150] sm:$0x1]
        %v1461 = vsel %vm1375, 0, %v1460
        %1462 = vst [vmem:[#allocation2 + $0x150] sm:$0x1] %v1461
        %v1463 = vld [vmem:[#allocation2 + $0x15c] sm:$0x1]
        %v1464 = vsel %vm1375, 0, %v1463
        %1465 = vst [vmem:[#allocation2 + $0x15c] sm:$0x1] %v1464
        %v1466 = vld [vmem:[#allocation2 + $0x168] sm:$0x1]
        %v1467 = vsel %vm1375, 0, %v1466
        %1468 = vst [vmem:[#allocation2 + $0x168] sm:$0x1] %v1467
        %v1469 = vld [vmem:[#allocation2 + $0x174] sm:$0x1]
        %v1470 = vsel %vm1375, 0, %v1469
        %1471 = vst [vmem:[#allocation2 + $0x174] sm:$0x1] %v1470
        %v1472 = vld [vmem:[#allocation2 + $0x180] sm:$0x1]
        %v1473 = vsel %vm1375, 0, %v1472
        %1474 = vst [vmem:[#allocation2 + $0x180] sm:$0x1] %v1473
        %v1475 = vld [vmem:[#allocation2 + $0x18c] sm:$0x1]
        %v1476 = vsel %vm1375, 0, %v1475
        %1477 = vst [vmem:[#allocation2 + $0x18c] sm:$0x1] %v1476
        %v1478 = vld [vmem:[#allocation2 + $0x198] sm:$0x1]
        %v1479 = vsel %vm1375, 0, %v1478
        %1480 = vst [vmem:[#allocation2 + $0x198] sm:$0x1] %v1479
        %v1481 = vld [vmem:[#allocation2 + $0x1a4] sm:$0x1]
        %v1482 = vsel %vm1375, 0, %v1481
        %1483 = vst [vmem:[#allocation2 + $0x1a4] sm:$0x1] %v1482
        %vm1484 = vsmask.f32 7938
        %vm1485 = vmand %vm1373, %vm1484
        %v1486 = vld [vmem:[#allocation2 + $0x8] sm:$0x1]
        %v1487 = vsel %vm1485, 0, %v1486
        %1488 = vst [vmem:[#allocation2 + $0x8] sm:$0x1] %v1487
        %v1489 = vld [vmem:[#allocation2 + $0x14] sm:$0x1]
        %v1490 = vsel %vm1485, 0, %v1489
        %1491 = vst [vmem:[#allocation2 + $0x14] sm:$0x1] %v1490
        %v1492 = vld [vmem:[#allocation2 + $0x20] sm:$0x1]
        %v1493 = vsel %vm1485, 0, %v1492
        %1494 = vst [vmem:[#allocation2 + $0x20] sm:$0x1] %v1493
        %v1495 = vld [vmem:[#allocation2 + $0x2c] sm:$0x1]
        %v1496 = vsel %vm1485, 0, %v1495
        %1497 = vst [vmem:[#allocation2 + $0x2c] sm:$0x1] %v1496
        %v1498 = vld [vmem:[#allocation2 + $0x38] sm:$0x1]
        %v1499 = vsel %vm1485, 0, %v1498
        %1500 = vst [vmem:[#allocation2 + $0x38] sm:$0x1] %v1499
        %v1501 = vld [vmem:[#allocation2 + $0x44] sm:$0x1]
        %v1502 = vsel %vm1485, 0, %v1501
        %1503 = vst [vmem:[#allocation2 + $0x44] sm:$0x1] %v1502
        %v1504 = vld [vmem:[#allocation2 + $0x50] sm:$0x1]
        %v1505 = vsel %vm1485, 0, %v1504
        %1506 = vst [vmem:[#allocation2 + $0x50] sm:$0x1] %v1505
        %v1507 = vld [vmem:[#allocation2 + $0x5c] sm:$0x1]
        %v1508 = vsel %vm1485, 0, %v1507
        %1509 = vst [vmem:[#allocation2 + $0x5c] sm:$0x1] %v1508
        %v1510 = vld [vmem:[#allocation2 + $0x68] sm:$0x1]
        %v1511 = vsel %vm1485, 0, %v1510
        %1512 = vst [vmem:[#allocation2 + $0x68] sm:$0x1] %v1511
        %v1513 = vld [vmem:[#allocation2 + $0x74] sm:$0x1]
        %v1514 = vsel %vm1485, 0, %v1513
        %1515 = vst [vmem:[#allocation2 + $0x74] sm:$0x1] %v1514
        %v1516 = vld [vmem:[#allocation2 + $0x80] sm:$0x1]
        %v1517 = vsel %vm1485, 0, %v1516
        %1518 = vst [vmem:[#allocation2 + $0x80] sm:$0x1] %v1517
        %v1519 = vld [vmem:[#allocation2 + $0x8c] sm:$0x1]
        %v1520 = vsel %vm1485, 0, %v1519
        %1521 = vst [vmem:[#allocation2 + $0x8c] sm:$0x1] %v1520
        %v1522 = vld [vmem:[#allocation2 + $0x98] sm:$0x1]
        %v1523 = vsel %vm1485, 0, %v1522
        %1524 = vst [vmem:[#allocation2 + $0x98] sm:$0x1] %v1523
        %v1525 = vld [vmem:[#allocation2 + $0xa4] sm:$0x1]
        %v1526 = vsel %vm1485, 0, %v1525
        %1527 = vst [vmem:[#allocation2 + $0xa4] sm:$0x1] %v1526
        %v1528 = vld [vmem:[#allocation2 + $0xb0] sm:$0x1]
        %v1529 = vsel %vm1485, 0, %v1528
        %1530 = vst [vmem:[#allocation2 + $0xb0] sm:$0x1] %v1529
        %v1531 = vld [vmem:[#allocation2 + $0xbc] sm:$0x1]
        %v1532 = vsel %vm1485, 0, %v1531
        %1533 = vst [vmem:[#allocation2 + $0xbc] sm:$0x1] %v1532
        %v1534 = vld [vmem:[#allocation2 + $0xc8] sm:$0x1]
        %v1535 = vsel %vm1485, 0, %v1534
        %1536 = vst [vmem:[#allocation2 + $0xc8] sm:$0x1] %v1535
        %v1537 = vld [vmem:[#allocation2 + $0xd4] sm:$0x1]
        %v1538 = vsel %vm1485, 0, %v1537
        %1539 = vst [vmem:[#allocation2 + $0xd4] sm:$0x1] %v1538
        %v1540 = vld [vmem:[#allocation2 + $0xe0] sm:$0x1]
        %v1541 = vsel %vm1485, 0, %v1540
        %1542 = vst [vmem:[#allocation2 + $0xe0] sm:$0x1] %v1541
        %v1543 = vld [vmem:[#allocation2 + $0xec] sm:$0x1]
        %v1544 = vsel %vm1485, 0, %v1543
        %1545 = vst [vmem:[#allocation2 + $0xec] sm:$0x1] %v1544
        %v1546 = vld [vmem:[#allocation2 + $0xf8] sm:$0x1]
        %v1547 = vsel %vm1485, 0, %v1546
        %1548 = vst [vmem:[#allocation2 + $0xf8] sm:$0x1] %v1547
        %v1549 = vld [vmem:[#allocation2 + $0x104] sm:$0x1]
        %v1550 = vsel %vm1485, 0, %v1549
        %1551 = vst [vmem:[#allocation2 + $0x104] sm:$0x1] %v1550
        %v1552 = vld [vmem:[#allocation2 + $0x110] sm:$0x1]
        %v1553 = vsel %vm1485, 0, %v1552
        %1554 = vst [vmem:[#allocation2 + $0x110] sm:$0x1] %v1553
        %v1555 = vld [vmem:[#allocation2 + $0x11c] sm:$0x1]
        %v1556 = vsel %vm1485, 0, %v1555
        %1557 = vst [vmem:[#allocation2 + $0x11c] sm:$0x1] %v1556
        %v1558 = vld [vmem:[#allocation2 + $0x128] sm:$0x1]
        %v1559 = vsel %vm1485, 0, %v1558
        %1560 = vst [vmem:[#allocation2 + $0x128] sm:$0x1] %v1559
        %v1561 = vld [vmem:[#allocation2 + $0x134] sm:$0x1]
        %v1562 = vsel %vm1485, 0, %v1561
        %1563 = vst [vmem:[#allocation2 + $0x134] sm:$0x1] %v1562
        %v1564 = vld [vmem:[#allocation2 + $0x140] sm:$0x1]
        %v1565 = vsel %vm1485, 0, %v1564
        %1566 = vst [vmem:[#allocation2 + $0x140] sm:$0x1] %v1565
        %v1567 = vld [vmem:[#allocation2 + $0x14c] sm:$0x1]
        %v1568 = vsel %vm1485, 0, %v1567
        %1569 = vst [vmem:[#allocation2 + $0x14c] sm:$0x1] %v1568
        %v1570 = vld [vmem:[#allocation2 + $0x158] sm:$0x1]
        %v1571 = vsel %vm1485, 0, %v1570
        %1572 = vst [vmem:[#allocation2 + $0x158] sm:$0x1] %v1571
        %v1573 = vld [vmem:[#allocation2 + $0x164] sm:$0x1]
        %v1574 = vsel %vm1485, 0, %v1573
        %1575 = vst [vmem:[#allocation2 + $0x164] sm:$0x1] %v1574
        %v1576 = vld [vmem:[#allocation2 + $0x170] sm:$0x1]
        %v1577 = vsel %vm1485, 0, %v1576
        %1578 = vst [vmem:[#allocation2 + $0x170] sm:$0x1] %v1577
        %v1579 = vld [vmem:[#allocation2 + $0x17c] sm:$0x1]
        %v1580 = vsel %vm1485, 0, %v1579
        %1581 = vst [vmem:[#allocation2 + $0x17c] sm:$0x1] %v1580
        %v1582 = vld [vmem:[#allocation2 + $0x188] sm:$0x1]
        %v1583 = vsel %vm1485, 0, %v1582
        %1584 = vst [vmem:[#allocation2 + $0x188] sm:$0x1] %v1583
        %v1585 = vld [vmem:[#allocation2 + $0x194] sm:$0x1]
        %v1586 = vsel %vm1485, 0, %v1585
        %1587 = vst [vmem:[#allocation2 + $0x194] sm:$0x1] %v1586
        %v1588 = vld [vmem:[#allocation2 + $0x1a0] sm:$0x1]
        %v1589 = vsel %vm1485, 0, %v1588
        %1590 = vst [vmem:[#allocation2 + $0x1a0] sm:$0x1] %v1589
        %v1591 = vld [vmem:[#allocation2 + $0x1ac] sm:$0x1]
        %v1592 = vsel %vm1485, 0, %v1591
        %1593 = vst [vmem:[#allocation2 + $0x1ac] sm:$0x1] %v1592
        %vm1594 = vsmask.f32 4368
        %vm1595 = vmor %vm1374, %vm1594
        %v1597 = vshrl.u32 %v1294, 16
        %v1599 = vrot.slane %v1597, 7
        %v1600 = vshll.u32 %v1294, 16
        %v1602 = vor.u32 %v1599, %v1600
        %v1603 = vrot.slane %v1599, 4
        %v1605 = vshrl.u32 %v1295, 16
        %v1607 = vrot.slane %v1605, 7
        %v1608 = vshll.u32 %v1295, 16
        %v1610 = vor.u32 %v1607, %v1608
        %v1611 = vsel %vm1595, %v1603, %v1610
        %v1612 = vrot.slane %v1607, 4
        %v1614 = vshrl.u32 %v1296, 16
        %v1616 = vrot.slane %v1614, 7
        %v1617 = vshll.u32 %v1296, 16
        %v1619 = vor.u32 %v1616, %v1617
        %v1620 = vrot.slane %v1616, 4
        %v1622 = vshrl.u32 %v1297, 16
        %v1624 = vrot.slane %v1622, 7
        %v1625 = vshll.u32 %v1297, 16
        %v1627 = vor.u32 %v1624, %v1625
        %v1628 = vsel %vm1595, %v1620, %v1627
        %v1629 = vrot.slane %v1624, 4
        %v1631 = vshrl.u32 %v1298, 16
        %v1633 = vrot.slane %v1631, 7
        %v1634 = vshll.u32 %v1298, 16
        %v1636 = vor.u32 %v1633, %v1634
        %v1637 = vrot.slane %v1633, 4
        %v1639 = vshrl.u32 %v1299, 16
        %v1641 = vrot.slane %v1639, 7
        %v1642 = vshll.u32 %v1299, 16
        %v1644 = vor.u32 %v1641, %v1642
        %v1645 = vsel %vm1595, %v1637, %v1644
        %v1646 = vrot.slane %v1641, 4
        %v1648 = vshrl.u32 %v1300, 16
        %v1650 = vrot.slane %v1648, 7
        %v1651 = vshll.u32 %v1300, 16
        %v1653 = vor.u32 %v1650, %v1651
        %v1654 = vrot.slane %v1650, 4
        %v1656 = vshrl.u32 %v1301, 16
        %v1658 = vrot.slane %v1656, 7
        %v1659 = vshll.u32 %v1301, 16
        %v1661 = vor.u32 %v1658, %v1659
        %v1662 = vsel %vm1595, %v1654, %v1661
        %v1663 = vrot.slane %v1658, 4
        %v1665 = vshrl.u32 %v1302, 16
        %v1667 = vrot.slane %v1665, 7
        %v1668 = vshll.u32 %v1302, 16
        %v1670 = vor.u32 %v1667, %v1668
        %v1671 = vrot.slane %v1667, 4
        %v1673 = vshrl.u32 %v1303, 16
        %v1675 = vrot.slane %v1673, 7
        %v1676 = vshll.u32 %v1303, 16
        %v1678 = vor.u32 %v1675, %v1676
        %v1679 = vsel %vm1595, %v1671, %v1678
        %v1680 = vrot.slane %v1675, 4
        %v1682 = vshrl.u32 %v1304, 16
        %v1684 = vrot.slane %v1682, 7
        %v1685 = vshll.u32 %v1304, 16
        %v1687 = vor.u32 %v1684, %v1685
        %v1688 = vrot.slane %v1684, 4
        %v1690 = vshrl.u32 %v1305, 16
        %v1692 = vrot.slane %v1690, 7
        %v1693 = vshll.u32 %v1305, 16
        %v1695 = vor.u32 %v1692, %v1693
        %v1696 = vsel %vm1595, %v1688, %v1695
        %v1697 = vrot.slane %v1692, 4
        %v1699 = vshrl.u32 %v1306, 16
        %v1701 = vrot.slane %v1699, 7
        %v1702 = vshll.u32 %v1306, 16
        %v1704 = vor.u32 %v1701, %v1702
        %v1705 = vrot.slane %v1701, 4
        %v1707 = vshrl.u32 %v1307, 16
        %v1709 = vrot.slane %v1707, 7
        %v1710 = vshll.u32 %v1307, 16
        %v1712 = vor.u32 %v1709, %v1710
        %v1713 = vsel %vm1595, %v1705, %v1712
        %v1714 = vrot.slane %v1709, 4
        %v1716 = vshrl.u32 %v1308, 16
        %v1718 = vrot.slane %v1716, 7
        %v1719 = vshll.u32 %v1308, 16
        %v1721 = vor.u32 %v1718, %v1719
        %v1722 = vrot.slane %v1718, 4
        %v1724 = vshrl.u32 %v1309, 16
        %v1726 = vrot.slane %v1724, 7
        %v1727 = vshll.u32 %v1309, 16
        %v1729 = vor.u32 %v1726, %v1727
        %v1730 = vsel %vm1595, %v1722, %v1729
        %v1731 = vrot.slane %v1726, 4
        %v1733 = vshrl.u32 %v1310, 16
        %v1735 = vrot.slane %v1733, 7
        %v1736 = vshll.u32 %v1310, 16
        %v1738 = vor.u32 %v1735, %v1736
        %v1739 = vrot.slane %v1735, 4
        %v1741 = vshrl.u32 %v1311, 16
        %v1743 = vrot.slane %v1741, 7
        %v1744 = vshll.u32 %v1311, 16
        %v1746 = vor.u32 %v1743, %v1744
        %v1747 = vsel %vm1595, %v1739, %v1746
        %v1748 = vrot.slane %v1743, 4
        %v1750 = vshrl.u32 %v1312, 16
        %v1752 = vrot.slane %v1750, 7
        %v1753 = vshll.u32 %v1312, 16
        %v1755 = vor.u32 %v1752, %v1753
        %v1756 = vrot.slane %v1752, 4
        %v1758 = vshrl.u32 %v1313, 16
        %v1760 = vrot.slane %v1758, 7
        %v1761 = vshll.u32 %v1313, 16
        %v1763 = vor.u32 %v1760, %v1761
        %v1764 = vsel %vm1595, %v1756, %v1763
        %v1765 = vrot.slane %v1760, 4
        %v1767 = vshrl.u32 %v1314, 16
        %v1769 = vrot.slane %v1767, 7
        %v1770 = vshll.u32 %v1314, 16
        %v1772 = vor.u32 %v1769, %v1770
        %v1773 = vrot.slane %v1769, 4
        %v1775 = vshrl.u32 %v1315, 16
        %v1777 = vrot.slane %v1775, 7
        %v1778 = vshll.u32 %v1315, 16
        %v1780 = vor.u32 %v1777, %v1778
        %v1781 = vsel %vm1595, %v1773, %v1780
        %v1782 = vrot.slane %v1777, 4
        %v1784 = vshrl.u32 %v1316, 16
        %v1786 = vrot.slane %v1784, 7
        %v1787 = vshll.u32 %v1316, 16
        %v1789 = vor.u32 %v1786, %v1787
        %v1790 = vrot.slane %v1786, 4
        %v1792 = vshrl.u32 %v1317, 16
        %v1794 = vrot.slane %v1792, 7
        %v1795 = vshll.u32 %v1317, 16
        %v1797 = vor.u32 %v1794, %v1795
        %v1798 = vsel %vm1595, %v1790, %v1797
        %v1799 = vrot.slane %v1794, 4
        %v1801 = vshrl.u32 %v1318, 16
        %v1803 = vrot.slane %v1801, 7
        %v1804 = vshll.u32 %v1318, 16
        %v1806 = vor.u32 %v1803, %v1804
        %v1807 = vrot.slane %v1803, 4
        %v1809 = vshrl.u32 %v1319, 16
        %v1811 = vrot.slane %v1809, 7
        %v1812 = vshll.u32 %v1319, 16
        %v1814 = vor.u32 %v1811, %v1812
        %v1815 = vsel %vm1595, %v1807, %v1814
        %v1816 = vrot.slane %v1811, 4
        %v1818 = vshrl.u32 %v1320, 16
        %v1820 = vrot.slane %v1818, 7
        %v1821 = vshll.u32 %v1320, 16
        %v1823 = vor.u32 %v1820, %v1821
        %v1824 = vrot.slane %v1820, 4
        %v1826 = vshrl.u32 %v1321, 16
        %v1828 = vrot.slane %v1826, 7
        %v1829 = vshll.u32 %v1321, 16
        %v1831 = vor.u32 %v1828, %v1829
        %v1832 = vsel %vm1595, %v1824, %v1831
        %v1833 = vrot.slane %v1828, 4
        %v1835 = vshrl.u32 %v1322, 16
        %v1837 = vrot.slane %v1835, 7
        %v1838 = vshll.u32 %v1322, 16
        %v1840 = vor.u32 %v1837, %v1838
        %v1841 = vrot.slane %v1837, 4
        %v1843 = vshrl.u32 %v1323, 16
        %v1845 = vrot.slane %v1843, 7
        %v1846 = vshll.u32 %v1323, 16
        %v1848 = vor.u32 %v1845, %v1846
        %v1849 = vsel %vm1595, %v1841, %v1848
        %v1850 = vrot.slane %v1845, 4
        %v1852 = vshrl.u32 %v1324, 16
        %v1854 = vrot.slane %v1852, 7
        %v1855 = vshll.u32 %v1324, 16
        %v1857 = vor.u32 %v1854, %v1855
        %v1858 = vrot.slane %v1854, 4
        %v1860 = vshrl.u32 %v1325, 16
        %v1862 = vrot.slane %v1860, 7
        %v1863 = vshll.u32 %v1325, 16
        %v1865 = vor.u32 %v1862, %v1863
        %v1866 = vsel %vm1595, %v1858, %v1865
        %v1867 = vrot.slane %v1862, 4
        %v1869 = vshrl.u32 %v1326, 16
        %v1871 = vrot.slane %v1869, 7
        %v1872 = vshll.u32 %v1326, 16
        %v1874 = vor.u32 %v1871, %v1872
        %v1875 = vrot.slane %v1871, 4
        %v1877 = vshrl.u32 %v1327, 16
        %v1879 = vrot.slane %v1877, 7
        %v1880 = vshll.u32 %v1327, 16
        %v1882 = vor.u32 %v1879, %v1880
        %v1883 = vsel %vm1595, %v1875, %v1882
        %v1884 = vrot.slane %v1879, 4
        %v1886 = vshrl.u32 %v1328, 16
        %v1888 = vrot.slane %v1886, 7
        %v1889 = vshll.u32 %v1328, 16
        %v1891 = vor.u32 %v1888, %v1889
        %v1892 = vrot.slane %v1888, 4
        %v1894 = vshrl.u32 %v1329, 16
        %v1896 = vrot.slane %v1894, 7
        %v1897 = vshll.u32 %v1329, 16
        %v1899 = vor.u32 %v1896, %v1897
        %v1900 = vsel %vm1595, %v1892, %v1899
        %v1901 = vrot.slane %v1896, 4
        %v1903 = vshrl.u32 %v1330, 16
        %v1905 = vrot.slane %v1903, 7
        %v1906 = vshll.u32 %v1330, 16
        %v1908 = vor.u32 %v1905, %v1906
        %v1909 = vrot.slane %v1905, 4
        %v1911 = vshrl.u32 %v1331, 16
        %v1913 = vrot.slane %v1911, 7
        %v1914 = vshll.u32 %v1331, 16
        %v1916 = vor.u32 %v1913, %v1914
        %v1917 = vsel %vm1595, %v1909, %v1916
        %v1918 = vrot.slane %v1913, 4
        %v1920 = vshrl.u32 %v1332, 16
        %v1922 = vrot.slane %v1920, 7
        %v1923 = vshll.u32 %v1332, 16
        %v1925 = vor.u32 %v1922, %v1923
        %v1926 = vrot.slane %v1922, 4
        %v1928 = vshrl.u32 %v1333, 16
        %v1930 = vrot.slane %v1928, 7
        %v1931 = vshll.u32 %v1333, 16
        %v1933 = vor.u32 %v1930, %v1931
        %v1934 = vsel %vm1595, %v1926, %v1933
        %v1935 = vrot.slane %v1930, 4
        %v1937 = vshrl.u32 %v1334, 16
        %v1939 = vrot.slane %v1937, 7
        %v1940 = vshll.u32 %v1334, 16
        %v1942 = vor.u32 %v1939, %v1940
        %v1943 = vrot.slane %v1939, 4
        %v1945 = vshrl.u32 %v1335, 16
        %v1947 = vrot.slane %v1945, 7
        %v1948 = vshll.u32 %v1335, 16
        %v1950 = vor.u32 %v1947, %v1948
        %v1951 = vsel %vm1595, %v1943, %v1950
        %v1952 = vrot.slane %v1947, 4
        %v1954 = vshrl.u32 %v1336, 16
        %v1956 = vrot.slane %v1954, 7
        %v1957 = vshll.u32 %v1336, 16
        %v1959 = vor.u32 %v1956, %v1957
        %v1960 = vrot.slane %v1956, 4
        %v1962 = vshrl.u32 %v1337, 16
        %v1964 = vrot.slane %v1962, 7
        %v1965 = vshll.u32 %v1337, 16
        %v1967 = vor.u32 %v1964, %v1965
        %v1968 = vsel %vm1595, %v1960, %v1967
        %v1969 = vrot.slane %v1964, 4
        %v1971 = vshrl.u32 %v1338, 16
        %v1973 = vrot.slane %v1971, 7
        %v1974 = vshll.u32 %v1338, 16
        %v1976 = vor.u32 %v1973, %v1974
        %v1977 = vrot.slane %v1973, 4
        %v1979 = vshrl.u32 %v1339, 16
        %v1981 = vrot.slane %v1979, 7
        %v1982 = vshll.u32 %v1339, 16
        %v1984 = vor.u32 %v1981, %v1982
        %v1985 = vsel %vm1595, %v1977, %v1984
        %v1986 = vrot.slane %v1981, 4
        %v1988 = vshrl.u32 %v1340, 16
        %v1990 = vrot.slane %v1988, 7
        %v1991 = vshll.u32 %v1340, 16
        %v1993 = vor.u32 %v1990, %v1991
        %v1994 = vrot.slane %v1990, 4
        %v1996 = vshrl.u32 %v1341, 16
        %v1998 = vrot.slane %v1996, 7
        %v1999 = vshll.u32 %v1341, 16
        %v2001 = vor.u32 %v1998, %v1999
        %v2002 = vsel %vm1595, %v1994, %v2001
        %v2003 = vrot.slane %v1998, 4
        %v2005 = vshrl.u32 %v1342, 16
        %v2007 = vrot.slane %v2005, 7
        %v2008 = vshll.u32 %v1342, 16
        %v2010 = vor.u32 %v2007, %v2008
        %v2011 = vrot.slane %v2007, 4
        %v2013 = vshrl.u32 %v1343, 16
        %v2015 = vrot.slane %v2013, 7
        %v2016 = vshll.u32 %v1343, 16
        %v2018 = vor.u32 %v2015, %v2016
        %v2019 = vsel %vm1595, %v2011, %v2018
        %v2020 = vrot.slane %v2015, 4
        %v2022 = vshrl.u32 %v1344, 16
        %v2024 = vrot.slane %v2022, 7
        %v2025 = vshll.u32 %v1344, 16
        %v2027 = vor.u32 %v2024, %v2025
        %v2028 = vrot.slane %v2024, 4
        %v2030 = vshrl.u32 %v1345, 16
        %v2032 = vrot.slane %v2030, 7
        %v2033 = vshll.u32 %v1345, 16
        %v2035 = vor.u32 %v2032, %v2033
        %v2036 = vsel %vm1595, %v2028, %v2035
        %v2037 = vrot.slane %v2032, 4
        %v2039 = vshrl.u32 %v1346, 16
        %v2041 = vrot.slane %v2039, 7
        %v2042 = vshll.u32 %v1346, 16
        %v2044 = vor.u32 %v2041, %v2042
        %v2045 = vrot.slane %v2041, 4
        %v2047 = vshrl.u32 %v1347, 16
        %v2049 = vrot.slane %v2047, 7
        %v2050 = vshll.u32 %v1347, 16
        %v2052 = vor.u32 %v2049, %v2050
        %v2053 = vsel %vm1595, %v2045, %v2052
        %v2054 = vrot.slane %v2049, 4
        %v2056 = vshrl.u32 %v1348, 16
        %v2058 = vrot.slane %v2056, 7
        %v2059 = vshll.u32 %v1348, 16
        %v2061 = vor.u32 %v2058, %v2059
        %v2062 = vrot.slane %v2058, 4
        %v2064 = vshrl.u32 %v1349, 16
        %v2066 = vrot.slane %v2064, 7
        %v2067 = vshll.u32 %v1349, 16
        %v2069 = vor.u32 %v2066, %v2067
        %v2070 = vsel %vm1595, %v2062, %v2069
        %v2071 = vrot.slane %v2066, 4
        %v2073 = vshrl.u32 %v1350, 16
        %v2075 = vrot.slane %v2073, 7
        %v2076 = vshll.u32 %v1350, 16
        %v2078 = vor.u32 %v2075, %v2076
        %v2079 = vrot.slane %v2075, 4
        %v2081 = vshrl.u32 %v1351, 16
        %v2083 = vrot.slane %v2081, 7
        %v2084 = vshll.u32 %v1351, 16
        %v2086 = vor.u32 %v2083, %v2084
        %v2087 = vsel %vm1595, %v2079, %v2086
        %v2088 = vrot.slane %v2083, 4
        %v2090 = vshrl.u32 %v1352, 16
        %v2092 = vrot.slane %v2090, 7
        %v2093 = vshll.u32 %v1352, 16
        %v2095 = vor.u32 %v2092, %v2093
        %v2096 = vrot.slane %v2092, 4
        %v2098 = vshrl.u32 %v1353, 16
        %v2100 = vrot.slane %v2098, 7
        %v2101 = vshll.u32 %v1353, 16
        %v2103 = vor.u32 %v2100, %v2101
        %v2104 = vsel %vm1595, %v2096, %v2103
        %v2105 = vrot.slane %v2100, 4
        %v2107 = vshrl.u32 %v1354, 16
        %v2109 = vrot.slane %v2107, 7
        %v2110 = vshll.u32 %v1354, 16
        %v2112 = vor.u32 %v2109, %v2110
        %v2113 = vrot.slane %v2109, 4
        %v2115 = vshrl.u32 %v1355, 16
        %v2117 = vrot.slane %v2115, 7
        %v2118 = vshll.u32 %v1355, 16
        %v2120 = vor.u32 %v2117, %v2118
        %v2121 = vsel %vm1595, %v2113, %v2120
        %v2122 = vrot.slane %v2117, 4
        %v2124 = vshrl.u32 %v1356, 16
        %v2126 = vrot.slane %v2124, 7
        %v2127 = vshll.u32 %v1356, 16
        %v2129 = vor.u32 %v2126, %v2127
        %v2130 = vrot.slane %v2126, 4
        %v2132 = vshrl.u32 %v1357, 16
        %v2134 = vrot.slane %v2132, 7
        %v2135 = vshll.u32 %v1357, 16
        %v2137 = vor.u32 %v2134, %v2135
        %v2138 = vsel %vm1595, %v2130, %v2137
        %v2139 = vrot.slane %v2134, 4
        %s2236 = scalar_lea.vmem [#allocation2], 12
        %vm2237 = vcmask 257024
        %vm2238 = vmand %vm2237, %vm1484
        %v2239 = vld [vmem:[%s2236] sm:$0xf]
        %v2240 = vsel %vm2238, %v1602, %v2239
        %2241 = vst [vmem:[%s2236] sm:$0xf] %v2240
        %2242 = vst.msk [vmem:[%s2236 + $0x4] sm:$0xf] %vm1358, %v1611
        %v2243 = vld [vmem:[%s2236 + $0x8] sm:$0x1]
        %v2244 = vsel %vm1375, %v1612, %v2243
        %2245 = vst [vmem:[%s2236 + $0x8] sm:$0x1] %v2244
        %v2246 = vld [vmem:[%s2236 + $0xc] sm:$0xf]
        %v2247 = vsel %vm2238, %v1619, %v2246
        %2248 = vst [vmem:[%s2236 + $0xc] sm:$0xf] %v2247
        %2249 = vst.msk [vmem:[%s2236 + $0x10] sm:$0xf] %vm1358, %v1628
        %v2250 = vld [vmem:[%s2236 + $0x14] sm:$0x1]
        %v2251 = vsel %vm1375, %v1629, %v2250
        %2252 = vst [vmem:[%s2236 + $0x14] sm:$0x1] %v2251
        %v2253 = vld [vmem:[%s2236 + $0x18] sm:$0xf]
        %v2254 = vsel %vm2238, %v1636, %v2253
        %2255 = vst [vmem:[%s2236 + $0x18] sm:$0xf] %v2254
        %2256 = vst.msk [vmem:[%s2236 + $0x1c] sm:$0xf] %vm1358, %v1645
        %v2257 = vld [vmem:[%s2236 + $0x20] sm:$0x1]
        %v2258 = vsel %vm1375, %v1646, %v2257
        %2259 = vst [vmem:[%s2236 + $0x20] sm:$0x1] %v2258
        %v2260 = vld [vmem:[%s2236 + $0x24] sm:$0xf]
        %v2261 = vsel %vm2238, %v1653, %v2260
        %2262 = vst [vmem:[%s2236 + $0x24] sm:$0xf] %v2261
        %2263 = vst.msk [vmem:[%s2236 + $0x28] sm:$0xf] %vm1358, %v1662
        %v2264 = vld [vmem:[%s2236 + $0x2c] sm:$0x1]
        %v2265 = vsel %vm1375, %v1663, %v2264
        %2266 = vst [vmem:[%s2236 + $0x2c] sm:$0x1] %v2265
        %v2267 = vld [vmem:[%s2236 + $0x30] sm:$0xf]
        %v2268 = vsel %vm2238, %v1670, %v2267
        %2269 = vst [vmem:[%s2236 + $0x30] sm:$0xf] %v2268
        %2270 = vst.msk [vmem:[%s2236 + $0x34] sm:$0xf] %vm1358, %v1679
        %v2271 = vld [vmem:[%s2236 + $0x38] sm:$0x1]
        %v2272 = vsel %vm1375, %v1680, %v2271
        %2273 = vst [vmem:[%s2236 + $0x38] sm:$0x1] %v2272
        %v2274 = vld [vmem:[%s2236 + $0x3c] sm:$0xf]
        %v2275 = vsel %vm2238, %v1687, %v2274
        %2276 = vst [vmem:[%s2236 + $0x3c] sm:$0xf] %v2275
        %2277 = vst.msk [vmem:[%s2236 + $0x40] sm:$0xf] %vm1358, %v1696
        %v2278 = vld [vmem:[%s2236 + $0x44] sm:$0x1]
        %v2279 = vsel %vm1375, %v1697, %v2278
        %2280 = vst [vmem:[%s2236 + $0x44] sm:$0x1] %v2279
        %v2281 = vld [vmem:[%s2236 + $0x48] sm:$0xf]
        %v2282 = vsel %vm2238, %v1704, %v2281
        %2283 = vst [vmem:[%s2236 + $0x48] sm:$0xf] %v2282
        %2284 = vst.msk [vmem:[%s2236 + $0x4c] sm:$0xf] %vm1358, %v1713
        %v2285 = vld [vmem:[%s2236 + $0x50] sm:$0x1]
        %v2286 = vsel %vm1375, %v1714, %v2285
        %2287 = vst [vmem:[%s2236 + $0x50] sm:$0x1] %v2286
        %v2288 = vld [vmem:[%s2236 + $0x54] sm:$0xf]
        %v2289 = vsel %vm2238, %v1721, %v2288
        %2290 = vst [vmem:[%s2236 + $0x54] sm:$0xf] %v2289
        %2291 = vst.msk [vmem:[%s2236 + $0x58] sm:$0xf] %vm1358, %v1730
        %v2292 = vld [vmem:[%s2236 + $0x5c] sm:$0x1]
        %v2293 = vsel %vm1375, %v1731, %v2292
        %2294 = vst [vmem:[%s2236 + $0x5c] sm:$0x1] %v2293
        %v2295 = vld [vmem:[%s2236 + $0x60] sm:$0xf]
        %v2296 = vsel %vm2238, %v1738, %v2295
        %2297 = vst [vmem:[%s2236 + $0x60] sm:$0xf] %v2296
        %2298 = vst.msk [vmem:[%s2236 + $0x64] sm:$0xf] %vm1358, %v1747
        %v2299 = vld [vmem:[%s2236 + $0x68] sm:$0x1]
        %v2300 = vsel %vm1375, %v1748, %v2299
        %2301 = vst [vmem:[%s2236 + $0x68] sm:$0x1] %v2300
        %v2302 = vld [vmem:[%s2236 + $0x6c] sm:$0xf]
        %v2303 = vsel %vm2238, %v1755, %v2302
        %2304 = vst [vmem:[%s2236 + $0x6c] sm:$0xf] %v2303
        %2305 = vst.msk [vmem:[%s2236 + $0x70] sm:$0xf] %vm1358, %v1764
        %v2306 = vld [vmem:[%s2236 + $0x74] sm:$0x1]
        %v2307 = vsel %vm1375, %v1765, %v2306
        %2308 = vst [vmem:[%s2236 + $0x74] sm:$0x1] %v2307
        %v2309 = vld [vmem:[%s2236 + $0x78] sm:$0xf]
        %v2310 = vsel %vm2238, %v1772, %v2309
        %2311 = vst [vmem:[%s2236 + $0x78] sm:$0xf] %v2310
        %2312 = vst.msk [vmem:[%s2236 + $0x7c] sm:$0xf] %vm1358, %v1781
        %v2313 = vld [vmem:[%s2236 + $0x80] sm:$0x1]
        %v2314 = vsel %vm1375, %v1782, %v2313
        %2315 = vst [vmem:[%s2236 + $0x80] sm:$0x1] %v2314
        %v2316 = vld [vmem:[%s2236 + $0x84] sm:$0xf]
        %v2317 = vsel %vm2238, %v1789, %v2316
        %2318 = vst [vmem:[%s2236 + $0x84] sm:$0xf] %v2317
        %2319 = vst.msk [vmem:[%s2236 + $0x88] sm:$0xf] %vm1358, %v1798
        %v2320 = vld [vmem:[%s2236 + $0x8c] sm:$0x1]
        %v2321 = vsel %vm1375, %v1799, %v2320
        %2322 = vst [vmem:[%s2236 + $0x8c] sm:$0x1] %v2321
        %v2323 = vld [vmem:[%s2236 + $0x90] sm:$0xf]
        %v2324 = vsel %vm2238, %v1806, %v2323
        %2325 = vst [vmem:[%s2236 + $0x90] sm:$0xf] %v2324
        %2326 = vst.msk [vmem:[%s2236 + $0x94] sm:$0xf] %vm1358, %v1815
        %v2327 = vld [vmem:[%s2236 + $0x98] sm:$0x1]
        %v2328 = vsel %vm1375, %v1816, %v2327
        %2329 = vst [vmem:[%s2236 + $0x98] sm:$0x1] %v2328
        %v2330 = vld [vmem:[%s2236 + $0x9c] sm:$0xf]
        %v2331 = vsel %vm2238, %v1823, %v2330
        %2332 = vst [vmem:[%s2236 + $0x9c] sm:$0xf] %v2331
        %2333 = vst.msk [vmem:[%s2236 + $0xa0] sm:$0xf] %vm1358, %v1832
        %v2334 = vld [vmem:[%s2236 + $0xa4] sm:$0x1]
        %v2335 = vsel %vm1375, %v1833, %v2334
        %2336 = vst [vmem:[%s2236 + $0xa4] sm:$0x1] %v2335
        %v2337 = vld [vmem:[%s2236 + $0xa8] sm:$0xf]
        %v2338 = vsel %vm2238, %v1840, %v2337
        %2339 = vst [vmem:[%s2236 + $0xa8] sm:$0xf] %v2338
        %2340 = vst.msk [vmem:[%s2236 + $0xac] sm:$0xf] %vm1358, %v1849
        %v2341 = vld [vmem:[%s2236 + $0xb0] sm:$0x1]
        %v2342 = vsel %vm1375, %v1850, %v2341
        %2343 = vst [vmem:[%s2236 + $0xb0] sm:$0x1] %v2342
        %v2344 = vld [vmem:[%s2236 + $0xb4] sm:$0xf]
        %v2345 = vsel %vm2238, %v1857, %v2344
        %2346 = vst [vmem:[%s2236 + $0xb4] sm:$0xf] %v2345
        %2347 = vst.msk [vmem:[%s2236 + $0xb8] sm:$0xf] %vm1358, %v1866
        %v2348 = vld [vmem:[%s2236 + $0xbc] sm:$0x1]
        %v2349 = vsel %vm1375, %v1867, %v2348
        %2350 = vst [vmem:[%s2236 + $0xbc] sm:$0x1] %v2349
        %v2351 = vld [vmem:[%s2236 + $0xd8] sm:$0xf]
        %v2352 = vsel %vm2238, %v1874, %v2351
        %2353 = vst [vmem:[%s2236 + $0xd8] sm:$0xf] %v2352
        %2354 = vst.msk [vmem:[%s2236 + $0xdc] sm:$0xf] %vm1358, %v1883
        %v2355 = vld [vmem:[%s2236 + $0xe0] sm:$0x1]
        %v2356 = vsel %vm1375, %v1884, %v2355
        %2357 = vst [vmem:[%s2236 + $0xe0] sm:$0x1] %v2356
        %v2358 = vld [vmem:[%s2236 + $0xe4] sm:$0xf]
        %v2359 = vsel %vm2238, %v1891, %v2358
        %2360 = vst [vmem:[%s2236 + $0xe4] sm:$0xf] %v2359
        %2361 = vst.msk [vmem:[%s2236 + $0xe8] sm:$0xf] %vm1358, %v1900
        %v2362 = vld [vmem:[%s2236 + $0xec] sm:$0x1]
        %v2363 = vsel %vm1375, %v1901, %v2362
        %2364 = vst [vmem:[%s2236 + $0xec] sm:$0x1] %v2363
        %v2365 = vld [vmem:[%s2236 + $0xf0] sm:$0xf]
        %v2366 = vsel %vm2238, %v1908, %v2365
        %2367 = vst [vmem:[%s2236 + $0xf0] sm:$0xf] %v2366
        %2368 = vst.msk [vmem:[%s2236 + $0xf4] sm:$0xf] %vm1358, %v1917
        %v2369 = vld [vmem:[%s2236 + $0xf8] sm:$0x1]
        %v2370 = vsel %vm1375, %v1918, %v2369
        %2371 = vst [vmem:[%s2236 + $0xf8] sm:$0x1] %v2370
        %v2372 = vld [vmem:[%s2236 + $0xfc] sm:$0xf]
        %v2373 = vsel %vm2238, %v1925, %v2372
        %2374 = vst [vmem:[%s2236 + $0xfc] sm:$0xf] %v2373
        %2375 = vst.msk [vmem:[%s2236 + $0x100] sm:$0xf] %vm1358, %v1934
        %v2376 = vld [vmem:[%s2236 + $0x104] sm:$0x1]
        %v2377 = vsel %vm1375, %v1935, %v2376
        %2378 = vst [vmem:[%s2236 + $0x104] sm:$0x1] %v2377
        %v2379 = vld [vmem:[%s2236 + $0x108] sm:$0xf]
        %v2380 = vsel %vm2238, %v1942, %v2379
        %2381 = vst [vmem:[%s2236 + $0x108] sm:$0xf] %v2380
        %2382 = vst.msk [vmem:[%s2236 + $0x10c] sm:$0xf] %vm1358, %v1951
        %v2383 = vld [vmem:[%s2236 + $0x110] sm:$0x1]
        %v2384 = vsel %vm1375, %v1952, %v2383
        %2385 = vst [vmem:[%s2236 + $0x110] sm:$0x1] %v2384
        %v2386 = vld [vmem:[%s2236 + $0x114] sm:$0xf]
        %v2387 = vsel %vm2238, %v1959, %v2386
        %2388 = vst [vmem:[%s2236 + $0x114] sm:$0xf] %v2387
        %2389 = vst.msk [vmem:[%s2236 + $0x118] sm:$0xf] %vm1358, %v1968
        %v2390 = vld [vmem:[%s2236 + $0x11c] sm:$0x1]
        %v2391 = vsel %vm1375, %v1969, %v2390
        %2392 = vst [vmem:[%s2236 + $0x11c] sm:$0x1] %v2391
        %v2393 = vld [vmem:[%s2236 + $0x120] sm:$0xf]
        %v2394 = vsel %vm2238, %v1976, %v2393
        %2395 = vst [vmem:[%s2236 + $0x120] sm:$0xf] %v2394
        %2396 = vst.msk [vmem:[%s2236 + $0x124] sm:$0xf] %vm1358, %v1985
        %v2397 = vld [vmem:[%s2236 + $0x128] sm:$0x1]
        %v2398 = vsel %vm1375, %v1986, %v2397
        %2399 = vst [vmem:[%s2236 + $0x128] sm:$0x1] %v2398
        %v2400 = vld [vmem:[%s2236 + $0x12c] sm:$0xf]
        %v2401 = vsel %vm2238, %v1993, %v2400
        %2402 = vst [vmem:[%s2236 + $0x12c] sm:$0xf] %v2401
        %2403 = vst.msk [vmem:[%s2236 + $0x130] sm:$0xf] %vm1358, %v2002
        %v2404 = vld [vmem:[%s2236 + $0x134] sm:$0x1]
        %v2405 = vsel %vm1375, %v2003, %v2404
        %2406 = vst [vmem:[%s2236 + $0x134] sm:$0x1] %v2405
        %v2407 = vld [vmem:[%s2236 + $0x138] sm:$0xf]
        %v2408 = vsel %vm2238, %v2010, %v2407
        %2409 = vst [vmem:[%s2236 + $0x138] sm:$0xf] %v2408
        %2410 = vst.msk [vmem:[%s2236 + $0x13c] sm:$0xf] %vm1358, %v2019
        %v2411 = vld [vmem:[%s2236 + $0x140] sm:$0x1]
        %v2412 = vsel %vm1375, %v2020, %v2411
        %2413 = vst [vmem:[%s2236 + $0x140] sm:$0x1] %v2412
        %v2414 = vld [vmem:[%s2236 + $0x144] sm:$0xf]
        %v2415 = vsel %vm2238, %v2027, %v2414
        %2416 = vst [vmem:[%s2236 + $0x144] sm:$0xf] %v2415
        %2417 = vst.msk [vmem:[%s2236 + $0x148] sm:$0xf] %vm1358, %v2036
        %v2418 = vld [vmem:[%s2236 + $0x14c] sm:$0x1]
        %v2419 = vsel %vm1375, %v2037, %v2418
        %2420 = vst [vmem:[%s2236 + $0x14c] sm:$0x1] %v2419
        %v2421 = vld [vmem:[%s2236 + $0x150] sm:$0xf]
        %v2422 = vsel %vm2238, %v2044, %v2421
        %2423 = vst [vmem:[%s2236 + $0x150] sm:$0xf] %v2422
        %2424 = vst.msk [vmem:[%s2236 + $0x154] sm:$0xf] %vm1358, %v2053
        %v2425 = vld [vmem:[%s2236 + $0x158] sm:$0x1]
        %v2426 = vsel %vm1375, %v2054, %v2425
        %2427 = vst [vmem:[%s2236 + $0x158] sm:$0x1] %v2426
        %v2428 = vld [vmem:[%s2236 + $0x15c] sm:$0xf]
        %v2429 = vsel %vm2238, %v2061, %v2428
        %2430 = vst [vmem:[%s2236 + $0x15c] sm:$0xf] %v2429
        %2431 = vst.msk [vmem:[%s2236 + $0x160] sm:$0xf] %vm1358, %v2070
        %v2432 = vld [vmem:[%s2236 + $0x164] sm:$0x1]
        %v2433 = vsel %vm1375, %v2071, %v2432
        %2434 = vst [vmem:[%s2236 + $0x164] sm:$0x1] %v2433
        %v2435 = vld [vmem:[%s2236 + $0x168] sm:$0xf]
        %v2436 = vsel %vm2238, %v2078, %v2435
        %2437 = vst [vmem:[%s2236 + $0x168] sm:$0xf] %v2436
        %2438 = vst.msk [vmem:[%s2236 + $0x16c] sm:$0xf] %vm1358, %v2087
        %v2439 = vld [vmem:[%s2236 + $0x170] sm:$0x1]
        %v2440 = vsel %vm1375, %v2088, %v2439
        %2441 = vst [vmem:[%s2236 + $0x170] sm:$0x1] %v2440
        %v2442 = vld [vmem:[%s2236 + $0x174] sm:$0xf]
        %v2443 = vsel %vm2238, %v2095, %v2442
        %2444 = vst [vmem:[%s2236 + $0x174] sm:$0xf] %v2443
        %2445 = vst.msk [vmem:[%s2236 + $0x178] sm:$0xf] %vm1358, %v2104
        %v2446 = vld [vmem:[%s2236 + $0x17c] sm:$0x1]
        %v2447 = vsel %vm1375, %v2105, %v2446
        %2448 = vst [vmem:[%s2236 + $0x17c] sm:$0x1] %v2447
        %v2449 = vld [vmem:[%s2236 + $0x180] sm:$0xf]
        %v2450 = vsel %vm2238, %v2112, %v2449
        %2451 = vst [vmem:[%s2236 + $0x180] sm:$0xf] %v2450
        %2452 = vst.msk [vmem:[%s2236 + $0x184] sm:$0xf] %vm1358, %v2121
        %v2453 = vld [vmem:[%s2236 + $0x188] sm:$0x1]
        %v2454 = vsel %vm1375, %v2122, %v2453
        %2455 = vst [vmem:[%s2236 + $0x188] sm:$0x1] %v2454
        %v2456 = vld [vmem:[%s2236 + $0x18c] sm:$0xf]
        %v2457 = vsel %vm2238, %v2129, %v2456
        %2458 = vst [vmem:[%s2236 + $0x18c] sm:$0xf] %v2457
        %2459 = vst.msk [vmem:[%s2236 + $0x190] sm:$0xf] %vm1358, %v2138
        %v2460 = vld [vmem:[%s2236 + $0x194] sm:$0x1]
        %v2461 = vsel %vm1375, %v2139, %v2460
        %2462 = vst [vmem:[%s2236 + $0x194] sm:$0x1] %v2461
        %v2463 = vld [vmem:[#allocation2] sm:$0xf]
        %v2464 = vld [vmem:[#allocation2 + $0x4] sm:$0xf]
        %v2465 = vld [vmem:[#allocation2 + $0xc] sm:$0xf]
        %v2466 = vld [vmem:[#allocation2 + $0x10] sm:$0xf]
        %v2467 = vld [vmem:[#allocation2 + $0x18] sm:$0xf]
        %v2468 = vld [vmem:[#allocation2 + $0x1c] sm:$0xf]
        %v2469 = vld [vmem:[#allocation2 + $0x24] sm:$0xf]
        %v2470 = vld [vmem:[#allocation2 + $0x28] sm:$0xf]
        %v2471 = vld [vmem:[#allocation2 + $0x30] sm:$0xf]
        %v2472 = vld [vmem:[#allocation2 + $0x34] sm:$0xf]
        %v2473 = vld [vmem:[#allocation2 + $0x3c] sm:$0xf]
        %v2474 = vld [vmem:[#allocation2 + $0x40] sm:$0xf]
        %v2475 = vld [vmem:[#allocation2 + $0x48] sm:$0xf]
        %v2476 = vld [vmem:[#allocation2 + $0x4c] sm:$0xf]
        %v2477 = vld [vmem:[#allocation2 + $0x54] sm:$0xf]
        %v2478 = vld [vmem:[#allocation2 + $0x58] sm:$0xf]
        %v2479 = vld [vmem:[#allocation2 + $0x60] sm:$0xf]
        %v2480 = vld [vmem:[#allocation2 + $0x64] sm:$0xf]
        %v2481 = vld [vmem:[#allocation2 + $0x6c] sm:$0xf]
        %v2482 = vld [vmem:[#allocation2 + $0x70] sm:$0xf]
        %v2483 = vld [vmem:[#allocation2 + $0x78] sm:$0xf]
        %v2484 = vld [vmem:[#allocation2 + $0x7c] sm:$0xf]
        %v2485 = vld [vmem:[#allocation2 + $0x84] sm:$0xf]
        %v2486 = vld [vmem:[#allocation2 + $0x88] sm:$0xf]
        %v2487 = vld [vmem:[#allocation2 + $0x90] sm:$0xf]
        %v2488 = vld [vmem:[#allocation2 + $0x94] sm:$0xf]
        %v2489 = vld [vmem:[#allocation2 + $0x9c] sm:$0xf]
        %v2490 = vld [vmem:[#allocation2 + $0xa0] sm:$0xf]
        %v2491 = vld [vmem:[#allocation2 + $0xa8] sm:$0xf]
        %v2492 = vld [vmem:[#allocation2 + $0xac] sm:$0xf]
        %v2493 = vld [vmem:[#allocation2 + $0xb4] sm:$0xf]
        %v2494 = vld [vmem:[#allocation2 + $0xb8] sm:$0xf]
        %v2495 = vld [vmem:[#allocation2 + $0xd8] sm:$0xf]
        %v2496 = vld [vmem:[#allocation2 + $0xdc] sm:$0xf]
        %v2497 = vld [vmem:[#allocation2 + $0xe4] sm:$0xf]
        %v2498 = vld [vmem:[#allocation2 + $0xe8] sm:$0xf]
        %v2499 = vld [vmem:[#allocation2 + $0xf0] sm:$0xf]
        %v2500 = vld [vmem:[#allocation2 + $0xf4] sm:$0xf]
        %v2501 = vld [vmem:[#allocation2 + $0xfc] sm:$0xf]
        %v2502 = vld [vmem:[#allocation2 + $0x100] sm:$0xf]
        %v2503 = vld [vmem:[#allocation2 + $0x108] sm:$0xf]
        %v2504 = vld [vmem:[#allocation2 + $0x10c] sm:$0xf]
        %v2505 = vld [vmem:[#allocation2 + $0x114] sm:$0xf]
        %v2506 = vld [vmem:[#allocation2 + $0x118] sm:$0xf]
        %v2507 = vld [vmem:[#allocation2 + $0x120] sm:$0xf]
        %v2508 = vld [vmem:[#allocation2 + $0x124] sm:$0xf]
        %v2509 = vld [vmem:[#allocation2 + $0x12c] sm:$0xf]
        %v2510 = vld [vmem:[#allocation2 + $0x130] sm:$0xf]
        %v2511 = vld [vmem:[#allocation2 + $0x138] sm:$0xf]
        %v2512 = vld [vmem:[#allocation2 + $0x13c] sm:$0xf]
        %v2513 = vld [vmem:[#allocation2 + $0x144] sm:$0xf]
        %v2514 = vld [vmem:[#allocation2 + $0x148] sm:$0xf]
        %v2515 = vld [vmem:[#allocation2 + $0x150] sm:$0xf]
        %v2516 = vld [vmem:[#allocation2 + $0x154] sm:$0xf]
        %v2517 = vld [vmem:[#allocation2 + $0x15c] sm:$0xf]
        %v2518 = vld [vmem:[#allocation2 + $0x160] sm:$0xf]
        %v2519 = vld [vmem:[#allocation2 + $0x168] sm:$0xf]
        %v2520 = vld [vmem:[#allocation2 + $0x16c] sm:$0xf]
        %v2521 = vld [vmem:[#allocation2 + $0x174] sm:$0xf]
        %v2522 = vld [vmem:[#allocation2 + $0x178] sm:$0xf]
        %v2523 = vld [vmem:[#allocation2 + $0x180] sm:$0xf]
        %v2524 = vld [vmem:[#allocation2 + $0x184] sm:$0xf]
        %v2525 = vld [vmem:[#allocation2 + $0x18c] sm:$0xf]
        %v2526 = vld [vmem:[#allocation2 + $0x190] sm:$0xf]
        %2527 = vst.msk [vmem:[#allocation3] sm:$0xf] %vm1358, %v2463
        %2528 = vst.msk [vmem:[#allocation3 + $0xc] sm:$0xf] %vm1358, %v2464
        %2529 = vst.msk [vmem:[#allocation3 + $0x18] sm:$0xf] %vm1358, %v2465
        %2530 = vst.msk [vmem:[#allocation3 + $0x24] sm:$0xf] %vm1358, %v2466
        %2531 = vst.msk [vmem:[#allocation3 + $0x30] sm:$0xf] %vm1358, %v2467
        %2532 = vst.msk [vmem:[#allocation3 + $0x3c] sm:$0xf] %vm1358, %v2468
        %2533 = vst.msk [vmem:[#allocation3 + $0x48] sm:$0xf] %vm1358, %v2469
        %2534 = vst.msk [vmem:[#allocation3 + $0x54] sm:$0xf] %vm1358, %v2470
        %2535 = vst.msk [vmem:[#allocation3 + $0x60] sm:$0xf] %vm1358, %v2471
        %2536 = vst.msk [vmem:[#allocation3 + $0x6c] sm:$0xf] %vm1358, %v2472
        %2537 = vst.msk [vmem:[#allocation3 + $0x78] sm:$0xf] %vm1358, %v2473
        %2538 = vst.msk [vmem:[#allocation3 + $0x84] sm:$0xf] %vm1358, %v2474
        %2539 = vst.msk [vmem:[#allocation3 + $0x90] sm:$0xf] %vm1358, %v2475
        %2540 = vst.msk [vmem:[#allocation3 + $0x9c] sm:$0xf] %vm1358, %v2476
        %2541 = vst.msk [vmem:[#allocation3 + $0xa8] sm:$0xf] %vm1358, %v2477
        %2542 = vst.msk [vmem:[#allocation3 + $0xb4] sm:$0xf] %vm1358, %v2478
        %2543 = vst.msk [vmem:[#allocation3 + $0xc0] sm:$0xf] %vm1358, %v2479
        %2544 = vst.msk [vmem:[#allocation3 + $0xcc] sm:$0xf] %vm1358, %v2480
        %2545 = vst.msk [vmem:[#allocation3 + $0xd8] sm:$0xf] %vm1358, %v2481
        %2546 = vst.msk [vmem:[#allocation3 + $0xe4] sm:$0xf] %vm1358, %v2482
        %2547 = vst.msk [vmem:[#allocation3 + $0xf0] sm:$0xf] %vm1358, %v2483
        %2548 = vst.msk [vmem:[#allocation3 + $0xfc] sm:$0xf] %vm1358, %v2484
        %2549 = vst.msk [vmem:[#allocation3 + $0x108] sm:$0xf] %vm1358, %v2485
        %2550 = vst.msk [vmem:[#allocation3 + $0x114] sm:$0xf] %vm1358, %v2486
        %2551 = vst.msk [vmem:[#allocation3 + $0x120] sm:$0xf] %vm1358, %v2487
        %2552 = vst.msk [vmem:[#allocation3 + $0x12c] sm:$0xf] %vm1358, %v2488
        %2553 = vst.msk [vmem:[#allocation3 + $0x138] sm:$0xf] %vm1358, %v2489
        %2554 = vst.msk [vmem:[#allocation3 + $0x144] sm:$0xf] %vm1358, %v2490
        %2555 = vst.msk [vmem:[#allocation3 + $0x150] sm:$0xf] %vm1358, %v2491
        %2556 = vst.msk [vmem:[#allocation3 + $0x15c] sm:$0xf] %vm1358, %v2492
        %2557 = vst.msk [vmem:[#allocation3 + $0x168] sm:$0xf] %vm1358, %v2493
        %2558 = vst.msk [vmem:[#allocation3 + $0x174] sm:$0xf] %vm1358, %v2494
        %2559 = vst.msk [vmem:[#allocation3 + $0x180] sm:$0xf] %vm1358, %v2495
        %2560 = vst.msk [vmem:[#allocation3 + $0x18c] sm:$0xf] %vm1358, %v2496
        %2561 = vst.msk [vmem:[#allocation3 + $0x198] sm:$0xf] %vm1358, %v2497
        %2562 = vst.msk [vmem:[#allocation3 + $0x1a4] sm:$0xf] %vm1358, %v2498
        %2563 = vst.msk [vmem:[#allocation3 + $0x1b0] sm:$0xf] %vm1358, %v2499
        %2564 = vst.msk [vmem:[#allocation3 + $0x1bc] sm:$0xf] %vm1358, %v2500
        %2565 = vst.msk [vmem:[#allocation3 + $0x1c8] sm:$0xf] %vm1358, %v2501
        %2566 = vst.msk [vmem:[#allocation3 + $0x1d4] sm:$0xf] %vm1358, %v2502
        %2567 = vst.msk [vmem:[#allocation3 + $0x1e0] sm:$0xf] %vm1358, %v2503
        %2568 = vst.msk [vmem:[#allocation3 + $0x1ec] sm:$0xf] %vm1358, %v2504
        %2569 = vst.msk [vmem:[#allocation3 + $0x1f8] sm:$0xf] %vm1358, %v2505
        %2570 = vst.msk [vmem:[#allocation3 + $0x204] sm:$0xf] %vm1358, %v2506
        %2571 = vst.msk [vmem:[#allocation3 + $0x210] sm:$0xf] %vm1358, %v2507
        %2572 = vst.msk [vmem:[#allocation3 + $0x21c] sm:$0xf] %vm1358, %v2508
        %2573 = vst.msk [vmem:[#allocation3 + $0x228] sm:$0xf] %vm1358, %v2509
        %2574 = vst.msk [vmem:[#allocation3 + $0x234] sm:$0xf] %vm1358, %v2510
        %2575 = vst.msk [vmem:[#allocation3 + $0x240] sm:$0xf] %vm1358, %v2511
        %2576 = vst.msk [vmem:[#allocation3 + $0x24c] sm:$0xf] %vm1358, %v2512
        %2577 = vst.msk [vmem:[#allocation3 + $0x258] sm:$0xf] %vm1358, %v2513
        %2578 = vst.msk [vmem:[#allocation3 + $0x264] sm:$0xf] %vm1358, %v2514
        %2579 = vst.msk [vmem:[#allocation3 + $0x270] sm:$0xf] %vm1358, %v2515
        %2580 = vst.msk [vmem:[#allocation3 + $0x27c] sm:$0xf] %vm1358, %v2516
        %2581 = vst.msk [vmem:[#allocation3 + $0x288] sm:$0xf] %vm1358, %v2517
        %2582 = vst.msk [vmem:[#allocation3 + $0x294] sm:$0xf] %vm1358, %v2518
        %2583 = vst.msk [vmem:[#allocation3 + $0x2a0] sm:$0xf] %vm1358, %v2519
        %2584 = vst.msk [vmem:[#allocation3 + $0x2ac] sm:$0xf] %vm1358, %v2520
        %2585 = vst.msk [vmem:[#allocation3 + $0x2b8] sm:$0xf] %vm1358, %v2521
        %2586 = vst.msk [vmem:[#allocation3 + $0x2c4] sm:$0xf] %vm1358, %v2522
        %2587 = vst.msk [vmem:[#allocation3 + $0x2d0] sm:$0xf] %vm1358, %v2523
        %2588 = vst.msk [vmem:[#allocation3 + $0x2dc] sm:$0xf] %vm1358, %v2524
        %2589 = vst.msk [vmem:[#allocation3 + $0x2e8] sm:$0xf] %vm1358, %v2525
        %2590 = vst.msk [vmem:[#allocation3 + $0x2f4] sm:$0xf] %vm1358, %v2526
        %v2591 = vld [vmem:[#allocation2] sm:$0xf]
        %v2592 = vld [vmem:[#allocation2 + $0x4] sm:$0xf]
        %v2593 = vld [vmem:[#allocation2 + $0x8] sm:$0x1]
        %v2594 = vld [vmem:[#allocation2 + $0xc] sm:$0xf]
        %v2595 = vld [vmem:[#allocation2 + $0x10] sm:$0xf]
        %v2596 = vld [vmem:[#allocation2 + $0x14] sm:$0x1]
        %v2597 = vld [vmem:[#allocation2 + $0x18] sm:$0xf]
        %v2598 = vld [vmem:[#allocation2 + $0x1c] sm:$0xf]
        %v2599 = vld [vmem:[#allocation2 + $0x20] sm:$0x1]
        %v2600 = vld [vmem:[#allocation2 + $0x24] sm:$0xf]
        %v2601 = vld [vmem:[#allocation2 + $0x28] sm:$0xf]
        %v2602 = vld [vmem:[#allocation2 + $0x2c] sm:$0x1]
        %v2603 = vld [vmem:[#allocation2 + $0x30] sm:$0xf]
        %v2604 = vld [vmem:[#allocation2 + $0x34] sm:$0xf]
        %v2605 = vld [vmem:[#allocation2 + $0x38] sm:$0x1]
        %v2606 = vld [vmem:[#allocation2 + $0x3c] sm:$0xf]
        %v2607 = vld [vmem:[#allocation2 + $0x40] sm:$0xf]
        %v2608 = vld [vmem:[#allocation2 + $0x44] sm:$0x1]
        %v2609 = vld [vmem:[#allocation2 + $0x48] sm:$0xf]
        %v2610 = vld [vmem:[#allocation2 + $0x4c] sm:$0xf]
        %v2611 = vld [vmem:[#allocation2 + $0x50] sm:$0x1]
        %v2612 = vld [vmem:[#allocation2 + $0x54] sm:$0xf]
        %v2613 = vld [vmem:[#allocation2 + $0x58] sm:$0xf]
        %v2614 = vld [vmem:[#allocation2 + $0x5c] sm:$0x1]
        %v2615 = vld [vmem:[#allocation2 + $0x60] sm:$0xf]
        %v2616 = vld [vmem:[#allocation2 + $0x64] sm:$0xf]
        %v2617 = vld [vmem:[#allocation2 + $0x68] sm:$0x1]
        %v2618 = vld [vmem:[#allocation2 + $0x6c] sm:$0xf]
        %v2619 = vld [vmem:[#allocation2 + $0x70] sm:$0xf]
        %v2620 = vld [vmem:[#allocation2 + $0x74] sm:$0x1]
        %v2621 = vld [vmem:[#allocation2 + $0x78] sm:$0xf]
        %v2622 = vld [vmem:[#allocation2 + $0x7c] sm:$0xf]
        %v2623 = vld [vmem:[#allocation2 + $0x80] sm:$0x1]
        %v2624 = vld [vmem:[#allocation2 + $0x84] sm:$0xf]
        %v2625 = vld [vmem:[#allocation2 + $0x88] sm:$0xf]
        %v2626 = vld [vmem:[#allocation2 + $0x8c] sm:$0x1]
        %v2627 = vld [vmem:[#allocation2 + $0x90] sm:$0xf]
        %v2628 = vld [vmem:[#allocation2 + $0x94] sm:$0xf]
        %v2629 = vld [vmem:[#allocation2 + $0x98] sm:$0x1]
        %v2630 = vld [vmem:[#allocation2 + $0x9c] sm:$0xf]
        %v2631 = vld [vmem:[#allocation2 + $0xa0] sm:$0xf]
        %v2632 = vld [vmem:[#allocation2 + $0xa4] sm:$0x1]
        %v2633 = vld [vmem:[#allocation2 + $0xa8] sm:$0xf]
        %v2634 = vld [vmem:[#allocation2 + $0xac] sm:$0xf]
        %v2635 = vld [vmem:[#allocation2 + $0xb0] sm:$0x1]
        %v2636 = vld [vmem:[#allocation2 + $0xb4] sm:$0xf]
        %v2637 = vld [vmem:[#allocation2 + $0xb8] sm:$0xf]
        %v2638 = vld [vmem:[#allocation2 + $0xbc] sm:$0x1]
        %v2639 = vld [vmem:[#allocation2 + $0xd8] sm:$0xf]
        %v2640 = vld [vmem:[#allocation2 + $0xdc] sm:$0xf]
        %v2641 = vld [vmem:[#allocation2 + $0xe0] sm:$0x1]
        %v2642 = vld [vmem:[#allocation2 + $0xe4] sm:$0xf]
        %v2643 = vld [vmem:[#allocation2 + $0xe8] sm:$0xf]
        %v2644 = vld [vmem:[#allocation2 + $0xec] sm:$0x1]
        %v2645 = vld [vmem:[#allocation2 + $0xf0] sm:$0xf]
        %v2646 = vld [vmem:[#allocation2 + $0xf4] sm:$0xf]
        %v2647 = vld [vmem:[#allocation2 + $0xf8] sm:$0x1]
        %v2648 = vld [vmem:[#allocation2 + $0xfc] sm:$0xf]
        %v2649 = vld [vmem:[#allocation2 + $0x100] sm:$0xf]
        %v2650 = vld [vmem:[#allocation2 + $0x104] sm:$0x1]
        %v2651 = vld [vmem:[#allocation2 + $0x108] sm:$0xf]
        %v2652 = vld [vmem:[#allocation2 + $0x10c] sm:$0xf]
        %v2653 = vld [vmem:[#allocation2 + $0x110] sm:$0x1]
        %v2654 = vld [vmem:[#allocation2 + $0x114] sm:$0xf]
        %v2655 = vld [vmem:[#allocation2 + $0x118] sm:$0xf]
        %v2656 = vld [vmem:[#allocation2 + $0x11c] sm:$0x1]
        %v2657 = vld [vmem:[#allocation2 + $0x120] sm:$0xf]
        %v2658 = vld [vmem:[#allocation2 + $0x124] sm:$0xf]
        %v2659 = vld [vmem:[#allocation2 + $0x128] sm:$0x1]
        %v2660 = vld [vmem:[#allocation2 + $0x12c] sm:$0xf]
        %v2661 = vld [vmem:[#allocation2 + $0x130] sm:$0xf]
        %v2662 = vld [vmem:[#allocation2 + $0x134] sm:$0x1]
        %v2663 = vld [vmem:[#allocation2 + $0x138] sm:$0xf]
        %v2664 = vld [vmem:[#allocation2 + $0x13c] sm:$0xf]
        %v2665 = vld [vmem:[#allocation2 + $0x140] sm:$0x1]
        %v2666 = vld [vmem:[#allocation2 + $0x144] sm:$0xf]
        %v2667 = vld [vmem:[#allocation2 + $0x148] sm:$0xf]
        %v2668 = vld [vmem:[#allocation2 + $0x14c] sm:$0x1]
        %v2669 = vld [vmem:[#allocation2 + $0x150] sm:$0xf]
        %v2670 = vld [vmem:[#allocation2 + $0x154] sm:$0xf]
        %v2671 = vld [vmem:[#allocation2 + $0x158] sm:$0x1]
        %v2672 = vld [vmem:[#allocation2 + $0x15c] sm:$0xf]
        %v2673 = vld [vmem:[#allocation2 + $0x160] sm:$0xf]
        %v2674 = vld [vmem:[#allocation2 + $0x164] sm:$0x1]
        %v2675 = vld [vmem:[#allocation2 + $0x168] sm:$0xf]
        %v2676 = vld [vmem:[#allocation2 + $0x16c] sm:$0xf]
        %v2677 = vld [vmem:[#allocation2 + $0x170] sm:$0x1]
        %v2678 = vld [vmem:[#allocation2 + $0x174] sm:$0xf]
        %v2679 = vld [vmem:[#allocation2 + $0x178] sm:$0xf]
        %v2680 = vld [vmem:[#allocation2 + $0x17c] sm:$0x1]
        %v2681 = vld [vmem:[#allocation2 + $0x180] sm:$0xf]
        %v2682 = vld [vmem:[#allocation2 + $0x184] sm:$0xf]
        %v2683 = vld [vmem:[#allocation2 + $0x188] sm:$0x1]
        %v2684 = vld [vmem:[#allocation2 + $0x18c] sm:$0xf]
        %v2685 = vld [vmem:[#allocation2 + $0x190] sm:$0xf]
        %v2686 = vld [vmem:[#allocation2 + $0x194] sm:$0x1]
        %vm2687 = vsmask.f32 3328
        %vm2688 = vsmask.f32 7440
        %vm2689 = vmor %vm2687, %vm2688
        %v2691 = vshrl.u32 %v2591, 16
        %v2693 = vrot.slane %v2691, 4
        %v2694 = vshll.u32 %v2591, 16
        %v2696 = vrot.slane %v2694, 5
        %v2697 = vor.u32 %v2693, %v2696
        %v2698 = vrot.slane %v2697, 4
        %v2700 = vshll.u32 %v2592, 16
        %v2702 = vrot.slane %v2700, 5
        %v2703 = vsel %vm2689, %v2698, %v2702
        %v2704 = vshrl.u32 %v2592, 16
        %v2706 = vrot.slane %v2704, 4
        %v2707 = vor.u32 %v2706, %v2702
        %v2708 = vrot.slane %v2707, 4
        %v2710 = vshll.u32 %v2593, 16
        %v2712 = vrot.slane %v2710, 5
        %v2713 = vsel %vm2689, %v2708, %v2712
        %v2715 = vshrl.u32 %v2594, 16
        %v2717 = vrot.slane %v2715, 4
        %v2718 = vshll.u32 %v2594, 16
        %v2720 = vrot.slane %v2718, 5
        %v2721 = vor.u32 %v2717, %v2720
        %v2722 = vrot.slane %v2721, 4
        %v2724 = vshll.u32 %v2595, 16
        %v2726 = vrot.slane %v2724, 5
        %v2727 = vsel %vm2689, %v2722, %v2726
        %v2728 = vshrl.u32 %v2595, 16
        %v2730 = vrot.slane %v2728, 4
        %v2731 = vor.u32 %v2730, %v2726
        %v2732 = vrot.slane %v2731, 4
        %v2734 = vshll.u32 %v2596, 16
        %v2736 = vrot.slane %v2734, 5
        %v2737 = vsel %vm2689, %v2732, %v2736
        %v2739 = vshrl.u32 %v2597, 16
        %v2741 = vrot.slane %v2739, 4
        %v2742 = vshll.u32 %v2597, 16
        %v2744 = vrot.slane %v2742, 5
        %v2745 = vor.u32 %v2741, %v2744
        %v2746 = vrot.slane %v2745, 4
        %v2748 = vshll.u32 %v2598, 16
        %v2750 = vrot.slane %v2748, 5
        %v2751 = vsel %vm2689, %v2746, %v2750
        %v2752 = vshrl.u32 %v2598, 16
        %v2754 = vrot.slane %v2752, 4
        %v2755 = vor.u32 %v2754, %v2750
        %v2756 = vrot.slane %v2755, 4
        %v2758 = vshll.u32 %v2599, 16
        %v2760 = vrot.slane %v2758, 5
        %v2761 = vsel %vm2689, %v2756, %v2760
        %v2763 = vshrl.u32 %v2600, 16
        %v2765 = vrot.slane %v2763, 4
        %v2766 = vshll.u32 %v2600, 16
        %v2768 = vrot.slane %v2766, 5
        %v2769 = vor.u32 %v2765, %v2768
        %v2770 = vrot.slane %v2769, 4
        %v2772 = vshll.u32 %v2601, 16
        %v2774 = vrot.slane %v2772, 5
        %v2775 = vsel %vm2689, %v2770, %v2774
        %v2776 = vshrl.u32 %v2601, 16
        %v2778 = vrot.slane %v2776, 4
        %v2779 = vor.u32 %v2778, %v2774
        %v2780 = vrot.slane %v2779, 4
        %v2782 = vshll.u32 %v2602, 16
        %v2784 = vrot.slane %v2782, 5
        %v2785 = vsel %vm2689, %v2780, %v2784
        %v2787 = vshrl.u32 %v2603, 16
        %v2789 = vrot.slane %v2787, 4
        %v2790 = vshll.u32 %v2603, 16
        %v2792 = vrot.slane %v2790, 5
        %v2793 = vor.u32 %v2789, %v2792
        %v2794 = vrot.slane %v2793, 4
        %v2796 = vshll.u32 %v2604, 16
        %v2798 = vrot.slane %v2796, 5
        %v2799 = vsel %vm2689, %v2794, %v2798
        %v2800 = vshrl.u32 %v2604, 16
        %v2802 = vrot.slane %v2800, 4
        %v2803 = vor.u32 %v2802, %v2798
        %v2804 = vrot.slane %v2803, 4
        %v2806 = vshll.u32 %v2605, 16
        %v2808 = vrot.slane %v2806, 5
        %v2809 = vsel %vm2689, %v2804, %v2808
        %v2811 = vshrl.u32 %v2606, 16
        %v2813 = vrot.slane %v2811, 4
        %v2814 = vshll.u32 %v2606, 16
        %v2816 = vrot.slane %v2814, 5
        %v2817 = vor.u32 %v2813, %v2816
        %v2818 = vrot.slane %v2817, 4
        %v2820 = vshll.u32 %v2607, 16
        %v2822 = vrot.slane %v2820, 5
        %v2823 = vsel %vm2689, %v2818, %v2822
        %v2824 = vshrl.u32 %v2607, 16
        %v2826 = vrot.slane %v2824, 4
        %v2827 = vor.u32 %v2826, %v2822
        %v2828 = vrot.slane %v2827, 4
        %v2830 = vshll.u32 %v2608, 16
        %v2832 = vrot.slane %v2830, 5
        %v2833 = vsel %vm2689, %v2828, %v2832
        %v2835 = vshrl.u32 %v2609, 16
        %v2837 = vrot.slane %v2835, 4
        %v2838 = vshll.u32 %v2609, 16
        %v2840 = vrot.slane %v2838, 5
        %v2841 = vor.u32 %v2837, %v2840
        %v2842 = vrot.slane %v2841, 4
        %v2844 = vshll.u32 %v2610, 16
        %v2846 = vrot.slane %v2844, 5
        %v2847 = vsel %vm2689, %v2842, %v2846
        %v2848 = vshrl.u32 %v2610, 16
        %v2850 = vrot.slane %v2848, 4
        %v2851 = vor.u32 %v2850, %v2846
        %v2852 = vrot.slane %v2851, 4
        %v2854 = vshll.u32 %v2611, 16
        %v2856 = vrot.slane %v2854, 5
        %v2857 = vsel %vm2689, %v2852, %v2856
        %v2859 = vshrl.u32 %v2612, 16
        %v2861 = vrot.slane %v2859, 4
        %v2862 = vshll.u32 %v2612, 16
        %v2864 = vrot.slane %v2862, 5
        %v2865 = vor.u32 %v2861, %v2864
        %v2866 = vrot.slane %v2865, 4
        %v2868 = vshll.u32 %v2613, 16
        %v2870 = vrot.slane %v2868, 5
        %v2871 = vsel %vm2689, %v2866, %v2870
        %v2872 = vshrl.u32 %v2613, 16
        %v2874 = vrot.slane %v2872, 4
        %v2875 = vor.u32 %v2874, %v2870
        %v2876 = vrot.slane %v2875, 4
        %v2878 = vshll.u32 %v2614, 16
        %v2880 = vrot.slane %v2878, 5
        %v2881 = vsel %vm2689, %v2876, %v2880
        %v2883 = vshrl.u32 %v2615, 16
        %v2885 = vrot.slane %v2883, 4
        %v2886 = vshll.u32 %v2615, 16
        %v2888 = vrot.slane %v2886, 5
        %v2889 = vor.u32 %v2885, %v2888
        %v2890 = vrot.slane %v2889, 4
        %v2892 = vshll.u32 %v2616, 16
        %v2894 = vrot.slane %v2892, 5
        %v2895 = vsel %vm2689, %v2890, %v2894
        %v2896 = vshrl.u32 %v2616, 16
        %v2898 = vrot.slane %v2896, 4
        %v2899 = vor.u32 %v2898, %v2894
        %v2900 = vrot.slane %v2899, 4
        %v2902 = vshll.u32 %v2617, 16
        %v2904 = vrot.slane %v2902, 5
        %v2905 = vsel %vm2689, %v2900, %v2904
        %v2907 = vshrl.u32 %v2618, 16
        %v2909 = vrot.slane %v2907, 4
        %v2910 = vshll.u32 %v2618, 16
        %v2912 = vrot.slane %v2910, 5
        %v2913 = vor.u32 %v2909, %v2912
        %v2914 = vrot.slane %v2913, 4
        %v2916 = vshll.u32 %v2619, 16
        %v2918 = vrot.slane %v2916, 5
        %v2919 = vsel %vm2689, %v2914, %v2918
        %v2920 = vshrl.u32 %v2619, 16
        %v2922 = vrot.slane %v2920, 4
        %v2923 = vor.u32 %v2922, %v2918
        %v2924 = vrot.slane %v2923, 4
        %v2926 = vshll.u32 %v2620, 16
        %v2928 = vrot.slane %v2926, 5
        %v2929 = vsel %vm2689, %v2924, %v2928
        %v2931 = vshrl.u32 %v2621, 16
        %v2933 = vrot.slane %v2931, 4
        %v2934 = vshll.u32 %v2621, 16
        %v2936 = vrot.slane %v2934, 5
        %v2937 = vor.u32 %v2933, %v2936
        %v2938 = vrot.slane %v2937, 4
        %v2940 = vshll.u32 %v2622, 16
        %v2942 = vrot.slane %v2940, 5
        %v2943 = vsel %vm2689, %v2938, %v2942
        %v2944 = vshrl.u32 %v2622, 16
        %v2946 = vrot.slane %v2944, 4
        %v2947 = vor.u32 %v2946, %v2942
        %v2948 = vrot.slane %v2947, 4
        %v2950 = vshll.u32 %v2623, 16
        %v2952 = vrot.slane %v2950, 5
        %v2953 = vsel %vm2689, %v2948, %v2952
        %v2955 = vshrl.u32 %v2624, 16
        %v2957 = vrot.slane %v2955, 4
        %v2958 = vshll.u32 %v2624, 16
        %v2960 = vrot.slane %v2958, 5
        %v2961 = vor.u32 %v2957, %v2960
        %v2962 = vrot.slane %v2961, 4
        %v2964 = vshll.u32 %v2625, 16
        %v2966 = vrot.slane %v2964, 5
        %v2967 = vsel %vm2689, %v2962, %v2966
        %v2968 = vshrl.u32 %v2625, 16
        %v2970 = vrot.slane %v2968, 4
        %v2971 = vor.u32 %v2970, %v2966
        %v2972 = vrot.slane %v2971, 4
        %v2974 = vshll.u32 %v2626, 16
        %v2976 = vrot.slane %v2974, 5
        %v2977 = vsel %vm2689, %v2972, %v2976
        %v2979 = vshrl.u32 %v2627, 16
        %v2981 = vrot.slane %v2979, 4
        %v2982 = vshll.u32 %v2627, 16
        %v2984 = vrot.slane %v2982, 5
        %v2985 = vor.u32 %v2981, %v2984
        %v2986 = vrot.slane %v2985, 4
        %v2988 = vshll.u32 %v2628, 16
        %v2990 = vrot.slane %v2988, 5
        %v2991 = vsel %vm2689, %v2986, %v2990
        %v2992 = vshrl.u32 %v2628, 16
        %v2994 = vrot.slane %v2992, 4
        %v2995 = vor.u32 %v2994, %v2990
        %v2996 = vrot.slane %v2995, 4
        %v2998 = vshll.u32 %v2629, 16
        %v3000 = vrot.slane %v2998, 5
        %v3001 = vsel %vm2689, %v2996, %v3000
        %v3003 = vshrl.u32 %v2630, 16
        %v3005 = vrot.slane %v3003, 4
        %v3006 = vshll.u32 %v2630, 16
        %v3008 = vrot.slane %v3006, 5
        %v3009 = vor.u32 %v3005, %v3008
        %v3010 = vrot.slane %v3009, 4
        %v3012 = vshll.u32 %v2631, 16
        %v3014 = vrot.slane %v3012, 5
        %v3015 = vsel %vm2689, %v3010, %v3014
        %v3016 = vshrl.u32 %v2631, 16
        %v3018 = vrot.slane %v3016, 4
        %v3019 = vor.u32 %v3018, %v3014
        %v3020 = vrot.slane %v3019, 4
        %v3022 = vshll.u32 %v2632, 16
        %v3024 = vrot.slane %v3022, 5
        %v3025 = vsel %vm2689, %v3020, %v3024
        %v3027 = vshrl.u32 %v2633, 16
        %v3029 = vrot.slane %v3027, 4
        %v3030 = vshll.u32 %v2633, 16
        %v3032 = vrot.slane %v3030, 5
        %v3033 = vor.u32 %v3029, %v3032
        %v3034 = vrot.slane %v3033, 4
        %v3036 = vshll.u32 %v2634, 16
        %v3038 = vrot.slane %v3036, 5
        %v3039 = vsel %vm2689, %v3034, %v3038
        %v3040 = vshrl.u32 %v2634, 16
        %v3042 = vrot.slane %v3040, 4
        %v3043 = vor.u32 %v3042, %v3038
        %v3044 = vrot.slane %v3043, 4
        %v3046 = vshll.u32 %v2635, 16
        %v3048 = vrot.slane %v3046, 5
        %v3049 = vsel %vm2689, %v3044, %v3048
        %v3051 = vshrl.u32 %v2636, 16
        %v3053 = vrot.slane %v3051, 4
        %v3054 = vshll.u32 %v2636, 16
        %v3056 = vrot.slane %v3054, 5
        %v3057 = vor.u32 %v3053, %v3056
        %v3058 = vrot.slane %v3057, 4
        %v3060 = vshll.u32 %v2637, 16
        %v3062 = vrot.slane %v3060, 5
        %v3063 = vsel %vm2689, %v3058, %v3062
        %v3064 = vshrl.u32 %v2637, 16
        %v3066 = vrot.slane %v3064, 4
        %v3067 = vor.u32 %v3066, %v3062
        %v3068 = vrot.slane %v3067, 4
        %v3070 = vshll.u32 %v2638, 16
        %v3072 = vrot.slane %v3070, 5
        %v3073 = vsel %vm2689, %v3068, %v3072
        %v3075 = vshrl.u32 %v2639, 16
        %v3077 = vrot.slane %v3075, 4
        %v3078 = vshll.u32 %v2639, 16
        %v3080 = vrot.slane %v3078, 5
        %v3081 = vor.u32 %v3077, %v3080
        %v3082 = vrot.slane %v3081, 4
        %v3084 = vshll.u32 %v2640, 16
        %v3086 = vrot.slane %v3084, 5
        %v3087 = vsel %vm2689, %v3082, %v3086
        %v3088 = vshrl.u32 %v2640, 16
        %v3090 = vrot.slane %v3088, 4
        %v3091 = vor.u32 %v3090, %v3086
        %v3092 = vrot.slane %v3091, 4
        %v3094 = vshll.u32 %v2641, 16
        %v3096 = vrot.slane %v3094, 5
        %v3097 = vsel %vm2689, %v3092, %v3096
        %v3099 = vshrl.u32 %v2642, 16
        %v3101 = vrot.slane %v3099, 4
        %v3102 = vshll.u32 %v2642, 16
        %v3104 = vrot.slane %v3102, 5
        %v3105 = vor.u32 %v3101, %v3104
        %v3106 = vrot.slane %v3105, 4
        %v3108 = vshll.u32 %v2643, 16
        %v3110 = vrot.slane %v3108, 5
        %v3111 = vsel %vm2689, %v3106, %v3110
        %v3112 = vshrl.u32 %v2643, 16
        %v3114 = vrot.slane %v3112, 4
        %v3115 = vor.u32 %v3114, %v3110
        %v3116 = vrot.slane %v3115, 4
        %v3118 = vshll.u32 %v2644, 16
        %v3120 = vrot.slane %v3118, 5
        %v3121 = vsel %vm2689, %v3116, %v3120
        %v3123 = vshrl.u32 %v2645, 16
        %v3125 = vrot.slane %v3123, 4
        %v3126 = vshll.u32 %v2645, 16
        %v3128 = vrot.slane %v3126, 5
        %v3129 = vor.u32 %v3125, %v3128
        %v3130 = vrot.slane %v3129, 4
        %v3132 = vshll.u32 %v2646, 16
        %v3134 = vrot.slane %v3132, 5
        %v3135 = vsel %vm2689, %v3130, %v3134
        %v3136 = vshrl.u32 %v2646, 16
        %v3138 = vrot.slane %v3136, 4
        %v3139 = vor.u32 %v3138, %v3134
        %v3140 = vrot.slane %v3139, 4
        %v3142 = vshll.u32 %v2647, 16
        %v3144 = vrot.slane %v3142, 5
        %v3145 = vsel %vm2689, %v3140, %v3144
        %v3147 = vshrl.u32 %v2648, 16
        %v3149 = vrot.slane %v3147, 4
        %v3150 = vshll.u32 %v2648, 16
        %v3152 = vrot.slane %v3150, 5
        %v3153 = vor.u32 %v3149, %v3152
        %v3154 = vrot.slane %v3153, 4
        %v3156 = vshll.u32 %v2649, 16
        %v3158 = vrot.slane %v3156, 5
        %v3159 = vsel %vm2689, %v3154, %v3158
        %v3160 = vshrl.u32 %v2649, 16
        %v3162 = vrot.slane %v3160, 4
        %v3163 = vor.u32 %v3162, %v3158
        %v3164 = vrot.slane %v3163, 4
        %v3166 = vshll.u32 %v2650, 16
        %v3168 = vrot.slane %v3166, 5
        %v3169 = vsel %vm2689, %v3164, %v3168
        %v3171 = vshrl.u32 %v2651, 16
        %v3173 = vrot.slane %v3171, 4
        %v3174 = vshll.u32 %v2651, 16
        %v3176 = vrot.slane %v3174, 5
        %v3177 = vor.u32 %v3173, %v3176
        %v3178 = vrot.slane %v3177, 4
        %v3180 = vshll.u32 %v2652, 16
        %v3182 = vrot.slane %v3180, 5
        %v3183 = vsel %vm2689, %v3178, %v3182
        %v3184 = vshrl.u32 %v2652, 16
        %v3186 = vrot.slane %v3184, 4
        %v3187 = vor.u32 %v3186, %v3182
        %v3188 = vrot.slane %v3187, 4
        %v3190 = vshll.u32 %v2653, 16
        %v3192 = vrot.slane %v3190, 5
        %v3193 = vsel %vm2689, %v3188, %v3192
        %v3195 = vshrl.u32 %v2654, 16
        %v3197 = vrot.slane %v3195, 4
        %v3198 = vshll.u32 %v2654, 16
        %v3200 = vrot.slane %v3198, 5
        %v3201 = vor.u32 %v3197, %v3200
        %v3202 = vrot.slane %v3201, 4
        %v3204 = vshll.u32 %v2655, 16
        %v3206 = vrot.slane %v3204, 5
        %v3207 = vsel %vm2689, %v3202, %v3206
        %v3208 = vshrl.u32 %v2655, 16
        %v3210 = vrot.slane %v3208, 4
        %v3211 = vor.u32 %v3210, %v3206
        %v3212 = vrot.slane %v3211, 4
        %v3214 = vshll.u32 %v2656, 16
        %v3216 = vrot.slane %v3214, 5
        %v3217 = vsel %vm2689, %v3212, %v3216
        %v3219 = vshrl.u32 %v2657, 16
        %v3221 = vrot.slane %v3219, 4
        %v3222 = vshll.u32 %v2657, 16
        %v3224 = vrot.slane %v3222, 5
        %v3225 = vor.u32 %v3221, %v3224
        %v3226 = vrot.slane %v3225, 4
        %v3228 = vshll.u32 %v2658, 16
        %v3230 = vrot.slane %v3228, 5
        %v3231 = vsel %vm2689, %v3226, %v3230
        %v3232 = vshrl.u32 %v2658, 16
        %v3234 = vrot.slane %v3232, 4
        %v3235 = vor.u32 %v3234, %v3230
        %v3236 = vrot.slane %v3235, 4
        %v3238 = vshll.u32 %v2659, 16
        %v3240 = vrot.slane %v3238, 5
        %v3241 = vsel %vm2689, %v3236, %v3240
        %v3243 = vshrl.u32 %v2660, 16
        %v3245 = vrot.slane %v3243, 4
        %v3246 = vshll.u32 %v2660, 16
        %v3248 = vrot.slane %v3246, 5
        %v3249 = vor.u32 %v3245, %v3248
        %v3250 = vrot.slane %v3249, 4
        %v3252 = vshll.u32 %v2661, 16
        %v3254 = vrot.slane %v3252, 5
        %v3255 = vsel %vm2689, %v3250, %v3254
        %v3256 = vshrl.u32 %v2661, 16
        %v3258 = vrot.slane %v3256, 4
        %v3259 = vor.u32 %v3258, %v3254
        %v3260 = vrot.slane %v3259, 4
        %v3262 = vshll.u32 %v2662, 16
        %v3264 = vrot.slane %v3262, 5
        %v3265 = vsel %vm2689, %v3260, %v3264
        %v3267 = vshrl.u32 %v2663, 16
        %v3269 = vrot.slane %v3267, 4
        %v3270 = vshll.u32 %v2663, 16
        %v3272 = vrot.slane %v3270, 5
        %v3273 = vor.u32 %v3269, %v3272
        %v3274 = vrot.slane %v3273, 4
        %v3276 = vshll.u32 %v2664, 16
        %v3278 = vrot.slane %v3276, 5
        %v3279 = vsel %vm2689, %v3274, %v3278
        %v3280 = vshrl.u32 %v2664, 16
        %v3282 = vrot.slane %v3280, 4
        %v3283 = vor.u32 %v3282, %v3278
        %v3284 = vrot.slane %v3283, 4
        %v3286 = vshll.u32 %v2665, 16
        %v3288 = vrot.slane %v3286, 5
        %v3289 = vsel %vm2689, %v3284, %v3288
        %v3291 = vshrl.u32 %v2666, 16
        %v3293 = vrot.slane %v3291, 4
        %v3294 = vshll.u32 %v2666, 16
        %v3296 = vrot.slane %v3294, 5
        %v3297 = vor.u32 %v3293, %v3296
        %v3298 = vrot.slane %v3297, 4
        %v3300 = vshll.u32 %v2667, 16
        %v3302 = vrot.slane %v3300, 5
        %v3303 = vsel %vm2689, %v3298, %v3302
        %v3304 = vshrl.u32 %v2667, 16
        %v3306 = vrot.slane %v3304, 4
        %v3307 = vor.u32 %v3306, %v3302
        %v3308 = vrot.slane %v3307, 4
        %v3310 = vshll.u32 %v2668, 16
        %v3312 = vrot.slane %v3310, 5
        %v3313 = vsel %vm2689, %v3308, %v3312
        %v3315 = vshrl.u32 %v2669, 16
        %v3317 = vrot.slane %v3315, 4
        %v3318 = vshll.u32 %v2669, 16
        %v3320 = vrot.slane %v3318, 5
        %v3321 = vor.u32 %v3317, %v3320
        %v3322 = vrot.slane %v3321, 4
        %v3324 = vshll.u32 %v2670, 16
        %v3326 = vrot.slane %v3324, 5
        %v3327 = vsel %vm2689, %v3322, %v3326
        %v3328 = vshrl.u32 %v2670, 16
        %v3330 = vrot.slane %v3328, 4
        %v3331 = vor.u32 %v3330, %v3326
        %v3332 = vrot.slane %v3331, 4
        %v3334 = vshll.u32 %v2671, 16
        %v3336 = vrot.slane %v3334, 5
        %v3337 = vsel %vm2689, %v3332, %v3336
        %v3339 = vshrl.u32 %v2672, 16
        %v3341 = vrot.slane %v3339, 4
        %v3342 = vshll.u32 %v2672, 16
        %v3344 = vrot.slane %v3342, 5
        %v3345 = vor.u32 %v3341, %v3344
        %v3346 = vrot.slane %v3345, 4
        %v3348 = vshll.u32 %v2673, 16
        %v3350 = vrot.slane %v3348, 5
        %v3351 = vsel %vm2689, %v3346, %v3350
        %v3352 = vshrl.u32 %v2673, 16
        %v3354 = vrot.slane %v3352, 4
        %v3355 = vor.u32 %v3354, %v3350
        %v3356 = vrot.slane %v3355, 4
        %v3358 = vshll.u32 %v2674, 16
        %v3360 = vrot.slane %v3358, 5
        %v3361 = vsel %vm2689, %v3356, %v3360
        %v3363 = vshrl.u32 %v2675, 16
        %v3365 = vrot.slane %v3363, 4
        %v3366 = vshll.u32 %v2675, 16
        %v3368 = vrot.slane %v3366, 5
        %v3369 = vor.u32 %v3365, %v3368
        %v3370 = vrot.slane %v3369, 4
        %v3372 = vshll.u32 %v2676, 16
        %v3374 = vrot.slane %v3372, 5
        %v3375 = vsel %vm2689, %v3370, %v3374
        %v3376 = vshrl.u32 %v2676, 16
        %v3378 = vrot.slane %v3376, 4
        %v3379 = vor.u32 %v3378, %v3374
        %v3380 = vrot.slane %v3379, 4
        %v3382 = vshll.u32 %v2677, 16
        %v3384 = vrot.slane %v3382, 5
        %v3385 = vsel %vm2689, %v3380, %v3384
        %v3387 = vshrl.u32 %v2678, 16
        %v3389 = vrot.slane %v3387, 4
        %v3390 = vshll.u32 %v2678, 16
        %v3392 = vrot.slane %v3390, 5
        %v3393 = vor.u32 %v3389, %v3392
        %v3394 = vrot.slane %v3393, 4
        %v3396 = vshll.u32 %v2679, 16
        %v3398 = vrot.slane %v3396, 5
        %v3399 = vsel %vm2689, %v3394, %v3398
        %v3400 = vshrl.u32 %v2679, 16
        %v3402 = vrot.slane %v3400, 4
        %v3403 = vor.u32 %v3402, %v3398
        %v3404 = vrot.slane %v3403, 4
        %v3406 = vshll.u32 %v2680, 16
        %v3408 = vrot.slane %v3406, 5
        %v3409 = vsel %vm2689, %v3404, %v3408
        %v3411 = vshrl.u32 %v2681, 16
        %v3413 = vrot.slane %v3411, 4
        %v3414 = vshll.u32 %v2681, 16
        %v3416 = vrot.slane %v3414, 5
        %v3417 = vor.u32 %v3413, %v3416
        %v3418 = vrot.slane %v3417, 4
        %v3420 = vshll.u32 %v2682, 16
        %v3422 = vrot.slane %v3420, 5
        %v3423 = vsel %vm2689, %v3418, %v3422
        %v3424 = vshrl.u32 %v2682, 16
        %v3426 = vrot.slane %v3424, 4
        %v3427 = vor.u32 %v3426, %v3422
        %v3428 = vrot.slane %v3427, 4
        %v3430 = vshll.u32 %v2683, 16
        %v3432 = vrot.slane %v3430, 5
        %v3433 = vsel %vm2689, %v3428, %v3432
        %v3435 = vshrl.u32 %v2684, 16
        %v3437 = vrot.slane %v3435, 4
        %v3438 = vshll.u32 %v2684, 16
        %v3440 = vrot.slane %v3438, 5
        %v3441 = vor.u32 %v3437, %v3440
        %v3442 = vrot.slane %v3441, 4
        %v3444 = vshll.u32 %v2685, 16
        %v3446 = vrot.slane %v3444, 5
        %v3447 = vsel %vm2689, %v3442, %v3446
        %v3448 = vshrl.u32 %v2685, 16
        %v3450 = vrot.slane %v3448, 4
        %v3451 = vor.u32 %v3450, %v3446
        %v3452 = vrot.slane %v3451, 4
        %v3454 = vshll.u32 %v2686, 16
        %v3456 = vrot.slane %v3454, 5
        %v3457 = vsel %vm2689, %v3452, %v3456
        %3458 = vrot.lane.b32.xlu0 %v2703, 32
        %v3459 = vpop.permute.xlu0 %3458
        %3460 = vrot.lane.b32.xlu0 %v2713, 32
        %v3461 = vpop.permute.xlu0 %3460
        %3462 = vrot.lane.b32.xlu0 %v2727, 32
        %v3463 = vpop.permute.xlu0 %3462
        %3464 = vrot.lane.b32.xlu0 %v2737, 32
        %v3465 = vpop.permute.xlu0 %3464
        %3466 = vrot.lane.b32.xlu0 %v2751, 32
        %v3467 = vpop.permute.xlu0 %3466
        %3468 = vrot.lane.b32.xlu0 %v2761, 32
        %v3469 = vpop.permute.xlu0 %3468
        %3470 = vrot.lane.b32.xlu0 %v2775, 32
        %v3471 = vpop.permute.xlu0 %3470
        %3472 = vrot.lane.b32.xlu0 %v2785, 32
        %v3473 = vpop.permute.xlu0 %3472
        %3474 = vrot.lane.b32.xlu0 %v2799, 32
        %v3475 = vpop.permute.xlu0 %3474
        %3476 = vrot.lane.b32.xlu0 %v2809, 32
        %v3477 = vpop.permute.xlu0 %3476
        %3478 = vrot.lane.b32.xlu0 %v2823, 32
        %v3479 = vpop.permute.xlu0 %3478
        %3480 = vrot.lane.b32.xlu0 %v2833, 32
        %v3481 = vpop.permute.xlu0 %3480
        %3482 = vrot.lane.b32.xlu0 %v2847, 32
        %v3483 = vpop.permute.xlu0 %3482
        %3484 = vrot.lane.b32.xlu0 %v2857, 32
        %v3485 = vpop.permute.xlu0 %3484
        %3486 = vrot.lane.b32.xlu0 %v2871, 32
        %v3487 = vpop.permute.xlu0 %3486
        %3488 = vrot.lane.b32.xlu0 %v2881, 32
        %v3489 = vpop.permute.xlu0 %3488
        %3490 = vrot.lane.b32.xlu0 %v2895, 32
        %v3491 = vpop.permute.xlu0 %3490
        %3492 = vrot.lane.b32.xlu0 %v2905, 32
        %v3493 = vpop.permute.xlu0 %3492
        %3494 = vrot.lane.b32.xlu0 %v2919, 32
        %v3495 = vpop.permute.xlu0 %3494
        %3496 = vrot.lane.b32.xlu0 %v2929, 32
        %v3497 = vpop.permute.xlu0 %3496
        %3498 = vrot.lane.b32.xlu0 %v2943, 32
        %v3499 = vpop.permute.xlu0 %3498
        %3500 = vrot.lane.b32.xlu0 %v2953, 32
        %v3501 = vpop.permute.xlu0 %3500
        %3502 = vrot.lane.b32.xlu0 %v2967, 32
        %v3503 = vpop.permute.xlu0 %3502
        %3504 = vrot.lane.b32.xlu0 %v2977, 32
        %v3505 = vpop.permute.xlu0 %3504
        %3506 = vrot.lane.b32.xlu0 %v2991, 32
        %v3507 = vpop.permute.xlu0 %3506
        %3508 = vrot.lane.b32.xlu0 %v3001, 32
        %v3509 = vpop.permute.xlu0 %3508
        %3510 = vrot.lane.b32.xlu0 %v3015, 32
        %v3511 = vpop.permute.xlu0 %3510
        %3512 = vrot.lane.b32.xlu0 %v3025, 32
        %v3513 = vpop.permute.xlu0 %3512
        %3514 = vrot.lane.b32.xlu0 %v3039, 32
        %v3515 = vpop.permute.xlu0 %3514
        %3516 = vrot.lane.b32.xlu0 %v3049, 32
        %v3517 = vpop.permute.xlu0 %3516
        %3518 = vrot.lane.b32.xlu0 %v3063, 32
        %v3519 = vpop.permute.xlu0 %3518
        %3520 = vrot.lane.b32.xlu0 %v3073, 32
        %v3521 = vpop.permute.xlu0 %3520
        %3522 = vrot.lane.b32.xlu0 %v3087, 32
        %v3523 = vpop.permute.xlu0 %3522
        %3524 = vrot.lane.b32.xlu0 %v3097, 32
        %v3525 = vpop.permute.xlu0 %3524
        %3526 = vrot.lane.b32.xlu0 %v3111, 32
        %v3527 = vpop.permute.xlu0 %3526
        %3528 = vrot.lane.b32.xlu0 %v3121, 32
        %v3529 = vpop.permute.xlu0 %3528
        %3530 = vrot.lane.b32.xlu0 %v3135, 32
        %v3531 = vpop.permute.xlu0 %3530
        %3532 = vrot.lane.b32.xlu0 %v3145, 32
        %v3533 = vpop.permute.xlu0 %3532
        %3534 = vrot.lane.b32.xlu0 %v3159, 32
        %v3535 = vpop.permute.xlu0 %3534
        %3536 = vrot.lane.b32.xlu0 %v3169, 32
        %v3537 = vpop.permute.xlu0 %3536
        %3538 = vrot.lane.b32.xlu0 %v3183, 32
        %v3539 = vpop.permute.xlu0 %3538
        %3540 = vrot.lane.b32.xlu0 %v3193, 32
        %v3541 = vpop.permute.xlu0 %3540
        %3542 = vrot.lane.b32.xlu0 %v3207, 32
        %v3543 = vpop.permute.xlu0 %3542
        %3544 = vrot.lane.b32.xlu0 %v3217, 32
        %v3545 = vpop.permute.xlu0 %3544
        %3546 = vrot.lane.b32.xlu0 %v3231, 32
        %v3547 = vpop.permute.xlu0 %3546
        %3548 = vrot.lane.b32.xlu0 %v3241, 32
        %v3549 = vpop.permute.xlu0 %3548
        %3550 = vrot.lane.b32.xlu0 %v3255, 32
        %v3551 = vpop.permute.xlu0 %3550
        %3552 = vrot.lane.b32.xlu0 %v3265, 32
        %v3553 = vpop.permute.xlu0 %3552
        %3554 = vrot.lane.b32.xlu0 %v3279, 32
        %v3555 = vpop.permute.xlu0 %3554
        %3556 = vrot.lane.b32.xlu0 %v3289, 32
        %v3557 = vpop.permute.xlu0 %3556
        %3558 = vrot.lane.b32.xlu0 %v3303, 32
        %v3559 = vpop.permute.xlu0 %3558
        %3560 = vrot.lane.b32.xlu0 %v3313, 32
        %v3561 = vpop.permute.xlu0 %3560
        %3562 = vrot.lane.b32.xlu0 %v3327, 32
        %v3563 = vpop.permute.xlu0 %3562
        %3564 = vrot.lane.b32.xlu0 %v3337, 32
        %v3565 = vpop.permute.xlu0 %3564
        %3566 = vrot.lane.b32.xlu0 %v3351, 32
        %v3567 = vpop.permute.xlu0 %3566
        %3568 = vrot.lane.b32.xlu0 %v3361, 32
        %v3569 = vpop.permute.xlu0 %3568
        %3570 = vrot.lane.b32.xlu0 %v3375, 32
        %v3571 = vpop.permute.xlu0 %3570
        %3572 = vrot.lane.b32.xlu0 %v3385, 32
        %v3573 = vpop.permute.xlu0 %3572
        %3574 = vrot.lane.b32.xlu0 %v3399, 32
        %v3575 = vpop.permute.xlu0 %3574
        %3576 = vrot.lane.b32.xlu0 %v3409, 32
        %v3577 = vpop.permute.xlu0 %3576
        %3578 = vrot.lane.b32.xlu0 %v3423, 32
        %v3579 = vpop.permute.xlu0 %3578
        %3580 = vrot.lane.b32.xlu0 %v3433, 32
        %v3581 = vpop.permute.xlu0 %3580
        %3582 = vrot.lane.b32.xlu0 %v3447, 32
        %v3583 = vpop.permute.xlu0 %3582
        %3584 = vrot.lane.b32.xlu0 %v3457, 32
        %v3585 = vpop.permute.xlu0 %3584
        %vm3650 = vcmask 519424
        %3651 = vst.msk [vmem:[#allocation3] sm:$0xf] %vm3650, %v3459
        %3652 = vst.msk [vmem:[#allocation3 + $0xc] sm:$0xf] %vm3650, %v3461
        %3653 = vst.msk [vmem:[#allocation3 + $0x18] sm:$0xf] %vm3650, %v3463
        %3654 = vst.msk [vmem:[#allocation3 + $0x24] sm:$0xf] %vm3650, %v3465
        %3655 = vst.msk [vmem:[#allocation3 + $0x30] sm:$0xf] %vm3650, %v3467
        %3656 = vst.msk [vmem:[#allocation3 + $0x3c] sm:$0xf] %vm3650, %v3469
        %3657 = vst.msk [vmem:[#allocation3 + $0x48] sm:$0xf] %vm3650, %v3471
        %3658 = vst.msk [vmem:[#allocation3 + $0x54] sm:$0xf] %vm3650, %v3473
        %3659 = vst.msk [vmem:[#allocation3 + $0x60] sm:$0xf] %vm3650, %v3475
        %3660 = vst.msk [vmem:[#allocation3 + $0x6c] sm:$0xf] %vm3650, %v3477
        %3661 = vst.msk [vmem:[#allocation3 + $0x78] sm:$0xf] %vm3650, %v3479
        %3662 = vst.msk [vmem:[#allocation3 + $0x84] sm:$0xf] %vm3650, %v3481
        %3663 = vst.msk [vmem:[#allocation3 + $0x90] sm:$0xf] %vm3650, %v3483
        %3664 = vst.msk [vmem:[#allocation3 + $0x9c] sm:$0xf] %vm3650, %v3485
        %3665 = vst.msk [vmem:[#allocation3 + $0xa8] sm:$0xf] %vm3650, %v3487
        %3666 = vst.msk [vmem:[#allocation3 + $0xb4] sm:$0xf] %vm3650, %v3489
        %3667 = vst.msk [vmem:[#allocation3 + $0xc0] sm:$0xf] %vm3650, %v3491
        %3668 = vst.msk [vmem:[#allocation3 + $0xcc] sm:$0xf] %vm3650, %v3493
        %3669 = vst.msk [vmem:[#allocation3 + $0xd8] sm:$0xf] %vm3650, %v3495
        %3670 = vst.msk [vmem:[#allocation3 + $0xe4] sm:$0xf] %vm3650, %v3497
        %3671 = vst.msk [vmem:[#allocation3 + $0xf0] sm:$0xf] %vm3650, %v3499
        %3672 = vst.msk [vmem:[#allocation3 + $0xfc] sm:$0xf] %vm3650, %v3501
        %3673 = vst.msk [vmem:[#allocation3 + $0x108] sm:$0xf] %vm3650, %v3503
        %3674 = vst.msk [vmem:[#allocation3 + $0x114] sm:$0xf] %vm3650, %v3505
        %3675 = vst.msk [vmem:[#allocation3 + $0x120] sm:$0xf] %vm3650, %v3507
        %3676 = vst.msk [vmem:[#allocation3 + $0x12c] sm:$0xf] %vm3650, %v3509
        %3677 = vst.msk [vmem:[#allocation3 + $0x138] sm:$0xf] %vm3650, %v3511
        %3678 = vst.msk [vmem:[#allocation3 + $0x144] sm:$0xf] %vm3650, %v3513
        %3679 = vst.msk [vmem:[#allocation3 + $0x150] sm:$0xf] %vm3650, %v3515
        %3680 = vst.msk [vmem:[#allocation3 + $0x15c] sm:$0xf] %vm3650, %v3517
        %3681 = vst.msk [vmem:[#allocation3 + $0x168] sm:$0xf] %vm3650, %v3519
        %3682 = vst.msk [vmem:[#allocation3 + $0x174] sm:$0xf] %vm3650, %v3521
        %3683 = vst.msk [vmem:[#allocation3 + $0x180] sm:$0xf] %vm3650, %v3523
        %3684 = vst.msk [vmem:[#allocation3 + $0x18c] sm:$0xf] %vm3650, %v3525
        %3685 = vst.msk [vmem:[#allocation3 + $0x198] sm:$0xf] %vm3650, %v3527
        %3686 = vst.msk [vmem:[#allocation3 + $0x1a4] sm:$0xf] %vm3650, %v3529
        %3687 = vst.msk [vmem:[#allocation3 + $0x1b0] sm:$0xf] %vm3650, %v3531
        %3688 = vst.msk [vmem:[#allocation3 + $0x1bc] sm:$0xf] %vm3650, %v3533
        %3689 = vst.msk [vmem:[#allocation3 + $0x1c8] sm:$0xf] %vm3650, %v3535
        %3690 = vst.msk [vmem:[#allocation3 + $0x1d4] sm:$0xf] %vm3650, %v3537
        %3691 = vst.msk [vmem:[#allocation3 + $0x1e0] sm:$0xf] %vm3650, %v3539
        %3692 = vst.msk [vmem:[#allocation3 + $0x1ec] sm:$0xf] %vm3650, %v3541
        %3693 = vst.msk [vmem:[#allocation3 + $0x1f8] sm:$0xf] %vm3650, %v3543
        %3694 = vst.msk [vmem:[#allocation3 + $0x204] sm:$0xf] %vm3650, %v3545
        %3695 = vst.msk [vmem:[#allocation3 + $0x210] sm:$0xf] %vm3650, %v3547
        %3696 = vst.msk [vmem:[#allocation3 + $0x21c] sm:$0xf] %vm3650, %v3549
        %3697 = vst.msk [vmem:[#allocation3 + $0x228] sm:$0xf] %vm3650, %v3551
        %3698 = vst.msk [vmem:[#allocation3 + $0x234] sm:$0xf] %vm3650, %v3553
        %3699 = vst.msk [vmem:[#allocation3 + $0x240] sm:$0xf] %vm3650, %v3555
        %3700 = vst.msk [vmem:[#allocation3 + $0x24c] sm:$0xf] %vm3650, %v3557
        %3701 = vst.msk [vmem:[#allocation3 + $0x258] sm:$0xf] %vm3650, %v3559
        %3702 = vst.msk [vmem:[#allocation3 + $0x264] sm:$0xf] %vm3650, %v3561
        %3703 = vst.msk [vmem:[#allocation3 + $0x270] sm:$0xf] %vm3650, %v3563
        %3704 = vst.msk [vmem:[#allocation3 + $0x27c] sm:$0xf] %vm3650, %v3565
        %3705 = vst.msk [vmem:[#allocation3 + $0x288] sm:$0xf] %vm3650, %v3567
        %3706 = vst.msk [vmem:[#allocation3 + $0x294] sm:$0xf] %vm3650, %v3569
        %3707 = vst.msk [vmem:[#allocation3 + $0x2a0] sm:$0xf] %vm3650, %v3571
        %3708 = vst.msk [vmem:[#allocation3 + $0x2ac] sm:$0xf] %vm3650, %v3573
        %3709 = vst.msk [vmem:[#allocation3 + $0x2b8] sm:$0xf] %vm3650, %v3575
        %3710 = vst.msk [vmem:[#allocation3 + $0x2c4] sm:$0xf] %vm3650, %v3577
        %3711 = vst.msk [vmem:[#allocation3 + $0x2d0] sm:$0xf] %vm3650, %v3579
        %3712 = vst.msk [vmem:[#allocation3 + $0x2dc] sm:$0xf] %vm3650, %v3581
        %3713 = vst.msk [vmem:[#allocation3 + $0x2e8] sm:$0xf] %vm3650, %v3583
        %3714 = vst.msk [vmem:[#allocation3 + $0x2f4] sm:$0xf] %vm3650, %v3585
        %v3715 = vld [vmem:[#allocation2] sm:$0xe]
        %v3716 = vld [vmem:[#allocation2 + $0x4] sm:$0xf]
        %v3717 = vld [vmem:[#allocation2 + $0x8] sm:$0x1]
        %v3718 = vld [vmem:[#allocation2 + $0xc] sm:$0xe]
        %v3719 = vld [vmem:[#allocation2 + $0x10] sm:$0xf]
        %v3720 = vld [vmem:[#allocation2 + $0x14] sm:$0x1]
        %v3721 = vld [vmem:[#allocation2 + $0x18] sm:$0xe]
        %v3722 = vld [vmem:[#allocation2 + $0x1c] sm:$0xf]
        %v3723 = vld [vmem:[#allocation2 + $0x20] sm:$0x1]
        %v3724 = vld [vmem:[#allocation2 + $0x24] sm:$0xe]
        %v3725 = vld [vmem:[#allocation2 + $0x28] sm:$0xf]
        %v3726 = vld [vmem:[#allocation2 + $0x2c] sm:$0x1]
        %v3727 = vld [vmem:[#allocation2 + $0x30] sm:$0xe]
        %v3728 = vld [vmem:[#allocation2 + $0x34] sm:$0xf]
        %v3729 = vld [vmem:[#allocation2 + $0x38] sm:$0x1]
        %v3730 = vld [vmem:[#allocation2 + $0x3c] sm:$0xe]
        %v3731 = vld [vmem:[#allocation2 + $0x40] sm:$0xf]
        %v3732 = vld [vmem:[#allocation2 + $0x44] sm:$0x1]
        %v3733 = vld [vmem:[#allocation2 + $0x48] sm:$0xe]
        %v3734 = vld [vmem:[#allocation2 + $0x4c] sm:$0xf]
        %v3735 = vld [vmem:[#allocation2 + $0x50] sm:$0x1]
        %v3736 = vld [vmem:[#allocation2 + $0x54] sm:$0xe]
        %v3737 = vld [vmem:[#allocation2 + $0x58] sm:$0xf]
        %v3738 = vld [vmem:[#allocation2 + $0x5c] sm:$0x1]
        %v3739 = vld [vmem:[#allocation2 + $0x60] sm:$0xe]
        %v3740 = vld [vmem:[#allocation2 + $0x64] sm:$0xf]
        %v3741 = vld [vmem:[#allocation2 + $0x68] sm:$0x1]
        %v3742 = vld [vmem:[#allocation2 + $0x6c] sm:$0xe]
        %v3743 = vld [vmem:[#allocation2 + $0x70] sm:$0xf]
        %v3744 = vld [vmem:[#allocation2 + $0x74] sm:$0x1]
        %v3745 = vld [vmem:[#allocation2 + $0x78] sm:$0xe]
        %v3746 = vld [vmem:[#allocation2 + $0x7c] sm:$0xf]
        %v3747 = vld [vmem:[#allocation2 + $0x80] sm:$0x1]
        %v3748 = vld [vmem:[#allocation2 + $0x84] sm:$0xe]
        %v3749 = vld [vmem:[#allocation2 + $0x88] sm:$0xf]
        %v3750 = vld [vmem:[#allocation2 + $0x8c] sm:$0x1]
        %v3751 = vld [vmem:[#allocation2 + $0x90] sm:$0xe]
        %v3752 = vld [vmem:[#allocation2 + $0x94] sm:$0xf]
        %v3753 = vld [vmem:[#allocation2 + $0x98] sm:$0x1]
        %v3754 = vld [vmem:[#allocation2 + $0x9c] sm:$0xe]
        %v3755 = vld [vmem:[#allocation2 + $0xa0] sm:$0xf]
        %v3756 = vld [vmem:[#allocation2 + $0xa4] sm:$0x1]
        %v3757 = vld [vmem:[#allocation2 + $0xa8] sm:$0xe]
        %v3758 = vld [vmem:[#allocation2 + $0xac] sm:$0xf]
        %v3759 = vld [vmem:[#allocation2 + $0xb0] sm:$0x1]
        %v3760 = vld [vmem:[#allocation2 + $0xb4] sm:$0xe]
        %v3761 = vld [vmem:[#allocation2 + $0xb8] sm:$0xf]
        %v3762 = vld [vmem:[#allocation2 + $0xbc] sm:$0x1]
        %v3763 = vld [vmem:[#allocation2 + $0xd8] sm:$0xe]
        %v3764 = vld [vmem:[#allocation2 + $0xdc] sm:$0xf]
        %v3765 = vld [vmem:[#allocation2 + $0xe0] sm:$0x1]
        %v3766 = vld [vmem:[#allocation2 + $0xe4] sm:$0xe]
        %v3767 = vld [vmem:[#allocation2 + $0xe8] sm:$0xf]
        %v3768 = vld [vmem:[#allocation2 + $0xec] sm:$0x1]
        %v3769 = vld [vmem:[#allocation2 + $0xf0] sm:$0xe]
        %v3770 = vld [vmem:[#allocation2 + $0xf4] sm:$0xf]
        %v3771 = vld [vmem:[#allocation2 + $0xf8] sm:$0x1]
        %v3772 = vld [vmem:[#allocation2 + $0xfc] sm:$0xe]
        %v3773 = vld [vmem:[#allocation2 + $0x100] sm:$0xf]
        %v3774 = vld [vmem:[#allocation2 + $0x104] sm:$0x1]
        %v3775 = vld [vmem:[#allocation2 + $0x108] sm:$0xe]
        %v3776 = vld [vmem:[#allocation2 + $0x10c] sm:$0xf]
        %v3777 = vld [vmem:[#allocation2 + $0x110] sm:$0x1]
        %v3778 = vld [vmem:[#allocation2 + $0x114] sm:$0xe]
        %v3779 = vld [vmem:[#allocation2 + $0x118] sm:$0xf]
        %v3780 = vld [vmem:[#allocation2 + $0x11c] sm:$0x1]
        %v3781 = vld [vmem:[#allocation2 + $0x120] sm:$0xe]
        %v3782 = vld [vmem:[#allocation2 + $0x124] sm:$0xf]
        %v3783 = vld [vmem:[#allocation2 + $0x128] sm:$0x1]
        %v3784 = vld [vmem:[#allocation2 + $0x12c] sm:$0xe]
        %v3785 = vld [vmem:[#allocation2 + $0x130] sm:$0xf]
        %v3786 = vld [vmem:[#allocation2 + $0x134] sm:$0x1]
        %v3787 = vld [vmem:[#allocation2 + $0x138] sm:$0xe]
        %v3788 = vld [vmem:[#allocation2 + $0x13c] sm:$0xf]
        %v3789 = vld [vmem:[#allocation2 + $0x140] sm:$0x1]
        %v3790 = vld [vmem:[#allocation2 + $0x144] sm:$0xe]
        %v3791 = vld [vmem:[#allocation2 + $0x148] sm:$0xf]
        %v3792 = vld [vmem:[#allocation2 + $0x14c] sm:$0x1]
        %v3793 = vld [vmem:[#allocation2 + $0x150] sm:$0xe]
        %v3794 = vld [vmem:[#allocation2 + $0x154] sm:$0xf]
        %v3795 = vld [vmem:[#allocation2 + $0x158] sm:$0x1]
        %v3796 = vld [vmem:[#allocation2 + $0x15c] sm:$0xe]
        %v3797 = vld [vmem:[#allocation2 + $0x160] sm:$0xf]
        %v3798 = vld [vmem:[#allocation2 + $0x164] sm:$0x1]
        %v3799 = vld [vmem:[#allocation2 + $0x168] sm:$0xe]
        %v3800 = vld [vmem:[#allocation2 + $0x16c] sm:$0xf]
        %v3801 = vld [vmem:[#allocation2 + $0x170] sm:$0x1]
        %v3802 = vld [vmem:[#allocation2 + $0x174] sm:$0xe]
        %v3803 = vld [vmem:[#allocation2 + $0x178] sm:$0xf]
        %v3804 = vld [vmem:[#allocation2 + $0x17c] sm:$0x1]
        %v3805 = vld [vmem:[#allocation2 + $0x180] sm:$0xe]
        %v3806 = vld [vmem:[#allocation2 + $0x184] sm:$0xf]
        %v3807 = vld [vmem:[#allocation2 + $0x188] sm:$0x1]
        %v3808 = vld [vmem:[#allocation2 + $0x18c] sm:$0xe]
        %v3809 = vld [vmem:[#allocation2 + $0x190] sm:$0xf]
        %v3810 = vld [vmem:[#allocation2 + $0x194] sm:$0x1]
        %vm3907 = vcmask 1042432
        %vm3908 = vcmask 1046532
        %vm3909 = vmor %vm3907, %vm3908
        %v3910 = vrot.slane %v3715, 5
        %v3911 = vrot.slane %v3910, 4
        %v3912 = vrot.slane %v3716, 5
        %v3913 = vsel %vm3909, %v3911, %v3912
        %v3914 = vrot.slane %v3912, 4
        %v3915 = vrot.slane %v3717, 5
        %v3916 = vsel %vm3909, %v3914, %v3915
        %v3917 = vrot.slane %v3718, 5
        %v3918 = vrot.slane %v3917, 4
        %v3919 = vrot.slane %v3719, 5
        %v3920 = vsel %vm3909, %v3918, %v3919
        %v3921 = vrot.slane %v3919, 4
        %v3922 = vrot.slane %v3720, 5
        %v3923 = vsel %vm3909, %v3921, %v3922
        %v3924 = vrot.slane %v3721, 5
        %v3925 = vrot.slane %v3924, 4
        %v3926 = vrot.slane %v3722, 5
        %v3927 = vsel %vm3909, %v3925, %v3926
        %v3928 = vrot.slane %v3926, 4
        %v3929 = vrot.slane %v3723, 5
        %v3930 = vsel %vm3909, %v3928, %v3929
        %v3931 = vrot.slane %v3724, 5
        %v3932 = vrot.slane %v3931, 4
        %v3933 = vrot.slane %v3725, 5
        %v3934 = vsel %vm3909, %v3932, %v3933
        %v3935 = vrot.slane %v3933, 4
        %v3936 = vrot.slane %v3726, 5
        %v3937 = vsel %vm3909, %v3935, %v3936
        %v3938 = vrot.slane %v3727, 5
        %v3939 = vrot.slane %v3938, 4
        %v3940 = vrot.slane %v3728, 5
        %v3941 = vsel %vm3909, %v3939, %v3940
        %v3942 = vrot.slane %v3940, 4
        %v3943 = vrot.slane %v3729, 5
        %v3944 = vsel %vm3909, %v3942, %v3943
        %v3945 = vrot.slane %v3730, 5
        %v3946 = vrot.slane %v3945, 4
        %v3947 = vrot.slane %v3731, 5
        %v3948 = vsel %vm3909, %v3946, %v3947
        %v3949 = vrot.slane %v3947, 4
        %v3950 = vrot.slane %v3732, 5
        %v3951 = vsel %vm3909, %v3949, %v3950
        %v3952 = vrot.slane %v3733, 5
        %v3953 = vrot.slane %v3952, 4
        %v3954 = vrot.slane %v3734, 5
        %v3955 = vsel %vm3909, %v3953, %v3954
        %v3956 = vrot.slane %v3954, 4
        %v3957 = vrot.slane %v3735, 5
        %v3958 = vsel %vm3909, %v3956, %v3957
        %v3959 = vrot.slane %v3736, 5
        %v3960 = vrot.slane %v3959, 4
        %v3961 = vrot.slane %v3737, 5
        %v3962 = vsel %vm3909, %v3960, %v3961
        %v3963 = vrot.slane %v3961, 4
        %v3964 = vrot.slane %v3738, 5
        %v3965 = vsel %vm3909, %v3963, %v3964
        %v3966 = vrot.slane %v3739, 5
        %v3967 = vrot.slane %v3966, 4
        %v3968 = vrot.slane %v3740, 5
        %v3969 = vsel %vm3909, %v3967, %v3968
        %v3970 = vrot.slane %v3968, 4
        %v3971 = vrot.slane %v3741, 5
        %v3972 = vsel %vm3909, %v3970, %v3971
        %v3973 = vrot.slane %v3742, 5
        %v3974 = vrot.slane %v3973, 4
        %v3975 = vrot.slane %v3743, 5
        %v3976 = vsel %vm3909, %v3974, %v3975
        %v3977 = vrot.slane %v3975, 4
        %v3978 = vrot.slane %v3744, 5
        %v3979 = vsel %vm3909, %v3977, %v3978
        %v3980 = vrot.slane %v3745, 5
        %v3981 = vrot.slane %v3980, 4
        %v3982 = vrot.slane %v3746, 5
        %v3983 = vsel %vm3909, %v3981, %v3982
        %v3984 = vrot.slane %v3982, 4
        %v3985 = vrot.slane %v3747, 5
        %v3986 = vsel %vm3909, %v3984, %v3985
        %v3987 = vrot.slane %v3748, 5
        %v3988 = vrot.slane %v3987, 4
        %v3989 = vrot.slane %v3749, 5
        %v3990 = vsel %vm3909, %v3988, %v3989
        %v3991 = vrot.slane %v3989, 4
        %v3992 = vrot.slane %v3750, 5
        %v3993 = vsel %vm3909, %v3991, %v3992
        %v3994 = vrot.slane %v3751, 5
        %v3995 = vrot.slane %v3994, 4
        %v3996 = vrot.slane %v3752, 5
        %v3997 = vsel %vm3909, %v3995, %v3996
        %v3998 = vrot.slane %v3996, 4
        %v3999 = vrot.slane %v3753, 5
        %v4000 = vsel %vm3909, %v3998, %v3999
        %v4001 = vrot.slane %v3754, 5
        %v4002 = vrot.slane %v4001, 4
        %v4003 = vrot.slane %v3755, 5
        %v4004 = vsel %vm3909, %v4002, %v4003
        %v4005 = vrot.slane %v4003, 4
        %v4006 = vrot.slane %v3756, 5
        %v4007 = vsel %vm3909, %v4005, %v4006
        %v4008 = vrot.slane %v3757, 5
        %v4009 = vrot.slane %v4008, 4
        %v4010 = vrot.slane %v3758, 5
        %v4011 = vsel %vm3909, %v4009, %v4010
        %v4012 = vrot.slane %v4010, 4
        %v4013 = vrot.slane %v3759, 5
        %v4014 = vsel %vm3909, %v4012, %v4013
        %v4015 = vrot.slane %v3760, 5
        %v4016 = vrot.slane %v4015, 4
        %v4017 = vrot.slane %v3761, 5
        %v4018 = vsel %vm3909, %v4016, %v4017
        %v4019 = vrot.slane %v4017, 4
        %v4020 = vrot.slane %v3762, 5
        %v4021 = vsel %vm3909, %v4019, %v4020
        %v4022 = vrot.slane %v3763, 5
        %v4023 = vrot.slane %v4022, 4
        %v4024 = vrot.slane %v3764, 5
        %v4025 = vsel %vm3909, %v4023, %v4024
        %v4026 = vrot.slane %v4024, 4
        %v4027 = vrot.slane %v3765, 5
        %v4028 = vsel %vm3909, %v4026, %v4027
        %v4029 = vrot.slane %v3766, 5
        %v4030 = vrot.slane %v4029, 4
        %v4031 = vrot.slane %v3767, 5
        %v4032 = vsel %vm3909, %v4030, %v4031
        %v4033 = vrot.slane %v4031, 4
        %v4034 = vrot.slane %v3768, 5
        %v4035 = vsel %vm3909, %v4033, %v4034
        %v4036 = vrot.slane %v3769, 5
        %v4037 = vrot.slane %v4036, 4
        %v4038 = vrot.slane %v3770, 5
        %v4039 = vsel %vm3909, %v4037, %v4038
        %v4040 = vrot.slane %v4038, 4
        %v4041 = vrot.slane %v3771, 5
        %v4042 = vsel %vm3909, %v4040, %v4041
        %v4043 = vrot.slane %v3772, 5
        %v4044 = vrot.slane %v4043, 4
        %v4045 = vrot.slane %v3773, 5
        %v4046 = vsel %vm3909, %v4044, %v4045
        %v4047 = vrot.slane %v4045, 4
        %v4048 = vrot.slane %v3774, 5
        %v4049 = vsel %vm3909, %v4047, %v4048
        %v4050 = vrot.slane %v3775, 5
        %v4051 = vrot.slane %v4050, 4
        %v4052 = vrot.slane %v3776, 5
        %v4053 = vsel %vm3909, %v4051, %v4052
        %v4054 = vrot.slane %v4052, 4
        %v4055 = vrot.slane %v3777, 5
        %v4056 = vsel %vm3909, %v4054, %v4055
        %v4057 = vrot.slane %v3778, 5
        %v4058 = vrot.slane %v4057, 4
        %v4059 = vrot.slane %v3779, 5
        %v4060 = vsel %vm3909, %v4058, %v4059
        %v4061 = vrot.slane %v4059, 4
        %v4062 = vrot.slane %v3780, 5
        %v4063 = vsel %vm3909, %v4061, %v4062
        %v4064 = vrot.slane %v3781, 5
        %v4065 = vrot.slane %v4064, 4
        %v4066 = vrot.slane %v3782, 5
        %v4067 = vsel %vm3909, %v4065, %v4066
        %v4068 = vrot.slane %v4066, 4
        %v4069 = vrot.slane %v3783, 5
        %v4070 = vsel %vm3909, %v4068, %v4069
        %v4071 = vrot.slane %v3784, 5
        %v4072 = vrot.slane %v4071, 4
        %v4073 = vrot.slane %v3785, 5
        %v4074 = vsel %vm3909, %v4072, %v4073
        %v4075 = vrot.slane %v4073, 4
        %v4076 = vrot.slane %v3786, 5
        %v4077 = vsel %vm3909, %v4075, %v4076
        %v4078 = vrot.slane %v3787, 5
        %v4079 = vrot.slane %v4078, 4
        %v4080 = vrot.slane %v3788, 5
        %v4081 = vsel %vm3909, %v4079, %v4080
        %v4082 = vrot.slane %v4080, 4
        %v4083 = vrot.slane %v3789, 5
        %v4084 = vsel %vm3909, %v4082, %v4083
        %v4085 = vrot.slane %v3790, 5
        %v4086 = vrot.slane %v4085, 4
        %v4087 = vrot.slane %v3791, 5
        %v4088 = vsel %vm3909, %v4086, %v4087
        %v4089 = vrot.slane %v4087, 4
        %v4090 = vrot.slane %v3792, 5
        %v4091 = vsel %vm3909, %v4089, %v4090
        %v4092 = vrot.slane %v3793, 5
        %v4093 = vrot.slane %v4092, 4
        %v4094 = vrot.slane %v3794, 5
        %v4095 = vsel %vm3909, %v4093, %v4094
        %v4096 = vrot.slane %v4094, 4
        %v4097 = vrot.slane %v3795, 5
        %v4098 = vsel %vm3909, %v4096, %v4097
        %v4099 = vrot.slane %v3796, 5
        %v4100 = vrot.slane %v4099, 4
        %v4101 = vrot.slane %v3797, 5
        %v4102 = vsel %vm3909, %v4100, %v4101
        %v4103 = vrot.slane %v4101, 4
        %v4104 = vrot.slane %v3798, 5
        %v4105 = vsel %vm3909, %v4103, %v4104
        %v4106 = vrot.slane %v3799, 5
        %v4107 = vrot.slane %v4106, 4
        %v4108 = vrot.slane %v3800, 5
        %v4109 = vsel %vm3909, %v4107, %v4108
        %v4110 = vrot.slane %v4108, 4
        %v4111 = vrot.slane %v3801, 5
        %v4112 = vsel %vm3909, %v4110, %v4111
        %v4113 = vrot.slane %v3802, 5
        %v4114 = vrot.slane %v4113, 4
        %v4115 = vrot.slane %v3803, 5
        %v4116 = vsel %vm3909, %v4114, %v4115
        %v4117 = vrot.slane %v4115, 4
        %v4118 = vrot.slane %v3804, 5
        %v4119 = vsel %vm3909, %v4117, %v4118
        %v4120 = vrot.slane %v3805, 5
        %v4121 = vrot.slane %v4120, 4
        %v4122 = vrot.slane %v3806, 5
        %v4123 = vsel %vm3909, %v4121, %v4122
        %v4124 = vrot.slane %v4122, 4
        %v4125 = vrot.slane %v3807, 5
        %v4126 = vsel %vm3909, %v4124, %v4125
        %v4127 = vrot.slane %v3808, 5
        %v4128 = vrot.slane %v4127, 4
        %v4129 = vrot.slane %v3809, 5
        %v4130 = vsel %vm3909, %v4128, %v4129
        %v4131 = vrot.slane %v4129, 4
        %v4132 = vrot.slane %v3810, 5
        %v4133 = vsel %vm3909, %v4131, %v4132
        %4134 = vrot.lane.b32.xlu0 %v3913, 64
        %v4135 = vpop.permute.xlu0 %4134
        %4136 = vrot.lane.b32.xlu0 %v3916, 64
        %v4137 = vpop.permute.xlu0 %4136
        %4138 = vrot.lane.b32.xlu0 %v3920, 64
        %v4139 = vpop.permute.xlu0 %4138
        %4140 = vrot.lane.b32.xlu0 %v3923, 64
        %v4141 = vpop.permute.xlu0 %4140
        %4142 = vrot.lane.b32.xlu0 %v3927, 64
        %v4143 = vpop.permute.xlu0 %4142
        %4144 = vrot.lane.b32.xlu0 %v3930, 64
        %v4145 = vpop.permute.xlu0 %4144
        %4146 = vrot.lane.b32.xlu0 %v3934, 64
        %v4147 = vpop.permute.xlu0 %4146
        %4148 = vrot.lane.b32.xlu0 %v3937, 64
        %v4149 = vpop.permute.xlu0 %4148
        %4150 = vrot.lane.b32.xlu0 %v3941, 64
        %v4151 = vpop.permute.xlu0 %4150
        %4152 = vrot.lane.b32.xlu0 %v3944, 64
        %v4153 = vpop.permute.xlu0 %4152
        %4154 = vrot.lane.b32.xlu0 %v3948, 64
        %v4155 = vpop.permute.xlu0 %4154
        %4156 = vrot.lane.b32.xlu0 %v3951, 64
        %v4157 = vpop.permute.xlu0 %4156
        %4158 = vrot.lane.b32.xlu0 %v3955, 64
        %v4159 = vpop.permute.xlu0 %4158
        %4160 = vrot.lane.b32.xlu0 %v3958, 64
        %v4161 = vpop.permute.xlu0 %4160
        %4162 = vrot.lane.b32.xlu0 %v3962, 64
        %v4163 = vpop.permute.xlu0 %4162
        %4164 = vrot.lane.b32.xlu0 %v3965, 64
        %v4165 = vpop.permute.xlu0 %4164
        %4166 = vrot.lane.b32.xlu0 %v3969, 64
        %v4167 = vpop.permute.xlu0 %4166
        %4168 = vrot.lane.b32.xlu0 %v3972, 64
        %v4169 = vpop.permute.xlu0 %4168
        %4170 = vrot.lane.b32.xlu0 %v3976, 64
        %v4171 = vpop.permute.xlu0 %4170
        %4172 = vrot.lane.b32.xlu0 %v3979, 64
        %v4173 = vpop.permute.xlu0 %4172
        %4174 = vrot.lane.b32.xlu0 %v3983, 64
        %v4175 = vpop.permute.xlu0 %4174
        %4176 = vrot.lane.b32.xlu0 %v3986, 64
        %v4177 = vpop.permute.xlu0 %4176
        %4178 = vrot.lane.b32.xlu0 %v3990, 64
        %v4179 = vpop.permute.xlu0 %4178
        %4180 = vrot.lane.b32.xlu0 %v3993, 64
        %v4181 = vpop.permute.xlu0 %4180
        %4182 = vrot.lane.b32.xlu0 %v3997, 64
        %v4183 = vpop.permute.xlu0 %4182
        %4184 = vrot.lane.b32.xlu0 %v4000, 64
        %v4185 = vpop.permute.xlu0 %4184
        %4186 = vrot.lane.b32.xlu0 %v4004, 64
        %v4187 = vpop.permute.xlu0 %4186
        %4188 = vrot.lane.b32.xlu0 %v4007, 64
        %v4189 = vpop.permute.xlu0 %4188
        %4190 = vrot.lane.b32.xlu0 %v4011, 64
        %v4191 = vpop.permute.xlu0 %4190
        %4192 = vrot.lane.b32.xlu0 %v4014, 64
        %v4193 = vpop.permute.xlu0 %4192
        %4194 = vrot.lane.b32.xlu0 %v4018, 64
        %v4195 = vpop.permute.xlu0 %4194
        %4196 = vrot.lane.b32.xlu0 %v4021, 64
        %v4197 = vpop.permute.xlu0 %4196
        %4198 = vrot.lane.b32.xlu0 %v4025, 64
        %v4199 = vpop.permute.xlu0 %4198
        %4200 = vrot.lane.b32.xlu0 %v4028, 64
        %v4201 = vpop.permute.xlu0 %4200
        %4202 = vrot.lane.b32.xlu0 %v4032, 64
        %v4203 = vpop.permute.xlu0 %4202
        %4204 = vrot.lane.b32.xlu0 %v4035, 64
        %v4205 = vpop.permute.xlu0 %4204
        %4206 = vrot.lane.b32.xlu0 %v4039, 64
        %v4207 = vpop.permute.xlu0 %4206
        %4208 = vrot.lane.b32.xlu0 %v4042, 64
        %v4209 = vpop.permute.xlu0 %4208
        %4210 = vrot.lane.b32.xlu0 %v4046, 64
        %v4211 = vpop.permute.xlu0 %4210
        %4212 = vrot.lane.b32.xlu0 %v4049, 64
        %v4213 = vpop.permute.xlu0 %4212
        %4214 = vrot.lane.b32.xlu0 %v4053, 64
        %v4215 = vpop.permute.xlu0 %4214
        %4216 = vrot.lane.b32.xlu0 %v4056, 64
        %v4217 = vpop.permute.xlu0 %4216
        %4218 = vrot.lane.b32.xlu0 %v4060, 64
        %v4219 = vpop.permute.xlu0 %4218
        %4220 = vrot.lane.b32.xlu0 %v4063, 64
        %v4221 = vpop.permute.xlu0 %4220
        %4222 = vrot.lane.b32.xlu0 %v4067, 64
        %v4223 = vpop.permute.xlu0 %4222
        %4224 = vrot.lane.b32.xlu0 %v4070, 64
        %v4225 = vpop.permute.xlu0 %4224
        %4226 = vrot.lane.b32.xlu0 %v4074, 64
        %v4227 = vpop.permute.xlu0 %4226
        %4228 = vrot.lane.b32.xlu0 %v4077, 64
        %v4229 = vpop.permute.xlu0 %4228
        %4230 = vrot.lane.b32.xlu0 %v4081, 64
        %v4231 = vpop.permute.xlu0 %4230
        %4232 = vrot.lane.b32.xlu0 %v4084, 64
        %v4233 = vpop.permute.xlu0 %4232
        %4234 = vrot.lane.b32.xlu0 %v4088, 64
        %v4235 = vpop.permute.xlu0 %4234
        %4236 = vrot.lane.b32.xlu0 %v4091, 64
        %v4237 = vpop.permute.xlu0 %4236
        %4238 = vrot.lane.b32.xlu0 %v4095, 64
        %v4239 = vpop.permute.xlu0 %4238
        %4240 = vrot.lane.b32.xlu0 %v4098, 64
        %v4241 = vpop.permute.xlu0 %4240
        %4242 = vrot.lane.b32.xlu0 %v4102, 64
        %v4243 = vpop.permute.xlu0 %4242
        %4244 = vrot.lane.b32.xlu0 %v4105, 64
        %v4245 = vpop.permute.xlu0 %4244
        %4246 = vrot.lane.b32.xlu0 %v4109, 64
        %v4247 = vpop.permute.xlu0 %4246
        %4248 = vrot.lane.b32.xlu0 %v4112, 64
        %v4249 = vpop.permute.xlu0 %4248
        %4250 = vrot.lane.b32.xlu0 %v4116, 64
        %v4251 = vpop.permute.xlu0 %4250
        %4252 = vrot.lane.b32.xlu0 %v4119, 64
        %v4253 = vpop.permute.xlu0 %4252
        %4254 = vrot.lane.b32.xlu0 %v4123, 64
        %v4255 = vpop.permute.xlu0 %4254
        %4256 = vrot.lane.b32.xlu0 %v4126, 64
        %v4257 = vpop.permute.xlu0 %4256
        %4258 = vrot.lane.b32.xlu0 %v4130, 64
        %v4259 = vpop.permute.xlu0 %4258
        %4260 = vrot.lane.b32.xlu0 %v4133, 64
        %v4261 = vpop.permute.xlu0 %4260
        %vm4326 = vcmask 781824
        %4327 = vst.msk [vmem:[#allocation3] sm:$0xf] %vm4326, %v4135
        %4328 = vst.msk [vmem:[#allocation3 + $0xc] sm:$0xf] %vm4326, %v4137
        %4329 = vst.msk [vmem:[#allocation3 + $0x18] sm:$0xf] %vm4326, %v4139
        %4330 = vst.msk [vmem:[#allocation3 + $0x24] sm:$0xf] %vm4326, %v4141
        %4331 = vst.msk [vmem:[#allocation3 + $0x30] sm:$0xf] %vm4326, %v4143
        %4332 = vst.msk [vmem:[#allocation3 + $0x3c] sm:$0xf] %vm4326, %v4145
        %4333 = vst.msk [vmem:[#allocation3 + $0x48] sm:$0xf] %vm4326, %v4147
        %4334 = vst.msk [vmem:[#allocation3 + $0x54] sm:$0xf] %vm4326, %v4149
        %4335 = vst.msk [vmem:[#allocation3 + $0x60] sm:$0xf] %vm4326, %v4151
        %4336 = vst.msk [vmem:[#allocation3 + $0x6c] sm:$0xf] %vm4326, %v4153
        %4337 = vst.msk [vmem:[#allocation3 + $0x78] sm:$0xf] %vm4326, %v4155
        %4338 = vst.msk [vmem:[#allocation3 + $0x84] sm:$0xf] %vm4326, %v4157
        %4339 = vst.msk [vmem:[#allocation3 + $0x90] sm:$0xf] %vm4326, %v4159
        %4340 = vst.msk [vmem:[#allocation3 + $0x9c] sm:$0xf] %vm4326, %v4161
        %4341 = vst.msk [vmem:[#allocation3 + $0xa8] sm:$0xf] %vm4326, %v4163
        %4342 = vst.msk [vmem:[#allocation3 + $0xb4] sm:$0xf] %vm4326, %v4165
        %4343 = vst.msk [vmem:[#allocation3 + $0xc0] sm:$0xf] %vm4326, %v4167
        %4344 = vst.msk [vmem:[#allocation3 + $0xcc] sm:$0xf] %vm4326, %v4169
        %4345 = vst.msk [vmem:[#allocation3 + $0xd8] sm:$0xf] %vm4326, %v4171
        %4346 = vst.msk [vmem:[#allocation3 + $0xe4] sm:$0xf] %vm4326, %v4173
        %4347 = vst.msk [vmem:[#allocation3 + $0xf0] sm:$0xf] %vm4326, %v4175
        %4348 = vst.msk [vmem:[#allocation3 + $0xfc] sm:$0xf] %vm4326, %v4177
        %4349 = vst.msk [vmem:[#allocation3 + $0x108] sm:$0xf] %vm4326, %v4179
        %4350 = vst.msk [vmem:[#allocation3 + $0x114] sm:$0xf] %vm4326, %v4181
        %4351 = vst.msk [vmem:[#allocation3 + $0x120] sm:$0xf] %vm4326, %v4183
        %4352 = vst.msk [vmem:[#allocation3 + $0x12c] sm:$0xf] %vm4326, %v4185
        %4353 = vst.msk [vmem:[#allocation3 + $0x138] sm:$0xf] %vm4326, %v4187
        %4354 = vst.msk [vmem:[#allocation3 + $0x144] sm:$0xf] %vm4326, %v4189
        %4355 = vst.msk [vmem:[#allocation3 + $0x150] sm:$0xf] %vm4326, %v4191
        %4356 = vst.msk [vmem:[#allocation3 + $0x15c] sm:$0xf] %vm4326, %v4193
        %4357 = vst.msk [vmem:[#allocation3 + $0x168] sm:$0xf] %vm4326, %v4195
        %4358 = vst.msk [vmem:[#allocation3 + $0x174] sm:$0xf] %vm4326, %v4197
        %4359 = vst.msk [vmem:[#allocation3 + $0x180] sm:$0xf] %vm4326, %v4199
        %4360 = vst.msk [vmem:[#allocation3 + $0x18c] sm:$0xf] %vm4326, %v4201
        %4361 = vst.msk [vmem:[#allocation3 + $0x198] sm:$0xf] %vm4326, %v4203
        %4362 = vst.msk [vmem:[#allocation3 + $0x1a4] sm:$0xf] %vm4326, %v4205
        %4363 = vst.msk [vmem:[#allocation3 + $0x1b0] sm:$0xf] %vm4326, %v4207
        %4364 = vst.msk [vmem:[#allocation3 + $0x1bc] sm:$0xf] %vm4326, %v4209
        %4365 = vst.msk [vmem:[#allocation3 + $0x1c8] sm:$0xf] %vm4326, %v4211
        %4366 = vst.msk [vmem:[#allocation3 + $0x1d4] sm:$0xf] %vm4326, %v4213
        %4367 = vst.msk [vmem:[#allocation3 + $0x1e0] sm:$0xf] %vm4326, %v4215
        %4368 = vst.msk [vmem:[#allocation3 + $0x1ec] sm:$0xf] %vm4326, %v4217
        %4369 = vst.msk [vmem:[#allocation3 + $0x1f8] sm:$0xf] %vm4326, %v4219
        %4370 = vst.msk [vmem:[#allocation3 + $0x204] sm:$0xf] %vm4326, %v4221
        %4371 = vst.msk [vmem:[#allocation3 + $0x210] sm:$0xf] %vm4326, %v4223
        %4372 = vst.msk [vmem:[#allocation3 + $0x21c] sm:$0xf] %vm4326, %v4225
        %4373 = vst.msk [vmem:[#allocation3 + $0x228] sm:$0xf] %vm4326, %v4227
        %4374 = vst.msk [vmem:[#allocation3 + $0x234] sm:$0xf] %vm4326, %v4229
        %4375 = vst.msk [vmem:[#allocation3 + $0x240] sm:$0xf] %vm4326, %v4231
        %4376 = vst.msk [vmem:[#allocation3 + $0x24c] sm:$0xf] %vm4326, %v4233
        %4377 = vst.msk [vmem:[#allocation3 + $0x258] sm:$0xf] %vm4326, %v4235
        %4378 = vst.msk [vmem:[#allocation3 + $0x264] sm:$0xf] %vm4326, %v4237
        %4379 = vst.msk [vmem:[#allocation3 + $0x270] sm:$0xf] %vm4326, %v4239
        %4380 = vst.msk [vmem:[#allocation3 + $0x27c] sm:$0xf] %vm4326, %v4241
        %4381 = vst.msk [vmem:[#allocation3 + $0x288] sm:$0xf] %vm4326, %v4243
        %4382 = vst.msk [vmem:[#allocation3 + $0x294] sm:$0xf] %vm4326, %v4245
        %4383 = vst.msk [vmem:[#allocation3 + $0x2a0] sm:$0xf] %vm4326, %v4247
        %4384 = vst.msk [vmem:[#allocation3 + $0x2ac] sm:$0xf] %vm4326, %v4249
        %4385 = vst.msk [vmem:[#allocation3 + $0x2b8] sm:$0xf] %vm4326, %v4251
        %4386 = vst.msk [vmem:[#allocation3 + $0x2c4] sm:$0xf] %vm4326, %v4253
        %4387 = vst.msk [vmem:[#allocation3 + $0x2d0] sm:$0xf] %vm4326, %v4255
        %4388 = vst.msk [vmem:[#allocation3 + $0x2dc] sm:$0xf] %vm4326, %v4257
        %4389 = vst.msk [vmem:[#allocation3 + $0x2e8] sm:$0xf] %vm4326, %v4259
        %4390 = vst.msk [vmem:[#allocation3 + $0x2f4] sm:$0xf] %vm4326, %v4261
        %v4391 = vld [vmem:[%s2236] sm:$0xf]
        %v4392 = vld [vmem:[%s2236 + $0x4] sm:$0xf]
        %v4393 = vld [vmem:[%s2236 + $0xc] sm:$0xf]
        %v4394 = vld [vmem:[%s2236 + $0x10] sm:$0xf]
        %v4395 = vld [vmem:[%s2236 + $0x18] sm:$0xf]
        %v4396 = vld [vmem:[%s2236 + $0x1c] sm:$0xf]
        %v4397 = vld [vmem:[%s2236 + $0x24] sm:$0xf]
        %v4398 = vld [vmem:[%s2236 + $0x28] sm:$0xf]
        %v4399 = vld [vmem:[%s2236 + $0x30] sm:$0xf]
        %v4400 = vld [vmem:[%s2236 + $0x34] sm:$0xf]
        %v4401 = vld [vmem:[%s2236 + $0x3c] sm:$0xf]
        %v4402 = vld [vmem:[%s2236 + $0x40] sm:$0xf]
        %v4403 = vld [vmem:[%s2236 + $0x48] sm:$0xf]
        %v4404 = vld [vmem:[%s2236 + $0x4c] sm:$0xf]
        %v4405 = vld [vmem:[%s2236 + $0x54] sm:$0xf]
        %v4406 = vld [vmem:[%s2236 + $0x58] sm:$0xf]
        %v4407 = vld [vmem:[%s2236 + $0x60] sm:$0xf]
        %v4408 = vld [vmem:[%s2236 + $0x64] sm:$0xf]
        %v4409 = vld [vmem:[%s2236 + $0x6c] sm:$0xf]
        %v4410 = vld [vmem:[%s2236 + $0x70] sm:$0xf]
        %v4411 = vld [vmem:[%s2236 + $0x78] sm:$0xf]
        %v4412 = vld [vmem:[%s2236 + $0x7c] sm:$0xf]
        %v4413 = vld [vmem:[%s2236 + $0x84] sm:$0xf]
        %v4414 = vld [vmem:[%s2236 + $0x88] sm:$0xf]
        %v4415 = vld [vmem:[%s2236 + $0x90] sm:$0xf]
        %v4416 = vld [vmem:[%s2236 + $0x94] sm:$0xf]
        %v4417 = vld [vmem:[%s2236 + $0x9c] sm:$0xf]
        %v4418 = vld [vmem:[%s2236 + $0xa0] sm:$0xf]
        %v4419 = vld [vmem:[%s2236 + $0xa8] sm:$0xf]
        %v4420 = vld [vmem:[%s2236 + $0xac] sm:$0xf]
        %v4421 = vld [vmem:[%s2236 + $0xb4] sm:$0xf]
        %v4422 = vld [vmem:[%s2236 + $0xb8] sm:$0xf]
        %v4423 = vld [vmem:[%s2236 + $0xd8] sm:$0xf]
        %v4424 = vld [vmem:[%s2236 + $0xdc] sm:$0xf]
        %v4425 = vld [vmem:[%s2236 + $0xe4] sm:$0xf]
        %v4426 = vld [vmem:[%s2236 + $0xe8] sm:$0xf]
        %v4427 = vld [vmem:[%s2236 + $0xf0] sm:$0xf]
        %v4428 = vld [vmem:[%s2236 + $0xf4] sm:$0xf]
        %v4429 = vld [vmem:[%s2236 + $0xfc] sm:$0xf]
        %v4430 = vld [vmem:[%s2236 + $0x100] sm:$0xf]
        %v4431 = vld [vmem:[%s2236 + $0x108] sm:$0xf]
        %v4432 = vld [vmem:[%s2236 + $0x10c] sm:$0xf]
        %v4433 = vld [vmem:[%s2236 + $0x114] sm:$0xf]
        %v4434 = vld [vmem:[%s2236 + $0x118] sm:$0xf]
        %v4435 = vld [vmem:[%s2236 + $0x120] sm:$0xf]
        %v4436 = vld [vmem:[%s2236 + $0x124] sm:$0xf]
        %v4437 = vld [vmem:[%s2236 + $0x12c] sm:$0xf]
        %v4438 = vld [vmem:[%s2236 + $0x130] sm:$0xf]
        %v4439 = vld [vmem:[%s2236 + $0x138] sm:$0xf]
        %v4440 = vld [vmem:[%s2236 + $0x13c] sm:$0xf]
        %v4441 = vld [vmem:[%s2236 + $0x144] sm:$0xf]
        %v4442 = vld [vmem:[%s2236 + $0x148] sm:$0xf]
        %v4443 = vld [vmem:[%s2236 + $0x150] sm:$0xf]
        %v4444 = vld [vmem:[%s2236 + $0x154] sm:$0xf]
        %v4445 = vld [vmem:[%s2236 + $0x15c] sm:$0xf]
        %v4446 = vld [vmem:[%s2236 + $0x160] sm:$0xf]
        %v4447 = vld [vmem:[%s2236 + $0x168] sm:$0xf]
        %v4448 = vld [vmem:[%s2236 + $0x16c] sm:$0xf]
        %v4449 = vld [vmem:[%s2236 + $0x174] sm:$0xf]
        %v4450 = vld [vmem:[%s2236 + $0x178] sm:$0xf]
        %v4451 = vld [vmem:[%s2236 + $0x180] sm:$0xf]
        %v4452 = vld [vmem:[%s2236 + $0x184] sm:$0xf]
        %v4453 = vld [vmem:[%s2236 + $0x18c] sm:$0xf]
        %v4454 = vld [vmem:[%s2236 + $0x190] sm:$0xf]
        %4519 = vrot.lane.b32.xlu0 %v4391, 96
        %v4520 = vpop.permute.xlu0 %4519
        %4521 = vrot.lane.b32.xlu0 %v4392, 96
        %v4522 = vpop.permute.xlu0 %4521
        %4523 = vrot.lane.b32.xlu0 %v4393, 96
        %v4524 = vpop.permute.xlu0 %4523
        %4525 = vrot.lane.b32.xlu0 %v4394, 96
        %v4526 = vpop.permute.xlu0 %4525
        %4527 = vrot.lane.b32.xlu0 %v4395, 96
        %v4528 = vpop.permute.xlu0 %4527
        %4529 = vrot.lane.b32.xlu0 %v4396, 96
        %v4530 = vpop.permute.xlu0 %4529
        %4531 = vrot.lane.b32.xlu0 %v4397, 96
        %v4532 = vpop.permute.xlu0 %4531
        %4533 = vrot.lane.b32.xlu0 %v4398, 96
        %v4534 = vpop.permute.xlu0 %4533
        %4535 = vrot.lane.b32.xlu0 %v4399, 96
        %v4536 = vpop.permute.xlu0 %4535
        %4537 = vrot.lane.b32.xlu0 %v4400, 96
        %v4538 = vpop.permute.xlu0 %4537
        %4539 = vrot.lane.b32.xlu0 %v4401, 96
        %v4540 = vpop.permute.xlu0 %4539
        %4541 = vrot.lane.b32.xlu0 %v4402, 96
        %v4542 = vpop.permute.xlu0 %4541
        %4543 = vrot.lane.b32.xlu0 %v4403, 96
        %v4544 = vpop.permute.xlu0 %4543
        %4545 = vrot.lane.b32.xlu0 %v4404, 96
        %v4546 = vpop.permute.xlu0 %4545
        %4547 = vrot.lane.b32.xlu0 %v4405, 96
        %v4548 = vpop.permute.xlu0 %4547
        %4549 = vrot.lane.b32.xlu0 %v4406, 96
        %v4550 = vpop.permute.xlu0 %4549
        %4551 = vrot.lane.b32.xlu0 %v4407, 96
        %v4552 = vpop.permute.xlu0 %4551
        %4553 = vrot.lane.b32.xlu0 %v4408, 96
        %v4554 = vpop.permute.xlu0 %4553
        %4555 = vrot.lane.b32.xlu0 %v4409, 96
        %v4556 = vpop.permute.xlu0 %4555
        %4557 = vrot.lane.b32.xlu0 %v4410, 96
        %v4558 = vpop.permute.xlu0 %4557
        %4559 = vrot.lane.b32.xlu0 %v4411, 96
        %v4560 = vpop.permute.xlu0 %4559
        %4561 = vrot.lane.b32.xlu0 %v4412, 96
        %v4562 = vpop.permute.xlu0 %4561
        %4563 = vrot.lane.b32.xlu0 %v4413, 96
        %v4564 = vpop.permute.xlu0 %4563
        %4565 = vrot.lane.b32.xlu0 %v4414, 96
        %v4566 = vpop.permute.xlu0 %4565
        %4567 = vrot.lane.b32.xlu0 %v4415, 96
        %v4568 = vpop.permute.xlu0 %4567
        %4569 = vrot.lane.b32.xlu0 %v4416, 96
        %v4570 = vpop.permute.xlu0 %4569
        %4571 = vrot.lane.b32.xlu0 %v4417, 96
        %v4572 = vpop.permute.xlu0 %4571
        %4573 = vrot.lane.b32.xlu0 %v4418, 96
        %v4574 = vpop.permute.xlu0 %4573
        %4575 = vrot.lane.b32.xlu0 %v4419, 96
        %v4576 = vpop.permute.xlu0 %4575
        %4577 = vrot.lane.b32.xlu0 %v4420, 96
        %v4578 = vpop.permute.xlu0 %4577
        %4579 = vrot.lane.b32.xlu0 %v4421, 96
        %v4580 = vpop.permute.xlu0 %4579
        %4581 = vrot.lane.b32.xlu0 %v4422, 96
        %v4582 = vpop.permute.xlu0 %4581
        %4583 = vrot.lane.b32.xlu0 %v4423, 96
        %v4584 = vpop.permute.xlu0 %4583
        %4585 = vrot.lane.b32.xlu0 %v4424, 96
        %v4586 = vpop.permute.xlu0 %4585
        %4587 = vrot.lane.b32.xlu0 %v4425, 96
        %v4588 = vpop.permute.xlu0 %4587
        %4589 = vrot.lane.b32.xlu0 %v4426, 96
        %v4590 = vpop.permute.xlu0 %4589
        %4591 = vrot.lane.b32.xlu0 %v4427, 96
        %v4592 = vpop.permute.xlu0 %4591
        %4593 = vrot.lane.b32.xlu0 %v4428, 96
        %v4594 = vpop.permute.xlu0 %4593
        %4595 = vrot.lane.b32.xlu0 %v4429, 96
        %v4596 = vpop.permute.xlu0 %4595
        %4597 = vrot.lane.b32.xlu0 %v4430, 96
        %v4598 = vpop.permute.xlu0 %4597
        %4599 = vrot.lane.b32.xlu0 %v4431, 96
        %v4600 = vpop.permute.xlu0 %4599
        %4601 = vrot.lane.b32.xlu0 %v4432, 96
        %v4602 = vpop.permute.xlu0 %4601
        %4603 = vrot.lane.b32.xlu0 %v4433, 96
        %v4604 = vpop.permute.xlu0 %4603
        %4605 = vrot.lane.b32.xlu0 %v4434, 96
        %v4606 = vpop.permute.xlu0 %4605
        %4607 = vrot.lane.b32.xlu0 %v4435, 96
        %v4608 = vpop.permute.xlu0 %4607
        %4609 = vrot.lane.b32.xlu0 %v4436, 96
        %v4610 = vpop.permute.xlu0 %4609
        %4611 = vrot.lane.b32.xlu0 %v4437, 96
        %v4612 = vpop.permute.xlu0 %4611
        %4613 = vrot.lane.b32.xlu0 %v4438, 96
        %v4614 = vpop.permute.xlu0 %4613
        %4615 = vrot.lane.b32.xlu0 %v4439, 96
        %v4616 = vpop.permute.xlu0 %4615
        %4617 = vrot.lane.b32.xlu0 %v4440, 96
        %v4618 = vpop.permute.xlu0 %4617
        %4619 = vrot.lane.b32.xlu0 %v4441, 96
        %v4620 = vpop.permute.xlu0 %4619
        %4621 = vrot.lane.b32.xlu0 %v4442, 96
        %v4622 = vpop.permute.xlu0 %4621
        %4623 = vrot.lane.b32.xlu0 %v4443, 96
        %v4624 = vpop.permute.xlu0 %4623
        %4625 = vrot.lane.b32.xlu0 %v4444, 96
        %v4626 = vpop.permute.xlu0 %4625
        %4627 = vrot.lane.b32.xlu0 %v4445, 96
        %v4628 = vpop.permute.xlu0 %4627
        %4629 = vrot.lane.b32.xlu0 %v4446, 96
        %v4630 = vpop.permute.xlu0 %4629
        %4631 = vrot.lane.b32.xlu0 %v4447, 96
        %v4632 = vpop.permute.xlu0 %4631
        %4633 = vrot.lane.b32.xlu0 %v4448, 96
        %v4634 = vpop.permute.xlu0 %4633
        %4635 = vrot.lane.b32.xlu0 %v4449, 96
        %v4636 = vpop.permute.xlu0 %4635
        %4637 = vrot.lane.b32.xlu0 %v4450, 96
        %v4638 = vpop.permute.xlu0 %4637
        %4639 = vrot.lane.b32.xlu0 %v4451, 96
        %v4640 = vpop.permute.xlu0 %4639
        %4641 = vrot.lane.b32.xlu0 %v4452, 96
        %v4642 = vpop.permute.xlu0 %4641
        %4643 = vrot.lane.b32.xlu0 %v4453, 96
        %v4644 = vpop.permute.xlu0 %4643
        %4645 = vrot.lane.b32.xlu0 %v4454, 96
        %v4646 = vpop.permute.xlu0 %4645
        %vm4711 = vcmask 1044224
        %4712 = vst.msk [vmem:[#allocation3] sm:$0xf] %vm4711, %v4520
        %4713 = vst.msk [vmem:[#allocation3 + $0xc] sm:$0xf] %vm4711, %v4522
        %4714 = vst.msk [vmem:[#allocation3 + $0x18] sm:$0xf] %vm4711, %v4524
        %4715 = vst.msk [vmem:[#allocation3 + $0x24] sm:$0xf] %vm4711, %v4526
        %4716 = vst.msk [vmem:[#allocation3 + $0x30] sm:$0xf] %vm4711, %v4528
        %4717 = vst.msk [vmem:[#allocation3 + $0x3c] sm:$0xf] %vm4711, %v4530
        %4718 = vst.msk [vmem:[#allocation3 + $0x48] sm:$0xf] %vm4711, %v4532
        %4719 = vst.msk [vmem:[#allocation3 + $0x54] sm:$0xf] %vm4711, %v4534
        %4720 = vst.msk [vmem:[#allocation3 + $0x60] sm:$0xf] %vm4711, %v4536
        %4721 = vst.msk [vmem:[#allocation3 + $0x6c] sm:$0xf] %vm4711, %v4538
        %4722 = vst.msk [vmem:[#allocation3 + $0x78] sm:$0xf] %vm4711, %v4540
        %4723 = vst.msk [vmem:[#allocation3 + $0x84] sm:$0xf] %vm4711, %v4542
        %4724 = vst.msk [vmem:[#allocation3 + $0x90] sm:$0xf] %vm4711, %v4544
        %4725 = vst.msk [vmem:[#allocation3 + $0x9c] sm:$0xf] %vm4711, %v4546
        %4726 = vst.msk [vmem:[#allocation3 + $0xa8] sm:$0xf] %vm4711, %v4548
        %4727 = vst.msk [vmem:[#allocation3 + $0xb4] sm:$0xf] %vm4711, %v4550
        %4728 = vst.msk [vmem:[#allocation3 + $0xc0] sm:$0xf] %vm4711, %v4552
        %4729 = vst.msk [vmem:[#allocation3 + $0xcc] sm:$0xf] %vm4711, %v4554
        %4730 = vst.msk [vmem:[#allocation3 + $0xd8] sm:$0xf] %vm4711, %v4556
        %4731 = vst.msk [vmem:[#allocation3 + $0xe4] sm:$0xf] %vm4711, %v4558
        %4732 = vst.msk [vmem:[#allocation3 + $0xf0] sm:$0xf] %vm4711, %v4560
        %4733 = vst.msk [vmem:[#allocation3 + $0xfc] sm:$0xf] %vm4711, %v4562
        %4734 = vst.msk [vmem:[#allocation3 + $0x108] sm:$0xf] %vm4711, %v4564
        %4735 = vst.msk [vmem:[#allocation3 + $0x114] sm:$0xf] %vm4711, %v4566
        %4736 = vst.msk [vmem:[#allocation3 + $0x120] sm:$0xf] %vm4711, %v4568
        %4737 = vst.msk [vmem:[#allocation3 + $0x12c] sm:$0xf] %vm4711, %v4570
        %4738 = vst.msk [vmem:[#allocation3 + $0x138] sm:$0xf] %vm4711, %v4572
        %4739 = vst.msk [vmem:[#allocation3 + $0x144] sm:$0xf] %vm4711, %v4574
        %4740 = vst.msk [vmem:[#allocation3 + $0x150] sm:$0xf] %vm4711, %v4576
        %4741 = vst.msk [vmem:[#allocation3 + $0x15c] sm:$0xf] %vm4711, %v4578
        %4742 = vst.msk [vmem:[#allocation3 + $0x168] sm:$0xf] %vm4711, %v4580
        %4743 = vst.msk [vmem:[#allocation3 + $0x174] sm:$0xf] %vm4711, %v4582
        %4744 = vst.msk [vmem:[#allocation3 + $0x180] sm:$0xf] %vm4711, %v4584
        %4745 = vst.msk [vmem:[#allocation3 + $0x18c] sm:$0xf] %vm4711, %v4586
        %4746 = vst.msk [vmem:[#allocation3 + $0x198] sm:$0xf] %vm4711, %v4588
        %4747 = vst.msk [vmem:[#allocation3 + $0x1a4] sm:$0xf] %vm4711, %v4590
        %4748 = vst.msk [vmem:[#allocation3 + $0x1b0] sm:$0xf] %vm4711, %v4592
        %4749 = vst.msk [vmem:[#allocation3 + $0x1bc] sm:$0xf] %vm4711, %v4594
        %4750 = vst.msk [vmem:[#allocation3 + $0x1c8] sm:$0xf] %vm4711, %v4596
        %4751 = vst.msk [vmem:[#allocation3 + $0x1d4] sm:$0xf] %vm4711, %v4598
        %4752 = vst.msk [vmem:[#allocation3 + $0x1e0] sm:$0xf] %vm4711, %v4600
        %4753 = vst.msk [vmem:[#allocation3 + $0x1ec] sm:$0xf] %vm4711, %v4602
        %4754 = vst.msk [vmem:[#allocation3 + $0x1f8] sm:$0xf] %vm4711, %v4604
        %4755 = vst.msk [vmem:[#allocation3 + $0x204] sm:$0xf] %vm4711, %v4606
        %4756 = vst.msk [vmem:[#allocation3 + $0x210] sm:$0xf] %vm4711, %v4608
        %4757 = vst.msk [vmem:[#allocation3 + $0x21c] sm:$0xf] %vm4711, %v4610
        %4758 = vst.msk [vmem:[#allocation3 + $0x228] sm:$0xf] %vm4711, %v4612
        %4759 = vst.msk [vmem:[#allocation3 + $0x234] sm:$0xf] %vm4711, %v4614
        %4760 = vst.msk [vmem:[#allocation3 + $0x240] sm:$0xf] %vm4711, %v4616
        %4761 = vst.msk [vmem:[#allocation3 + $0x24c] sm:$0xf] %vm4711, %v4618
        %4762 = vst.msk [vmem:[#allocation3 + $0x258] sm:$0xf] %vm4711, %v4620
        %4763 = vst.msk [vmem:[#allocation3 + $0x264] sm:$0xf] %vm4711, %v4622
        %4764 = vst.msk [vmem:[#allocation3 + $0x270] sm:$0xf] %vm4711, %v4624
        %4765 = vst.msk [vmem:[#allocation3 + $0x27c] sm:$0xf] %vm4711, %v4626
        %4766 = vst.msk [vmem:[#allocation3 + $0x288] sm:$0xf] %vm4711, %v4628
        %4767 = vst.msk [vmem:[#allocation3 + $0x294] sm:$0xf] %vm4711, %v4630
        %4768 = vst.msk [vmem:[#allocation3 + $0x2a0] sm:$0xf] %vm4711, %v4632
        %4769 = vst.msk [vmem:[#allocation3 + $0x2ac] sm:$0xf] %vm4711, %v4634
        %4770 = vst.msk [vmem:[#allocation3 + $0x2b8] sm:$0xf] %vm4711, %v4636
        %4771 = vst.msk [vmem:[#allocation3 + $0x2c4] sm:$0xf] %vm4711, %v4638
        %4772 = vst.msk [vmem:[#allocation3 + $0x2d0] sm:$0xf] %vm4711, %v4640
        %4773 = vst.msk [vmem:[#allocation3 + $0x2dc] sm:$0xf] %vm4711, %v4642
        %4774 = vst.msk [vmem:[#allocation3 + $0x2e8] sm:$0xf] %vm4711, %v4644
        %4775 = vst.msk [vmem:[#allocation3 + $0x2f4] sm:$0xf] %vm4711, %v4646
        %v4776 = vld [vmem:[%s2236] sm:$0xf]
        %v4777 = vld [vmem:[%s2236 + $0x4] sm:$0xf]
        %v4778 = vld [vmem:[%s2236 + $0x8] sm:$0x1]
        %v4779 = vld [vmem:[%s2236 + $0xc] sm:$0xf]
        %v4780 = vld [vmem:[%s2236 + $0x10] sm:$0xf]
        %v4781 = vld [vmem:[%s2236 + $0x14] sm:$0x1]
        %v4782 = vld [vmem:[%s2236 + $0x18] sm:$0xf]
        %v4783 = vld [vmem:[%s2236 + $0x1c] sm:$0xf]
        %v4784 = vld [vmem:[%s2236 + $0x20] sm:$0x1]
        %v4785 = vld [vmem:[%s2236 + $0x24] sm:$0xf]
        %v4786 = vld [vmem:[%s2236 + $0x28] sm:$0xf]
        %v4787 = vld [vmem:[%s2236 + $0x2c] sm:$0x1]
        %v4788 = vld [vmem:[%s2236 + $0x30] sm:$0xf]
        %v4789 = vld [vmem:[%s2236 + $0x34] sm:$0xf]
        %v4790 = vld [vmem:[%s2236 + $0x38] sm:$0x1]
        %v4791 = vld [vmem:[%s2236 + $0x3c] sm:$0xf]
        %v4792 = vld [vmem:[%s2236 + $0x40] sm:$0xf]
        %v4793 = vld [vmem:[%s2236 + $0x44] sm:$0x1]
        %v4794 = vld [vmem:[%s2236 + $0x48] sm:$0xf]
        %v4795 = vld [vmem:[%s2236 + $0x4c] sm:$0xf]
        %v4796 = vld [vmem:[%s2236 + $0x50] sm:$0x1]
        %v4797 = vld [vmem:[%s2236 + $0x54] sm:$0xf]
        %v4798 = vld [vmem:[%s2236 + $0x58] sm:$0xf]
        %v4799 = vld [vmem:[%s2236 + $0x5c] sm:$0x1]
        %v4800 = vld [vmem:[%s2236 + $0x60] sm:$0xf]
        %v4801 = vld [vmem:[%s2236 + $0x64] sm:$0xf]
        %v4802 = vld [vmem:[%s2236 + $0x68] sm:$0x1]
        %v4803 = vld [vmem:[%s2236 + $0x6c] sm:$0xf]
        %v4804 = vld [vmem:[%s2236 + $0x70] sm:$0xf]
        %v4805 = vld [vmem:[%s2236 + $0x74] sm:$0x1]
        %v4806 = vld [vmem:[%s2236 + $0x78] sm:$0xf]
        %v4807 = vld [vmem:[%s2236 + $0x7c] sm:$0xf]
        %v4808 = vld [vmem:[%s2236 + $0x80] sm:$0x1]
        %v4809 = vld [vmem:[%s2236 + $0x84] sm:$0xf]
        %v4810 = vld [vmem:[%s2236 + $0x88] sm:$0xf]
        %v4811 = vld [vmem:[%s2236 + $0x8c] sm:$0x1]
        %v4812 = vld [vmem:[%s2236 + $0x90] sm:$0xf]
        %v4813 = vld [vmem:[%s2236 + $0x94] sm:$0xf]
        %v4814 = vld [vmem:[%s2236 + $0x98] sm:$0x1]
        %v4815 = vld [vmem:[%s2236 + $0x9c] sm:$0xf]
        %v4816 = vld [vmem:[%s2236 + $0xa0] sm:$0xf]
        %v4817 = vld [vmem:[%s2236 + $0xa4] sm:$0x1]
        %v4818 = vld [vmem:[%s2236 + $0xa8] sm:$0xf]
        %v4819 = vld [vmem:[%s2236 + $0xac] sm:$0xf]
        %v4820 = vld [vmem:[%s2236 + $0xb0] sm:$0x1]
        %v4821 = vld [vmem:[%s2236 + $0xb4] sm:$0xf]
        %v4822 = vld [vmem:[%s2236 + $0xb8] sm:$0xf]
        %v4823 = vld [vmem:[%s2236 + $0xbc] sm:$0x1]
        %v4824 = vld [vmem:[%s2236 + $0xd8] sm:$0xf]
        %v4825 = vld [vmem:[%s2236 + $0xdc] sm:$0xf]
        %v4826 = vld [vmem:[%s2236 + $0xe0] sm:$0x1]
        %v4827 = vld [vmem:[%s2236 + $0xe4] sm:$0xf]
        %v4828 = vld [vmem:[%s2236 + $0xe8] sm:$0xf]
        %v4829 = vld [vmem:[%s2236 + $0xec] sm:$0x1]
        %v4830 = vld [vmem:[%s2236 + $0xf0] sm:$0xf]
        %v4831 = vld [vmem:[%s2236 + $0xf4] sm:$0xf]
        %v4832 = vld [vmem:[%s2236 + $0xf8] sm:$0x1]
        %v4833 = vld [vmem:[%s2236 + $0xfc] sm:$0xf]
        %v4834 = vld [vmem:[%s2236 + $0x100] sm:$0xf]
        %v4835 = vld [vmem:[%s2236 + $0x104] sm:$0x1]
        %v4836 = vld [vmem:[%s2236 + $0x108] sm:$0xf]
        %v4837 = vld [vmem:[%s2236 + $0x10c] sm:$0xf]
        %v4838 = vld [vmem:[%s2236 + $0x110] sm:$0x1]
        %v4839 = vld [vmem:[%s2236 + $0x114] sm:$0xf]
        %v4840 = vld [vmem:[%s2236 + $0x118] sm:$0xf]
        %v4841 = vld [vmem:[%s2236 + $0x11c] sm:$0x1]
        %v4842 = vld [vmem:[%s2236 + $0x120] sm:$0xf]
        %v4843 = vld [vmem:[%s2236 + $0x124] sm:$0xf]
        %v4844 = vld [vmem:[%s2236 + $0x128] sm:$0x1]
        %v4845 = vld [vmem:[%s2236 + $0x12c] sm:$0xf]
        %v4846 = vld [vmem:[%s2236 + $0x130] sm:$0xf]
        %v4847 = vld [vmem:[%s2236 + $0x134] sm:$0x1]
        %v4848 = vld [vmem:[%s2236 + $0x138] sm:$0xf]
        %v4849 = vld [vmem:[%s2236 + $0x13c] sm:$0xf]
        %v4850 = vld [vmem:[%s2236 + $0x140] sm:$0x1]
        %v4851 = vld [vmem:[%s2236 + $0x144] sm:$0xf]
        %v4852 = vld [vmem:[%s2236 + $0x148] sm:$0xf]
        %v4853 = vld [vmem:[%s2236 + $0x14c] sm:$0x1]
        %v4854 = vld [vmem:[%s2236 + $0x150] sm:$0xf]
        %v4855 = vld [vmem:[%s2236 + $0x154] sm:$0xf]
        %v4856 = vld [vmem:[%s2236 + $0x158] sm:$0x1]
        %v4857 = vld [vmem:[%s2236 + $0x15c] sm:$0xf]
        %v4858 = vld [vmem:[%s2236 + $0x160] sm:$0xf]
        %v4859 = vld [vmem:[%s2236 + $0x164] sm:$0x1]
        %v4860 = vld [vmem:[%s2236 + $0x168] sm:$0xf]
        %v4861 = vld [vmem:[%s2236 + $0x16c] sm:$0xf]
        %v4862 = vld [vmem:[%s2236 + $0x170] sm:$0x1]
        %v4863 = vld [vmem:[%s2236 + $0x174] sm:$0xf]
        %v4864 = vld [vmem:[%s2236 + $0x178] sm:$0xf]
        %v4865 = vld [vmem:[%s2236 + $0x17c] sm:$0x1]
        %v4866 = vld [vmem:[%s2236 + $0x180] sm:$0xf]
        %v4867 = vld [vmem:[%s2236 + $0x184] sm:$0xf]
        %v4868 = vld [vmem:[%s2236 + $0x188] sm:$0x1]
        %v4869 = vld [vmem:[%s2236 + $0x18c] sm:$0xf]
        %v4870 = vld [vmem:[%s2236 + $0x190] sm:$0xf]
        %v4871 = vld [vmem:[%s2236 + $0x194] sm:$0x1]
        %v4873 = vshrl.u32 %v4776, 16
        %v4875 = vrot.slane %v4873, 4
        %v4876 = vshll.u32 %v4776, 16
        %v4878 = vrot.slane %v4876, 5
        %v4879 = vor.u32 %v4875, %v4878
        %v4880 = vrot.slane %v4879, 4
        %v4882 = vshll.u32 %v4777, 16
        %v4884 = vrot.slane %v4882, 5
        %v4885 = vsel %vm2689, %v4880, %v4884
        %v4886 = vshrl.u32 %v4777, 16
        %v4888 = vrot.slane %v4886, 4
        %v4889 = vor.u32 %v4888, %v4884
        %v4890 = vrot.slane %v4889, 4
        %v4892 = vshll.u32 %v4778, 16
        %v4894 = vrot.slane %v4892, 5
        %v4895 = vsel %vm2689, %v4890, %v4894
        %v4897 = vshrl.u32 %v4779, 16
        %v4899 = vrot.slane %v4897, 4
        %v4900 = vshll.u32 %v4779, 16
        %v4902 = vrot.slane %v4900, 5
        %v4903 = vor.u32 %v4899, %v4902
        %v4904 = vrot.slane %v4903, 4
        %v4906 = vshll.u32 %v4780, 16
        %v4908 = vrot.slane %v4906, 5
        %v4909 = vsel %vm2689, %v4904, %v4908
        %v4910 = vshrl.u32 %v4780, 16
        %v4912 = vrot.slane %v4910, 4
        %v4913 = vor.u32 %v4912, %v4908
        %v4914 = vrot.slane %v4913, 4
        %v4916 = vshll.u32 %v4781, 16
        %v4918 = vrot.slane %v4916, 5
        %v4919 = vsel %vm2689, %v4914, %v4918
        %v4921 = vshrl.u32 %v4782, 16
        %v4923 = vrot.slane %v4921, 4
        %v4924 = vshll.u32 %v4782, 16
        %v4926 = vrot.slane %v4924, 5
        %v4927 = vor.u32 %v4923, %v4926
        %v4928 = vrot.slane %v4927, 4
        %v4930 = vshll.u32 %v4783, 16
        %v4932 = vrot.slane %v4930, 5
        %v4933 = vsel %vm2689, %v4928, %v4932
        %v4934 = vshrl.u32 %v4783, 16
        %v4936 = vrot.slane %v4934, 4
        %v4937 = vor.u32 %v4936, %v4932
        %v4938 = vrot.slane %v4937, 4
        %v4940 = vshll.u32 %v4784, 16
        %v4942 = vrot.slane %v4940, 5
        %v4943 = vsel %vm2689, %v4938, %v4942
        %v4945 = vshrl.u32 %v4785, 16
        %v4947 = vrot.slane %v4945, 4
        %v4948 = vshll.u32 %v4785, 16
        %v4950 = vrot.slane %v4948, 5
        %v4951 = vor.u32 %v4947, %v4950
        %v4952 = vrot.slane %v4951, 4
        %v4954 = vshll.u32 %v4786, 16
        %v4956 = vrot.slane %v4954, 5
        %v4957 = vsel %vm2689, %v4952, %v4956
        %v4958 = vshrl.u32 %v4786, 16
        %v4960 = vrot.slane %v4958, 4
        %v4961 = vor.u32 %v4960, %v4956
        %v4962 = vrot.slane %v4961, 4
        %v4964 = vshll.u32 %v4787, 16
        %v4966 = vrot.slane %v4964, 5
        %v4967 = vsel %vm2689, %v4962, %v4966
        %v4969 = vshrl.u32 %v4788, 16
        %v4971 = vrot.slane %v4969, 4
        %v4972 = vshll.u32 %v4788, 16
        %v4974 = vrot.slane %v4972, 5
        %v4975 = vor.u32 %v4971, %v4974
        %v4976 = vrot.slane %v4975, 4
        %v4978 = vshll.u32 %v4789, 16
        %v4980 = vrot.slane %v4978, 5
        %v4981 = vsel %vm2689, %v4976, %v4980
        %v4982 = vshrl.u32 %v4789, 16
        %v4984 = vrot.slane %v4982, 4
        %v4985 = vor.u32 %v4984, %v4980
        %v4986 = vrot.slane %v4985, 4
        %v4988 = vshll.u32 %v4790, 16
        %v4990 = vrot.slane %v4988, 5
        %v4991 = vsel %vm2689, %v4986, %v4990
        %v4993 = vshrl.u32 %v4791, 16
        %v4995 = vrot.slane %v4993, 4
        %v4996 = vshll.u32 %v4791, 16
        %v4998 = vrot.slane %v4996, 5
        %v4999 = vor.u32 %v4995, %v4998
        %v5000 = vrot.slane %v4999, 4
        %v5002 = vshll.u32 %v4792, 16
        %v5004 = vrot.slane %v5002, 5
        %v5005 = vsel %vm2689, %v5000, %v5004
        %v5006 = vshrl.u32 %v4792, 16
        %v5008 = vrot.slane %v5006, 4
        %v5009 = vor.u32 %v5008, %v5004
        %v5010 = vrot.slane %v5009, 4
        %v5012 = vshll.u32 %v4793, 16
        %v5014 = vrot.slane %v5012, 5
        %v5015 = vsel %vm2689, %v5010, %v5014
        %v5017 = vshrl.u32 %v4794, 16
        %v5019 = vrot.slane %v5017, 4
        %v5020 = vshll.u32 %v4794, 16
        %v5022 = vrot.slane %v5020, 5
        %v5023 = vor.u32 %v5019, %v5022
        %v5024 = vrot.slane %v5023, 4
        %v5026 = vshll.u32 %v4795, 16
        %v5028 = vrot.slane %v5026, 5
        %v5029 = vsel %vm2689, %v5024, %v5028
        %v5030 = vshrl.u32 %v4795, 16
        %v5032 = vrot.slane %v5030, 4
        %v5033 = vor.u32 %v5032, %v5028
        %v5034 = vrot.slane %v5033, 4
        %v5036 = vshll.u32 %v4796, 16
        %v5038 = vrot.slane %v5036, 5
        %v5039 = vsel %vm2689, %v5034, %v5038
        %v5041 = vshrl.u32 %v4797, 16
        %v5043 = vrot.slane %v5041, 4
        %v5044 = vshll.u32 %v4797, 16
        %v5046 = vrot.slane %v5044, 5
        %v5047 = vor.u32 %v5043, %v5046
        %v5048 = vrot.slane %v5047, 4
        %v5050 = vshll.u32 %v4798, 16
        %v5052 = vrot.slane %v5050, 5
        %v5053 = vsel %vm2689, %v5048, %v5052
        %v5054 = vshrl.u32 %v4798, 16
        %v5056 = vrot.slane %v5054, 4
        %v5057 = vor.u32 %v5056, %v5052
        %v5058 = vrot.slane %v5057, 4
        %v5060 = vshll.u32 %v4799, 16
        %v5062 = vrot.slane %v5060, 5
        %v5063 = vsel %vm2689, %v5058, %v5062
        %v5065 = vshrl.u32 %v4800, 16
        %v5067 = vrot.slane %v5065, 4
        %v5068 = vshll.u32 %v4800, 16
        %v5070 = vrot.slane %v5068, 5
        %v5071 = vor.u32 %v5067, %v5070
        %v5072 = vrot.slane %v5071, 4
        %v5074 = vshll.u32 %v4801, 16
        %v5076 = vrot.slane %v5074, 5
        %v5077 = vsel %vm2689, %v5072, %v5076
        %v5078 = vshrl.u32 %v4801, 16
        %v5080 = vrot.slane %v5078, 4
        %v5081 = vor.u32 %v5080, %v5076
        %v5082 = vrot.slane %v5081, 4
        %v5084 = vshll.u32 %v4802, 16
        %v5086 = vrot.slane %v5084, 5
        %v5087 = vsel %vm2689, %v5082, %v5086
        %v5089 = vshrl.u32 %v4803, 16
        %v5091 = vrot.slane %v5089, 4
        %v5092 = vshll.u32 %v4803, 16
        %v5094 = vrot.slane %v5092, 5
        %v5095 = vor.u32 %v5091, %v5094
        %v5096 = vrot.slane %v5095, 4
        %v5098 = vshll.u32 %v4804, 16
        %v5100 = vrot.slane %v5098, 5
        %v5101 = vsel %vm2689, %v5096, %v5100
        %v5102 = vshrl.u32 %v4804, 16
        %v5104 = vrot.slane %v5102, 4
        %v5105 = vor.u32 %v5104, %v5100
        %v5106 = vrot.slane %v5105, 4
        %v5108 = vshll.u32 %v4805, 16
        %v5110 = vrot.slane %v5108, 5
        %v5111 = vsel %vm2689, %v5106, %v5110
        %v5113 = vshrl.u32 %v4806, 16
        %v5115 = vrot.slane %v5113, 4
        %v5116 = vshll.u32 %v4806, 16
        %v5118 = vrot.slane %v5116, 5
        %v5119 = vor.u32 %v5115, %v5118
        %v5120 = vrot.slane %v5119, 4
        %v5122 = vshll.u32 %v4807, 16
        %v5124 = vrot.slane %v5122, 5
        %v5125 = vsel %vm2689, %v5120, %v5124
        %v5126 = vshrl.u32 %v4807, 16
        %v5128 = vrot.slane %v5126, 4
        %v5129 = vor.u32 %v5128, %v5124
        %v5130 = vrot.slane %v5129, 4
        %v5132 = vshll.u32 %v4808, 16
        %v5134 = vrot.slane %v5132, 5
        %v5135 = vsel %vm2689, %v5130, %v5134
        %v5137 = vshrl.u32 %v4809, 16
        %v5139 = vrot.slane %v5137, 4
        %v5140 = vshll.u32 %v4809, 16
        %v5142 = vrot.slane %v5140, 5
        %v5143 = vor.u32 %v5139, %v5142
        %v5144 = vrot.slane %v5143, 4
        %v5146 = vshll.u32 %v4810, 16
        %v5148 = vrot.slane %v5146, 5
        %v5149 = vsel %vm2689, %v5144, %v5148
        %v5150 = vshrl.u32 %v4810, 16
        %v5152 = vrot.slane %v5150, 4
        %v5153 = vor.u32 %v5152, %v5148
        %v5154 = vrot.slane %v5153, 4
        %v5156 = vshll.u32 %v4811, 16
        %v5158 = vrot.slane %v5156, 5
        %v5159 = vsel %vm2689, %v5154, %v5158
        %v5161 = vshrl.u32 %v4812, 16
        %v5163 = vrot.slane %v5161, 4
        %v5164 = vshll.u32 %v4812, 16
        %v5166 = vrot.slane %v5164, 5
        %v5167 = vor.u32 %v5163, %v5166
        %v5168 = vrot.slane %v5167, 4
        %v5170 = vshll.u32 %v4813, 16
        %v5172 = vrot.slane %v5170, 5
        %v5173 = vsel %vm2689, %v5168, %v5172
        %v5174 = vshrl.u32 %v4813, 16
        %v5176 = vrot.slane %v5174, 4
        %v5177 = vor.u32 %v5176, %v5172
        %v5178 = vrot.slane %v5177, 4
        %v5180 = vshll.u32 %v4814, 16
        %v5182 = vrot.slane %v5180, 5
        %v5183 = vsel %vm2689, %v5178, %v5182
        %v5185 = vshrl.u32 %v4815, 16
        %v5187 = vrot.slane %v5185, 4
        %v5188 = vshll.u32 %v4815, 16
        %v5190 = vrot.slane %v5188, 5
        %v5191 = vor.u32 %v5187, %v5190
        %v5192 = vrot.slane %v5191, 4
        %v5194 = vshll.u32 %v4816, 16
        %v5196 = vrot.slane %v5194, 5
        %v5197 = vsel %vm2689, %v5192, %v5196
        %v5198 = vshrl.u32 %v4816, 16
        %v5200 = vrot.slane %v5198, 4
        %v5201 = vor.u32 %v5200, %v5196
        %v5202 = vrot.slane %v5201, 4
        %v5204 = vshll.u32 %v4817, 16
        %v5206 = vrot.slane %v5204, 5
        %v5207 = vsel %vm2689, %v5202, %v5206
        %v5209 = vshrl.u32 %v4818, 16
        %v5211 = vrot.slane %v5209, 4
        %v5212 = vshll.u32 %v4818, 16
        %v5214 = vrot.slane %v5212, 5
        %v5215 = vor.u32 %v5211, %v5214
        %v5216 = vrot.slane %v5215, 4
        %v5218 = vshll.u32 %v4819, 16
        %v5220 = vrot.slane %v5218, 5
        %v5221 = vsel %vm2689, %v5216, %v5220
        %v5222 = vshrl.u32 %v4819, 16
        %v5224 = vrot.slane %v5222, 4
        %v5225 = vor.u32 %v5224, %v5220
        %v5226 = vrot.slane %v5225, 4
        %v5228 = vshll.u32 %v4820, 16
        %v5230 = vrot.slane %v5228, 5
        %v5231 = vsel %vm2689, %v5226, %v5230
        %v5233 = vshrl.u32 %v4821, 16
        %v5235 = vrot.slane %v5233, 4
        %v5236 = vshll.u32 %v4821, 16
        %v5238 = vrot.slane %v5236, 5
        %v5239 = vor.u32 %v5235, %v5238
        %v5240 = vrot.slane %v5239, 4
        %v5242 = vshll.u32 %v4822, 16
        %v5244 = vrot.slane %v5242, 5
        %v5245 = vsel %vm2689, %v5240, %v5244
        %v5246 = vshrl.u32 %v4822, 16
        %v5248 = vrot.slane %v5246, 4
        %v5249 = vor.u32 %v5248, %v5244
        %v5250 = vrot.slane %v5249, 4
        %v5252 = vshll.u32 %v4823, 16
        %v5254 = vrot.slane %v5252, 5
        %v5255 = vsel %vm2689, %v5250, %v5254
        %v5257 = vshrl.u32 %v4824, 16
        %v5259 = vrot.slane %v5257, 4
        %v5260 = vshll.u32 %v4824, 16
        %v5262 = vrot.slane %v5260, 5
        %v5263 = vor.u32 %v5259, %v5262
        %v5264 = vrot.slane %v5263, 4
        %v5266 = vshll.u32 %v4825, 16
        %v5268 = vrot.slane %v5266, 5
        %v5269 = vsel %vm2689, %v5264, %v5268
        %v5270 = vshrl.u32 %v4825, 16
        %v5272 = vrot.slane %v5270, 4
        %v5273 = vor.u32 %v5272, %v5268
        %v5274 = vrot.slane %v5273, 4
        %v5276 = vshll.u32 %v4826, 16
        %v5278 = vrot.slane %v5276, 5
        %v5279 = vsel %vm2689, %v5274, %v5278
        %v5281 = vshrl.u32 %v4827, 16
        %v5283 = vrot.slane %v5281, 4
        %v5284 = vshll.u32 %v4827, 16
        %v5286 = vrot.slane %v5284, 5
        %v5287 = vor.u32 %v5283, %v5286
        %v5288 = vrot.slane %v5287, 4
        %v5290 = vshll.u32 %v4828, 16
        %v5292 = vrot.slane %v5290, 5
        %v5293 = vsel %vm2689, %v5288, %v5292
        %v5294 = vshrl.u32 %v4828, 16
        %v5296 = vrot.slane %v5294, 4
        %v5297 = vor.u32 %v5296, %v5292
        %v5298 = vrot.slane %v5297, 4
        %v5300 = vshll.u32 %v4829, 16
        %v5302 = vrot.slane %v5300, 5
        %v5303 = vsel %vm2689, %v5298, %v5302
        %v5305 = vshrl.u32 %v4830, 16
        %v5307 = vrot.slane %v5305, 4
        %v5308 = vshll.u32 %v4830, 16
        %v5310 = vrot.slane %v5308, 5
        %v5311 = vor.u32 %v5307, %v5310
        %v5312 = vrot.slane %v5311, 4
        %v5314 = vshll.u32 %v4831, 16
        %v5316 = vrot.slane %v5314, 5
        %v5317 = vsel %vm2689, %v5312, %v5316
        %v5318 = vshrl.u32 %v4831, 16
        %v5320 = vrot.slane %v5318, 4
        %v5321 = vor.u32 %v5320, %v5316
        %v5322 = vrot.slane %v5321, 4
        %v5324 = vshll.u32 %v4832, 16
        %v5326 = vrot.slane %v5324, 5
        %v5327 = vsel %vm2689, %v5322, %v5326
        %v5329 = vshrl.u32 %v4833, 16
        %v5331 = vrot.slane %v5329, 4
        %v5332 = vshll.u32 %v4833, 16
        %v5334 = vrot.slane %v5332, 5
        %v5335 = vor.u32 %v5331, %v5334
        %v5336 = vrot.slane %v5335, 4
        %v5338 = vshll.u32 %v4834, 16
        %v5340 = vrot.slane %v5338, 5
        %v5341 = vsel %vm2689, %v5336, %v5340
        %v5342 = vshrl.u32 %v4834, 16
        %v5344 = vrot.slane %v5342, 4
        %v5345 = vor.u32 %v5344, %v5340
        %v5346 = vrot.slane %v5345, 4
        %v5348 = vshll.u32 %v4835, 16
        %v5350 = vrot.slane %v5348, 5
        %v5351 = vsel %vm2689, %v5346, %v5350
        %v5353 = vshrl.u32 %v4836, 16
        %v5355 = vrot.slane %v5353, 4
        %v5356 = vshll.u32 %v4836, 16
        %v5358 = vrot.slane %v5356, 5
        %v5359 = vor.u32 %v5355, %v5358
        %v5360 = vrot.slane %v5359, 4
        %v5362 = vshll.u32 %v4837, 16
        %v5364 = vrot.slane %v5362, 5
        %v5365 = vsel %vm2689, %v5360, %v5364
        %v5366 = vshrl.u32 %v4837, 16
        %v5368 = vrot.slane %v5366, 4
        %v5369 = vor.u32 %v5368, %v5364
        %v5370 = vrot.slane %v5369, 4
        %v5372 = vshll.u32 %v4838, 16
        %v5374 = vrot.slane %v5372, 5
        %v5375 = vsel %vm2689, %v5370, %v5374
        %v5377 = vshrl.u32 %v4839, 16
        %v5379 = vrot.slane %v5377, 4
        %v5380 = vshll.u32 %v4839, 16
        %v5382 = vrot.slane %v5380, 5
        %v5383 = vor.u32 %v5379, %v5382
        %v5384 = vrot.slane %v5383, 4
        %v5386 = vshll.u32 %v4840, 16
        %v5388 = vrot.slane %v5386, 5
        %v5389 = vsel %vm2689, %v5384, %v5388
        %v5390 = vshrl.u32 %v4840, 16
        %v5392 = vrot.slane %v5390, 4
        %v5393 = vor.u32 %v5392, %v5388
        %v5394 = vrot.slane %v5393, 4
        %v5396 = vshll.u32 %v4841, 16
        %v5398 = vrot.slane %v5396, 5
        %v5399 = vsel %vm2689, %v5394, %v5398
        %v5401 = vshrl.u32 %v4842, 16
        %v5403 = vrot.slane %v5401, 4
        %v5404 = vshll.u32 %v4842, 16
        %v5406 = vrot.slane %v5404, 5
        %v5407 = vor.u32 %v5403, %v5406
        %v5408 = vrot.slane %v5407, 4
        %v5410 = vshll.u32 %v4843, 16
        %v5412 = vrot.slane %v5410, 5
        %v5413 = vsel %vm2689, %v5408, %v5412
        %v5414 = vshrl.u32 %v4843, 16
        %v5416 = vrot.slane %v5414, 4
        %v5417 = vor.u32 %v5416, %v5412
        %v5418 = vrot.slane %v5417, 4
        %v5420 = vshll.u32 %v4844, 16
        %v5422 = vrot.slane %v5420, 5
        %v5423 = vsel %vm2689, %v5418, %v5422
        %v5425 = vshrl.u32 %v4845, 16
        %v5427 = vrot.slane %v5425, 4
        %v5428 = vshll.u32 %v4845, 16
        %v5430 = vrot.slane %v5428, 5
        %v5431 = vor.u32 %v5427, %v5430
        %v5432 = vrot.slane %v5431, 4
        %v5434 = vshll.u32 %v4846, 16
        %v5436 = vrot.slane %v5434, 5
        %v5437 = vsel %vm2689, %v5432, %v5436
        %v5438 = vshrl.u32 %v4846, 16
        %v5440 = vrot.slane %v5438, 4
        %v5441 = vor.u32 %v5440, %v5436
        %v5442 = vrot.slane %v5441, 4
        %v5444 = vshll.u32 %v4847, 16
        %v5446 = vrot.slane %v5444, 5
        %v5447 = vsel %vm2689, %v5442, %v5446
        %v5449 = vshrl.u32 %v4848, 16
        %v5451 = vrot.slane %v5449, 4
        %v5452 = vshll.u32 %v4848, 16
        %v5454 = vrot.slane %v5452, 5
        %v5455 = vor.u32 %v5451, %v5454
        %v5456 = vrot.slane %v5455, 4
        %v5458 = vshll.u32 %v4849, 16
        %v5460 = vrot.slane %v5458, 5
        %v5461 = vsel %vm2689, %v5456, %v5460
        %v5462 = vshrl.u32 %v4849, 16
        %v5464 = vrot.slane %v5462, 4
        %v5465 = vor.u32 %v5464, %v5460
        %v5466 = vrot.slane %v5465, 4
        %v5468 = vshll.u32 %v4850, 16
        %v5470 = vrot.slane %v5468, 5
        %v5471 = vsel %vm2689, %v5466, %v5470
        %v5473 = vshrl.u32 %v4851, 16
        %v5475 = vrot.slane %v5473, 4
        %v5476 = vshll.u32 %v4851, 16
        %v5478 = vrot.slane %v5476, 5
        %v5479 = vor.u32 %v5475, %v5478
        %v5480 = vrot.slane %v5479, 4
        %v5482 = vshll.u32 %v4852, 16
        %v5484 = vrot.slane %v5482, 5
        %v5485 = vsel %vm2689, %v5480, %v5484
        %v5486 = vshrl.u32 %v4852, 16
        %v5488 = vrot.slane %v5486, 4
        %v5489 = vor.u32 %v5488, %v5484
        %v5490 = vrot.slane %v5489, 4
        %v5492 = vshll.u32 %v4853, 16
        %v5494 = vrot.slane %v5492, 5
        %v5495 = vsel %vm2689, %v5490, %v5494
        %v5497 = vshrl.u32 %v4854, 16
        %v5499 = vrot.slane %v5497, 4
        %v5500 = vshll.u32 %v4854, 16
        %v5502 = vrot.slane %v5500, 5
        %v5503 = vor.u32 %v5499, %v5502
        %v5504 = vrot.slane %v5503, 4
        %v5506 = vshll.u32 %v4855, 16
        %v5508 = vrot.slane %v5506, 5
        %v5509 = vsel %vm2689, %v5504, %v5508
        %v5510 = vshrl.u32 %v4855, 16
        %v5512 = vrot.slane %v5510, 4
        %v5513 = vor.u32 %v5512, %v5508
        %v5514 = vrot.slane %v5513, 4
        %v5516 = vshll.u32 %v4856, 16
        %v5518 = vrot.slane %v5516, 5
        %v5519 = vsel %vm2689, %v5514, %v5518
        %v5521 = vshrl.u32 %v4857, 16
        %v5523 = vrot.slane %v5521, 4
        %v5524 = vshll.u32 %v4857, 16
        %v5526 = vrot.slane %v5524, 5
        %v5527 = vor.u32 %v5523, %v5526
        %v5528 = vrot.slane %v5527, 4
        %v5530 = vshll.u32 %v4858, 16
        %v5532 = vrot.slane %v5530, 5
        %v5533 = vsel %vm2689, %v5528, %v5532
        %v5534 = vshrl.u32 %v4858, 16
        %v5536 = vrot.slane %v5534, 4
        %v5537 = vor.u32 %v5536, %v5532
        %v5538 = vrot.slane %v5537, 4
        %v5540 = vshll.u32 %v4859, 16
        %v5542 = vrot.slane %v5540, 5
        %v5543 = vsel %vm2689, %v5538, %v5542
        %v5545 = vshrl.u32 %v4860, 16
        %v5547 = vrot.slane %v5545, 4
        %v5548 = vshll.u32 %v4860, 16
        %v5550 = vrot.slane %v5548, 5
        %v5551 = vor.u32 %v5547, %v5550
        %v5552 = vrot.slane %v5551, 4
        %v5554 = vshll.u32 %v4861, 16
        %v5556 = vrot.slane %v5554, 5
        %v5557 = vsel %vm2689, %v5552, %v5556
        %v5558 = vshrl.u32 %v4861, 16
        %v5560 = vrot.slane %v5558, 4
        %v5561 = vor.u32 %v5560, %v5556
        %v5562 = vrot.slane %v5561, 4
        %v5564 = vshll.u32 %v4862, 16
        %v5566 = vrot.slane %v5564, 5
        %v5567 = vsel %vm2689, %v5562, %v5566
        %v5569 = vshrl.u32 %v4863, 16
        %v5571 = vrot.slane %v5569, 4
        %v5572 = vshll.u32 %v4863, 16
        %v5574 = vrot.slane %v5572, 5
        %v5575 = vor.u32 %v5571, %v5574
        %v5576 = vrot.slane %v5575, 4
        %v5578 = vshll.u32 %v4864, 16
        %v5580 = vrot.slane %v5578, 5
        %v5581 = vsel %vm2689, %v5576, %v5580
        %v5582 = vshrl.u32 %v4864, 16
        %v5584 = vrot.slane %v5582, 4
        %v5585 = vor.u32 %v5584, %v5580
        %v5586 = vrot.slane %v5585, 4
        %v5588 = vshll.u32 %v4865, 16
        %v5590 = vrot.slane %v5588, 5
        %v5591 = vsel %vm2689, %v5586, %v5590
        %v5593 = vshrl.u32 %v4866, 16
        %v5595 = vrot.slane %v5593, 4
        %v5596 = vshll.u32 %v4866, 16
        %v5598 = vrot.slane %v5596, 5
        %v5599 = vor.u32 %v5595, %v5598
        %v5600 = vrot.slane %v5599, 4
        %v5602 = vshll.u32 %v4867, 16
        %v5604 = vrot.slane %v5602, 5
        %v5605 = vsel %vm2689, %v5600, %v5604
        %v5606 = vshrl.u32 %v4867, 16
        %v5608 = vrot.slane %v5606, 4
        %v5609 = vor.u32 %v5608, %v5604
        %v5610 = vrot.slane %v5609, 4
        %v5612 = vshll.u32 %v4868, 16
        %v5614 = vrot.slane %v5612, 5
        %v5615 = vsel %vm2689, %v5610, %v5614
        %v5617 = vshrl.u32 %v4869, 16
        %v5619 = vrot.slane %v5617, 4
        %v5620 = vshll.u32 %v4869, 16
        %v5622 = vrot.slane %v5620, 5
        %v5623 = vor.u32 %v5619, %v5622
        %v5624 = vrot.slane %v5623, 4
        %v5626 = vshll.u32 %v4870, 16
        %v5628 = vrot.slane %v5626, 5
        %v5629 = vsel %vm2689, %v5624, %v5628
        %v5630 = vshrl.u32 %v4870, 16
        %v5632 = vrot.slane %v5630, 4
        %v5633 = vor.u32 %v5632, %v5628
        %v5634 = vrot.slane %v5633, 4
        %v5636 = vshll.u32 %v4871, 16
        %v5638 = vrot.slane %v5636, 5
        %v5639 = vsel %vm2689, %v5634, %v5638
        %5704 = vst.msk [vmem:[#allocation3 + $0x4] sm:$0xf] %vm1358, %v4885
        %5705 = vst.msk [vmem:[#allocation3 + $0x10] sm:$0xf] %vm1358, %v4895
        %5706 = vst.msk [vmem:[#allocation3 + $0x1c] sm:$0xf] %vm1358, %v4909
        %5707 = vst.msk [vmem:[#allocation3 + $0x28] sm:$0xf] %vm1358, %v4919
        %5708 = vst.msk [vmem:[#allocation3 + $0x34] sm:$0xf] %vm1358, %v4933
        %5709 = vst.msk [vmem:[#allocation3 + $0x40] sm:$0xf] %vm1358, %v4943
        %5710 = vst.msk [vmem:[#allocation3 + $0x4c] sm:$0xf] %vm1358, %v4957
        %5711 = vst.msk [vmem:[#allocation3 + $0x58] sm:$0xf] %vm1358, %v4967
        %5712 = vst.msk [vmem:[#allocation3 + $0x64] sm:$0xf] %vm1358, %v4981
        %5713 = vst.msk [vmem:[#allocation3 + $0x70] sm:$0xf] %vm1358, %v4991
        %5714 = vst.msk [vmem:[#allocation3 + $0x7c] sm:$0xf] %vm1358, %v5005
        %5715 = vst.msk [vmem:[#allocation3 + $0x88] sm:$0xf] %vm1358, %v5015
        %5716 = vst.msk [vmem:[#allocation3 + $0x94] sm:$0xf] %vm1358, %v5029
        %5717 = vst.msk [vmem:[#allocation3 + $0xa0] sm:$0xf] %vm1358, %v5039
        %5718 = vst.msk [vmem:[#allocation3 + $0xac] sm:$0xf] %vm1358, %v5053
        %5719 = vst.msk [vmem:[#allocation3 + $0xb8] sm:$0xf] %vm1358, %v5063
        %5720 = vst.msk [vmem:[#allocation3 + $0xc4] sm:$0xf] %vm1358, %v5077
        %5721 = vst.msk [vmem:[#allocation3 + $0xd0] sm:$0xf] %vm1358, %v5087
        %5722 = vst.msk [vmem:[#allocation3 + $0xdc] sm:$0xf] %vm1358, %v5101
        %5723 = vst.msk [vmem:[#allocation3 + $0xe8] sm:$0xf] %vm1358, %v5111
        %5724 = vst.msk [vmem:[#allocation3 + $0xf4] sm:$0xf] %vm1358, %v5125
        %5725 = vst.msk [vmem:[#allocation3 + $0x100] sm:$0xf] %vm1358, %v5135
        %5726 = vst.msk [vmem:[#allocation3 + $0x10c] sm:$0xf] %vm1358, %v5149
        %5727 = vst.msk [vmem:[#allocation3 + $0x118] sm:$0xf] %vm1358, %v5159
        %5728 = vst.msk [vmem:[#allocation3 + $0x124] sm:$0xf] %vm1358, %v5173
        %5729 = vst.msk [vmem:[#allocation3 + $0x130] sm:$0xf] %vm1358, %v5183
        %5730 = vst.msk [vmem:[#allocation3 + $0x13c] sm:$0xf] %vm1358, %v5197
        %5731 = vst.msk [vmem:[#allocation3 + $0x148] sm:$0xf] %vm1358, %v5207
        %5732 = vst.msk [vmem:[#allocation3 + $0x154] sm:$0xf] %vm1358, %v5221
        %5733 = vst.msk [vmem:[#allocation3 + $0x160] sm:$0xf] %vm1358, %v5231
        %5734 = vst.msk [vmem:[#allocation3 + $0x16c] sm:$0xf] %vm1358, %v5245
        %5735 = vst.msk [vmem:[#allocation3 + $0x178] sm:$0xf] %vm1358, %v5255
        %5736 = vst.msk [vmem:[#allocation3 + $0x184] sm:$0xf] %vm1358, %v5269
        %5737 = vst.msk [vmem:[#allocation3 + $0x190] sm:$0xf] %vm1358, %v5279
        %5738 = vst.msk [vmem:[#allocation3 + $0x19c] sm:$0xf] %vm1358, %v5293
        %5739 = vst.msk [vmem:[#allocation3 + $0x1a8] sm:$0xf] %vm1358, %v5303
        %5740 = vst.msk [vmem:[#allocation3 + $0x1b4] sm:$0xf] %vm1358, %v5317
        %5741 = vst.msk [vmem:[#allocation3 + $0x1c0] sm:$0xf] %vm1358, %v5327
        %5742 = vst.msk [vmem:[#allocation3 + $0x1cc] sm:$0xf] %vm1358, %v5341
        %5743 = vst.msk [vmem:[#allocation3 + $0x1d8] sm:$0xf] %vm1358, %v5351
        %5744 = vst.msk [vmem:[#allocation3 + $0x1e4] sm:$0xf] %vm1358, %v5365
        %5745 = vst.msk [vmem:[#allocation3 + $0x1f0] sm:$0xf] %vm1358, %v5375
        %5746 = vst.msk [vmem:[#allocation3 + $0x1fc] sm:$0xf] %vm1358, %v5389
        %5747 = vst.msk [vmem:[#allocation3 + $0x208] sm:$0xf] %vm1358, %v5399
        %5748 = vst.msk [vmem:[#allocation3 + $0x214] sm:$0xf] %vm1358, %v5413
        %5749 = vst.msk [vmem:[#allocation3 + $0x220] sm:$0xf] %vm1358, %v5423
        %5750 = vst.msk [vmem:[#allocation3 + $0x22c] sm:$0xf] %vm1358, %v5437
        %5751 = vst.msk [vmem:[#allocation3 + $0x238] sm:$0xf] %vm1358, %v5447
        %5752 = vst.msk [vmem:[#allocation3 + $0x244] sm:$0xf] %vm1358, %v5461
        %5753 = vst.msk [vmem:[#allocation3 + $0x250] sm:$0xf] %vm1358, %v5471
        %5754 = vst.msk [vmem:[#allocation3 + $0x25c] sm:$0xf] %vm1358, %v5485
        %5755 = vst.msk [vmem:[#allocation3 + $0x268] sm:$0xf] %vm1358, %v5495
        %5756 = vst.msk [vmem:[#allocation3 + $0x274] sm:$0xf] %vm1358, %v5509
        %5757 = vst.msk [vmem:[#allocation3 + $0x280] sm:$0xf] %vm1358, %v5519
        %5758 = vst.msk [vmem:[#allocation3 + $0x28c] sm:$0xf] %vm1358, %v5533
        %5759 = vst.msk [vmem:[#allocation3 + $0x298] sm:$0xf] %vm1358, %v5543
        %5760 = vst.msk [vmem:[#allocation3 + $0x2a4] sm:$0xf] %vm1358, %v5557
        %5761 = vst.msk [vmem:[#allocation3 + $0x2b0] sm:$0xf] %vm1358, %v5567
        %5762 = vst.msk [vmem:[#allocation3 + $0x2bc] sm:$0xf] %vm1358, %v5581
        %5763 = vst.msk [vmem:[#allocation3 + $0x2c8] sm:$0xf] %vm1358, %v5591
        %5764 = vst.msk [vmem:[#allocation3 + $0x2d4] sm:$0xf] %vm1358, %v5605
        %5765 = vst.msk [vmem:[#allocation3 + $0x2e0] sm:$0xf] %vm1358, %v5615
        %5766 = vst.msk [vmem:[#allocation3 + $0x2ec] sm:$0xf] %vm1358, %v5629
        %5767 = vst.msk [vmem:[#allocation3 + $0x2f8] sm:$0xf] %vm1358, %v5639
        %v5768 = vld [vmem:[%s2236] sm:$0xe]
        %v5769 = vld [vmem:[%s2236 + $0x4] sm:$0xf]
        %v5770 = vld [vmem:[%s2236 + $0x8] sm:$0x1]
        %v5771 = vld [vmem:[%s2236 + $0xc] sm:$0xe]
        %v5772 = vld [vmem:[%s2236 + $0x10] sm:$0xf]
        %v5773 = vld [vmem:[%s2236 + $0x14] sm:$0x1]
        %v5774 = vld [vmem:[%s2236 + $0x18] sm:$0xe]
        %v5775 = vld [vmem:[%s2236 + $0x1c] sm:$0xf]
        %v5776 = vld [vmem:[%s2236 + $0x20] sm:$0x1]
        %v5777 = vld [vmem:[%s2236 + $0x24] sm:$0xe]
        %v5778 = vld [vmem:[%s2236 + $0x28] sm:$0xf]
        %v5779 = vld [vmem:[%s2236 + $0x2c] sm:$0x1]
        %v5780 = vld [vmem:[%s2236 + $0x30] sm:$0xe]
        %v5781 = vld [vmem:[%s2236 + $0x34] sm:$0xf]
        %v5782 = vld [vmem:[%s2236 + $0x38] sm:$0x1]
        %v5783 = vld [vmem:[%s2236 + $0x3c] sm:$0xe]
        %v5784 = vld [vmem:[%s2236 + $0x40] sm:$0xf]
        %v5785 = vld [vmem:[%s2236 + $0x44] sm:$0x1]
        %v5786 = vld [vmem:[%s2236 + $0x48] sm:$0xe]
        %v5787 = vld [vmem:[%s2236 + $0x4c] sm:$0xf]
        %v5788 = vld [vmem:[%s2236 + $0x50] sm:$0x1]
        %v5789 = vld [vmem:[%s2236 + $0x54] sm:$0xe]
        %v5790 = vld [vmem:[%s2236 + $0x58] sm:$0xf]
        %v5791 = vld [vmem:[%s2236 + $0x5c] sm:$0x1]
        %v5792 = vld [vmem:[%s2236 + $0x60] sm:$0xe]
        %v5793 = vld [vmem:[%s2236 + $0x64] sm:$0xf]
        %v5794 = vld [vmem:[%s2236 + $0x68] sm:$0x1]
        %v5795 = vld [vmem:[%s2236 + $0x6c] sm:$0xe]
        %v5796 = vld [vmem:[%s2236 + $0x70] sm:$0xf]
        %v5797 = vld [vmem:[%s2236 + $0x74] sm:$0x1]
        %v5798 = vld [vmem:[%s2236 + $0x78] sm:$0xe]
        %v5799 = vld [vmem:[%s2236 + $0x7c] sm:$0xf]
        %v5800 = vld [vmem:[%s2236 + $0x80] sm:$0x1]
        %v5801 = vld [vmem:[%s2236 + $0x84] sm:$0xe]
        %v5802 = vld [vmem:[%s2236 + $0x88] sm:$0xf]
        %v5803 = vld [vmem:[%s2236 + $0x8c] sm:$0x1]
        %v5804 = vld [vmem:[%s2236 + $0x90] sm:$0xe]
        %v5805 = vld [vmem:[%s2236 + $0x94] sm:$0xf]
        %v5806 = vld [vmem:[%s2236 + $0x98] sm:$0x1]
        %v5807 = vld [vmem:[%s2236 + $0x9c] sm:$0xe]
        %v5808 = vld [vmem:[%s2236 + $0xa0] sm:$0xf]
        %v5809 = vld [vmem:[%s2236 + $0xa4] sm:$0x1]
        %v5810 = vld [vmem:[%s2236 + $0xa8] sm:$0xe]
        %v5811 = vld [vmem:[%s2236 + $0xac] sm:$0xf]
        %v5812 = vld [vmem:[%s2236 + $0xb0] sm:$0x1]
        %v5813 = vld [vmem:[%s2236 + $0xb4] sm:$0xe]
        %v5814 = vld [vmem:[%s2236 + $0xb8] sm:$0xf]
        %v5815 = vld [vmem:[%s2236 + $0xbc] sm:$0x1]
        %v5816 = vld [vmem:[%s2236 + $0xd8] sm:$0xe]
        %v5817 = vld [vmem:[%s2236 + $0xdc] sm:$0xf]
        %v5818 = vld [vmem:[%s2236 + $0xe0] sm:$0x1]
        %v5819 = vld [vmem:[%s2236 + $0xe4] sm:$0xe]
        %v5820 = vld [vmem:[%s2236 + $0xe8] sm:$0xf]
        %v5821 = vld [vmem:[%s2236 + $0xec] sm:$0x1]
        %v5822 = vld [vmem:[%s2236 + $0xf0] sm:$0xe]
        %v5823 = vld [vmem:[%s2236 + $0xf4] sm:$0xf]
        %v5824 = vld [vmem:[%s2236 + $0xf8] sm:$0x1]
        %v5825 = vld [vmem:[%s2236 + $0xfc] sm:$0xe]
        %v5826 = vld [vmem:[%s2236 + $0x100] sm:$0xf]
        %v5827 = vld [vmem:[%s2236 + $0x104] sm:$0x1]
        %v5828 = vld [vmem:[%s2236 + $0x108] sm:$0xe]
        %v5829 = vld [vmem:[%s2236 + $0x10c] sm:$0xf]
        %v5830 = vld [vmem:[%s2236 + $0x110] sm:$0x1]
        %v5831 = vld [vmem:[%s2236 + $0x114] sm:$0xe]
        %v5832 = vld [vmem:[%s2236 + $0x118] sm:$0xf]
        %v5833 = vld [vmem:[%s2236 + $0x11c] sm:$0x1]
        %v5834 = vld [vmem:[%s2236 + $0x120] sm:$0xe]
        %v5835 = vld [vmem:[%s2236 + $0x124] sm:$0xf]
        %v5836 = vld [vmem:[%s2236 + $0x128] sm:$0x1]
        %v5837 = vld [vmem:[%s2236 + $0x12c] sm:$0xe]
        %v5838 = vld [vmem:[%s2236 + $0x130] sm:$0xf]
        %v5839 = vld [vmem:[%s2236 + $0x134] sm:$0x1]
        %v5840 = vld [vmem:[%s2236 + $0x138] sm:$0xe]
        %v5841 = vld [vmem:[%s2236 + $0x13c] sm:$0xf]
        %v5842 = vld [vmem:[%s2236 + $0x140] sm:$0x1]
        %v5843 = vld [vmem:[%s2236 + $0x144] sm:$0xe]
        %v5844 = vld [vmem:[%s2236 + $0x148] sm:$0xf]
        %v5845 = vld [vmem:[%s2236 + $0x14c] sm:$0x1]
        %v5846 = vld [vmem:[%s2236 + $0x150] sm:$0xe]
        %v5847 = vld [vmem:[%s2236 + $0x154] sm:$0xf]
        %v5848 = vld [vmem:[%s2236 + $0x158] sm:$0x1]
        %v5849 = vld [vmem:[%s2236 + $0x15c] sm:$0xe]
        %v5850 = vld [vmem:[%s2236 + $0x160] sm:$0xf]
        %v5851 = vld [vmem:[%s2236 + $0x164] sm:$0x1]
        %v5852 = vld [vmem:[%s2236 + $0x168] sm:$0xe]
        %v5853 = vld [vmem:[%s2236 + $0x16c] sm:$0xf]
        %v5854 = vld [vmem:[%s2236 + $0x170] sm:$0x1]
        %v5855 = vld [vmem:[%s2236 + $0x174] sm:$0xe]
        %v5856 = vld [vmem:[%s2236 + $0x178] sm:$0xf]
        %v5857 = vld [vmem:[%s2236 + $0x17c] sm:$0x1]
        %v5858 = vld [vmem:[%s2236 + $0x180] sm:$0xe]
        %v5859 = vld [vmem:[%s2236 + $0x184] sm:$0xf]
        %v5860 = vld [vmem:[%s2236 + $0x188] sm:$0x1]
        %v5861 = vld [vmem:[%s2236 + $0x18c] sm:$0xe]
        %v5862 = vld [vmem:[%s2236 + $0x190] sm:$0xf]
        %v5863 = vld [vmem:[%s2236 + $0x194] sm:$0x1]
        %v5960 = vrot.slane %v5768, 5
        %v5961 = vrot.slane %v5960, 4
        %v5962 = vrot.slane %v5769, 5
        %v5963 = vsel %vm3909, %v5961, %v5962
        %v5964 = vrot.slane %v5962, 4
        %v5965 = vrot.slane %v5770, 5
        %v5966 = vsel %vm3909, %v5964, %v5965
        %v5967 = vrot.slane %v5771, 5
        %v5968 = vrot.slane %v5967, 4
        %v5969 = vrot.slane %v5772, 5
        %v5970 = vsel %vm3909, %v5968, %v5969
        %v5971 = vrot.slane %v5969, 4
        %v5972 = vrot.slane %v5773, 5
        %v5973 = vsel %vm3909, %v5971, %v5972
        %v5974 = vrot.slane %v5774, 5
        %v5975 = vrot.slane %v5974, 4
        %v5976 = vrot.slane %v5775, 5
        %v5977 = vsel %vm3909, %v5975, %v5976
        %v5978 = vrot.slane %v5976, 4
        %v5979 = vrot.slane %v5776, 5
        %v5980 = vsel %vm3909, %v5978, %v5979
        %v5981 = vrot.slane %v5777, 5
        %v5982 = vrot.slane %v5981, 4
        %v5983 = vrot.slane %v5778, 5
        %v5984 = vsel %vm3909, %v5982, %v5983
        %v5985 = vrot.slane %v5983, 4
        %v5986 = vrot.slane %v5779, 5
        %v5987 = vsel %vm3909, %v5985, %v5986
        %v5988 = vrot.slane %v5780, 5
        %v5989 = vrot.slane %v5988, 4
        %v5990 = vrot.slane %v5781, 5
        %v5991 = vsel %vm3909, %v5989, %v5990
        %v5992 = vrot.slane %v5990, 4
        %v5993 = vrot.slane %v5782, 5
        %v5994 = vsel %vm3909, %v5992, %v5993
        %v5995 = vrot.slane %v5783, 5
        %v5996 = vrot.slane %v5995, 4
        %v5997 = vrot.slane %v5784, 5
        %v5998 = vsel %vm3909, %v5996, %v5997
        %v5999 = vrot.slane %v5997, 4
        %v6000 = vrot.slane %v5785, 5
        %v6001 = vsel %vm3909, %v5999, %v6000
        %v6002 = vrot.slane %v5786, 5
        %v6003 = vrot.slane %v6002, 4
        %v6004 = vrot.slane %v5787, 5
        %v6005 = vsel %vm3909, %v6003, %v6004
        %v6006 = vrot.slane %v6004, 4
        %v6007 = vrot.slane %v5788, 5
        %v6008 = vsel %vm3909, %v6006, %v6007
        %v6009 = vrot.slane %v5789, 5
        %v6010 = vrot.slane %v6009, 4
        %v6011 = vrot.slane %v5790, 5
        %v6012 = vsel %vm3909, %v6010, %v6011
        %v6013 = vrot.slane %v6011, 4
        %v6014 = vrot.slane %v5791, 5
        %v6015 = vsel %vm3909, %v6013, %v6014
        %v6016 = vrot.slane %v5792, 5
        %v6017 = vrot.slane %v6016, 4
        %v6018 = vrot.slane %v5793, 5
        %v6019 = vsel %vm3909, %v6017, %v6018
        %v6020 = vrot.slane %v6018, 4
        %v6021 = vrot.slane %v5794, 5
        %v6022 = vsel %vm3909, %v6020, %v6021
        %v6023 = vrot.slane %v5795, 5
        %v6024 = vrot.slane %v6023, 4
        %v6025 = vrot.slane %v5796, 5
        %v6026 = vsel %vm3909, %v6024, %v6025
        %v6027 = vrot.slane %v6025, 4
        %v6028 = vrot.slane %v5797, 5
        %v6029 = vsel %vm3909, %v6027, %v6028
        %v6030 = vrot.slane %v5798, 5
        %v6031 = vrot.slane %v6030, 4
        %v6032 = vrot.slane %v5799, 5
        %v6033 = vsel %vm3909, %v6031, %v6032
        %v6034 = vrot.slane %v6032, 4
        %v6035 = vrot.slane %v5800, 5
        %v6036 = vsel %vm3909, %v6034, %v6035
        %v6037 = vrot.slane %v5801, 5
        %v6038 = vrot.slane %v6037, 4
        %v6039 = vrot.slane %v5802, 5
        %v6040 = vsel %vm3909, %v6038, %v6039
        %v6041 = vrot.slane %v6039, 4
        %v6042 = vrot.slane %v5803, 5
        %v6043 = vsel %vm3909, %v6041, %v6042
        %v6044 = vrot.slane %v5804, 5
        %v6045 = vrot.slane %v6044, 4
        %v6046 = vrot.slane %v5805, 5
        %v6047 = vsel %vm3909, %v6045, %v6046
        %v6048 = vrot.slane %v6046, 4
        %v6049 = vrot.slane %v5806, 5
        %v6050 = vsel %vm3909, %v6048, %v6049
        %v6051 = vrot.slane %v5807, 5
        %v6052 = vrot.slane %v6051, 4
        %v6053 = vrot.slane %v5808, 5
        %v6054 = vsel %vm3909, %v6052, %v6053
        %v6055 = vrot.slane %v6053, 4
        %v6056 = vrot.slane %v5809, 5
        %v6057 = vsel %vm3909, %v6055, %v6056
        %v6058 = vrot.slane %v5810, 5
        %v6059 = vrot.slane %v6058, 4
        %v6060 = vrot.slane %v5811, 5
        %v6061 = vsel %vm3909, %v6059, %v6060
        %v6062 = vrot.slane %v6060, 4
        %v6063 = vrot.slane %v5812, 5
        %v6064 = vsel %vm3909, %v6062, %v6063
        %v6065 = vrot.slane %v5813, 5
        %v6066 = vrot.slane %v6065, 4
        %v6067 = vrot.slane %v5814, 5
        %v6068 = vsel %vm3909, %v6066, %v6067
        %v6069 = vrot.slane %v6067, 4
        %v6070 = vrot.slane %v5815, 5
        %v6071 = vsel %vm3909, %v6069, %v6070
        %v6072 = vrot.slane %v5816, 5
        %v6073 = vrot.slane %v6072, 4
        %v6074 = vrot.slane %v5817, 5
        %v6075 = vsel %vm3909, %v6073, %v6074
        %v6076 = vrot.slane %v6074, 4
        %v6077 = vrot.slane %v5818, 5
        %v6078 = vsel %vm3909, %v6076, %v6077
        %v6079 = vrot.slane %v5819, 5
        %v6080 = vrot.slane %v6079, 4
        %v6081 = vrot.slane %v5820, 5
        %v6082 = vsel %vm3909, %v6080, %v6081
        %v6083 = vrot.slane %v6081, 4
        %v6084 = vrot.slane %v5821, 5
        %v6085 = vsel %vm3909, %v6083, %v6084
        %v6086 = vrot.slane %v5822, 5
        %v6087 = vrot.slane %v6086, 4
        %v6088 = vrot.slane %v5823, 5
        %v6089 = vsel %vm3909, %v6087, %v6088
        %v6090 = vrot.slane %v6088, 4
        %v6091 = vrot.slane %v5824, 5
        %v6092 = vsel %vm3909, %v6090, %v6091
        %v6093 = vrot.slane %v5825, 5
        %v6094 = vrot.slane %v6093, 4
        %v6095 = vrot.slane %v5826, 5
        %v6096 = vsel %vm3909, %v6094, %v6095
        %v6097 = vrot.slane %v6095, 4
        %v6098 = vrot.slane %v5827, 5
        %v6099 = vsel %vm3909, %v6097, %v6098
        %v6100 = vrot.slane %v5828, 5
        %v6101 = vrot.slane %v6100, 4
        %v6102 = vrot.slane %v5829, 5
        %v6103 = vsel %vm3909, %v6101, %v6102
        %v6104 = vrot.slane %v6102, 4
        %v6105 = vrot.slane %v5830, 5
        %v6106 = vsel %vm3909, %v6104, %v6105
        %v6107 = vrot.slane %v5831, 5
        %v6108 = vrot.slane %v6107, 4
        %v6109 = vrot.slane %v5832, 5
        %v6110 = vsel %vm3909, %v6108, %v6109
        %v6111 = vrot.slane %v6109, 4
        %v6112 = vrot.slane %v5833, 5
        %v6113 = vsel %vm3909, %v6111, %v6112
        %v6114 = vrot.slane %v5834, 5
        %v6115 = vrot.slane %v6114, 4
        %v6116 = vrot.slane %v5835, 5
        %v6117 = vsel %vm3909, %v6115, %v6116
        %v6118 = vrot.slane %v6116, 4
        %v6119 = vrot.slane %v5836, 5
        %v6120 = vsel %vm3909, %v6118, %v6119
        %v6121 = vrot.slane %v5837, 5
        %v6122 = vrot.slane %v6121, 4
        %v6123 = vrot.slane %v5838, 5
        %v6124 = vsel %vm3909, %v6122, %v6123
        %v6125 = vrot.slane %v6123, 4
        %v6126 = vrot.slane %v5839, 5
        %v6127 = vsel %vm3909, %v6125, %v6126
        %v6128 = vrot.slane %v5840, 5
        %v6129 = vrot.slane %v6128, 4
        %v6130 = vrot.slane %v5841, 5
        %v6131 = vsel %vm3909, %v6129, %v6130
        %v6132 = vrot.slane %v6130, 4
        %v6133 = vrot.slane %v5842, 5
        %v6134 = vsel %vm3909, %v6132, %v6133
        %v6135 = vrot.slane %v5843, 5
        %v6136 = vrot.slane %v6135, 4
        %v6137 = vrot.slane %v5844, 5
        %v6138 = vsel %vm3909, %v6136, %v6137
        %v6139 = vrot.slane %v6137, 4
        %v6140 = vrot.slane %v5845, 5
        %v6141 = vsel %vm3909, %v6139, %v6140
        %v6142 = vrot.slane %v5846, 5
        %v6143 = vrot.slane %v6142, 4
        %v6144 = vrot.slane %v5847, 5
        %v6145 = vsel %vm3909, %v6143, %v6144
        %v6146 = vrot.slane %v6144, 4
        %v6147 = vrot.slane %v5848, 5
        %v6148 = vsel %vm3909, %v6146, %v6147
        %v6149 = vrot.slane %v5849, 5
        %v6150 = vrot.slane %v6149, 4
        %v6151 = vrot.slane %v5850, 5
        %v6152 = vsel %vm3909, %v6150, %v6151
        %v6153 = vrot.slane %v6151, 4
        %v6154 = vrot.slane %v5851, 5
        %v6155 = vsel %vm3909, %v6153, %v6154
        %v6156 = vrot.slane %v5852, 5
        %v6157 = vrot.slane %v6156, 4
        %v6158 = vrot.slane %v5853, 5
        %v6159 = vsel %vm3909, %v6157, %v6158
        %v6160 = vrot.slane %v6158, 4
        %v6161 = vrot.slane %v5854, 5
        %v6162 = vsel %vm3909, %v6160, %v6161
        %v6163 = vrot.slane %v5855, 5
        %v6164 = vrot.slane %v6163, 4
        %v6165 = vrot.slane %v5856, 5
        %v6166 = vsel %vm3909, %v6164, %v6165
        %v6167 = vrot.slane %v6165, 4
        %v6168 = vrot.slane %v5857, 5
        %v6169 = vsel %vm3909, %v6167, %v6168
        %v6170 = vrot.slane %v5858, 5
        %v6171 = vrot.slane %v6170, 4
        %v6172 = vrot.slane %v5859, 5
        %v6173 = vsel %vm3909, %v6171, %v6172
        %v6174 = vrot.slane %v6172, 4
        %v6175 = vrot.slane %v5860, 5
        %v6176 = vsel %vm3909, %v6174, %v6175
        %v6177 = vrot.slane %v5861, 5
        %v6178 = vrot.slane %v6177, 4
        %v6179 = vrot.slane %v5862, 5
        %v6180 = vsel %vm3909, %v6178, %v6179
        %v6181 = vrot.slane %v6179, 4
        %v6182 = vrot.slane %v5863, 5
        %v6183 = vsel %vm3909, %v6181, %v6182
        %6184 = vrot.lane.b32.xlu0 %v5963, 32
        %v6185 = vpop.permute.xlu0 %6184
        %6186 = vrot.lane.b32.xlu0 %v5966, 32
        %v6187 = vpop.permute.xlu0 %6186
        %6188 = vrot.lane.b32.xlu0 %v5970, 32
        %v6189 = vpop.permute.xlu0 %6188
        %6190 = vrot.lane.b32.xlu0 %v5973, 32
        %v6191 = vpop.permute.xlu0 %6190
        %6192 = vrot.lane.b32.xlu0 %v5977, 32
        %v6193 = vpop.permute.xlu0 %6192
        %6194 = vrot.lane.b32.xlu0 %v5980, 32
        %v6195 = vpop.permute.xlu0 %6194
        %6196 = vrot.lane.b32.xlu0 %v5984, 32
        %v6197 = vpop.permute.xlu0 %6196
        %6198 = vrot.lane.b32.xlu0 %v5987, 32
        %v6199 = vpop.permute.xlu0 %6198
        %6200 = vrot.lane.b32.xlu0 %v5991, 32
        %v6201 = vpop.permute.xlu0 %6200
        %6202 = vrot.lane.b32.xlu0 %v5994, 32
        %v6203 = vpop.permute.xlu0 %6202
        %6204 = vrot.lane.b32.xlu0 %v5998, 32
        %v6205 = vpop.permute.xlu0 %6204
        %6206 = vrot.lane.b32.xlu0 %v6001, 32
        %v6207 = vpop.permute.xlu0 %6206
        %6208 = vrot.lane.b32.xlu0 %v6005, 32
        %v6209 = vpop.permute.xlu0 %6208
        %6210 = vrot.lane.b32.xlu0 %v6008, 32
        %v6211 = vpop.permute.xlu0 %6210
        %6212 = vrot.lane.b32.xlu0 %v6012, 32
        %v6213 = vpop.permute.xlu0 %6212
        %6214 = vrot.lane.b32.xlu0 %v6015, 32
        %v6215 = vpop.permute.xlu0 %6214
        %6216 = vrot.lane.b32.xlu0 %v6019, 32
        %v6217 = vpop.permute.xlu0 %6216
        %6218 = vrot.lane.b32.xlu0 %v6022, 32
        %v6219 = vpop.permute.xlu0 %6218
        %6220 = vrot.lane.b32.xlu0 %v6026, 32
        %v6221 = vpop.permute.xlu0 %6220
        %6222 = vrot.lane.b32.xlu0 %v6029, 32
        %v6223 = vpop.permute.xlu0 %6222
        %6224 = vrot.lane.b32.xlu0 %v6033, 32
        %v6225 = vpop.permute.xlu0 %6224
        %6226 = vrot.lane.b32.xlu0 %v6036, 32
        %v6227 = vpop.permute.xlu0 %6226
        %6228 = vrot.lane.b32.xlu0 %v6040, 32
        %v6229 = vpop.permute.xlu0 %6228
        %6230 = vrot.lane.b32.xlu0 %v6043, 32
        %v6231 = vpop.permute.xlu0 %6230
        %6232 = vrot.lane.b32.xlu0 %v6047, 32
        %v6233 = vpop.permute.xlu0 %6232
        %6234 = vrot.lane.b32.xlu0 %v6050, 32
        %v6235 = vpop.permute.xlu0 %6234
        %6236 = vrot.lane.b32.xlu0 %v6054, 32
        %v6237 = vpop.permute.xlu0 %6236
        %6238 = vrot.lane.b32.xlu0 %v6057, 32
        %v6239 = vpop.permute.xlu0 %6238
        %6240 = vrot.lane.b32.xlu0 %v6061, 32
        %v6241 = vpop.permute.xlu0 %6240
        %6242 = vrot.lane.b32.xlu0 %v6064, 32
        %v6243 = vpop.permute.xlu0 %6242
        %6244 = vrot.lane.b32.xlu0 %v6068, 32
        %v6245 = vpop.permute.xlu0 %6244
        %6246 = vrot.lane.b32.xlu0 %v6071, 32
        %v6247 = vpop.permute.xlu0 %6246
        %6248 = vrot.lane.b32.xlu0 %v6075, 32
        %v6249 = vpop.permute.xlu0 %6248
        %6250 = vrot.lane.b32.xlu0 %v6078, 32
        %v6251 = vpop.permute.xlu0 %6250
        %6252 = vrot.lane.b32.xlu0 %v6082, 32
        %v6253 = vpop.permute.xlu0 %6252
        %6254 = vrot.lane.b32.xlu0 %v6085, 32
        %v6255 = vpop.permute.xlu0 %6254
        %6256 = vrot.lane.b32.xlu0 %v6089, 32
        %v6257 = vpop.permute.xlu0 %6256
        %6258 = vrot.lane.b32.xlu0 %v6092, 32
        %v6259 = vpop.permute.xlu0 %6258
        %6260 = vrot.lane.b32.xlu0 %v6096, 32
        %v6261 = vpop.permute.xlu0 %6260
        %6262 = vrot.lane.b32.xlu0 %v6099, 32
        %v6263 = vpop.permute.xlu0 %6262
        %6264 = vrot.lane.b32.xlu0 %v6103, 32
        %v6265 = vpop.permute.xlu0 %6264
        %6266 = vrot.lane.b32.xlu0 %v6106, 32
        %v6267 = vpop.permute.xlu0 %6266
        %6268 = vrot.lane.b32.xlu0 %v6110, 32
        %v6269 = vpop.permute.xlu0 %6268
        %6270 = vrot.lane.b32.xlu0 %v6113, 32
        %v6271 = vpop.permute.xlu0 %6270
        %6272 = vrot.lane.b32.xlu0 %v6117, 32
        %v6273 = vpop.permute.xlu0 %6272
        %6274 = vrot.lane.b32.xlu0 %v6120, 32
        %v6275 = vpop.permute.xlu0 %6274
        %6276 = vrot.lane.b32.xlu0 %v6124, 32
        %v6277 = vpop.permute.xlu0 %6276
        %6278 = vrot.lane.b32.xlu0 %v6127, 32
        %v6279 = vpop.permute.xlu0 %6278
        %6280 = vrot.lane.b32.xlu0 %v6131, 32
        %v6281 = vpop.permute.xlu0 %6280
        %6282 = vrot.lane.b32.xlu0 %v6134, 32
        %v6283 = vpop.permute.xlu0 %6282
        %6284 = vrot.lane.b32.xlu0 %v6138, 32
        %v6285 = vpop.permute.xlu0 %6284
        %6286 = vrot.lane.b32.xlu0 %v6141, 32
        %v6287 = vpop.permute.xlu0 %6286
        %6288 = vrot.lane.b32.xlu0 %v6145, 32
        %v6289 = vpop.permute.xlu0 %6288
        %6290 = vrot.lane.b32.xlu0 %v6148, 32
        %v6291 = vpop.permute.xlu0 %6290
        %6292 = vrot.lane.b32.xlu0 %v6152, 32
        %v6293 = vpop.permute.xlu0 %6292
        %6294 = vrot.lane.b32.xlu0 %v6155, 32
        %v6295 = vpop.permute.xlu0 %6294
        %6296 = vrot.lane.b32.xlu0 %v6159, 32
        %v6297 = vpop.permute.xlu0 %6296
        %6298 = vrot.lane.b32.xlu0 %v6162, 32
        %v6299 = vpop.permute.xlu0 %6298
        %6300 = vrot.lane.b32.xlu0 %v6166, 32
        %v6301 = vpop.permute.xlu0 %6300
        %6302 = vrot.lane.b32.xlu0 %v6169, 32
        %v6303 = vpop.permute.xlu0 %6302
        %6304 = vrot.lane.b32.xlu0 %v6173, 32
        %v6305 = vpop.permute.xlu0 %6304
        %6306 = vrot.lane.b32.xlu0 %v6176, 32
        %v6307 = vpop.permute.xlu0 %6306
        %6308 = vrot.lane.b32.xlu0 %v6180, 32
        %v6309 = vpop.permute.xlu0 %6308
        %6310 = vrot.lane.b32.xlu0 %v6183, 32
        %v6311 = vpop.permute.xlu0 %6310
        %6376 = vst.msk [vmem:[#allocation3 + $0x4] sm:$0xf] %vm3650, %v6185
        %6377 = vst.msk [vmem:[#allocation3 + $0x10] sm:$0xf] %vm3650, %v6187
        %6378 = vst.msk [vmem:[#allocation3 + $0x1c] sm:$0xf] %vm3650, %v6189
        %6379 = vst.msk [vmem:[#allocation3 + $0x28] sm:$0xf] %vm3650, %v6191
        %6380 = vst.msk [vmem:[#allocation3 + $0x34] sm:$0xf] %vm3650, %v6193
        %6381 = vst.msk [vmem:[#allocation3 + $0x40] sm:$0xf] %vm3650, %v6195
        %6382 = vst.msk [vmem:[#allocation3 + $0x4c] sm:$0xf] %vm3650, %v6197
        %6383 = vst.msk [vmem:[#allocation3 + $0x58] sm:$0xf] %vm3650, %v6199
        %6384 = vst.msk [vmem:[#allocation3 + $0x64] sm:$0xf] %vm3650, %v6201
        %6385 = vst.msk [vmem:[#allocation3 + $0x70] sm:$0xf] %vm3650, %v6203
        %6386 = vst.msk [vmem:[#allocation3 + $0x7c] sm:$0xf] %vm3650, %v6205
        %6387 = vst.msk [vmem:[#allocation3 + $0x88] sm:$0xf] %vm3650, %v6207
        %6388 = vst.msk [vmem:[#allocation3 + $0x94] sm:$0xf] %vm3650, %v6209
        %6389 = vst.msk [vmem:[#allocation3 + $0xa0] sm:$0xf] %vm3650, %v6211
        %6390 = vst.msk [vmem:[#allocation3 + $0xac] sm:$0xf] %vm3650, %v6213
        %6391 = vst.msk [vmem:[#allocation3 + $0xb8] sm:$0xf] %vm3650, %v6215
        %6392 = vst.msk [vmem:[#allocation3 + $0xc4] sm:$0xf] %vm3650, %v6217
        %6393 = vst.msk [vmem:[#allocation3 + $0xd0] sm:$0xf] %vm3650, %v6219
        %6394 = vst.msk [vmem:[#allocation3 + $0xdc] sm:$0xf] %vm3650, %v6221
        %6395 = vst.msk [vmem:[#allocation3 + $0xe8] sm:$0xf] %vm3650, %v6223
        %6396 = vst.msk [vmem:[#allocation3 + $0xf4] sm:$0xf] %vm3650, %v6225
        %6397 = vst.msk [vmem:[#allocation3 + $0x100] sm:$0xf] %vm3650, %v6227
        %6398 = vst.msk [vmem:[#allocation3 + $0x10c] sm:$0xf] %vm3650, %v6229
        %6399 = vst.msk [vmem:[#allocation3 + $0x118] sm:$0xf] %vm3650, %v6231
        %6400 = vst.msk [vmem:[#allocation3 + $0x124] sm:$0xf] %vm3650, %v6233
        %6401 = vst.msk [vmem:[#allocation3 + $0x130] sm:$0xf] %vm3650, %v6235
        %6402 = vst.msk [vmem:[#allocation3 + $0x13c] sm:$0xf] %vm3650, %v6237
        %6403 = vst.msk [vmem:[#allocation3 + $0x148] sm:$0xf] %vm3650, %v6239
        %6404 = vst.msk [vmem:[#allocation3 + $0x154] sm:$0xf] %vm3650, %v6241
        %6405 = vst.msk [vmem:[#allocation3 + $0x160] sm:$0xf] %vm3650, %v6243
        %6406 = vst.msk [vmem:[#allocation3 + $0x16c] sm:$0xf] %vm3650, %v6245
        %6407 = vst.msk [vmem:[#allocation3 + $0x178] sm:$0xf] %vm3650, %v6247
        %6408 = vst.msk [vmem:[#allocation3 + $0x184] sm:$0xf] %vm3650, %v6249
        %6409 = vst.msk [vmem:[#allocation3 + $0x190] sm:$0xf] %vm3650, %v6251
        %6410 = vst.msk [vmem:[#allocation3 + $0x19c] sm:$0xf] %vm3650, %v6253
        %6411 = vst.msk [vmem:[#allocation3 + $0x1a8] sm:$0xf] %vm3650, %v6255
        %6412 = vst.msk [vmem:[#allocation3 + $0x1b4] sm:$0xf] %vm3650, %v6257
        %6413 = vst.msk [vmem:[#allocation3 + $0x1c0] sm:$0xf] %vm3650, %v6259
        %6414 = vst.msk [vmem:[#allocation3 + $0x1cc] sm:$0xf] %vm3650, %v6261
        %6415 = vst.msk [vmem:[#allocation3 + $0x1d8] sm:$0xf] %vm3650, %v6263
        %6416 = vst.msk [vmem:[#allocation3 + $0x1e4] sm:$0xf] %vm3650, %v6265
        %6417 = vst.msk [vmem:[#allocation3 + $0x1f0] sm:$0xf] %vm3650, %v6267
        %6418 = vst.msk [vmem:[#allocation3 + $0x1fc] sm:$0xf] %vm3650, %v6269
        %6419 = vst.msk [vmem:[#allocation3 + $0x208] sm:$0xf] %vm3650, %v6271
        %6420 = vst.msk [vmem:[#allocation3 + $0x214] sm:$0xf] %vm3650, %v6273
        %6421 = vst.msk [vmem:[#allocation3 + $0x220] sm:$0xf] %vm3650, %v6275
        %6422 = vst.msk [vmem:[#allocation3 + $0x22c] sm:$0xf] %vm3650, %v6277
        %6423 = vst.msk [vmem:[#allocation3 + $0x238] sm:$0xf] %vm3650, %v6279
        %6424 = vst.msk [vmem:[#allocation3 + $0x244] sm:$0xf] %vm3650, %v6281
        %6425 = vst.msk [vmem:[#allocation3 + $0x250] sm:$0xf] %vm3650, %v6283
        %6426 = vst.msk [vmem:[#allocation3 + $0x25c] sm:$0xf] %vm3650, %v6285
        %6427 = vst.msk [vmem:[#allocation3 + $0x268] sm:$0xf] %vm3650, %v6287
        %6428 = vst.msk [vmem:[#allocation3 + $0x274] sm:$0xf] %vm3650, %v6289
        %6429 = vst.msk [vmem:[#allocation3 + $0x280] sm:$0xf] %vm3650, %v6291
        %6430 = vst.msk [vmem:[#allocation3 + $0x28c] sm:$0xf] %vm3650, %v6293
        %6431 = vst.msk [vmem:[#allocation3 + $0x298] sm:$0xf] %vm3650, %v6295
        %6432 = vst.msk [vmem:[#allocation3 + $0x2a4] sm:$0xf] %vm3650, %v6297
        %6433 = vst.msk [vmem:[#allocation3 + $0x2b0] sm:$0xf] %vm3650, %v6299
        %6434 = vst.msk [vmem:[#allocation3 + $0x2bc] sm:$0xf] %vm3650, %v6301
        %6435 = vst.msk [vmem:[#allocation3 + $0x2c8] sm:$0xf] %vm3650, %v6303
        %6436 = vst.msk [vmem:[#allocation3 + $0x2d4] sm:$0xf] %vm3650, %v6305
        %6437 = vst.msk [vmem:[#allocation3 + $0x2e0] sm:$0xf] %vm3650, %v6307
        %6438 = vst.msk [vmem:[#allocation3 + $0x2ec] sm:$0xf] %vm3650, %v6309
        %6439 = vst.msk [vmem:[#allocation3 + $0x2f8] sm:$0xf] %vm3650, %v6311
        %s6440 = scalar_lea.vmem [#allocation2], 24
        %v6441 = vld [vmem:[%s6440] sm:$0xf]
        %v6442 = vld [vmem:[%s6440 + $0x4] sm:$0xf]
        %v6443 = vld [vmem:[%s6440 + $0xc] sm:$0xf]
        %v6444 = vld [vmem:[%s6440 + $0x10] sm:$0xf]
        %v6445 = vld [vmem:[%s6440 + $0x18] sm:$0xf]
        %v6446 = vld [vmem:[%s6440 + $0x1c] sm:$0xf]
        %v6447 = vld [vmem:[%s6440 + $0x24] sm:$0xf]
        %v6448 = vld [vmem:[%s6440 + $0x28] sm:$0xf]
        %v6449 = vld [vmem:[%s6440 + $0x30] sm:$0xf]
        %v6450 = vld [vmem:[%s6440 + $0x34] sm:$0xf]
        %v6451 = vld [vmem:[%s6440 + $0x3c] sm:$0xf]
        %v6452 = vld [vmem:[%s6440 + $0x40] sm:$0xf]
        %v6453 = vld [vmem:[%s6440 + $0x48] sm:$0xf]
        %v6454 = vld [vmem:[%s6440 + $0x4c] sm:$0xf]
        %v6455 = vld [vmem:[%s6440 + $0x54] sm:$0xf]
        %v6456 = vld [vmem:[%s6440 + $0x58] sm:$0xf]
        %v6457 = vld [vmem:[%s6440 + $0x60] sm:$0xf]
        %v6458 = vld [vmem:[%s6440 + $0x64] sm:$0xf]
        %v6459 = vld [vmem:[%s6440 + $0x6c] sm:$0xf]
        %v6460 = vld [vmem:[%s6440 + $0x70] sm:$0xf]
        %v6461 = vld [vmem:[%s6440 + $0x78] sm:$0xf]
        %v6462 = vld [vmem:[%s6440 + $0x7c] sm:$0xf]
        %v6463 = vld [vmem:[%s6440 + $0x84] sm:$0xf]
        %v6464 = vld [vmem:[%s6440 + $0x88] sm:$0xf]
        %v6465 = vld [vmem:[%s6440 + $0x90] sm:$0xf]
        %v6466 = vld [vmem:[%s6440 + $0x94] sm:$0xf]
        %v6467 = vld [vmem:[%s6440 + $0x9c] sm:$0xf]
        %v6468 = vld [vmem:[%s6440 + $0xa0] sm:$0xf]
        %v6469 = vld [vmem:[%s6440 + $0xa8] sm:$0xf]
        %v6470 = vld [vmem:[%s6440 + $0xac] sm:$0xf]
        %v6471 = vld [vmem:[%s6440 + $0xb4] sm:$0xf]
        %v6472 = vld [vmem:[%s6440 + $0xb8] sm:$0xf]
        %v6473 = vld [vmem:[%s6440 + $0xd8] sm:$0xf]
        %v6474 = vld [vmem:[%s6440 + $0xdc] sm:$0xf]
        %v6475 = vld [vmem:[%s6440 + $0xe4] sm:$0xf]
        %v6476 = vld [vmem:[%s6440 + $0xe8] sm:$0xf]
        %v6477 = vld [vmem:[%s6440 + $0xf0] sm:$0xf]
        %v6478 = vld [vmem:[%s6440 + $0xf4] sm:$0xf]
        %v6479 = vld [vmem:[%s6440 + $0xfc] sm:$0xf]
        %v6480 = vld [vmem:[%s6440 + $0x100] sm:$0xf]
        %v6481 = vld [vmem:[%s6440 + $0x108] sm:$0xf]
        %v6482 = vld [vmem:[%s6440 + $0x10c] sm:$0xf]
        %v6483 = vld [vmem:[%s6440 + $0x114] sm:$0xf]
        %v6484 = vld [vmem:[%s6440 + $0x118] sm:$0xf]
        %v6485 = vld [vmem:[%s6440 + $0x120] sm:$0xf]
        %v6486 = vld [vmem:[%s6440 + $0x124] sm:$0xf]
        %v6487 = vld [vmem:[%s6440 + $0x12c] sm:$0xf]
        %v6488 = vld [vmem:[%s6440 + $0x130] sm:$0xf]
        %v6489 = vld [vmem:[%s6440 + $0x138] sm:$0xf]
        %v6490 = vld [vmem:[%s6440 + $0x13c] sm:$0xf]
        %v6491 = vld [vmem:[%s6440 + $0x144] sm:$0xf]
        %v6492 = vld [vmem:[%s6440 + $0x148] sm:$0xf]
        %v6493 = vld [vmem:[%s6440 + $0x150] sm:$0xf]
        %v6494 = vld [vmem:[%s6440 + $0x154] sm:$0xf]
        %v6495 = vld [vmem:[%s6440 + $0x15c] sm:$0xf]
        %v6496 = vld [vmem:[%s6440 + $0x160] sm:$0xf]
        %v6497 = vld [vmem:[%s6440 + $0x168] sm:$0xf]
        %v6498 = vld [vmem:[%s6440 + $0x16c] sm:$0xf]
        %v6499 = vld [vmem:[%s6440 + $0x174] sm:$0xf]
        %v6500 = vld [vmem:[%s6440 + $0x178] sm:$0xf]
        %v6501 = vld [vmem:[%s6440 + $0x180] sm:$0xf]
        %v6502 = vld [vmem:[%s6440 + $0x184] sm:$0xf]
        %v6503 = vld [vmem:[%s6440 + $0x18c] sm:$0xf]
        %v6504 = vld [vmem:[%s6440 + $0x190] sm:$0xf]
        %6569 = vrot.lane.b32.xlu0 %v6441, 64
        %v6570 = vpop.permute.xlu0 %6569
        %6571 = vrot.lane.b32.xlu0 %v6442, 64
        %v6572 = vpop.permute.xlu0 %6571
        %6573 = vrot.lane.b32.xlu0 %v6443, 64
        %v6574 = vpop.permute.xlu0 %6573
        %6575 = vrot.lane.b32.xlu0 %v6444, 64
        %v6576 = vpop.permute.xlu0 %6575
        %6577 = vrot.lane.b32.xlu0 %v6445, 64
        %v6578 = vpop.permute.xlu0 %6577
        %6579 = vrot.lane.b32.xlu0 %v6446, 64
        %v6580 = vpop.permute.xlu0 %6579
        %6581 = vrot.lane.b32.xlu0 %v6447, 64
        %v6582 = vpop.permute.xlu0 %6581
        %6583 = vrot.lane.b32.xlu0 %v6448, 64
        %v6584 = vpop.permute.xlu0 %6583
        %6585 = vrot.lane.b32.xlu0 %v6449, 64
        %v6586 = vpop.permute.xlu0 %6585
        %6587 = vrot.lane.b32.xlu0 %v6450, 64
        %v6588 = vpop.permute.xlu0 %6587
        %6589 = vrot.lane.b32.xlu0 %v6451, 64
        %v6590 = vpop.permute.xlu0 %6589
        %6591 = vrot.lane.b32.xlu0 %v6452, 64
        %v6592 = vpop.permute.xlu0 %6591
        %6593 = vrot.lane.b32.xlu0 %v6453, 64
        %v6594 = vpop.permute.xlu0 %6593
        %6595 = vrot.lane.b32.xlu0 %v6454, 64
        %v6596 = vpop.permute.xlu0 %6595
        %6597 = vrot.lane.b32.xlu0 %v6455, 64
        %v6598 = vpop.permute.xlu0 %6597
        %6599 = vrot.lane.b32.xlu0 %v6456, 64
        %v6600 = vpop.permute.xlu0 %6599
        %6601 = vrot.lane.b32.xlu0 %v6457, 64
        %v6602 = vpop.permute.xlu0 %6601
        %6603 = vrot.lane.b32.xlu0 %v6458, 64
        %v6604 = vpop.permute.xlu0 %6603
        %6605 = vrot.lane.b32.xlu0 %v6459, 64
        %v6606 = vpop.permute.xlu0 %6605
        %6607 = vrot.lane.b32.xlu0 %v6460, 64
        %v6608 = vpop.permute.xlu0 %6607
        %6609 = vrot.lane.b32.xlu0 %v6461, 64
        %v6610 = vpop.permute.xlu0 %6609
        %6611 = vrot.lane.b32.xlu0 %v6462, 64
        %v6612 = vpop.permute.xlu0 %6611
        %6613 = vrot.lane.b32.xlu0 %v6463, 64
        %v6614 = vpop.permute.xlu0 %6613
        %6615 = vrot.lane.b32.xlu0 %v6464, 64
        %v6616 = vpop.permute.xlu0 %6615
        %6617 = vrot.lane.b32.xlu0 %v6465, 64
        %v6618 = vpop.permute.xlu0 %6617
        %6619 = vrot.lane.b32.xlu0 %v6466, 64
        %v6620 = vpop.permute.xlu0 %6619
        %6621 = vrot.lane.b32.xlu0 %v6467, 64
        %v6622 = vpop.permute.xlu0 %6621
        %6623 = vrot.lane.b32.xlu0 %v6468, 64
        %v6624 = vpop.permute.xlu0 %6623
        %6625 = vrot.lane.b32.xlu0 %v6469, 64
        %v6626 = vpop.permute.xlu0 %6625
        %6627 = vrot.lane.b32.xlu0 %v6470, 64
        %v6628 = vpop.permute.xlu0 %6627
        %6629 = vrot.lane.b32.xlu0 %v6471, 64
        %v6630 = vpop.permute.xlu0 %6629
        %6631 = vrot.lane.b32.xlu0 %v6472, 64
        %v6632 = vpop.permute.xlu0 %6631
        %6633 = vrot.lane.b32.xlu0 %v6473, 64
        %v6634 = vpop.permute.xlu0 %6633
        %6635 = vrot.lane.b32.xlu0 %v6474, 64
        %v6636 = vpop.permute.xlu0 %6635
        %6637 = vrot.lane.b32.xlu0 %v6475, 64
        %v6638 = vpop.permute.xlu0 %6637
        %6639 = vrot.lane.b32.xlu0 %v6476, 64
        %v6640 = vpop.permute.xlu0 %6639
        %6641 = vrot.lane.b32.xlu0 %v6477, 64
        %v6642 = vpop.permute.xlu0 %6641
        %6643 = vrot.lane.b32.xlu0 %v6478, 64
        %v6644 = vpop.permute.xlu0 %6643
        %6645 = vrot.lane.b32.xlu0 %v6479, 64
        %v6646 = vpop.permute.xlu0 %6645
        %6647 = vrot.lane.b32.xlu0 %v6480, 64
        %v6648 = vpop.permute.xlu0 %6647
        %6649 = vrot.lane.b32.xlu0 %v6481, 64
        %v6650 = vpop.permute.xlu0 %6649
        %6651 = vrot.lane.b32.xlu0 %v6482, 64
        %v6652 = vpop.permute.xlu0 %6651
        %6653 = vrot.lane.b32.xlu0 %v6483, 64
        %v6654 = vpop.permute.xlu0 %6653
        %6655 = vrot.lane.b32.xlu0 %v6484, 64
        %v6656 = vpop.permute.xlu0 %6655
        %6657 = vrot.lane.b32.xlu0 %v6485, 64
        %v6658 = vpop.permute.xlu0 %6657
        %6659 = vrot.lane.b32.xlu0 %v6486, 64
        %v6660 = vpop.permute.xlu0 %6659
        %6661 = vrot.lane.b32.xlu0 %v6487, 64
        %v6662 = vpop.permute.xlu0 %6661
        %6663 = vrot.lane.b32.xlu0 %v6488, 64
        %v6664 = vpop.permute.xlu0 %6663
        %6665 = vrot.lane.b32.xlu0 %v6489, 64
        %v6666 = vpop.permute.xlu0 %6665
        %6667 = vrot.lane.b32.xlu0 %v6490, 64
        %v6668 = vpop.permute.xlu0 %6667
        %6669 = vrot.lane.b32.xlu0 %v6491, 64
        %v6670 = vpop.permute.xlu0 %6669
        %6671 = vrot.lane.b32.xlu0 %v6492, 64
        %v6672 = vpop.permute.xlu0 %6671
        %6673 = vrot.lane.b32.xlu0 %v6493, 64
        %v6674 = vpop.permute.xlu0 %6673
        %6675 = vrot.lane.b32.xlu0 %v6494, 64
        %v6676 = vpop.permute.xlu0 %6675
        %6677 = vrot.lane.b32.xlu0 %v6495, 64
        %v6678 = vpop.permute.xlu0 %6677
        %6679 = vrot.lane.b32.xlu0 %v6496, 64
        %v6680 = vpop.permute.xlu0 %6679
        %6681 = vrot.lane.b32.xlu0 %v6497, 64
        %v6682 = vpop.permute.xlu0 %6681
        %6683 = vrot.lane.b32.xlu0 %v6498, 64
        %v6684 = vpop.permute.xlu0 %6683
        %6685 = vrot.lane.b32.xlu0 %v6499, 64
        %v6686 = vpop.permute.xlu0 %6685
        %6687 = vrot.lane.b32.xlu0 %v6500, 64
        %v6688 = vpop.permute.xlu0 %6687
        %6689 = vrot.lane.b32.xlu0 %v6501, 64
        %v6690 = vpop.permute.xlu0 %6689
        %6691 = vrot.lane.b32.xlu0 %v6502, 64
        %v6692 = vpop.permute.xlu0 %6691
        %6693 = vrot.lane.b32.xlu0 %v6503, 64
        %v6694 = vpop.permute.xlu0 %6693
        %6695 = vrot.lane.b32.xlu0 %v6504, 64
        %v6696 = vpop.permute.xlu0 %6695
        %6761 = vst.msk [vmem:[#allocation3 + $0x4] sm:$0xf] %vm4326, %v6570
        %6762 = vst.msk [vmem:[#allocation3 + $0x10] sm:$0xf] %vm4326, %v6572
        %6763 = vst.msk [vmem:[#allocation3 + $0x1c] sm:$0xf] %vm4326, %v6574
        %6764 = vst.msk [vmem:[#allocation3 + $0x28] sm:$0xf] %vm4326, %v6576
        %6765 = vst.msk [vmem:[#allocation3 + $0x34] sm:$0xf] %vm4326, %v6578
        %6766 = vst.msk [vmem:[#allocation3 + $0x40] sm:$0xf] %vm4326, %v6580
        %6767 = vst.msk [vmem:[#allocation3 + $0x4c] sm:$0xf] %vm4326, %v6582
        %6768 = vst.msk [vmem:[#allocation3 + $0x58] sm:$0xf] %vm4326, %v6584
        %6769 = vst.msk [vmem:[#allocation3 + $0x64] sm:$0xf] %vm4326, %v6586
        %6770 = vst.msk [vmem:[#allocation3 + $0x70] sm:$0xf] %vm4326, %v6588
        %6771 = vst.msk [vmem:[#allocation3 + $0x7c] sm:$0xf] %vm4326, %v6590
        %6772 = vst.msk [vmem:[#allocation3 + $0x88] sm:$0xf] %vm4326, %v6592
        %6773 = vst.msk [vmem:[#allocation3 + $0x94] sm:$0xf] %vm4326, %v6594
        %6774 = vst.msk [vmem:[#allocation3 + $0xa0] sm:$0xf] %vm4326, %v6596
        %6775 = vst.msk [vmem:[#allocation3 + $0xac] sm:$0xf] %vm4326, %v6598
        %6776 = vst.msk [vmem:[#allocation3 + $0xb8] sm:$0xf] %vm4326, %v6600
        %6777 = vst.msk [vmem:[#allocation3 + $0xc4] sm:$0xf] %vm4326, %v6602
        %6778 = vst.msk [vmem:[#allocation3 + $0xd0] sm:$0xf] %vm4326, %v6604
        %6779 = vst.msk [vmem:[#allocation3 + $0xdc] sm:$0xf] %vm4326, %v6606
        %6780 = vst.msk [vmem:[#allocation3 + $0xe8] sm:$0xf] %vm4326, %v6608
        %6781 = vst.msk [vmem:[#allocation3 + $0xf4] sm:$0xf] %vm4326, %v6610
        %6782 = vst.msk [vmem:[#allocation3 + $0x100] sm:$0xf] %vm4326, %v6612
        %6783 = vst.msk [vmem:[#allocation3 + $0x10c] sm:$0xf] %vm4326, %v6614
        %6784 = vst.msk [vmem:[#allocation3 + $0x118] sm:$0xf] %vm4326, %v6616
        %6785 = vst.msk [vmem:[#allocation3 + $0x124] sm:$0xf] %vm4326, %v6618
        %6786 = vst.msk [vmem:[#allocation3 + $0x130] sm:$0xf] %vm4326, %v6620
        %6787 = vst.msk [vmem:[#allocation3 + $0x13c] sm:$0xf] %vm4326, %v6622
        %6788 = vst.msk [vmem:[#allocation3 + $0x148] sm:$0xf] %vm4326, %v6624
        %6789 = vst.msk [vmem:[#allocation3 + $0x154] sm:$0xf] %vm4326, %v6626
        %6790 = vst.msk [vmem:[#allocation3 + $0x160] sm:$0xf] %vm4326, %v6628
        %6791 = vst.msk [vmem:[#allocation3 + $0x16c] sm:$0xf] %vm4326, %v6630
        %6792 = vst.msk [vmem:[#allocation3 + $0x178] sm:$0xf] %vm4326, %v6632
        %6793 = vst.msk [vmem:[#allocation3 + $0x184] sm:$0xf] %vm4326, %v6634
        %6794 = vst.msk [vmem:[#allocation3 + $0x190] sm:$0xf] %vm4326, %v6636
        %6795 = vst.msk [vmem:[#allocation3 + $0x19c] sm:$0xf] %vm4326, %v6638
        %6796 = vst.msk [vmem:[#allocation3 + $0x1a8] sm:$0xf] %vm4326, %v6640
        %6797 = vst.msk [vmem:[#allocation3 + $0x1b4] sm:$0xf] %vm4326, %v6642
        %6798 = vst.msk [vmem:[#allocation3 + $0x1c0] sm:$0xf] %vm4326, %v6644
        %6799 = vst.msk [vmem:[#allocation3 + $0x1cc] sm:$0xf] %vm4326, %v6646
        %6800 = vst.msk [vmem:[#allocation3 + $0x1d8] sm:$0xf] %vm4326, %v6648
        %6801 = vst.msk [vmem:[#allocation3 + $0x1e4] sm:$0xf] %vm4326, %v6650
        %6802 = vst.msk [vmem:[#allocation3 + $0x1f0] sm:$0xf] %vm4326, %v6652
        %6803 = vst.msk [vmem:[#allocation3 + $0x1fc] sm:$0xf] %vm4326, %v6654
        %6804 = vst.msk [vmem:[#allocation3 + $0x208] sm:$0xf] %vm4326, %v6656
        %6805 = vst.msk [vmem:[#allocation3 + $0x214] sm:$0xf] %vm4326, %v6658
        %6806 = vst.msk [vmem:[#allocation3 + $0x220] sm:$0xf] %vm4326, %v6660
        %6807 = vst.msk [vmem:[#allocation3 + $0x22c] sm:$0xf] %vm4326, %v6662
        %6808 = vst.msk [vmem:[#allocation3 + $0x238] sm:$0xf] %vm4326, %v6664
        %6809 = vst.msk [vmem:[#allocation3 + $0x244] sm:$0xf] %vm4326, %v6666
        %6810 = vst.msk [vmem:[#allocation3 + $0x250] sm:$0xf] %vm4326, %v6668
        %6811 = vst.msk [vmem:[#allocation3 + $0x25c] sm:$0xf] %vm4326, %v6670
        %6812 = vst.msk [vmem:[#allocation3 + $0x268] sm:$0xf] %vm4326, %v6672
        %6813 = vst.msk [vmem:[#allocation3 + $0x274] sm:$0xf] %vm4326, %v6674
        %6814 = vst.msk [vmem:[#allocation3 + $0x280] sm:$0xf] %vm4326, %v6676
        %6815 = vst.msk [vmem:[#allocation3 + $0x28c] sm:$0xf] %vm4326, %v6678
        %6816 = vst.msk [vmem:[#allocation3 + $0x298] sm:$0xf] %vm4326, %v6680
        %6817 = vst.msk [vmem:[#allocation3 + $0x2a4] sm:$0xf] %vm4326, %v6682
        %6818 = vst.msk [vmem:[#allocation3 + $0x2b0] sm:$0xf] %vm4326, %v6684
        %6819 = vst.msk [vmem:[#allocation3 + $0x2bc] sm:$0xf] %vm4326, %v6686
        %6820 = vst.msk [vmem:[#allocation3 + $0x2c8] sm:$0xf] %vm4326, %v6688
        %6821 = vst.msk [vmem:[#allocation3 + $0x2d4] sm:$0xf] %vm4326, %v6690
        %6822 = vst.msk [vmem:[#allocation3 + $0x2e0] sm:$0xf] %vm4326, %v6692
        %6823 = vst.msk [vmem:[#allocation3 + $0x2ec] sm:$0xf] %vm4326, %v6694
        %6824 = vst.msk [vmem:[#allocation3 + $0x2f8] sm:$0xf] %vm4326, %v6696
        %v6825 = vld [vmem:[%s6440] sm:$0xf]
        %v6826 = vld [vmem:[%s6440 + $0x4] sm:$0xf]
        %v6827 = vld [vmem:[%s6440 + $0x8] sm:$0x1]
        %v6828 = vld [vmem:[%s6440 + $0xc] sm:$0xf]
        %v6829 = vld [vmem:[%s6440 + $0x10] sm:$0xf]
        %v6830 = vld [vmem:[%s6440 + $0x14] sm:$0x1]
        %v6831 = vld [vmem:[%s6440 + $0x18] sm:$0xf]
        %v6832 = vld [vmem:[%s6440 + $0x1c] sm:$0xf]
        %v6833 = vld [vmem:[%s6440 + $0x20] sm:$0x1]
        %v6834 = vld [vmem:[%s6440 + $0x24] sm:$0xf]
        %v6835 = vld [vmem:[%s6440 + $0x28] sm:$0xf]
        %v6836 = vld [vmem:[%s6440 + $0x2c] sm:$0x1]
        %v6837 = vld [vmem:[%s6440 + $0x30] sm:$0xf]
        %v6838 = vld [vmem:[%s6440 + $0x34] sm:$0xf]
        %v6839 = vld [vmem:[%s6440 + $0x38] sm:$0x1]
        %v6840 = vld [vmem:[%s6440 + $0x3c] sm:$0xf]
        %v6841 = vld [vmem:[%s6440 + $0x40] sm:$0xf]
        %v6842 = vld [vmem:[%s6440 + $0x44] sm:$0x1]
        %v6843 = vld [vmem:[%s6440 + $0x48] sm:$0xf]
        %v6844 = vld [vmem:[%s6440 + $0x4c] sm:$0xf]
        %v6845 = vld [vmem:[%s6440 + $0x50] sm:$0x1]
        %v6846 = vld [vmem:[%s6440 + $0x54] sm:$0xf]
        %v6847 = vld [vmem:[%s6440 + $0x58] sm:$0xf]
        %v6848 = vld [vmem:[%s6440 + $0x5c] sm:$0x1]
        %v6849 = vld [vmem:[%s6440 + $0x60] sm:$0xf]
        %v6850 = vld [vmem:[%s6440 + $0x64] sm:$0xf]
        %v6851 = vld [vmem:[%s6440 + $0x68] sm:$0x1]
        %v6852 = vld [vmem:[%s6440 + $0x6c] sm:$0xf]
        %v6853 = vld [vmem:[%s6440 + $0x70] sm:$0xf]
        %v6854 = vld [vmem:[%s6440 + $0x74] sm:$0x1]
        %v6855 = vld [vmem:[%s6440 + $0x78] sm:$0xf]
        %v6856 = vld [vmem:[%s6440 + $0x7c] sm:$0xf]
        %v6857 = vld [vmem:[%s6440 + $0x80] sm:$0x1]
        %v6858 = vld [vmem:[%s6440 + $0x84] sm:$0xf]
        %v6859 = vld [vmem:[%s6440 + $0x88] sm:$0xf]
        %v6860 = vld [vmem:[%s6440 + $0x8c] sm:$0x1]
        %v6861 = vld [vmem:[%s6440 + $0x90] sm:$0xf]
        %v6862 = vld [vmem:[%s6440 + $0x94] sm:$0xf]
        %v6863 = vld [vmem:[%s6440 + $0x98] sm:$0x1]
        %v6864 = vld [vmem:[%s6440 + $0x9c] sm:$0xf]
        %v6865 = vld [vmem:[%s6440 + $0xa0] sm:$0xf]
        %v6866 = vld [vmem:[%s6440 + $0xa4] sm:$0x1]
        %v6867 = vld [vmem:[%s6440 + $0xa8] sm:$0xf]
        %v6868 = vld [vmem:[%s6440 + $0xac] sm:$0xf]
        %v6869 = vld [vmem:[%s6440 + $0xb0] sm:$0x1]
        %v6870 = vld [vmem:[%s6440 + $0xb4] sm:$0xf]
        %v6871 = vld [vmem:[%s6440 + $0xb8] sm:$0xf]
        %v6872 = vld [vmem:[%s6440 + $0xbc] sm:$0x1]
        %v6873 = vld [vmem:[%s6440 + $0xd8] sm:$0xf]
        %v6874 = vld [vmem:[%s6440 + $0xdc] sm:$0xf]
        %v6875 = vld [vmem:[%s6440 + $0xe0] sm:$0x1]
        %v6876 = vld [vmem:[%s6440 + $0xe4] sm:$0xf]
        %v6877 = vld [vmem:[%s6440 + $0xe8] sm:$0xf]
        %v6878 = vld [vmem:[%s6440 + $0xec] sm:$0x1]
        %v6879 = vld [vmem:[%s6440 + $0xf0] sm:$0xf]
        %v6880 = vld [vmem:[%s6440 + $0xf4] sm:$0xf]
        %v6881 = vld [vmem:[%s6440 + $0xf8] sm:$0x1]
        %v6882 = vld [vmem:[%s6440 + $0xfc] sm:$0xf]
        %v6883 = vld [vmem:[%s6440 + $0x100] sm:$0xf]
        %v6884 = vld [vmem:[%s6440 + $0x104] sm:$0x1]
        %v6885 = vld [vmem:[%s6440 + $0x108] sm:$0xf]
        %v6886 = vld [vmem:[%s6440 + $0x10c] sm:$0xf]
        %v6887 = vld [vmem:[%s6440 + $0x110] sm:$0x1]
        %v6888 = vld [vmem:[%s6440 + $0x114] sm:$0xf]
        %v6889 = vld [vmem:[%s6440 + $0x118] sm:$0xf]
        %v6890 = vld [vmem:[%s6440 + $0x11c] sm:$0x1]
        %v6891 = vld [vmem:[%s6440 + $0x120] sm:$0xf]
        %v6892 = vld [vmem:[%s6440 + $0x124] sm:$0xf]
        %v6893 = vld [vmem:[%s6440 + $0x128] sm:$0x1]
        %v6894 = vld [vmem:[%s6440 + $0x12c] sm:$0xf]
        %v6895 = vld [vmem:[%s6440 + $0x130] sm:$0xf]
        %v6896 = vld [vmem:[%s6440 + $0x134] sm:$0x1]
        %v6897 = vld [vmem:[%s6440 + $0x138] sm:$0xf]
        %v6898 = vld [vmem:[%s6440 + $0x13c] sm:$0xf]
        %v6899 = vld [vmem:[%s6440 + $0x140] sm:$0x1]
        %v6900 = vld [vmem:[%s6440 + $0x144] sm:$0xf]
        %v6901 = vld [vmem:[%s6440 + $0x148] sm:$0xf]
        %v6902 = vld [vmem:[%s6440 + $0x14c] sm:$0x1]
        %v6903 = vld [vmem:[%s6440 + $0x150] sm:$0xf]
        %v6904 = vld [vmem:[%s6440 + $0x154] sm:$0xf]
        %v6905 = vld [vmem:[%s6440 + $0x158] sm:$0x1]
        %v6906 = vld [vmem:[%s6440 + $0x15c] sm:$0xf]
        %v6907 = vld [vmem:[%s6440 + $0x160] sm:$0xf]
        %v6908 = vld [vmem:[%s6440 + $0x164] sm:$0x1]
        %v6909 = vld [vmem:[%s6440 + $0x168] sm:$0xf]
        %v6910 = vld [vmem:[%s6440 + $0x16c] sm:$0xf]
        %v6911 = vld [vmem:[%s6440 + $0x170] sm:$0x1]
        %v6912 = vld [vmem:[%s6440 + $0x174] sm:$0xf]
        %v6913 = vld [vmem:[%s6440 + $0x178] sm:$0xf]
        %v6914 = vld [vmem:[%s6440 + $0x17c] sm:$0x1]
        %v6915 = vld [vmem:[%s6440 + $0x180] sm:$0xf]
        %v6916 = vld [vmem:[%s6440 + $0x184] sm:$0xf]
        %v6917 = vld [vmem:[%s6440 + $0x188] sm:$0x1]
        %v6918 = vld [vmem:[%s6440 + $0x18c] sm:$0xf]
        %v6919 = vld [vmem:[%s6440 + $0x190] sm:$0xf]
        %v6920 = vld [vmem:[%s6440 + $0x194] sm:$0x1]
        %v6922 = vshrl.u32 %v6825, 16
        %v6924 = vrot.slane %v6922, 4
        %v6925 = vshll.u32 %v6825, 16
        %v6927 = vrot.slane %v6925, 5
        %v6928 = vor.u32 %v6924, %v6927
        %v6929 = vrot.slane %v6928, 4
        %v6931 = vshll.u32 %v6826, 16
        %v6933 = vrot.slane %v6931, 5
        %v6934 = vsel %vm2689, %v6929, %v6933
        %v6935 = vshrl.u32 %v6826, 16
        %v6937 = vrot.slane %v6935, 4
        %v6938 = vor.u32 %v6937, %v6933
        %v6939 = vrot.slane %v6938, 4
        %v6941 = vshll.u32 %v6827, 16
        %v6943 = vrot.slane %v6941, 5
        %v6944 = vsel %vm2689, %v6939, %v6943
        %v6946 = vshrl.u32 %v6828, 16
        %v6948 = vrot.slane %v6946, 4
        %v6949 = vshll.u32 %v6828, 16
        %v6951 = vrot.slane %v6949, 5
        %v6952 = vor.u32 %v6948, %v6951
        %v6953 = vrot.slane %v6952, 4
        %v6955 = vshll.u32 %v6829, 16
        %v6957 = vrot.slane %v6955, 5
        %v6958 = vsel %vm2689, %v6953, %v6957
        %v6959 = vshrl.u32 %v6829, 16
        %v6961 = vrot.slane %v6959, 4
        %v6962 = vor.u32 %v6961, %v6957
        %v6963 = vrot.slane %v6962, 4
        %v6965 = vshll.u32 %v6830, 16
        %v6967 = vrot.slane %v6965, 5
        %v6968 = vsel %vm2689, %v6963, %v6967
        %v6970 = vshrl.u32 %v6831, 16
        %v6972 = vrot.slane %v6970, 4
        %v6973 = vshll.u32 %v6831, 16
        %v6975 = vrot.slane %v6973, 5
        %v6976 = vor.u32 %v6972, %v6975
        %v6977 = vrot.slane %v6976, 4
        %v6979 = vshll.u32 %v6832, 16
        %v6981 = vrot.slane %v6979, 5
        %v6982 = vsel %vm2689, %v6977, %v6981
        %v6983 = vshrl.u32 %v6832, 16
        %v6985 = vrot.slane %v6983, 4
        %v6986 = vor.u32 %v6985, %v6981
        %v6987 = vrot.slane %v6986, 4
        %v6989 = vshll.u32 %v6833, 16
        %v6991 = vrot.slane %v6989, 5
        %v6992 = vsel %vm2689, %v6987, %v6991
        %v6994 = vshrl.u32 %v6834, 16
        %v6996 = vrot.slane %v6994, 4
        %v6997 = vshll.u32 %v6834, 16
        %v6999 = vrot.slane %v6997, 5
        %v7000 = vor.u32 %v6996, %v6999
        %v7001 = vrot.slane %v7000, 4
        %v7003 = vshll.u32 %v6835, 16
        %v7005 = vrot.slane %v7003, 5
        %v7006 = vsel %vm2689, %v7001, %v7005
        %v7007 = vshrl.u32 %v6835, 16
        %v7009 = vrot.slane %v7007, 4
        %v7010 = vor.u32 %v7009, %v7005
        %v7011 = vrot.slane %v7010, 4
        %v7013 = vshll.u32 %v6836, 16
        %v7015 = vrot.slane %v7013, 5
        %v7016 = vsel %vm2689, %v7011, %v7015
        %v7018 = vshrl.u32 %v6837, 16
        %v7020 = vrot.slane %v7018, 4
        %v7021 = vshll.u32 %v6837, 16
        %v7023 = vrot.slane %v7021, 5
        %v7024 = vor.u32 %v7020, %v7023
        %v7025 = vrot.slane %v7024, 4
        %v7027 = vshll.u32 %v6838, 16
        %v7029 = vrot.slane %v7027, 5
        %v7030 = vsel %vm2689, %v7025, %v7029
        %v7031 = vshrl.u32 %v6838, 16
        %v7033 = vrot.slane %v7031, 4
        %v7034 = vor.u32 %v7033, %v7029
        %v7035 = vrot.slane %v7034, 4
        %v7037 = vshll.u32 %v6839, 16
        %v7039 = vrot.slane %v7037, 5
        %v7040 = vsel %vm2689, %v7035, %v7039
        %v7042 = vshrl.u32 %v6840, 16
        %v7044 = vrot.slane %v7042, 4
        %v7045 = vshll.u32 %v6840, 16
        %v7047 = vrot.slane %v7045, 5
        %v7048 = vor.u32 %v7044, %v7047
        %v7049 = vrot.slane %v7048, 4
        %v7051 = vshll.u32 %v6841, 16
        %v7053 = vrot.slane %v7051, 5
        %v7054 = vsel %vm2689, %v7049, %v7053
        %v7055 = vshrl.u32 %v6841, 16
        %v7057 = vrot.slane %v7055, 4
        %v7058 = vor.u32 %v7057, %v7053
        %v7059 = vrot.slane %v7058, 4
        %v7061 = vshll.u32 %v6842, 16
        %v7063 = vrot.slane %v7061, 5
        %v7064 = vsel %vm2689, %v7059, %v7063
        %v7066 = vshrl.u32 %v6843, 16
        %v7068 = vrot.slane %v7066, 4
        %v7069 = vshll.u32 %v6843, 16
        %v7071 = vrot.slane %v7069, 5
        %v7072 = vor.u32 %v7068, %v7071
        %v7073 = vrot.slane %v7072, 4
        %v7075 = vshll.u32 %v6844, 16
        %v7077 = vrot.slane %v7075, 5
        %v7078 = vsel %vm2689, %v7073, %v7077
        %v7079 = vshrl.u32 %v6844, 16
        %v7081 = vrot.slane %v7079, 4
        %v7082 = vor.u32 %v7081, %v7077
        %v7083 = vrot.slane %v7082, 4
        %v7085 = vshll.u32 %v6845, 16
        %v7087 = vrot.slane %v7085, 5
        %v7088 = vsel %vm2689, %v7083, %v7087
        %v7090 = vshrl.u32 %v6846, 16
        %v7092 = vrot.slane %v7090, 4
        %v7093 = vshll.u32 %v6846, 16
        %v7095 = vrot.slane %v7093, 5
        %v7096 = vor.u32 %v7092, %v7095
        %v7097 = vrot.slane %v7096, 4
        %v7099 = vshll.u32 %v6847, 16
        %v7101 = vrot.slane %v7099, 5
        %v7102 = vsel %vm2689, %v7097, %v7101
        %v7103 = vshrl.u32 %v6847, 16
        %v7105 = vrot.slane %v7103, 4
        %v7106 = vor.u32 %v7105, %v7101
        %v7107 = vrot.slane %v7106, 4
        %v7109 = vshll.u32 %v6848, 16
        %v7111 = vrot.slane %v7109, 5
        %v7112 = vsel %vm2689, %v7107, %v7111
        %v7114 = vshrl.u32 %v6849, 16
        %v7116 = vrot.slane %v7114, 4
        %v7117 = vshll.u32 %v6849, 16
        %v7119 = vrot.slane %v7117, 5
        %v7120 = vor.u32 %v7116, %v7119
        %v7121 = vrot.slane %v7120, 4
        %v7123 = vshll.u32 %v6850, 16
        %v7125 = vrot.slane %v7123, 5
        %v7126 = vsel %vm2689, %v7121, %v7125
        %v7127 = vshrl.u32 %v6850, 16
        %v7129 = vrot.slane %v7127, 4
        %v7130 = vor.u32 %v7129, %v7125
        %v7131 = vrot.slane %v7130, 4
        %v7133 = vshll.u32 %v6851, 16
        %v7135 = vrot.slane %v7133, 5
        %v7136 = vsel %vm2689, %v7131, %v7135
        %v7138 = vshrl.u32 %v6852, 16
        %v7140 = vrot.slane %v7138, 4
        %v7141 = vshll.u32 %v6852, 16
        %v7143 = vrot.slane %v7141, 5
        %v7144 = vor.u32 %v7140, %v7143
        %v7145 = vrot.slane %v7144, 4
        %v7147 = vshll.u32 %v6853, 16
        %v7149 = vrot.slane %v7147, 5
        %v7150 = vsel %vm2689, %v7145, %v7149
        %v7151 = vshrl.u32 %v6853, 16
        %v7153 = vrot.slane %v7151, 4
        %v7154 = vor.u32 %v7153, %v7149
        %v7155 = vrot.slane %v7154, 4
        %v7157 = vshll.u32 %v6854, 16
        %v7159 = vrot.slane %v7157, 5
        %v7160 = vsel %vm2689, %v7155, %v7159
        %v7162 = vshrl.u32 %v6855, 16
        %v7164 = vrot.slane %v7162, 4
        %v7165 = vshll.u32 %v6855, 16
        %v7167 = vrot.slane %v7165, 5
        %v7168 = vor.u32 %v7164, %v7167
        %v7169 = vrot.slane %v7168, 4
        %v7171 = vshll.u32 %v6856, 16
        %v7173 = vrot.slane %v7171, 5
        %v7174 = vsel %vm2689, %v7169, %v7173
        %v7175 = vshrl.u32 %v6856, 16
        %v7177 = vrot.slane %v7175, 4
        %v7178 = vor.u32 %v7177, %v7173
        %v7179 = vrot.slane %v7178, 4
        %v7181 = vshll.u32 %v6857, 16
        %v7183 = vrot.slane %v7181, 5
        %v7184 = vsel %vm2689, %v7179, %v7183
        %v7186 = vshrl.u32 %v6858, 16
        %v7188 = vrot.slane %v7186, 4
        %v7189 = vshll.u32 %v6858, 16
        %v7191 = vrot.slane %v7189, 5
        %v7192 = vor.u32 %v7188, %v7191
        %v7193 = vrot.slane %v7192, 4
        %v7195 = vshll.u32 %v6859, 16
        %v7197 = vrot.slane %v7195, 5
        %v7198 = vsel %vm2689, %v7193, %v7197
        %v7199 = vshrl.u32 %v6859, 16
        %v7201 = vrot.slane %v7199, 4
        %v7202 = vor.u32 %v7201, %v7197
        %v7203 = vrot.slane %v7202, 4
        %v7205 = vshll.u32 %v6860, 16
        %v7207 = vrot.slane %v7205, 5
        %v7208 = vsel %vm2689, %v7203, %v7207
        %v7210 = vshrl.u32 %v6861, 16
        %v7212 = vrot.slane %v7210, 4
        %v7213 = vshll.u32 %v6861, 16
        %v7215 = vrot.slane %v7213, 5
        %v7216 = vor.u32 %v7212, %v7215
        %v7217 = vrot.slane %v7216, 4
        %v7219 = vshll.u32 %v6862, 16
        %v7221 = vrot.slane %v7219, 5
        %v7222 = vsel %vm2689, %v7217, %v7221
        %v7223 = vshrl.u32 %v6862, 16
        %v7225 = vrot.slane %v7223, 4
        %v7226 = vor.u32 %v7225, %v7221
        %v7227 = vrot.slane %v7226, 4
        %v7229 = vshll.u32 %v6863, 16
        %v7231 = vrot.slane %v7229, 5
        %v7232 = vsel %vm2689, %v7227, %v7231
        %v7234 = vshrl.u32 %v6864, 16
        %v7236 = vrot.slane %v7234, 4
        %v7237 = vshll.u32 %v6864, 16
        %v7239 = vrot.slane %v7237, 5
        %v7240 = vor.u32 %v7236, %v7239
        %v7241 = vrot.slane %v7240, 4
        %v7243 = vshll.u32 %v6865, 16
        %v7245 = vrot.slane %v7243, 5
        %v7246 = vsel %vm2689, %v7241, %v7245
        %v7247 = vshrl.u32 %v6865, 16
        %v7249 = vrot.slane %v7247, 4
        %v7250 = vor.u32 %v7249, %v7245
        %v7251 = vrot.slane %v7250, 4
        %v7253 = vshll.u32 %v6866, 16
        %v7255 = vrot.slane %v7253, 5
        %v7256 = vsel %vm2689, %v7251, %v7255
        %v7258 = vshrl.u32 %v6867, 16
        %v7260 = vrot.slane %v7258, 4
        %v7261 = vshll.u32 %v6867, 16
        %v7263 = vrot.slane %v7261, 5
        %v7264 = vor.u32 %v7260, %v7263
        %v7265 = vrot.slane %v7264, 4
        %v7267 = vshll.u32 %v6868, 16
        %v7269 = vrot.slane %v7267, 5
        %v7270 = vsel %vm2689, %v7265, %v7269
        %v7271 = vshrl.u32 %v6868, 16
        %v7273 = vrot.slane %v7271, 4
        %v7274 = vor.u32 %v7273, %v7269
        %v7275 = vrot.slane %v7274, 4
        %v7277 = vshll.u32 %v6869, 16
        %v7279 = vrot.slane %v7277, 5
        %v7280 = vsel %vm2689, %v7275, %v7279
        %v7282 = vshrl.u32 %v6870, 16
        %v7284 = vrot.slane %v7282, 4
        %v7285 = vshll.u32 %v6870, 16
        %v7287 = vrot.slane %v7285, 5
        %v7288 = vor.u32 %v7284, %v7287
        %v7289 = vrot.slane %v7288, 4
        %v7291 = vshll.u32 %v6871, 16
        %v7293 = vrot.slane %v7291, 5
        %v7294 = vsel %vm2689, %v7289, %v7293
        %v7295 = vshrl.u32 %v6871, 16
        %v7297 = vrot.slane %v7295, 4
        %v7298 = vor.u32 %v7297, %v7293
        %v7299 = vrot.slane %v7298, 4
        %v7301 = vshll.u32 %v6872, 16
        %v7303 = vrot.slane %v7301, 5
        %v7304 = vsel %vm2689, %v7299, %v7303
        %v7306 = vshrl.u32 %v6873, 16
        %v7308 = vrot.slane %v7306, 4
        %v7309 = vshll.u32 %v6873, 16
        %v7311 = vrot.slane %v7309, 5
        %v7312 = vor.u32 %v7308, %v7311
        %v7313 = vrot.slane %v7312, 4
        %v7315 = vshll.u32 %v6874, 16
        %v7317 = vrot.slane %v7315, 5
        %v7318 = vsel %vm2689, %v7313, %v7317
        %v7319 = vshrl.u32 %v6874, 16
        %v7321 = vrot.slane %v7319, 4
        %v7322 = vor.u32 %v7321, %v7317
        %v7323 = vrot.slane %v7322, 4
        %v7325 = vshll.u32 %v6875, 16
        %v7327 = vrot.slane %v7325, 5
        %v7328 = vsel %vm2689, %v7323, %v7327
        %v7330 = vshrl.u32 %v6876, 16
        %v7332 = vrot.slane %v7330, 4
        %v7333 = vshll.u32 %v6876, 16
        %v7335 = vrot.slane %v7333, 5
        %v7336 = vor.u32 %v7332, %v7335
        %v7337 = vrot.slane %v7336, 4
        %v7339 = vshll.u32 %v6877, 16
        %v7341 = vrot.slane %v7339, 5
        %v7342 = vsel %vm2689, %v7337, %v7341
        %v7343 = vshrl.u32 %v6877, 16
        %v7345 = vrot.slane %v7343, 4
        %v7346 = vor.u32 %v7345, %v7341
        %v7347 = vrot.slane %v7346, 4
        %v7349 = vshll.u32 %v6878, 16
        %v7351 = vrot.slane %v7349, 5
        %v7352 = vsel %vm2689, %v7347, %v7351
        %v7354 = vshrl.u32 %v6879, 16
        %v7356 = vrot.slane %v7354, 4
        %v7357 = vshll.u32 %v6879, 16
        %v7359 = vrot.slane %v7357, 5
        %v7360 = vor.u32 %v7356, %v7359
        %v7361 = vrot.slane %v7360, 4
        %v7363 = vshll.u32 %v6880, 16
        %v7365 = vrot.slane %v7363, 5
        %v7366 = vsel %vm2689, %v7361, %v7365
        %v7367 = vshrl.u32 %v6880, 16
        %v7369 = vrot.slane %v7367, 4
        %v7370 = vor.u32 %v7369, %v7365
        %v7371 = vrot.slane %v7370, 4
        %v7373 = vshll.u32 %v6881, 16
        %v7375 = vrot.slane %v7373, 5
        %v7376 = vsel %vm2689, %v7371, %v7375
        %v7378 = vshrl.u32 %v6882, 16
        %v7380 = vrot.slane %v7378, 4
        %v7381 = vshll.u32 %v6882, 16
        %v7383 = vrot.slane %v7381, 5
        %v7384 = vor.u32 %v7380, %v7383
        %v7385 = vrot.slane %v7384, 4
        %v7387 = vshll.u32 %v6883, 16
        %v7389 = vrot.slane %v7387, 5
        %v7390 = vsel %vm2689, %v7385, %v7389
        %v7391 = vshrl.u32 %v6883, 16
        %v7393 = vrot.slane %v7391, 4
        %v7394 = vor.u32 %v7393, %v7389
        %v7395 = vrot.slane %v7394, 4
        %v7397 = vshll.u32 %v6884, 16
        %v7399 = vrot.slane %v7397, 5
        %v7400 = vsel %vm2689, %v7395, %v7399
        %v7402 = vshrl.u32 %v6885, 16
        %v7404 = vrot.slane %v7402, 4
        %v7405 = vshll.u32 %v6885, 16
        %v7407 = vrot.slane %v7405, 5
        %v7408 = vor.u32 %v7404, %v7407
        %v7409 = vrot.slane %v7408, 4
        %v7411 = vshll.u32 %v6886, 16
        %v7413 = vrot.slane %v7411, 5
        %v7414 = vsel %vm2689, %v7409, %v7413
        %v7415 = vshrl.u32 %v6886, 16
        %v7417 = vrot.slane %v7415, 4
        %v7418 = vor.u32 %v7417, %v7413
        %v7419 = vrot.slane %v7418, 4
        %v7421 = vshll.u32 %v6887, 16
        %v7423 = vrot.slane %v7421, 5
        %v7424 = vsel %vm2689, %v7419, %v7423
        %v7426 = vshrl.u32 %v6888, 16
        %v7428 = vrot.slane %v7426, 4
        %v7429 = vshll.u32 %v6888, 16
        %v7431 = vrot.slane %v7429, 5
        %v7432 = vor.u32 %v7428, %v7431
        %v7433 = vrot.slane %v7432, 4
        %v7435 = vshll.u32 %v6889, 16
        %v7437 = vrot.slane %v7435, 5
        %v7438 = vsel %vm2689, %v7433, %v7437
        %v7439 = vshrl.u32 %v6889, 16
        %v7441 = vrot.slane %v7439, 4
        %v7442 = vor.u32 %v7441, %v7437
        %v7443 = vrot.slane %v7442, 4
        %v7445 = vshll.u32 %v6890, 16
        %v7447 = vrot.slane %v7445, 5
        %v7448 = vsel %vm2689, %v7443, %v7447
        %v7450 = vshrl.u32 %v6891, 16
        %v7452 = vrot.slane %v7450, 4
        %v7453 = vshll.u32 %v6891, 16
        %v7455 = vrot.slane %v7453, 5
        %v7456 = vor.u32 %v7452, %v7455
        %v7457 = vrot.slane %v7456, 4
        %v7459 = vshll.u32 %v6892, 16
        %v7461 = vrot.slane %v7459, 5
        %v7462 = vsel %vm2689, %v7457, %v7461
        %v7463 = vshrl.u32 %v6892, 16
        %v7465 = vrot.slane %v7463, 4
        %v7466 = vor.u32 %v7465, %v7461
        %v7467 = vrot.slane %v7466, 4
        %v7469 = vshll.u32 %v6893, 16
        %v7471 = vrot.slane %v7469, 5
        %v7472 = vsel %vm2689, %v7467, %v7471
        %v7474 = vshrl.u32 %v6894, 16
        %v7476 = vrot.slane %v7474, 4
        %v7477 = vshll.u32 %v6894, 16
        %v7479 = vrot.slane %v7477, 5
        %v7480 = vor.u32 %v7476, %v7479
        %v7481 = vrot.slane %v7480, 4
        %v7483 = vshll.u32 %v6895, 16
        %v7485 = vrot.slane %v7483, 5
        %v7486 = vsel %vm2689, %v7481, %v7485
        %v7487 = vshrl.u32 %v6895, 16
        %v7489 = vrot.slane %v7487, 4
        %v7490 = vor.u32 %v7489, %v7485
        %v7491 = vrot.slane %v7490, 4
        %v7493 = vshll.u32 %v6896, 16
        %v7495 = vrot.slane %v7493, 5
        %v7496 = vsel %vm2689, %v7491, %v7495
        %v7498 = vshrl.u32 %v6897, 16
        %v7500 = vrot.slane %v7498, 4
        %v7501 = vshll.u32 %v6897, 16
        %v7503 = vrot.slane %v7501, 5
        %v7504 = vor.u32 %v7500, %v7503
        %v7505 = vrot.slane %v7504, 4
        %v7507 = vshll.u32 %v6898, 16
        %v7509 = vrot.slane %v7507, 5
        %v7510 = vsel %vm2689, %v7505, %v7509
        %v7511 = vshrl.u32 %v6898, 16
        %v7513 = vrot.slane %v7511, 4
        %v7514 = vor.u32 %v7513, %v7509
        %v7515 = vrot.slane %v7514, 4
        %v7517 = vshll.u32 %v6899, 16
        %v7519 = vrot.slane %v7517, 5
        %v7520 = vsel %vm2689, %v7515, %v7519
        %v7522 = vshrl.u32 %v6900, 16
        %v7524 = vrot.slane %v7522, 4
        %v7525 = vshll.u32 %v6900, 16
        %v7527 = vrot.slane %v7525, 5
        %v7528 = vor.u32 %v7524, %v7527
        %v7529 = vrot.slane %v7528, 4
        %v7531 = vshll.u32 %v6901, 16
        %v7533 = vrot.slane %v7531, 5
        %v7534 = vsel %vm2689, %v7529, %v7533
        %v7535 = vshrl.u32 %v6901, 16
        %v7537 = vrot.slane %v7535, 4
        %v7538 = vor.u32 %v7537, %v7533
        %v7539 = vrot.slane %v7538, 4
        %v7541 = vshll.u32 %v6902, 16
        %v7543 = vrot.slane %v7541, 5
        %v7544 = vsel %vm2689, %v7539, %v7543
        %v7546 = vshrl.u32 %v6903, 16
        %v7548 = vrot.slane %v7546, 4
        %v7549 = vshll.u32 %v6903, 16
        %v7551 = vrot.slane %v7549, 5
        %v7552 = vor.u32 %v7548, %v7551
        %v7553 = vrot.slane %v7552, 4
        %v7555 = vshll.u32 %v6904, 16
        %v7557 = vrot.slane %v7555, 5
        %v7558 = vsel %vm2689, %v7553, %v7557
        %v7559 = vshrl.u32 %v6904, 16
        %v7561 = vrot.slane %v7559, 4
        %v7562 = vor.u32 %v7561, %v7557
        %v7563 = vrot.slane %v7562, 4
        %v7565 = vshll.u32 %v6905, 16
        %v7567 = vrot.slane %v7565, 5
        %v7568 = vsel %vm2689, %v7563, %v7567
        %v7570 = vshrl.u32 %v6906, 16
        %v7572 = vrot.slane %v7570, 4
        %v7573 = vshll.u32 %v6906, 16
        %v7575 = vrot.slane %v7573, 5
        %v7576 = vor.u32 %v7572, %v7575
        %v7577 = vrot.slane %v7576, 4
        %v7579 = vshll.u32 %v6907, 16
        %v7581 = vrot.slane %v7579, 5
        %v7582 = vsel %vm2689, %v7577, %v7581
        %v7583 = vshrl.u32 %v6907, 16
        %v7585 = vrot.slane %v7583, 4
        %v7586 = vor.u32 %v7585, %v7581
        %v7587 = vrot.slane %v7586, 4
        %v7589 = vshll.u32 %v6908, 16
        %v7591 = vrot.slane %v7589, 5
        %v7592 = vsel %vm2689, %v7587, %v7591
        %v7594 = vshrl.u32 %v6909, 16
        %v7596 = vrot.slane %v7594, 4
        %v7597 = vshll.u32 %v6909, 16
        %v7599 = vrot.slane %v7597, 5
        %v7600 = vor.u32 %v7596, %v7599
        %v7601 = vrot.slane %v7600, 4
        %v7603 = vshll.u32 %v6910, 16
        %v7605 = vrot.slane %v7603, 5
        %v7606 = vsel %vm2689, %v7601, %v7605
        %v7607 = vshrl.u32 %v6910, 16
        %v7609 = vrot.slane %v7607, 4
        %v7610 = vor.u32 %v7609, %v7605
        %v7611 = vrot.slane %v7610, 4
        %v7613 = vshll.u32 %v6911, 16
        %v7615 = vrot.slane %v7613, 5
        %v7616 = vsel %vm2689, %v7611, %v7615
        %v7618 = vshrl.u32 %v6912, 16
        %v7620 = vrot.slane %v7618, 4
        %v7621 = vshll.u32 %v6912, 16
        %v7623 = vrot.slane %v7621, 5
        %v7624 = vor.u32 %v7620, %v7623
        %v7625 = vrot.slane %v7624, 4
        %v7627 = vshll.u32 %v6913, 16
        %v7629 = vrot.slane %v7627, 5
        %v7630 = vsel %vm2689, %v7625, %v7629
        %v7631 = vshrl.u32 %v6913, 16
        %v7633 = vrot.slane %v7631, 4
        %v7634 = vor.u32 %v7633, %v7629
        %v7635 = vrot.slane %v7634, 4
        %v7637 = vshll.u32 %v6914, 16
        %v7639 = vrot.slane %v7637, 5
        %v7640 = vsel %vm2689, %v7635, %v7639
        %v7642 = vshrl.u32 %v6915, 16
        %v7644 = vrot.slane %v7642, 4
        %v7645 = vshll.u32 %v6915, 16
        %v7647 = vrot.slane %v7645, 5
        %v7648 = vor.u32 %v7644, %v7647
        %v7649 = vrot.slane %v7648, 4
        %v7651 = vshll.u32 %v6916, 16
        %v7653 = vrot.slane %v7651, 5
        %v7654 = vsel %vm2689, %v7649, %v7653
        %v7655 = vshrl.u32 %v6916, 16
        %v7657 = vrot.slane %v7655, 4
        %v7658 = vor.u32 %v7657, %v7653
        %v7659 = vrot.slane %v7658, 4
        %v7661 = vshll.u32 %v6917, 16
        %v7663 = vrot.slane %v7661, 5
        %v7664 = vsel %vm2689, %v7659, %v7663
        %v7666 = vshrl.u32 %v6918, 16
        %v7668 = vrot.slane %v7666, 4
        %v7669 = vshll.u32 %v6918, 16
        %v7671 = vrot.slane %v7669, 5
        %v7672 = vor.u32 %v7668, %v7671
        %v7673 = vrot.slane %v7672, 4
        %v7675 = vshll.u32 %v6919, 16
        %v7677 = vrot.slane %v7675, 5
        %v7678 = vsel %vm2689, %v7673, %v7677
        %v7679 = vshrl.u32 %v6919, 16
        %v7681 = vrot.slane %v7679, 4
        %v7682 = vor.u32 %v7681, %v7677
        %v7683 = vrot.slane %v7682, 4
        %v7685 = vshll.u32 %v6920, 16
        %v7687 = vrot.slane %v7685, 5
        %v7688 = vsel %vm2689, %v7683, %v7687
        %7689 = vrot.lane.b32.xlu0 %v6934, 96
        %v7690 = vpop.permute.xlu0 %7689
        %7691 = vrot.lane.b32.xlu0 %v6944, 96
        %v7692 = vpop.permute.xlu0 %7691
        %7693 = vrot.lane.b32.xlu0 %v6958, 96
        %v7694 = vpop.permute.xlu0 %7693
        %7695 = vrot.lane.b32.xlu0 %v6968, 96
        %v7696 = vpop.permute.xlu0 %7695
        %7697 = vrot.lane.b32.xlu0 %v6982, 96
        %v7698 = vpop.permute.xlu0 %7697
        %7699 = vrot.lane.b32.xlu0 %v6992, 96
        %v7700 = vpop.permute.xlu0 %7699
        %7701 = vrot.lane.b32.xlu0 %v7006, 96
        %v7702 = vpop.permute.xlu0 %7701
        %7703 = vrot.lane.b32.xlu0 %v7016, 96
        %v7704 = vpop.permute.xlu0 %7703
        %7705 = vrot.lane.b32.xlu0 %v7030, 96
        %v7706 = vpop.permute.xlu0 %7705
        %7707 = vrot.lane.b32.xlu0 %v7040, 96
        %v7708 = vpop.permute.xlu0 %7707
        %7709 = vrot.lane.b32.xlu0 %v7054, 96
        %v7710 = vpop.permute.xlu0 %7709
        %7711 = vrot.lane.b32.xlu0 %v7064, 96
        %v7712 = vpop.permute.xlu0 %7711
        %7713 = vrot.lane.b32.xlu0 %v7078, 96
        %v7714 = vpop.permute.xlu0 %7713
        %7715 = vrot.lane.b32.xlu0 %v7088, 96
        %v7716 = vpop.permute.xlu0 %7715
        %7717 = vrot.lane.b32.xlu0 %v7102, 96
        %v7718 = vpop.permute.xlu0 %7717
        %7719 = vrot.lane.b32.xlu0 %v7112, 96
        %v7720 = vpop.permute.xlu0 %7719
        %7721 = vrot.lane.b32.xlu0 %v7126, 96
        %v7722 = vpop.permute.xlu0 %7721
        %7723 = vrot.lane.b32.xlu0 %v7136, 96
        %v7724 = vpop.permute.xlu0 %7723
        %7725 = vrot.lane.b32.xlu0 %v7150, 96
        %v7726 = vpop.permute.xlu0 %7725
        %7727 = vrot.lane.b32.xlu0 %v7160, 96
        %v7728 = vpop.permute.xlu0 %7727
        %7729 = vrot.lane.b32.xlu0 %v7174, 96
        %v7730 = vpop.permute.xlu0 %7729
        %7731 = vrot.lane.b32.xlu0 %v7184, 96
        %v7732 = vpop.permute.xlu0 %7731
        %7733 = vrot.lane.b32.xlu0 %v7198, 96
        %v7734 = vpop.permute.xlu0 %7733
        %7735 = vrot.lane.b32.xlu0 %v7208, 96
        %v7736 = vpop.permute.xlu0 %7735
        %7737 = vrot.lane.b32.xlu0 %v7222, 96
        %v7738 = vpop.permute.xlu0 %7737
        %7739 = vrot.lane.b32.xlu0 %v7232, 96
        %v7740 = vpop.permute.xlu0 %7739
        %7741 = vrot.lane.b32.xlu0 %v7246, 96
        %v7742 = vpop.permute.xlu0 %7741
        %7743 = vrot.lane.b32.xlu0 %v7256, 96
        %v7744 = vpop.permute.xlu0 %7743
        %7745 = vrot.lane.b32.xlu0 %v7270, 96
        %v7746 = vpop.permute.xlu0 %7745
        %7747 = vrot.lane.b32.xlu0 %v7280, 96
        %v7748 = vpop.permute.xlu0 %7747
        %7749 = vrot.lane.b32.xlu0 %v7294, 96
        %v7750 = vpop.permute.xlu0 %7749
        %7751 = vrot.lane.b32.xlu0 %v7304, 96
        %v7752 = vpop.permute.xlu0 %7751
        %7753 = vrot.lane.b32.xlu0 %v7318, 96
        %v7754 = vpop.permute.xlu0 %7753
        %7755 = vrot.lane.b32.xlu0 %v7328, 96
        %v7756 = vpop.permute.xlu0 %7755
        %7757 = vrot.lane.b32.xlu0 %v7342, 96
        %v7758 = vpop.permute.xlu0 %7757
        %7759 = vrot.lane.b32.xlu0 %v7352, 96
        %v7760 = vpop.permute.xlu0 %7759
        %7761 = vrot.lane.b32.xlu0 %v7366, 96
        %v7762 = vpop.permute.xlu0 %7761
        %7763 = vrot.lane.b32.xlu0 %v7376, 96
        %v7764 = vpop.permute.xlu0 %7763
        %7765 = vrot.lane.b32.xlu0 %v7390, 96
        %v7766 = vpop.permute.xlu0 %7765
        %7767 = vrot.lane.b32.xlu0 %v7400, 96
        %v7768 = vpop.permute.xlu0 %7767
        %7769 = vrot.lane.b32.xlu0 %v7414, 96
        %v7770 = vpop.permute.xlu0 %7769
        %7771 = vrot.lane.b32.xlu0 %v7424, 96
        %v7772 = vpop.permute.xlu0 %7771
        %7773 = vrot.lane.b32.xlu0 %v7438, 96
        %v7774 = vpop.permute.xlu0 %7773
        %7775 = vrot.lane.b32.xlu0 %v7448, 96
        %v7776 = vpop.permute.xlu0 %7775
        %7777 = vrot.lane.b32.xlu0 %v7462, 96
        %v7778 = vpop.permute.xlu0 %7777
        %7779 = vrot.lane.b32.xlu0 %v7472, 96
        %v7780 = vpop.permute.xlu0 %7779
        %7781 = vrot.lane.b32.xlu0 %v7486, 96
        %v7782 = vpop.permute.xlu0 %7781
        %7783 = vrot.lane.b32.xlu0 %v7496, 96
        %v7784 = vpop.permute.xlu0 %7783
        %7785 = vrot.lane.b32.xlu0 %v7510, 96
        %v7786 = vpop.permute.xlu0 %7785
        %7787 = vrot.lane.b32.xlu0 %v7520, 96
        %v7788 = vpop.permute.xlu0 %7787
        %7789 = vrot.lane.b32.xlu0 %v7534, 96
        %v7790 = vpop.permute.xlu0 %7789
        %7791 = vrot.lane.b32.xlu0 %v7544, 96
        %v7792 = vpop.permute.xlu0 %7791
        %7793 = vrot.lane.b32.xlu0 %v7558, 96
        %v7794 = vpop.permute.xlu0 %7793
        %7795 = vrot.lane.b32.xlu0 %v7568, 96
        %v7796 = vpop.permute.xlu0 %7795
        %7797 = vrot.lane.b32.xlu0 %v7582, 96
        %v7798 = vpop.permute.xlu0 %7797
        %7799 = vrot.lane.b32.xlu0 %v7592, 96
        %v7800 = vpop.permute.xlu0 %7799
        %7801 = vrot.lane.b32.xlu0 %v7606, 96
        %v7802 = vpop.permute.xlu0 %7801
        %7803 = vrot.lane.b32.xlu0 %v7616, 96
        %v7804 = vpop.permute.xlu0 %7803
        %7805 = vrot.lane.b32.xlu0 %v7630, 96
        %v7806 = vpop.permute.xlu0 %7805
        %7807 = vrot.lane.b32.xlu0 %v7640, 96
        %v7808 = vpop.permute.xlu0 %7807
        %7809 = vrot.lane.b32.xlu0 %v7654, 96
        %v7810 = vpop.permute.xlu0 %7809
        %7811 = vrot.lane.b32.xlu0 %v7664, 96
        %v7812 = vpop.permute.xlu0 %7811
        %7813 = vrot.lane.b32.xlu0 %v7678, 96
        %v7814 = vpop.permute.xlu0 %7813
        %7815 = vrot.lane.b32.xlu0 %v7688, 96
        %v7816 = vpop.permute.xlu0 %7815
        %7881 = vst.msk [vmem:[#allocation3 + $0x4] sm:$0xf] %vm4711, %v7690
        %7882 = vst.msk [vmem:[#allocation3 + $0x10] sm:$0xf] %vm4711, %v7692
        %7883 = vst.msk [vmem:[#allocation3 + $0x1c] sm:$0xf] %vm4711, %v7694
        %7884 = vst.msk [vmem:[#allocation3 + $0x28] sm:$0xf] %vm4711, %v7696
        %7885 = vst.msk [vmem:[#allocation3 + $0x34] sm:$0xf] %vm4711, %v7698
        %7886 = vst.msk [vmem:[#allocation3 + $0x40] sm:$0xf] %vm4711, %v7700
        %7887 = vst.msk [vmem:[#allocation3 + $0x4c] sm:$0xf] %vm4711, %v7702
        %7888 = vst.msk [vmem:[#allocation3 + $0x58] sm:$0xf] %vm4711, %v7704
        %7889 = vst.msk [vmem:[#allocation3 + $0x64] sm:$0xf] %vm4711, %v7706
        %7890 = vst.msk [vmem:[#allocation3 + $0x70] sm:$0xf] %vm4711, %v7708
        %7891 = vst.msk [vmem:[#allocation3 + $0x7c] sm:$0xf] %vm4711, %v7710
        %7892 = vst.msk [vmem:[#allocation3 + $0x88] sm:$0xf] %vm4711, %v7712
        %7893 = vst.msk [vmem:[#allocation3 + $0x94] sm:$0xf] %vm4711, %v7714
        %7894 = vst.msk [vmem:[#allocation3 + $0xa0] sm:$0xf] %vm4711, %v7716
        %7895 = vst.msk [vmem:[#allocation3 + $0xac] sm:$0xf] %vm4711, %v7718
        %7896 = vst.msk [vmem:[#allocation3 + $0xb8] sm:$0xf] %vm4711, %v7720
        %7897 = vst.msk [vmem:[#allocation3 + $0xc4] sm:$0xf] %vm4711, %v7722
        %7898 = vst.msk [vmem:[#allocation3 + $0xd0] sm:$0xf] %vm4711, %v7724
        %7899 = vst.msk [vmem:[#allocation3 + $0xdc] sm:$0xf] %vm4711, %v7726
        %7900 = vst.msk [vmem:[#allocation3 + $0xe8] sm:$0xf] %vm4711, %v7728
        %7901 = vst.msk [vmem:[#allocation3 + $0xf4] sm:$0xf] %vm4711, %v7730
        %7902 = vst.msk [vmem:[#allocation3 + $0x100] sm:$0xf] %vm4711, %v7732
        %7903 = vst.msk [vmem:[#allocation3 + $0x10c] sm:$0xf] %vm4711, %v7734
        %7904 = vst.msk [vmem:[#allocation3 + $0x118] sm:$0xf] %vm4711, %v7736
        %7905 = vst.msk [vmem:[#allocation3 + $0x124] sm:$0xf] %vm4711, %v7738
        %7906 = vst.msk [vmem:[#allocation3 + $0x130] sm:$0xf] %vm4711, %v7740
        %7907 = vst.msk [vmem:[#allocation3 + $0x13c] sm:$0xf] %vm4711, %v7742
        %7908 = vst.msk [vmem:[#allocation3 + $0x148] sm:$0xf] %vm4711, %v7744
        %7909 = vst.msk [vmem:[#allocation3 + $0x154] sm:$0xf] %vm4711, %v7746
        %7910 = vst.msk [vmem:[#allocation3 + $0x160] sm:$0xf] %vm4711, %v7748
        %7911 = vst.msk [vmem:[#allocation3 + $0x16c] sm:$0xf] %vm4711, %v7750
        %7912 = vst.msk [vmem:[#allocation3 + $0x178] sm:$0xf] %vm4711, %v7752
        %7913 = vst.msk [vmem:[#allocation3 + $0x184] sm:$0xf] %vm4711, %v7754
        %7914 = vst.msk [vmem:[#allocation3 + $0x190] sm:$0xf] %vm4711, %v7756
        %7915 = vst.msk [vmem:[#allocation3 + $0x19c] sm:$0xf] %vm4711, %v7758
        %7916 = vst.msk [vmem:[#allocation3 + $0x1a8] sm:$0xf] %vm4711, %v7760
        %7917 = vst.msk [vmem:[#allocation3 + $0x1b4] sm:$0xf] %vm4711, %v7762
        %7918 = vst.msk [vmem:[#allocation3 + $0x1c0] sm:$0xf] %vm4711, %v7764
        %7919 = vst.msk [vmem:[#allocation3 + $0x1cc] sm:$0xf] %vm4711, %v7766
        %7920 = vst.msk [vmem:[#allocation3 + $0x1d8] sm:$0xf] %vm4711, %v7768
        %7921 = vst.msk [vmem:[#allocation3 + $0x1e4] sm:$0xf] %vm4711, %v7770
        %7922 = vst.msk [vmem:[#allocation3 + $0x1f0] sm:$0xf] %vm4711, %v7772
        %7923 = vst.msk [vmem:[#allocation3 + $0x1fc] sm:$0xf] %vm4711, %v7774
        %7924 = vst.msk [vmem:[#allocation3 + $0x208] sm:$0xf] %vm4711, %v7776
        %7925 = vst.msk [vmem:[#allocation3 + $0x214] sm:$0xf] %vm4711, %v7778
        %7926 = vst.msk [vmem:[#allocation3 + $0x220] sm:$0xf] %vm4711, %v7780
        %7927 = vst.msk [vmem:[#allocation3 + $0x22c] sm:$0xf] %vm4711, %v7782
        %7928 = vst.msk [vmem:[#allocation3 + $0x238] sm:$0xf] %vm4711, %v7784
        %7929 = vst.msk [vmem:[#allocation3 + $0x244] sm:$0xf] %vm4711, %v7786
        %7930 = vst.msk [vmem:[#allocation3 + $0x250] sm:$0xf] %vm4711, %v7788
        %7931 = vst.msk [vmem:[#allocation3 + $0x25c] sm:$0xf] %vm4711, %v7790
        %7932 = vst.msk [vmem:[#allocation3 + $0x268] sm:$0xf] %vm4711, %v7792
        %7933 = vst.msk [vmem:[#allocation3 + $0x274] sm:$0xf] %vm4711, %v7794
        %7934 = vst.msk [vmem:[#allocation3 + $0x280] sm:$0xf] %vm4711, %v7796
        %7935 = vst.msk [vmem:[#allocation3 + $0x28c] sm:$0xf] %vm4711, %v7798
        %7936 = vst.msk [vmem:[#allocation3 + $0x298] sm:$0xf] %vm4711, %v7800
        %7937 = vst.msk [vmem:[#allocation3 + $0x2a4] sm:$0xf] %vm4711, %v7802
        %7938 = vst.msk [vmem:[#allocation3 + $0x2b0] sm:$0xf] %vm4711, %v7804
        %7939 = vst.msk [vmem:[#allocation3 + $0x2bc] sm:$0xf] %vm4711, %v7806
        %7940 = vst.msk [vmem:[#allocation3 + $0x2c8] sm:$0xf] %vm4711, %v7808
        %7941 = vst.msk [vmem:[#allocation3 + $0x2d4] sm:$0xf] %vm4711, %v7810
        %7942 = vst.msk [vmem:[#allocation3 + $0x2e0] sm:$0xf] %vm4711, %v7812
        %7943 = vst.msk [vmem:[#allocation3 + $0x2ec] sm:$0xf] %vm4711, %v7814
        %7944 = vst.msk [vmem:[#allocation3 + $0x2f8] sm:$0xf] %vm4711, %v7816
        %v7945 = vld [vmem:[%s6440] sm:$0xe]
        %v7946 = vld [vmem:[%s6440 + $0x4] sm:$0xf]
        %v7947 = vld [vmem:[%s6440 + $0x8] sm:$0x1]
        %v7948 = vld [vmem:[%s6440 + $0xc] sm:$0xe]
        %v7949 = vld [vmem:[%s6440 + $0x10] sm:$0xf]
        %v7950 = vld [vmem:[%s6440 + $0x14] sm:$0x1]
        %v7951 = vld [vmem:[%s6440 + $0x18] sm:$0xe]
        %v7952 = vld [vmem:[%s6440 + $0x1c] sm:$0xf]
        %v7953 = vld [vmem:[%s6440 + $0x20] sm:$0x1]
        %v7954 = vld [vmem:[%s6440 + $0x24] sm:$0xe]
        %v7955 = vld [vmem:[%s6440 + $0x28] sm:$0xf]
        %v7956 = vld [vmem:[%s6440 + $0x2c] sm:$0x1]
        %v7957 = vld [vmem:[%s6440 + $0x30] sm:$0xe]
        %v7958 = vld [vmem:[%s6440 + $0x34] sm:$0xf]
        %v7959 = vld [vmem:[%s6440 + $0x38] sm:$0x1]
        %v7960 = vld [vmem:[%s6440 + $0x3c] sm:$0xe]
        %v7961 = vld [vmem:[%s6440 + $0x40] sm:$0xf]
        %v7962 = vld [vmem:[%s6440 + $0x44] sm:$0x1]
        %v7963 = vld [vmem:[%s6440 + $0x48] sm:$0xe]
        %v7964 = vld [vmem:[%s6440 + $0x4c] sm:$0xf]
        %v7965 = vld [vmem:[%s6440 + $0x50] sm:$0x1]
        %v7966 = vld [vmem:[%s6440 + $0x54] sm:$0xe]
        %v7967 = vld [vmem:[%s6440 + $0x58] sm:$0xf]
        %v7968 = vld [vmem:[%s6440 + $0x5c] sm:$0x1]
        %v7969 = vld [vmem:[%s6440 + $0x60] sm:$0xe]
        %v7970 = vld [vmem:[%s6440 + $0x64] sm:$0xf]
        %v7971 = vld [vmem:[%s6440 + $0x68] sm:$0x1]
        %v7972 = vld [vmem:[%s6440 + $0x6c] sm:$0xe]
        %v7973 = vld [vmem:[%s6440 + $0x70] sm:$0xf]
        %v7974 = vld [vmem:[%s6440 + $0x74] sm:$0x1]
        %v7975 = vld [vmem:[%s6440 + $0x78] sm:$0xe]
        %v7976 = vld [vmem:[%s6440 + $0x7c] sm:$0xf]
        %v7977 = vld [vmem:[%s6440 + $0x80] sm:$0x1]
        %v7978 = vld [vmem:[%s6440 + $0x84] sm:$0xe]
        %v7979 = vld [vmem:[%s6440 + $0x88] sm:$0xf]
        %v7980 = vld [vmem:[%s6440 + $0x8c] sm:$0x1]
        %v7981 = vld [vmem:[%s6440 + $0x90] sm:$0xe]
        %v7982 = vld [vmem:[%s6440 + $0x94] sm:$0xf]
        %v7983 = vld [vmem:[%s6440 + $0x98] sm:$0x1]
        %v7984 = vld [vmem:[%s6440 + $0x9c] sm:$0xe]
        %v7985 = vld [vmem:[%s6440 + $0xa0] sm:$0xf]
        %v7986 = vld [vmem:[%s6440 + $0xa4] sm:$0x1]
        %v7987 = vld [vmem:[%s6440 + $0xa8] sm:$0xe]
        %v7988 = vld [vmem:[%s6440 + $0xac] sm:$0xf]
        %v7989 = vld [vmem:[%s6440 + $0xb0] sm:$0x1]
        %v7990 = vld [vmem:[%s6440 + $0xb4] sm:$0xe]
        %v7991 = vld [vmem:[%s6440 + $0xb8] sm:$0xf]
        %v7992 = vld [vmem:[%s6440 + $0xbc] sm:$0x1]
        %v7993 = vld [vmem:[%s6440 + $0xd8] sm:$0xe]
        %v7994 = vld [vmem:[%s6440 + $0xdc] sm:$0xf]
        %v7995 = vld [vmem:[%s6440 + $0xe0] sm:$0x1]
        %v7996 = vld [vmem:[%s6440 + $0xe4] sm:$0xe]
        %v7997 = vld [vmem:[%s6440 + $0xe8] sm:$0xf]
        %v7998 = vld [vmem:[%s6440 + $0xec] sm:$0x1]
        %v7999 = vld [vmem:[%s6440 + $0xf0] sm:$0xe]
        %v8000 = vld [vmem:[%s6440 + $0xf4] sm:$0xf]
        %v8001 = vld [vmem:[%s6440 + $0xf8] sm:$0x1]
        %v8002 = vld [vmem:[%s6440 + $0xfc] sm:$0xe]
        %v8003 = vld [vmem:[%s6440 + $0x100] sm:$0xf]
        %v8004 = vld [vmem:[%s6440 + $0x104] sm:$0x1]
        %v8005 = vld [vmem:[%s6440 + $0x108] sm:$0xe]
        %v8006 = vld [vmem:[%s6440 + $0x10c] sm:$0xf]
        %v8007 = vld [vmem:[%s6440 + $0x110] sm:$0x1]
        %v8008 = vld [vmem:[%s6440 + $0x114] sm:$0xe]
        %v8009 = vld [vmem:[%s6440 + $0x118] sm:$0xf]
        %v8010 = vld [vmem:[%s6440 + $0x11c] sm:$0x1]
        %v8011 = vld [vmem:[%s6440 + $0x120] sm:$0xe]
        %v8012 = vld [vmem:[%s6440 + $0x124] sm:$0xf]
        %v8013 = vld [vmem:[%s6440 + $0x128] sm:$0x1]
        %v8014 = vld [vmem:[%s6440 + $0x12c] sm:$0xe]
        %v8015 = vld [vmem:[%s6440 + $0x130] sm:$0xf]
        %v8016 = vld [vmem:[%s6440 + $0x134] sm:$0x1]
        %v8017 = vld [vmem:[%s6440 + $0x138] sm:$0xe]
        %v8018 = vld [vmem:[%s6440 + $0x13c] sm:$0xf]
        %v8019 = vld [vmem:[%s6440 + $0x140] sm:$0x1]
        %v8020 = vld [vmem:[%s6440 + $0x144] sm:$0xe]
        %v8021 = vld [vmem:[%s6440 + $0x148] sm:$0xf]
        %v8022 = vld [vmem:[%s6440 + $0x14c] sm:$0x1]
        %v8023 = vld [vmem:[%s6440 + $0x150] sm:$0xe]
        %v8024 = vld [vmem:[%s6440 + $0x154] sm:$0xf]
        %v8025 = vld [vmem:[%s6440 + $0x158] sm:$0x1]
        %v8026 = vld [vmem:[%s6440 + $0x15c] sm:$0xe]
        %v8027 = vld [vmem:[%s6440 + $0x160] sm:$0xf]
        %v8028 = vld [vmem:[%s6440 + $0x164] sm:$0x1]
        %v8029 = vld [vmem:[%s6440 + $0x168] sm:$0xe]
        %v8030 = vld [vmem:[%s6440 + $0x16c] sm:$0xf]
        %v8031 = vld [vmem:[%s6440 + $0x170] sm:$0x1]
        %v8032 = vld [vmem:[%s6440 + $0x174] sm:$0xe]
        %v8033 = vld [vmem:[%s6440 + $0x178] sm:$0xf]
        %v8034 = vld [vmem:[%s6440 + $0x17c] sm:$0x1]
        %v8035 = vld [vmem:[%s6440 + $0x180] sm:$0xe]
        %v8036 = vld [vmem:[%s6440 + $0x184] sm:$0xf]
        %v8037 = vld [vmem:[%s6440 + $0x188] sm:$0x1]
        %v8038 = vld [vmem:[%s6440 + $0x18c] sm:$0xe]
        %v8039 = vld [vmem:[%s6440 + $0x190] sm:$0xf]
        %v8040 = vld [vmem:[%s6440 + $0x194] sm:$0x1]
        %v8137 = vrot.slane %v7945, 5
        %v8138 = vrot.slane %v8137, 4
        %v8139 = vrot.slane %v7946, 5
        %v8140 = vsel %vm3909, %v8138, %v8139
        %v8141 = vrot.slane %v8139, 4
        %v8142 = vrot.slane %v7947, 5
        %v8143 = vsel %vm3909, %v8141, %v8142
        %v8144 = vrot.slane %v7948, 5
        %v8145 = vrot.slane %v8144, 4
        %v8146 = vrot.slane %v7949, 5
        %v8147 = vsel %vm3909, %v8145, %v8146
        %v8148 = vrot.slane %v8146, 4
        %v8149 = vrot.slane %v7950, 5
        %v8150 = vsel %vm3909, %v8148, %v8149
        %v8151 = vrot.slane %v7951, 5
        %v8152 = vrot.slane %v8151, 4
        %v8153 = vrot.slane %v7952, 5
        %v8154 = vsel %vm3909, %v8152, %v8153
        %v8155 = vrot.slane %v8153, 4
        %v8156 = vrot.slane %v7953, 5
        %v8157 = vsel %vm3909, %v8155, %v8156
        %v8158 = vrot.slane %v7954, 5
        %v8159 = vrot.slane %v8158, 4
        %v8160 = vrot.slane %v7955, 5
        %v8161 = vsel %vm3909, %v8159, %v8160
        %v8162 = vrot.slane %v8160, 4
        %v8163 = vrot.slane %v7956, 5
        %v8164 = vsel %vm3909, %v8162, %v8163
        %v8165 = vrot.slane %v7957, 5
        %v8166 = vrot.slane %v8165, 4
        %v8167 = vrot.slane %v7958, 5
        %v8168 = vsel %vm3909, %v8166, %v8167
        %v8169 = vrot.slane %v8167, 4
        %v8170 = vrot.slane %v7959, 5
        %v8171 = vsel %vm3909, %v8169, %v8170
        %v8172 = vrot.slane %v7960, 5
        %v8173 = vrot.slane %v8172, 4
        %v8174 = vrot.slane %v7961, 5
        %v8175 = vsel %vm3909, %v8173, %v8174
        %v8176 = vrot.slane %v8174, 4
        %v8177 = vrot.slane %v7962, 5
        %v8178 = vsel %vm3909, %v8176, %v8177
        %v8179 = vrot.slane %v7963, 5
        %v8180 = vrot.slane %v8179, 4
        %v8181 = vrot.slane %v7964, 5
        %v8182 = vsel %vm3909, %v8180, %v8181
        %v8183 = vrot.slane %v8181, 4
        %v8184 = vrot.slane %v7965, 5
        %v8185 = vsel %vm3909, %v8183, %v8184
        %v8186 = vrot.slane %v7966, 5
        %v8187 = vrot.slane %v8186, 4
        %v8188 = vrot.slane %v7967, 5
        %v8189 = vsel %vm3909, %v8187, %v8188
        %v8190 = vrot.slane %v8188, 4
        %v8191 = vrot.slane %v7968, 5
        %v8192 = vsel %vm3909, %v8190, %v8191
        %v8193 = vrot.slane %v7969, 5
        %v8194 = vrot.slane %v8193, 4
        %v8195 = vrot.slane %v7970, 5
        %v8196 = vsel %vm3909, %v8194, %v8195
        %v8197 = vrot.slane %v8195, 4
        %v8198 = vrot.slane %v7971, 5
        %v8199 = vsel %vm3909, %v8197, %v8198
        %v8200 = vrot.slane %v7972, 5
        %v8201 = vrot.slane %v8200, 4
        %v8202 = vrot.slane %v7973, 5
        %v8203 = vsel %vm3909, %v8201, %v8202
        %v8204 = vrot.slane %v8202, 4
        %v8205 = vrot.slane %v7974, 5
        %v8206 = vsel %vm3909, %v8204, %v8205
        %v8207 = vrot.slane %v7975, 5
        %v8208 = vrot.slane %v8207, 4
        %v8209 = vrot.slane %v7976, 5
        %v8210 = vsel %vm3909, %v8208, %v8209
        %v8211 = vrot.slane %v8209, 4
        %v8212 = vrot.slane %v7977, 5
        %v8213 = vsel %vm3909, %v8211, %v8212
        %v8214 = vrot.slane %v7978, 5
        %v8215 = vrot.slane %v8214, 4
        %v8216 = vrot.slane %v7979, 5
        %v8217 = vsel %vm3909, %v8215, %v8216
        %v8218 = vrot.slane %v8216, 4
        %v8219 = vrot.slane %v7980, 5
        %v8220 = vsel %vm3909, %v8218, %v8219
        %v8221 = vrot.slane %v7981, 5
        %v8222 = vrot.slane %v8221, 4
        %v8223 = vrot.slane %v7982, 5
        %v8224 = vsel %vm3909, %v8222, %v8223
        %v8225 = vrot.slane %v8223, 4
        %v8226 = vrot.slane %v7983, 5
        %v8227 = vsel %vm3909, %v8225, %v8226
        %v8228 = vrot.slane %v7984, 5
        %v8229 = vrot.slane %v8228, 4
        %v8230 = vrot.slane %v7985, 5
        %v8231 = vsel %vm3909, %v8229, %v8230
        %v8232 = vrot.slane %v8230, 4
        %v8233 = vrot.slane %v7986, 5
        %v8234 = vsel %vm3909, %v8232, %v8233
        %v8235 = vrot.slane %v7987, 5
        %v8236 = vrot.slane %v8235, 4
        %v8237 = vrot.slane %v7988, 5
        %v8238 = vsel %vm3909, %v8236, %v8237
        %v8239 = vrot.slane %v8237, 4
        %v8240 = vrot.slane %v7989, 5
        %v8241 = vsel %vm3909, %v8239, %v8240
        %v8242 = vrot.slane %v7990, 5
        %v8243 = vrot.slane %v8242, 4
        %v8244 = vrot.slane %v7991, 5
        %v8245 = vsel %vm3909, %v8243, %v8244
        %v8246 = vrot.slane %v8244, 4
        %v8247 = vrot.slane %v7992, 5
        %v8248 = vsel %vm3909, %v8246, %v8247
        %v8249 = vrot.slane %v7993, 5
        %v8250 = vrot.slane %v8249, 4
        %v8251 = vrot.slane %v7994, 5
        %v8252 = vsel %vm3909, %v8250, %v8251
        %v8253 = vrot.slane %v8251, 4
        %v8254 = vrot.slane %v7995, 5
        %v8255 = vsel %vm3909, %v8253, %v8254
        %v8256 = vrot.slane %v7996, 5
        %v8257 = vrot.slane %v8256, 4
        %v8258 = vrot.slane %v7997, 5
        %v8259 = vsel %vm3909, %v8257, %v8258
        %v8260 = vrot.slane %v8258, 4
        %v8261 = vrot.slane %v7998, 5
        %v8262 = vsel %vm3909, %v8260, %v8261
        %v8263 = vrot.slane %v7999, 5
        %v8264 = vrot.slane %v8263, 4
        %v8265 = vrot.slane %v8000, 5
        %v8266 = vsel %vm3909, %v8264, %v8265
        %v8267 = vrot.slane %v8265, 4
        %v8268 = vrot.slane %v8001, 5
        %v8269 = vsel %vm3909, %v8267, %v8268
        %v8270 = vrot.slane %v8002, 5
        %v8271 = vrot.slane %v8270, 4
        %v8272 = vrot.slane %v8003, 5
        %v8273 = vsel %vm3909, %v8271, %v8272
        %v8274 = vrot.slane %v8272, 4
        %v8275 = vrot.slane %v8004, 5
        %v8276 = vsel %vm3909, %v8274, %v8275
        %v8277 = vrot.slane %v8005, 5
        %v8278 = vrot.slane %v8277, 4
        %v8279 = vrot.slane %v8006, 5
        %v8280 = vsel %vm3909, %v8278, %v8279
        %v8281 = vrot.slane %v8279, 4
        %v8282 = vrot.slane %v8007, 5
        %v8283 = vsel %vm3909, %v8281, %v8282
        %v8284 = vrot.slane %v8008, 5
        %v8285 = vrot.slane %v8284, 4
        %v8286 = vrot.slane %v8009, 5
        %v8287 = vsel %vm3909, %v8285, %v8286
        %v8288 = vrot.slane %v8286, 4
        %v8289 = vrot.slane %v8010, 5
        %v8290 = vsel %vm3909, %v8288, %v8289
        %v8291 = vrot.slane %v8011, 5
        %v8292 = vrot.slane %v8291, 4
        %v8293 = vrot.slane %v8012, 5
        %v8294 = vsel %vm3909, %v8292, %v8293
        %v8295 = vrot.slane %v8293, 4
        %v8296 = vrot.slane %v8013, 5
        %v8297 = vsel %vm3909, %v8295, %v8296
        %v8298 = vrot.slane %v8014, 5
        %v8299 = vrot.slane %v8298, 4
        %v8300 = vrot.slane %v8015, 5
        %v8301 = vsel %vm3909, %v8299, %v8300
        %v8302 = vrot.slane %v8300, 4
        %v8303 = vrot.slane %v8016, 5
        %v8304 = vsel %vm3909, %v8302, %v8303
        %v8305 = vrot.slane %v8017, 5
        %v8306 = vrot.slane %v8305, 4
        %v8307 = vrot.slane %v8018, 5
        %v8308 = vsel %vm3909, %v8306, %v8307
        %v8309 = vrot.slane %v8307, 4
        %v8310 = vrot.slane %v8019, 5
        %v8311 = vsel %vm3909, %v8309, %v8310
        %v8312 = vrot.slane %v8020, 5
        %v8313 = vrot.slane %v8312, 4
        %v8314 = vrot.slane %v8021, 5
        %v8315 = vsel %vm3909, %v8313, %v8314
        %v8316 = vrot.slane %v8314, 4
        %v8317 = vrot.slane %v8022, 5
        %v8318 = vsel %vm3909, %v8316, %v8317
        %v8319 = vrot.slane %v8023, 5
        %v8320 = vrot.slane %v8319, 4
        %v8321 = vrot.slane %v8024, 5
        %v8322 = vsel %vm3909, %v8320, %v8321
        %v8323 = vrot.slane %v8321, 4
        %v8324 = vrot.slane %v8025, 5
        %v8325 = vsel %vm3909, %v8323, %v8324
        %v8326 = vrot.slane %v8026, 5
        %v8327 = vrot.slane %v8326, 4
        %v8328 = vrot.slane %v8027, 5
        %v8329 = vsel %vm3909, %v8327, %v8328
        %v8330 = vrot.slane %v8328, 4
        %v8331 = vrot.slane %v8028, 5
        %v8332 = vsel %vm3909, %v8330, %v8331
        %v8333 = vrot.slane %v8029, 5
        %v8334 = vrot.slane %v8333, 4
        %v8335 = vrot.slane %v8030, 5
        %v8336 = vsel %vm3909, %v8334, %v8335
        %v8337 = vrot.slane %v8335, 4
        %v8338 = vrot.slane %v8031, 5
        %v8339 = vsel %vm3909, %v8337, %v8338
        %v8340 = vrot.slane %v8032, 5
        %v8341 = vrot.slane %v8340, 4
        %v8342 = vrot.slane %v8033, 5
        %v8343 = vsel %vm3909, %v8341, %v8342
        %v8344 = vrot.slane %v8342, 4
        %v8345 = vrot.slane %v8034, 5
        %v8346 = vsel %vm3909, %v8344, %v8345
        %v8347 = vrot.slane %v8035, 5
        %v8348 = vrot.slane %v8347, 4
        %v8349 = vrot.slane %v8036, 5
        %v8350 = vsel %vm3909, %v8348, %v8349
        %v8351 = vrot.slane %v8349, 4
        %v8352 = vrot.slane %v8037, 5
        %v8353 = vsel %vm3909, %v8351, %v8352
        %v8354 = vrot.slane %v8038, 5
        %v8355 = vrot.slane %v8354, 4
        %v8356 = vrot.slane %v8039, 5
        %v8357 = vsel %vm3909, %v8355, %v8356
        %v8358 = vrot.slane %v8356, 4
        %v8359 = vrot.slane %v8040, 5
        %v8360 = vsel %vm3909, %v8358, %v8359
        %8425 = vst.msk [vmem:[#allocation3 + $0x8] sm:$0xf] %vm1358, %v8140
        %8426 = vst.msk [vmem:[#allocation3 + $0x14] sm:$0xf] %vm1358, %v8143
        %8427 = vst.msk [vmem:[#allocation3 + $0x20] sm:$0xf] %vm1358, %v8147
        %8428 = vst.msk [vmem:[#allocation3 + $0x2c] sm:$0xf] %vm1358, %v8150
        %8429 = vst.msk [vmem:[#allocation3 + $0x38] sm:$0xf] %vm1358, %v8154
        %8430 = vst.msk [vmem:[#allocation3 + $0x44] sm:$0xf] %vm1358, %v8157
        %8431 = vst.msk [vmem:[#allocation3 + $0x50] sm:$0xf] %vm1358, %v8161
        %8432 = vst.msk [vmem:[#allocation3 + $0x5c] sm:$0xf] %vm1358, %v8164
        %8433 = vst.msk [vmem:[#allocation3 + $0x68] sm:$0xf] %vm1358, %v8168
        %8434 = vst.msk [vmem:[#allocation3 + $0x74] sm:$0xf] %vm1358, %v8171
        %8435 = vst.msk [vmem:[#allocation3 + $0x80] sm:$0xf] %vm1358, %v8175
        %8436 = vst.msk [vmem:[#allocation3 + $0x8c] sm:$0xf] %vm1358, %v8178
        %8437 = vst.msk [vmem:[#allocation3 + $0x98] sm:$0xf] %vm1358, %v8182
        %8438 = vst.msk [vmem:[#allocation3 + $0xa4] sm:$0xf] %vm1358, %v8185
        %8439 = vst.msk [vmem:[#allocation3 + $0xb0] sm:$0xf] %vm1358, %v8189
        %8440 = vst.msk [vmem:[#allocation3 + $0xbc] sm:$0xf] %vm1358, %v8192
        %8441 = vst.msk [vmem:[#allocation3 + $0xc8] sm:$0xf] %vm1358, %v8196
        %8442 = vst.msk [vmem:[#allocation3 + $0xd4] sm:$0xf] %vm1358, %v8199
        %8443 = vst.msk [vmem:[#allocation3 + $0xe0] sm:$0xf] %vm1358, %v8203
        %8444 = vst.msk [vmem:[#allocation3 + $0xec] sm:$0xf] %vm1358, %v8206
        %8445 = vst.msk [vmem:[#allocation3 + $0xf8] sm:$0xf] %vm1358, %v8210
        %8446 = vst.msk [vmem:[#allocation3 + $0x104] sm:$0xf] %vm1358, %v8213
        %8447 = vst.msk [vmem:[#allocation3 + $0x110] sm:$0xf] %vm1358, %v8217
        %8448 = vst.msk [vmem:[#allocation3 + $0x11c] sm:$0xf] %vm1358, %v8220
        %8449 = vst.msk [vmem:[#allocation3 + $0x128] sm:$0xf] %vm1358, %v8224
        %8450 = vst.msk [vmem:[#allocation3 + $0x134] sm:$0xf] %vm1358, %v8227
        %8451 = vst.msk [vmem:[#allocation3 + $0x140] sm:$0xf] %vm1358, %v8231
        %8452 = vst.msk [vmem:[#allocation3 + $0x14c] sm:$0xf] %vm1358, %v8234
        %8453 = vst.msk [vmem:[#allocation3 + $0x158] sm:$0xf] %vm1358, %v8238
        %8454 = vst.msk [vmem:[#allocation3 + $0x164] sm:$0xf] %vm1358, %v8241
        %8455 = vst.msk [vmem:[#allocation3 + $0x170] sm:$0xf] %vm1358, %v8245
        %8456 = vst.msk [vmem:[#allocation3 + $0x17c] sm:$0xf] %vm1358, %v8248
        %8457 = vst.msk [vmem:[#allocation3 + $0x188] sm:$0xf] %vm1358, %v8252
        %8458 = vst.msk [vmem:[#allocation3 + $0x194] sm:$0xf] %vm1358, %v8255
        %8459 = vst.msk [vmem:[#allocation3 + $0x1a0] sm:$0xf] %vm1358, %v8259
        %8460 = vst.msk [vmem:[#allocation3 + $0x1ac] sm:$0xf] %vm1358, %v8262
        %8461 = vst.msk [vmem:[#allocation3 + $0x1b8] sm:$0xf] %vm1358, %v8266
        %8462 = vst.msk [vmem:[#allocation3 + $0x1c4] sm:$0xf] %vm1358, %v8269
        %8463 = vst.msk [vmem:[#allocation3 + $0x1d0] sm:$0xf] %vm1358, %v8273
        %8464 = vst.msk [vmem:[#allocation3 + $0x1dc] sm:$0xf] %vm1358, %v8276
        %8465 = vst.msk [vmem:[#allocation3 + $0x1e8] sm:$0xf] %vm1358, %v8280
        %8466 = vst.msk [vmem:[#allocation3 + $0x1f4] sm:$0xf] %vm1358, %v8283
        %8467 = vst.msk [vmem:[#allocation3 + $0x200] sm:$0xf] %vm1358, %v8287
        %8468 = vst.msk [vmem:[#allocation3 + $0x20c] sm:$0xf] %vm1358, %v8290
        %8469 = vst.msk [vmem:[#allocation3 + $0x218] sm:$0xf] %vm1358, %v8294
        %8470 = vst.msk [vmem:[#allocation3 + $0x224] sm:$0xf] %vm1358, %v8297
        %8471 = vst.msk [vmem:[#allocation3 + $0x230] sm:$0xf] %vm1358, %v8301
        %8472 = vst.msk [vmem:[#allocation3 + $0x23c] sm:$0xf] %vm1358, %v8304
        %8473 = vst.msk [vmem:[#allocation3 + $0x248] sm:$0xf] %vm1358, %v8308
        %8474 = vst.msk [vmem:[#allocation3 + $0x254] sm:$0xf] %vm1358, %v8311
        %8475 = vst.msk [vmem:[#allocation3 + $0x260] sm:$0xf] %vm1358, %v8315
        %8476 = vst.msk [vmem:[#allocation3 + $0x26c] sm:$0xf] %vm1358, %v8318
        %8477 = vst.msk [vmem:[#allocation3 + $0x278] sm:$0xf] %vm1358, %v8322
        %8478 = vst.msk [vmem:[#allocation3 + $0x284] sm:$0xf] %vm1358, %v8325
        %8479 = vst.msk [vmem:[#allocation3 + $0x290] sm:$0xf] %vm1358, %v8329
        %8480 = vst.msk [vmem:[#allocation3 + $0x29c] sm:$0xf] %vm1358, %v8332
        %8481 = vst.msk [vmem:[#allocation3 + $0x2a8] sm:$0xf] %vm1358, %v8336
        %8482 = vst.msk [vmem:[#allocation3 + $0x2b4] sm:$0xf] %vm1358, %v8339
        %8483 = vst.msk [vmem:[#allocation3 + $0x2c0] sm:$0xf] %vm1358, %v8343
        %8484 = vst.msk [vmem:[#allocation3 + $0x2cc] sm:$0xf] %vm1358, %v8346
        %8485 = vst.msk [vmem:[#allocation3 + $0x2d8] sm:$0xf] %vm1358, %v8350
        %8486 = vst.msk [vmem:[#allocation3 + $0x2e4] sm:$0xf] %vm1358, %v8353
        %8487 = vst.msk [vmem:[#allocation3 + $0x2f0] sm:$0xf] %vm1358, %v8357
        %8488 = vst.msk [vmem:[#allocation3 + $0x2fc] sm:$0xf] %vm1358, %v8360
        %v8489 = vld [vmem:[#allocation3] sm:$0xff]
        %v8490 = vld [vmem:[#allocation3 + $0x8] sm:$0xf]
        %v8491 = vld [vmem:[#allocation3 + $0xc] sm:$0xff]
        %v8492 = vld [vmem:[#allocation3 + $0x14] sm:$0xf]
        %v8493 = vld [vmem:[#allocation3 + $0x18] sm:$0xff]
        %v8494 = vld [vmem:[#allocation3 + $0x20] sm:$0xf]
        %v8495 = vld [vmem:[#allocation3 + $0x24] sm:$0xff]
        %v8496 = vld [vmem:[#allocation3 + $0x2c] sm:$0xf]
        %v8497 = vld [vmem:[#allocation3 + $0x30] sm:$0xff]
        %v8498 = vld [vmem:[#allocation3 + $0x38] sm:$0xf]
        %v8499 = vld [vmem:[#allocation3 + $0x3c] sm:$0xff]
        %v8500 = vld [vmem:[#allocation3 + $0x44] sm:$0xf]
        %v8501 = vld [vmem:[#allocation3 + $0x48] sm:$0xff]
        %v8502 = vld [vmem:[#allocation3 + $0x50] sm:$0xf]
        %v8503 = vld [vmem:[#allocation3 + $0x54] sm:$0xff]
        %v8504 = vld [vmem:[#allocation3 + $0x5c] sm:$0xf]
        %v8505 = vld [vmem:[#allocation3 + $0x60] sm:$0xff]
        %v8506 = vld [vmem:[#allocation3 + $0x68] sm:$0xf]
        %v8507 = vld [vmem:[#allocation3 + $0x6c] sm:$0xff]
        %v8508 = vld [vmem:[#allocation3 + $0x74] sm:$0xf]
        %v8509 = vld [vmem:[#allocation3 + $0x78] sm:$0xff]
        %v8510 = vld [vmem:[#allocation3 + $0x80] sm:$0xf]
        %v8511 = vld [vmem:[#allocation3 + $0x84] sm:$0xff]
        %v8512 = vld [vmem:[#allocation3 + $0x8c] sm:$0xf]
        %v8513 = vld [vmem:[#allocation3 + $0x90] sm:$0xff]
        %v8514 = vld [vmem:[#allocation3 + $0x98] sm:$0xf]
        %v8515 = vld [vmem:[#allocation3 + $0x9c] sm:$0xff]
        %v8516 = vld [vmem:[#allocation3 + $0xa4] sm:$0xf]
        %v8517 = vld [vmem:[#allocation3 + $0xa8] sm:$0xff]
        %v8518 = vld [vmem:[#allocation3 + $0xb0] sm:$0xf]
        %v8519 = vld [vmem:[#allocation3 + $0xb4] sm:$0xff]
        %v8520 = vld [vmem:[#allocation3 + $0xbc] sm:$0xf]
        %v8521 = vld [vmem:[#allocation3 + $0xc0] sm:$0xff]
        %v8522 = vld [vmem:[#allocation3 + $0xc8] sm:$0xf]
        %v8523 = vld [vmem:[#allocation3 + $0xcc] sm:$0xff]
        %v8524 = vld [vmem:[#allocation3 + $0xd4] sm:$0xf]
        %v8525 = vld [vmem:[#allocation3 + $0xd8] sm:$0xff]
        %v8526 = vld [vmem:[#allocation3 + $0xe0] sm:$0xf]
        %v8527 = vld [vmem:[#allocation3 + $0xe4] sm:$0xff]
        %v8528 = vld [vmem:[#allocation3 + $0xec] sm:$0xf]
        %v8529 = vld [vmem:[#allocation3 + $0xf0] sm:$0xff]
        %v8530 = vld [vmem:[#allocation3 + $0xf8] sm:$0xf]
        %v8531 = vld [vmem:[#allocation3 + $0xfc] sm:$0xff]
        %v8532 = vld [vmem:[#allocation3 + $0x104] sm:$0xf]
        %v8533 = vld [vmem:[#allocation3 + $0x108] sm:$0xff]
        %v8534 = vld [vmem:[#allocation3 + $0x110] sm:$0xf]
        %v8535 = vld [vmem:[#allocation3 + $0x114] sm:$0xff]
        %v8536 = vld [vmem:[#allocation3 + $0x11c] sm:$0xf]
        %v8537 = vld [vmem:[#allocation3 + $0x120] sm:$0xff]
        %v8538 = vld [vmem:[#allocation3 + $0x128] sm:$0xf]
        %v8539 = vld [vmem:[#allocation3 + $0x12c] sm:$0xff]
        %v8540 = vld [vmem:[#allocation3 + $0x134] sm:$0xf]
        %v8541 = vld [vmem:[#allocation3 + $0x138] sm:$0xff]
        %v8542 = vld [vmem:[#allocation3 + $0x140] sm:$0xf]
        %v8543 = vld [vmem:[#allocation3 + $0x144] sm:$0xff]
        %v8544 = vld [vmem:[#allocation3 + $0x14c] sm:$0xf]
        %v8545 = vld [vmem:[#allocation3 + $0x150] sm:$0xff]
        %v8546 = vld [vmem:[#allocation3 + $0x158] sm:$0xf]
        %v8547 = vld [vmem:[#allocation3 + $0x15c] sm:$0xff]
        %v8548 = vld [vmem:[#allocation3 + $0x164] sm:$0xf]
        %v8549 = vld [vmem:[#allocation3 + $0x168] sm:$0xff]
        %v8550 = vld [vmem:[#allocation3 + $0x170] sm:$0xf]
        %v8551 = vld [vmem:[#allocation3 + $0x174] sm:$0xff]
        %v8552 = vld [vmem:[#allocation3 + $0x17c] sm:$0xf]
        %v8553 = vld [vmem:[#allocation3 + $0x180] sm:$0xff]
        %v8554 = vld [vmem:[#allocation3 + $0x188] sm:$0xf]
        %v8555 = vld [vmem:[#allocation3 + $0x18c] sm:$0xff]
        %v8556 = vld [vmem:[#allocation3 + $0x194] sm:$0xf]
        %v8557 = vld [vmem:[#allocation3 + $0x198] sm:$0xff]
        %v8558 = vld [vmem:[#allocation3 + $0x1a0] sm:$0xf]
        %v8559 = vld [vmem:[#allocation3 + $0x1a4] sm:$0xff]
        %v8560 = vld [vmem:[#allocation3 + $0x1ac] sm:$0xf]
        %v8561 = vld [vmem:[#allocation3 + $0x1b0] sm:$0xff]
        %v8562 = vld [vmem:[#allocation3 + $0x1b8] sm:$0xf]
        %v8563 = vld [vmem:[#allocation3 + $0x1bc] sm:$0xff]
        %v8564 = vld [vmem:[#allocation3 + $0x1c4] sm:$0xf]
        %v8565 = vld [vmem:[#allocation3 + $0x1c8] sm:$0xff]
        %v8566 = vld [vmem:[#allocation3 + $0x1d0] sm:$0xf]
        %v8567 = vld [vmem:[#allocation3 + $0x1d4] sm:$0xff]
        %v8568 = vld [vmem:[#allocation3 + $0x1dc] sm:$0xf]
        %v8569 = vld [vmem:[#allocation3 + $0x1e0] sm:$0xff]
        %v8570 = vld [vmem:[#allocation3 + $0x1e8] sm:$0xf]
        %v8571 = vld [vmem:[#allocation3 + $0x1ec] sm:$0xff]
        %v8572 = vld [vmem:[#allocation3 + $0x1f4] sm:$0xf]
        %v8573 = vld [vmem:[#allocation3 + $0x1f8] sm:$0xff]
        %v8574 = vld [vmem:[#allocation3 + $0x200] sm:$0xf]
        %v8575 = vld [vmem:[#allocation3 + $0x204] sm:$0xff]
        %v8576 = vld [vmem:[#allocation3 + $0x20c] sm:$0xf]
        %v8577 = vld [vmem:[#allocation3 + $0x210] sm:$0xff]
        %v8578 = vld [vmem:[#allocation3 + $0x218] sm:$0xf]
        %v8579 = vld [vmem:[#allocation3 + $0x21c] sm:$0xff]
        %v8580 = vld [vmem:[#allocation3 + $0x224] sm:$0xf]
        %v8581 = vld [vmem:[#allocation3 + $0x228] sm:$0xff]
        %v8582 = vld [vmem:[#allocation3 + $0x230] sm:$0xf]
        %v8583 = vld [vmem:[#allocation3 + $0x234] sm:$0xff]
        %v8584 = vld [vmem:[#allocation3 + $0x23c] sm:$0xf]
        %v8585 = vld [vmem:[#allocation3 + $0x240] sm:$0xff]
        %v8586 = vld [vmem:[#allocation3 + $0x248] sm:$0xf]
        %v8587 = vld [vmem:[#allocation3 + $0x24c] sm:$0xff]
        %v8588 = vld [vmem:[#allocation3 + $0x254] sm:$0xf]
        %v8589 = vld [vmem:[#allocation3 + $0x258] sm:$0xff]
        %v8590 = vld [vmem:[#allocation3 + $0x260] sm:$0xf]
        %v8591 = vld [vmem:[#allocation3 + $0x264] sm:$0xff]
        %v8592 = vld [vmem:[#allocation3 + $0x26c] sm:$0xf]
        %v8593 = vld [vmem:[#allocation3 + $0x270] sm:$0xff]
        %v8594 = vld [vmem:[#allocation3 + $0x278] sm:$0xf]
        %v8595 = vld [vmem:[#allocation3 + $0x27c] sm:$0xff]
        %v8596 = vld [vmem:[#allocation3 + $0x284] sm:$0xf]
        %v8597 = vld [vmem:[#allocation3 + $0x288] sm:$0xff]
        %v8598 = vld [vmem:[#allocation3 + $0x290] sm:$0xf]
        %v8599 = vld [vmem:[#allocation3 + $0x294] sm:$0xff]
        %v8600 = vld [vmem:[#allocation3 + $0x29c] sm:$0xf]
        %v8601 = vld [vmem:[#allocation3 + $0x2a0] sm:$0xff]
        %v8602 = vld [vmem:[#allocation3 + $0x2a8] sm:$0xf]
        %v8603 = vld [vmem:[#allocation3 + $0x2ac] sm:$0xff]
        %v8604 = vld [vmem:[#allocation3 + $0x2b4] sm:$0xf]
        %v8605 = vld [vmem:[#allocation3 + $0x2b8] sm:$0xff]
        %v8606 = vld [vmem:[#allocation3 + $0x2c0] sm:$0xf]
        %v8607 = vld [vmem:[#allocation3 + $0x2c4] sm:$0xff]
        %v8608 = vld [vmem:[#allocation3 + $0x2cc] sm:$0xf]
        %v8609 = vld [vmem:[#allocation3 + $0x2d0] sm:$0xff]
        %v8610 = vld [vmem:[#allocation3 + $0x2d8] sm:$0xf]
        %v8611 = vld [vmem:[#allocation3 + $0x2dc] sm:$0xff]
        %v8612 = vld [vmem:[#allocation3 + $0x2e4] sm:$0xf]
        %v8613 = vld [vmem:[#allocation3 + $0x2e8] sm:$0xff]
        %v8614 = vld [vmem:[#allocation3 + $0x2f0] sm:$0xf]
        %v8615 = vld [vmem:[#allocation3 + $0x2f4] sm:$0xff]
        %v8616 = vld [vmem:[#allocation3 + $0x2fc] sm:$0xf]
        %v8617 = vld [vmem:[%s8] sm:$0xf]
        %v8618 = vld [vmem:[%s8 + $0x4] sm:$0xf]
        %v8619 = vld [vmem:[%s8 + $0x8] sm:$0xf]
        %v8620 = vld [vmem:[%s8 + $0xc] sm:$0xf]
        %v8621 = vld [vmem:[%s8 + $0x10] sm:$0xf]
        %v8622 = vld [vmem:[%s8 + $0x14] sm:$0xf]
        %v8623 = vld [vmem:[%s8 + $0x18] sm:$0xf]
        %v8624 = vld [vmem:[%s8 + $0x1c] sm:$0xf]
        %v8625 = vld [vmem:[%s8 + $0x20] sm:$0xf]
        %v8626 = vld [vmem:[%s8 + $0x24] sm:$0xf]
        %v8627 = vld [vmem:[%s8 + $0x28] sm:$0xf]
        %v8628 = vld [vmem:[%s8 + $0x2c] sm:$0xf]
        %v8629 = vld [vmem:[%s8 + $0x30] sm:$0xf]
        %v8630 = vld [vmem:[%s8 + $0x34] sm:$0xf]
        %v8631 = vld [vmem:[%s8 + $0x38] sm:$0xf]
        %v8632 = vld [vmem:[%s8 + $0x3c] sm:$0xf]
        %v8633 = vld [vmem:[%s8 + $0x40] sm:$0xf]
        %v8634 = vld [vmem:[%s8 + $0x44] sm:$0xf]
        %v8635 = vld [vmem:[%s8 + $0x48] sm:$0xf]
        %v8636 = vld [vmem:[%s8 + $0x4c] sm:$0xf]
        %v8637 = vld [vmem:[%s8 + $0x50] sm:$0xf]
        %v8638 = vld [vmem:[%s8 + $0x54] sm:$0xf]
        %v8639 = vld [vmem:[%s8 + $0x58] sm:$0xf]
        %v8640 = vld [vmem:[%s8 + $0x5c] sm:$0xf]
        %v8641 = vld [vmem:[%s8 + $0x60] sm:$0xf]
        %v8642 = vld [vmem:[%s8 + $0x64] sm:$0xf]
        %v8643 = vld [vmem:[%s8 + $0x68] sm:$0xf]
        %v8644 = vld [vmem:[%s8 + $0x6c] sm:$0xf]
        %v8645 = vld [vmem:[%s8 + $0x70] sm:$0xf]
        %v8646 = vld [vmem:[%s8 + $0x74] sm:$0xf]
        %v8647 = vld [vmem:[%s8 + $0x78] sm:$0xf]
        %v8648 = vld [vmem:[%s8 + $0x7c] sm:$0xf]
        %v8649 = vld [vmem:[%s8 + $0x80] sm:$0xf]
        %v8650 = vld [vmem:[%s8 + $0x84] sm:$0xf]
        %v8651 = vld [vmem:[%s8 + $0x88] sm:$0xf]
        %v8652 = vld [vmem:[%s8 + $0x8c] sm:$0xf]
        %v8653 = vld [vmem:[%s6] sm:$0x1]
        %v8655 = vperm.slane %v8653, 0
        %v8785 = vunpack.c.l.b16 %v8489
        %v8786 = vunpack.c.h.b16 %v8489
        %v8787 = vunpack.c.l.b16 %v8490
        %v8788 = vunpack.c.l.b16 %v8491
        %v8789 = vunpack.c.h.b16 %v8491
        %v8790 = vunpack.c.l.b16 %v8492
        %v8791 = vunpack.c.l.b16 %v8493
        %v8792 = vunpack.c.h.b16 %v8493
        %v8793 = vunpack.c.l.b16 %v8494
        %v8794 = vunpack.c.l.b16 %v8495
        %v8795 = vunpack.c.h.b16 %v8495
        %v8796 = vunpack.c.l.b16 %v8496
        %v8797 = vunpack.c.l.b16 %v8497
        %v8798 = vunpack.c.h.b16 %v8497
        %v8799 = vunpack.c.l.b16 %v8498
        %v8800 = vunpack.c.l.b16 %v8499
        %v8801 = vunpack.c.h.b16 %v8499
        %v8802 = vunpack.c.l.b16 %v8500
        %v8803 = vunpack.c.l.b16 %v8501
        %v8804 = vunpack.c.h.b16 %v8501
        %v8805 = vunpack.c.l.b16 %v8502
        %v8806 = vunpack.c.l.b16 %v8503
        %v8807 = vunpack.c.h.b16 %v8503
        %v8808 = vunpack.c.l.b16 %v8504
        %v8809 = vunpack.c.l.b16 %v8505
        %v8810 = vunpack.c.h.b16 %v8505
        %v8811 = vunpack.c.l.b16 %v8506
        %v8812 = vunpack.c.l.b16 %v8507
        %v8813 = vunpack.c.h.b16 %v8507
        %v8814 = vunpack.c.l.b16 %v8508
        %v8815 = vunpack.c.l.b16 %v8509
        %v8816 = vunpack.c.h.b16 %v8509
        %v8817 = vunpack.c.l.b16 %v8510
        %v8818 = vunpack.c.l.b16 %v8511
        %v8819 = vunpack.c.h.b16 %v8511
        %v8820 = vunpack.c.l.b16 %v8512
        %v8821 = vunpack.c.l.b16 %v8513
        %v8822 = vunpack.c.h.b16 %v8513
        %v8823 = vunpack.c.l.b16 %v8514
        %v8824 = vunpack.c.l.b16 %v8515
        %v8825 = vunpack.c.h.b16 %v8515
        %v8826 = vunpack.c.l.b16 %v8516
        %v8827 = vunpack.c.l.b16 %v8517
        %v8828 = vunpack.c.h.b16 %v8517
        %v8829 = vunpack.c.l.b16 %v8518
        %v8830 = vunpack.c.l.b16 %v8519
        %v8831 = vunpack.c.h.b16 %v8519
        %v8832 = vunpack.c.l.b16 %v8520
        %v8833 = vunpack.c.l.b16 %v8521
        %v8834 = vunpack.c.h.b16 %v8521
        %v8835 = vunpack.c.l.b16 %v8522
        %v8836 = vunpack.c.l.b16 %v8523
        %v8837 = vunpack.c.h.b16 %v8523
        %v8838 = vunpack.c.l.b16 %v8524
        %v8839 = vunpack.c.l.b16 %v8525
        %v8840 = vunpack.c.h.b16 %v8525
        %v8841 = vunpack.c.l.b16 %v8526
        %v8842 = vunpack.c.l.b16 %v8527
        %v8843 = vunpack.c.h.b16 %v8527
        %v8844 = vunpack.c.l.b16 %v8528
        %v8845 = vunpack.c.l.b16 %v8529
        %v8846 = vunpack.c.h.b16 %v8529
        %v8847 = vunpack.c.l.b16 %v8530
        %v8848 = vunpack.c.l.b16 %v8531
        %v8849 = vunpack.c.h.b16 %v8531
        %v8850 = vunpack.c.l.b16 %v8532
        %v8851 = vunpack.c.l.b16 %v8533
        %v8852 = vunpack.c.h.b16 %v8533
        %v8853 = vunpack.c.l.b16 %v8534
        %v8854 = vunpack.c.l.b16 %v8535
        %v8855 = vunpack.c.h.b16 %v8535
        %v8856 = vunpack.c.l.b16 %v8536
        %v8857 = vunpack.c.l.b16 %v8537
        %v8858 = vunpack.c.h.b16 %v8537
        %v8859 = vunpack.c.l.b16 %v8538
        %v8860 = vunpack.c.l.b16 %v8539
        %v8861 = vunpack.c.h.b16 %v8539
        %v8862 = vunpack.c.l.b16 %v8540
        %v8863 = vunpack.c.l.b16 %v8541
        %v8864 = vunpack.c.h.b16 %v8541
        %v8865 = vunpack.c.l.b16 %v8542
        %v8866 = vunpack.c.l.b16 %v8543
        %v8867 = vunpack.c.h.b16 %v8543
        %v8868 = vunpack.c.l.b16 %v8544
        %v8869 = vunpack.c.l.b16 %v8545
        %v8870 = vunpack.c.h.b16 %v8545
        %v8871 = vunpack.c.l.b16 %v8546
        %v8872 = vunpack.c.l.b16 %v8547
        %v8873 = vunpack.c.h.b16 %v8547
        %v8874 = vunpack.c.l.b16 %v8548
        %v8875 = vunpack.c.l.b16 %v8549
        %v8876 = vunpack.c.h.b16 %v8549
        %v8877 = vunpack.c.l.b16 %v8550
        %v8878 = vunpack.c.l.b16 %v8551
        %v8879 = vunpack.c.h.b16 %v8551
        %v8880 = vunpack.c.l.b16 %v8552
        %v8881 = vunpack.c.l.b16 %v8553
        %v8882 = vunpack.c.h.b16 %v8553
        %v8883 = vunpack.c.l.b16 %v8554
        %v8884 = vunpack.c.l.b16 %v8555
        %v8885 = vunpack.c.h.b16 %v8555
        %v8886 = vunpack.c.l.b16 %v8556
        %v8887 = vunpack.c.l.b16 %v8557
        %v8888 = vunpack.c.h.b16 %v8557
        %v8889 = vunpack.c.l.b16 %v8558
        %v8890 = vunpack.c.l.b16 %v8559
        %v8891 = vunpack.c.h.b16 %v8559
        %v8892 = vunpack.c.l.b16 %v8560
        %v8893 = vunpack.c.l.b16 %v8561
        %v8894 = vunpack.c.h.b16 %v8561
        %v8895 = vunpack.c.l.b16 %v8562
        %v8896 = vunpack.c.l.b16 %v8563
        %v8897 = vunpack.c.h.b16 %v8563
        %v8898 = vunpack.c.l.b16 %v8564
        %v8899 = vunpack.c.l.b16 %v8565
        %v8900 = vunpack.c.h.b16 %v8565
        %v8901 = vunpack.c.l.b16 %v8566
        %v8902 = vunpack.c.l.b16 %v8567
        %v8903 = vunpack.c.h.b16 %v8567
        %v8904 = vunpack.c.l.b16 %v8568
        %v8905 = vunpack.c.l.b16 %v8569
        %v8906 = vunpack.c.h.b16 %v8569
        %v8907 = vunpack.c.l.b16 %v8570
        %v8908 = vunpack.c.l.b16 %v8571
        %v8909 = vunpack.c.h.b16 %v8571
        %v8910 = vunpack.c.l.b16 %v8572
        %v8911 = vunpack.c.l.b16 %v8573
        %v8912 = vunpack.c.h.b16 %v8573
        %v8913 = vunpack.c.l.b16 %v8574
        %v8914 = vunpack.c.l.b16 %v8575
        %v8915 = vunpack.c.h.b16 %v8575
        %v8916 = vunpack.c.l.b16 %v8576
        %v8917 = vunpack.c.l.b16 %v8577
        %v8918 = vunpack.c.h.b16 %v8577
        %v8919 = vunpack.c.l.b16 %v8578
        %v8920 = vunpack.c.l.b16 %v8579
        %v8921 = vunpack.c.h.b16 %v8579
        %v8922 = vunpack.c.l.b16 %v8580
        %v8923 = vunpack.c.l.b16 %v8581
        %v8924 = vunpack.c.h.b16 %v8581
        %v8925 = vunpack.c.l.b16 %v8582
        %v8926 = vunpack.c.l.b16 %v8583
        %v8927 = vunpack.c.h.b16 %v8583
        %v8928 = vunpack.c.l.b16 %v8584
        %v8929 = vunpack.c.l.b16 %v8585
        %v8930 = vunpack.c.h.b16 %v8585
        %v8931 = vunpack.c.l.b16 %v8586
        %v8932 = vunpack.c.l.b16 %v8587
        %v8933 = vunpack.c.h.b16 %v8587
        %v8934 = vunpack.c.l.b16 %v8588
        %v8935 = vunpack.c.l.b16 %v8589
        %v8936 = vunpack.c.h.b16 %v8589
        %v8937 = vunpack.c.l.b16 %v8590
        %v8938 = vunpack.c.l.b16 %v8591
        %v8939 = vunpack.c.h.b16 %v8591
        %v8940 = vunpack.c.l.b16 %v8592
        %v8941 = vunpack.c.l.b16 %v8593
        %v8942 = vunpack.c.h.b16 %v8593
        %v8943 = vunpack.c.l.b16 %v8594
        %v8944 = vunpack.c.l.b16 %v8595
        %v8945 = vunpack.c.h.b16 %v8595
        %v8946 = vunpack.c.l.b16 %v8596
        %v8947 = vunpack.c.l.b16 %v8597
        %v8948 = vunpack.c.h.b16 %v8597
        %v8949 = vunpack.c.l.b16 %v8598
        %v8950 = vunpack.c.l.b16 %v8599
        %v8951 = vunpack.c.h.b16 %v8599
        %v8952 = vunpack.c.l.b16 %v8600
        %v8953 = vunpack.c.l.b16 %v8601
        %v8954 = vunpack.c.h.b16 %v8601
        %v8955 = vunpack.c.l.b16 %v8602
        %v8956 = vunpack.c.l.b16 %v8603
        %v8957 = vunpack.c.h.b16 %v8603
        %v8958 = vunpack.c.l.b16 %v8604
        %v8959 = vunpack.c.l.b16 %v8605
        %v8960 = vunpack.c.h.b16 %v8605
        %v8961 = vunpack.c.l.b16 %v8606
        %v8962 = vunpack.c.l.b16 %v8607
        %v8963 = vunpack.c.h.b16 %v8607
        %v8964 = vunpack.c.l.b16 %v8608
        %v8965 = vunpack.c.l.b16 %v8609
        %v8966 = vunpack.c.h.b16 %v8609
        %v8967 = vunpack.c.l.b16 %v8610
        %v8968 = vunpack.c.l.b16 %v8611
        %v8969 = vunpack.c.h.b16 %v8611
        %v8970 = vunpack.c.l.b16 %v8612
        %v8971 = vunpack.c.l.b16 %v8613
        %v8972 = vunpack.c.h.b16 %v8613
        %v8973 = vunpack.c.l.b16 %v8614
        %v8974 = vunpack.c.l.b16 %v8615
        %v8975 = vunpack.c.h.b16 %v8615
        %v8976 = vunpack.c.l.b16 %v8616
        %v8977 = vpack.c.b16 %v8788, %v8785
        %v8978 = vpack.c.b16 %v8789, %v8786
        %v8979 = vpack.c.b16 %v8790, %v8787
        %v8980 = vpack.c.b16 %v8794, %v8791
        %v8981 = vpack.c.b16 %v8795, %v8792
        %v8982 = vpack.c.b16 %v8796, %v8793
        %v8983 = vpack.c.b16 %v8800, %v8797
        %v8984 = vpack.c.b16 %v8801, %v8798
        %v8985 = vpack.c.b16 %v8802, %v8799
        %v8986 = vpack.c.b16 %v8806, %v8803
        %v8987 = vpack.c.b16 %v8807, %v8804
        %v8988 = vpack.c.b16 %v8808, %v8805
        %v8989 = vpack.c.b16 %v8812, %v8809
        %v8990 = vpack.c.b16 %v8813, %v8810
        %v8991 = vpack.c.b16 %v8814, %v8811
        %v8992 = vpack.c.b16 %v8818, %v8815
        %v8993 = vpack.c.b16 %v8819, %v8816
        %v8994 = vpack.c.b16 %v8820, %v8817
        %v8995 = vpack.c.b16 %v8824, %v8821
        %v8996 = vpack.c.b16 %v8825, %v8822
        %v8997 = vpack.c.b16 %v8826, %v8823
        %v8998 = vpack.c.b16 %v8830, %v8827
        %v8999 = vpack.c.b16 %v8831, %v8828
        %v9000 = vpack.c.b16 %v8832, %v8829
        %v9001 = vpack.c.b16 %v8836, %v8833
        %v9002 = vpack.c.b16 %v8837, %v8834
        %v9003 = vpack.c.b16 %v8838, %v8835
        %v9004 = vpack.c.b16 %v8842, %v8839
        %v9005 = vpack.c.b16 %v8843, %v8840
        %v9006 = vpack.c.b16 %v8844, %v8841
        %v9007 = vpack.c.b16 %v8848, %v8845
        %v9008 = vpack.c.b16 %v8849, %v8846
        %v9009 = vpack.c.b16 %v8850, %v8847
        %v9010 = vpack.c.b16 %v8854, %v8851
        %v9011 = vpack.c.b16 %v8855, %v8852
        %v9012 = vpack.c.b16 %v8856, %v8853
        %v9013 = vpack.c.b16 %v8860, %v8857
        %v9014 = vpack.c.b16 %v8861, %v8858
        %v9015 = vpack.c.b16 %v8862, %v8859
        %v9016 = vpack.c.b16 %v8866, %v8863
        %v9017 = vpack.c.b16 %v8867, %v8864
        %v9018 = vpack.c.b16 %v8868, %v8865
        %v9019 = vpack.c.b16 %v8872, %v8869
        %v9020 = vpack.c.b16 %v8873, %v8870
        %v9021 = vpack.c.b16 %v8874, %v8871
        %v9022 = vpack.c.b16 %v8878, %v8875
        %v9023 = vpack.c.b16 %v8879, %v8876
        %v9024 = vpack.c.b16 %v8880, %v8877
        %v9025 = vpack.c.b16 %v8884, %v8881
        %v9026 = vpack.c.b16 %v8885, %v8882
        %v9027 = vpack.c.b16 %v8886, %v8883
        %v9028 = vpack.c.b16 %v8890, %v8887
        %v9029 = vpack.c.b16 %v8891, %v8888
        %v9030 = vpack.c.b16 %v8892, %v8889
        %v9031 = vpack.c.b16 %v8896, %v8893
        %v9032 = vpack.c.b16 %v8897, %v8894
        %v9033 = vpack.c.b16 %v8898, %v8895
        %v9034 = vpack.c.b16 %v8902, %v8899
        %v9035 = vpack.c.b16 %v8903, %v8900
        %v9036 = vpack.c.b16 %v8904, %v8901
        %v9037 = vpack.c.b16 %v8908, %v8905
        %v9038 = vpack.c.b16 %v8909, %v8906
        %v9039 = vpack.c.b16 %v8910, %v8907
        %v9040 = vpack.c.b16 %v8914, %v8911
        %v9041 = vpack.c.b16 %v8915, %v8912
        %v9042 = vpack.c.b16 %v8916, %v8913
        %v9043 = vpack.c.b16 %v8920, %v8917
        %v9044 = vpack.c.b16 %v8921, %v8918
        %v9045 = vpack.c.b16 %v8922, %v8919
        %v9046 = vpack.c.b16 %v8926, %v8923
        %v9047 = vpack.c.b16 %v8927, %v8924
        %v9048 = vpack.c.b16 %v8928, %v8925
        %v9049 = vpack.c.b16 %v8932, %v8929
        %v9050 = vpack.c.b16 %v8933, %v8930
        %v9051 = vpack.c.b16 %v8934, %v8931
        %v9052 = vpack.c.b16 %v8938, %v8935
        %v9053 = vpack.c.b16 %v8939, %v8936
        %v9054 = vpack.c.b16 %v8940, %v8937
        %v9055 = vpack.c.b16 %v8944, %v8941
        %v9056 = vpack.c.b16 %v8945, %v8942
        %v9057 = vpack.c.b16 %v8946, %v8943
        %v9058 = vpack.c.b16 %v8950, %v8947
        %v9059 = vpack.c.b16 %v8951, %v8948
        %v9060 = vpack.c.b16 %v8952, %v8949
        %v9061 = vpack.c.b16 %v8956, %v8953
        %v9062 = vpack.c.b16 %v8957, %v8954
        %v9063 = vpack.c.b16 %v8958, %v8955
        %v9064 = vpack.c.b16 %v8962, %v8959
        %v9065 = vpack.c.b16 %v8963, %v8960
        %v9066 = vpack.c.b16 %v8964, %v8961
        %v9067 = vpack.c.b16 %v8968, %v8965
        %v9068 = vpack.c.b16 %v8969, %v8966
        %v9069 = vpack.c.b16 %v8970, %v8967
        %v9070 = vpack.c.b16 %v8974, %v8971
        %v9071 = vpack.c.b16 %v8975, %v8972
        %v9072 = vpack.c.b16 %v8976, %v8973
        %v9173 = vunpack.c.l.b16 %v8617
        %v9174 = vunpack.c.l.b16 %v8618
        %v9175 = vunpack.c.l.b16 %v8619
        %v9176 = vunpack.c.l.b16 %v8620
        %v9177 = vunpack.c.l.b16 %v8621
        %v9178 = vunpack.c.l.b16 %v8622
        %v9179 = vunpack.c.l.b16 %v8623
        %v9180 = vunpack.c.l.b16 %v8624
        %v9181 = vunpack.c.l.b16 %v8625
        %v9182 = vunpack.c.l.b16 %v8626
        %v9183 = vunpack.c.l.b16 %v8627
        %v9184 = vunpack.c.l.b16 %v8628
        %v9185 = vunpack.c.l.b16 %v8629
        %v9186 = vunpack.c.l.b16 %v8630
        %v9187 = vunpack.c.l.b16 %v8631
        %v9188 = vunpack.c.l.b16 %v8632
        %v9189 = vunpack.c.l.b16 %v8633
        %v9190 = vunpack.c.l.b16 %v8634
        %v9191 = vunpack.c.l.b16 %v8635
        %v9192 = vunpack.c.l.b16 %v8636
        %v9193 = vunpack.c.l.b16 %v8637
        %v9194 = vunpack.c.l.b16 %v8638
        %v9195 = vunpack.c.l.b16 %v8639
        %v9196 = vunpack.c.l.b16 %v8640
        %v9197 = vunpack.c.l.b16 %v8641
        %v9198 = vunpack.c.l.b16 %v8642
        %v9199 = vunpack.c.l.b16 %v8643
        %v9200 = vunpack.c.l.b16 %v8644
        %v9201 = vunpack.c.l.b16 %v8645
        %v9202 = vunpack.c.l.b16 %v8646
        %v9203 = vunpack.c.l.b16 %v8647
        %v9204 = vunpack.c.l.b16 %v8648
        %v9205 = vunpack.c.l.b16 %v8649
        %v9206 = vunpack.c.l.b16 %v8650
        %v9207 = vunpack.c.l.b16 %v8651
        %v9208 = vunpack.c.l.b16 %v8652
        %v9209 = vpack.c.b16 %v9174, %v9173
        %v9210 = vpack.c.b16 %v9176, %v9175
        %v9211 = vpack.c.b16 %v9178, %v9177
        %v9212 = vpack.c.b16 %v9180, %v9179
        %v9213 = vpack.c.b16 %v9182, %v9181
        %v9214 = vpack.c.b16 %v9184, %v9183
        %v9215 = vpack.c.b16 %v9186, %v9185
        %v9216 = vpack.c.b16 %v9188, %v9187
        %v9217 = vpack.c.b16 %v9190, %v9189
        %v9218 = vpack.c.b16 %v9192, %v9191
        %v9219 = vpack.c.b16 %v9194, %v9193
        %v9220 = vpack.c.b16 %v9196, %v9195
        %v9221 = vpack.c.b16 %v9198, %v9197
        %v9222 = vpack.c.b16 %v9200, %v9199
        %v9223 = vpack.c.b16 %v9202, %v9201
        %v9224 = vpack.c.b16 %v9204, %v9203
        %v9225 = vpack.c.b16 %v9206, %v9205
        %v9226 = vpack.c.b16 %v9208, %v9207
        %v9246 = vsel %vm964, %v8979, 0
        %v9249 = vsel %vm964, %v8982, 0
        %v9252 = vsel %vm964, %v8985, 0
        %v9255 = vsel %vm964, %v8988, 0
        %v9258 = vsel %vm964, %v8991, 0
        %v9261 = vsel %vm964, %v8994, 0
        %v9264 = vsel %vm964, %v8997, 0
        %v9267 = vsel %vm964, %v9000, 0
        %v9270 = vsel %vm964, %v9003, 0
        %v9273 = vsel %vm964, %v9006, 0
        %v9276 = vsel %vm964, %v9009, 0
        %v9279 = vsel %vm964, %v9012, 0
        %v9282 = vsel %vm964, %v9015, 0
        %v9285 = vsel %vm964, %v9018, 0
        %v9288 = vsel %vm964, %v9021, 0
        %v9291 = vsel %vm964, %v9024, 0
        %v9294 = vsel %vm964, %v9027, 0
        %v9297 = vsel %vm964, %v9030, 0
        %v9300 = vsel %vm964, %v9033, 0
        %v9303 = vsel %vm964, %v9036, 0
        %v9306 = vsel %vm964, %v9039, 0
        %v9309 = vsel %vm964, %v9042, 0
        %v9312 = vsel %vm964, %v9045, 0
        %v9315 = vsel %vm964, %v9048, 0
        %v9318 = vsel %vm964, %v9051, 0
        %v9321 = vsel %vm964, %v9054, 0
        %v9324 = vsel %vm964, %v9057, 0
        %v9327 = vsel %vm964, %v9060, 0
        %v9330 = vsel %vm964, %v9063, 0
        %v9333 = vsel %vm964, %v9066, 0
        %v9336 = vsel %vm964, %v9069, 0
        %v9339 = vsel %vm964, %v9072, 0
        %9341 = vmatpush.bf16.msra.mxu0 %v9216
        %9342 = vmatpush.bf16.msra.mxu0 %v9215
        %9343 = vmatpush.bf16.msra.mxu0 %v9214
        %9344 = vmatpush.bf16.msra.mxu0 %v9213
        %9345 = vmatpush.bf16.msra.mxu0 %v9212
        %9346 = vmatpush.bf16.msra.mxu0 %v9211
        %9347 = vmatpush.bf16.msra.mxu0 %v9210
        %9348 = vmatpush.bf16.msra.mxu0 %v9209
        %9349 = vmatmul.bf16.gmra.mxu0 %v8977
        %v9350 = vpop.f32.mrf.mxu0
        %v9351 = vadd.f32 %v8655, %v9350
        %v9352 = vpop.f32.mrf.mxu0
        %v9353 = vadd.f32 %v8655, %v9352
        %9354 = vmatmul.bf16.gmra.mxu0 %v8980
        %v9355 = vpop.f32.mrf.mxu0
        %v9356 = vadd.f32 %v8655, %v9355
        %v9357 = vpop.f32.mrf.mxu0
        %v9358 = vadd.f32 %v8655, %v9357
        %9359 = vmatmul.bf16.gmra.mxu0 %v8983
        %v9360 = vpop.f32.mrf.mxu0
        %v9361 = vadd.f32 %v8655, %v9360
        %v9362 = vpop.f32.mrf.mxu0
        %v9363 = vadd.f32 %v8655, %v9362
        %9364 = vmatmul.bf16.gmra.mxu0 %v8986
        %v9365 = vpop.f32.mrf.mxu0
        %v9366 = vadd.f32 %v8655, %v9365
        %v9367 = vpop.f32.mrf.mxu0
        %v9368 = vadd.f32 %v8655, %v9367
        %9369 = vmatmul.bf16.gmra.mxu0 %v8989
        %v9370 = vpop.f32.mrf.mxu0
        %v9371 = vadd.f32 %v8655, %v9370
        %v9372 = vpop.f32.mrf.mxu0
        %v9373 = vadd.f32 %v8655, %v9372
        %9374 = vmatmul.bf16.gmra.mxu0 %v8992
        %v9375 = vpop.f32.mrf.mxu0
        %v9376 = vadd.f32 %v8655, %v9375
        %v9377 = vpop.f32.mrf.mxu0
        %v9378 = vadd.f32 %v8655, %v9377
        %9379 = vmatmul.bf16.gmra.mxu0 %v8995
        %v9380 = vpop.f32.mrf.mxu0
        %v9381 = vadd.f32 %v8655, %v9380
        %v9382 = vpop.f32.mrf.mxu0
        %v9383 = vadd.f32 %v8655, %v9382
        %9384 = vmatmul.bf16.gmra.mxu0 %v8998
        %v9385 = vpop.f32.mrf.mxu0
        %v9386 = vadd.f32 %v8655, %v9385
        %v9387 = vpop.f32.mrf.mxu0
        %v9388 = vadd.f32 %v8655, %v9387
        %9389 = vmatmul.bf16.gmra.mxu0 %v9001
        %v9390 = vpop.f32.mrf.mxu0
        %v9391 = vadd.f32 %v8655, %v9390
        %v9392 = vpop.f32.mrf.mxu0
        %v9393 = vadd.f32 %v8655, %v9392
        %9394 = vmatmul.bf16.gmra.mxu0 %v9004
        %v9395 = vpop.f32.mrf.mxu0
        %v9396 = vadd.f32 %v8655, %v9395
        %v9397 = vpop.f32.mrf.mxu0
        %v9398 = vadd.f32 %v8655, %v9397
        %9399 = vmatmul.bf16.gmra.mxu0 %v9007
        %v9400 = vpop.f32.mrf.mxu0
        %v9401 = vadd.f32 %v8655, %v9400
        %v9402 = vpop.f32.mrf.mxu0
        %v9403 = vadd.f32 %v8655, %v9402
        %9404 = vmatmul.bf16.gmra.mxu0 %v9010
        %v9405 = vpop.f32.mrf.mxu0
        %v9406 = vadd.f32 %v8655, %v9405
        %v9407 = vpop.f32.mrf.mxu0
        %v9408 = vadd.f32 %v8655, %v9407
        %9409 = vmatmul.bf16.gmra.mxu0 %v9013
        %v9410 = vpop.f32.mrf.mxu0
        %v9411 = vadd.f32 %v8655, %v9410
        %v9412 = vpop.f32.mrf.mxu0
        %v9413 = vadd.f32 %v8655, %v9412
        %9414 = vmatmul.bf16.gmra.mxu0 %v9016
        %v9415 = vpop.f32.mrf.mxu0
        %v9416 = vadd.f32 %v8655, %v9415
        %v9417 = vpop.f32.mrf.mxu0
        %v9418 = vadd.f32 %v8655, %v9417
        %9419 = vmatmul.bf16.gmra.mxu0 %v9019
        %v9420 = vpop.f32.mrf.mxu0
        %v9421 = vadd.f32 %v8655, %v9420
        %v9422 = vpop.f32.mrf.mxu0
        %v9423 = vadd.f32 %v8655, %v9422
        %9424 = vmatmul.bf16.gmra.mxu0 %v9022
        %v9425 = vpop.f32.mrf.mxu0
        %v9426 = vadd.f32 %v8655, %v9425
        %v9427 = vpop.f32.mrf.mxu0
        %v9428 = vadd.f32 %v8655, %v9427
        %9429 = vmatmul.bf16.gmra.mxu0 %v9025
        %v9430 = vpop.f32.mrf.mxu0
        %v9431 = vadd.f32 %v8655, %v9430
        %v9432 = vpop.f32.mrf.mxu0
        %v9433 = vadd.f32 %v8655, %v9432
        %9434 = vmatmul.bf16.gmra.mxu0 %v9028
        %v9435 = vpop.f32.mrf.mxu0
        %v9436 = vadd.f32 %v8655, %v9435
        %v9437 = vpop.f32.mrf.mxu0
        %v9438 = vadd.f32 %v8655, %v9437
        %9439 = vmatmul.bf16.gmra.mxu0 %v9031
        %v9440 = vpop.f32.mrf.mxu0
        %v9441 = vadd.f32 %v8655, %v9440
        %v9442 = vpop.f32.mrf.mxu0
        %v9443 = vadd.f32 %v8655, %v9442
        %9444 = vmatmul.bf16.gmra.mxu0 %v9034
        %v9445 = vpop.f32.mrf.mxu0
        %v9446 = vadd.f32 %v8655, %v9445
        %v9447 = vpop.f32.mrf.mxu0
        %v9448 = vadd.f32 %v8655, %v9447
        %9449 = vmatmul.bf16.gmra.mxu0 %v9037
        %v9450 = vpop.f32.mrf.mxu0
        %v9451 = vadd.f32 %v8655, %v9450
        %v9452 = vpop.f32.mrf.mxu0
        %v9453 = vadd.f32 %v8655, %v9452
        %9454 = vmatmul.bf16.gmra.mxu0 %v9040
        %v9455 = vpop.f32.mrf.mxu0
        %v9456 = vadd.f32 %v8655, %v9455
        %v9457 = vpop.f32.mrf.mxu0
        %v9458 = vadd.f32 %v8655, %v9457
        %9459 = vmatmul.bf16.gmra.mxu0 %v9043
        %v9460 = vpop.f32.mrf.mxu0
        %v9461 = vadd.f32 %v8655, %v9460
        %v9462 = vpop.f32.mrf.mxu0
        %v9463 = vadd.f32 %v8655, %v9462
        %9464 = vmatmul.bf16.gmra.mxu0 %v9046
        %v9465 = vpop.f32.mrf.mxu0
        %v9466 = vadd.f32 %v8655, %v9465
        %v9467 = vpop.f32.mrf.mxu0
        %v9468 = vadd.f32 %v8655, %v9467
        %9469 = vmatmul.bf16.gmra.mxu0 %v9049
        %v9470 = vpop.f32.mrf.mxu0
        %v9471 = vadd.f32 %v8655, %v9470
        %v9472 = vpop.f32.mrf.mxu0
        %v9473 = vadd.f32 %v8655, %v9472
        %9474 = vmatmul.bf16.gmra.mxu0 %v9052
        %v9475 = vpop.f32.mrf.mxu0
        %v9476 = vadd.f32 %v8655, %v9475
        %v9477 = vpop.f32.mrf.mxu0
        %v9478 = vadd.f32 %v8655, %v9477
        %9479 = vmatmul.bf16.gmra.mxu0 %v9055
        %v9480 = vpop.f32.mrf.mxu0
        %v9481 = vadd.f32 %v8655, %v9480
        %v9482 = vpop.f32.mrf.mxu0
        %v9483 = vadd.f32 %v8655, %v9482
        %9484 = vmatmul.bf16.gmra.mxu0 %v9058
        %v9485 = vpop.f32.mrf.mxu0
        %v9486 = vadd.f32 %v8655, %v9485
        %v9487 = vpop.f32.mrf.mxu0
        %v9488 = vadd.f32 %v8655, %v9487
        %9489 = vmatmul.bf16.gmra.mxu0 %v9061
        %v9490 = vpop.f32.mrf.mxu0
        %v9491 = vadd.f32 %v8655, %v9490
        %v9492 = vpop.f32.mrf.mxu0
        %v9493 = vadd.f32 %v8655, %v9492
        %9494 = vmatmul.bf16.gmra.mxu0 %v9064
        %v9495 = vpop.f32.mrf.mxu0
        %v9496 = vadd.f32 %v8655, %v9495
        %v9497 = vpop.f32.mrf.mxu0
        %v9498 = vadd.f32 %v8655, %v9497
        %9499 = vmatmul.bf16.gmra.mxu0 %v9067
        %v9500 = vpop.f32.mrf.mxu0
        %v9501 = vadd.f32 %v8655, %v9500
        %v9502 = vpop.f32.mrf.mxu0
        %v9503 = vadd.f32 %v8655, %v9502
        %9504 = vmatmul.bf16.gmra.mxu0 %v9070
        %v9505 = vpop.f32.mrf.mxu0
        %v9506 = vadd.f32 %v8655, %v9505
        %v9507 = vpop.f32.mrf.mxu0
        %v9508 = vadd.f32 %v8655, %v9507
        %9509 = vdwg.mxu0
        %9510 = vmatpush.bf16.msra.mxu0 %v9224
        %9511 = vmatpush.bf16.msra.mxu0 %v9223
        %9512 = vmatpush.bf16.msra.mxu0 %v9222
        %9513 = vmatpush.bf16.msra.mxu0 %v9221
        %9514 = vmatpush.bf16.msra.mxu0 %v9220
        %9515 = vmatpush.bf16.msra.mxu0 %v9219
        %9516 = vmatpush.bf16.msra.mxu0 %v9218
        %9517 = vmatpush.bf16.msra.mxu0 %v9217
        %9518 = vmatmul.bf16.gmra.mxu0 %v8978
        %v9519 = vpop.f32.mrf.mxu0
        %v9520 = vadd.f32 %v9351, %v9519
        %v9521 = vpop.f32.mrf.mxu0
        %v9522 = vadd.f32 %v9353, %v9521
        %9523 = vmatmul.bf16.gmra.mxu0 %v8981
        %v9524 = vpop.f32.mrf.mxu0
        %v9525 = vadd.f32 %v9356, %v9524
        %v9526 = vpop.f32.mrf.mxu0
        %v9527 = vadd.f32 %v9358, %v9526
        %9528 = vmatmul.bf16.gmra.mxu0 %v8984
        %v9529 = vpop.f32.mrf.mxu0
        %v9530 = vadd.f32 %v9361, %v9529
        %v9531 = vpop.f32.mrf.mxu0
        %v9532 = vadd.f32 %v9363, %v9531
        %9533 = vmatmul.bf16.gmra.mxu0 %v8987
        %v9534 = vpop.f32.mrf.mxu0
        %v9535 = vadd.f32 %v9366, %v9534
        %v9536 = vpop.f32.mrf.mxu0
        %v9537 = vadd.f32 %v9368, %v9536
        %9538 = vmatmul.bf16.gmra.mxu0 %v8990
        %v9539 = vpop.f32.mrf.mxu0
        %v9540 = vadd.f32 %v9371, %v9539
        %v9541 = vpop.f32.mrf.mxu0
        %v9542 = vadd.f32 %v9373, %v9541
        %9543 = vmatmul.bf16.gmra.mxu0 %v8993
        %v9544 = vpop.f32.mrf.mxu0
        %v9545 = vadd.f32 %v9376, %v9544
        %v9546 = vpop.f32.mrf.mxu0
        %v9547 = vadd.f32 %v9378, %v9546
        %9548 = vmatmul.bf16.gmra.mxu0 %v8996
        %v9549 = vpop.f32.mrf.mxu0
        %v9550 = vadd.f32 %v9381, %v9549
        %v9551 = vpop.f32.mrf.mxu0
        %v9552 = vadd.f32 %v9383, %v9551
        %9553 = vmatmul.bf16.gmra.mxu0 %v8999
        %v9554 = vpop.f32.mrf.mxu0
        %v9555 = vadd.f32 %v9386, %v9554
        %v9556 = vpop.f32.mrf.mxu0
        %v9557 = vadd.f32 %v9388, %v9556
        %9558 = vmatmul.bf16.gmra.mxu0 %v9002
        %v9559 = vpop.f32.mrf.mxu0
        %v9560 = vadd.f32 %v9391, %v9559
        %v9561 = vpop.f32.mrf.mxu0
        %v9562 = vadd.f32 %v9393, %v9561
        %9563 = vmatmul.bf16.gmra.mxu0 %v9005
        %v9564 = vpop.f32.mrf.mxu0
        %v9565 = vadd.f32 %v9396, %v9564
        %v9566 = vpop.f32.mrf.mxu0
        %v9567 = vadd.f32 %v9398, %v9566
        %9568 = vmatmul.bf16.gmra.mxu0 %v9008
        %v9569 = vpop.f32.mrf.mxu0
        %v9570 = vadd.f32 %v9401, %v9569
        %v9571 = vpop.f32.mrf.mxu0
        %v9572 = vadd.f32 %v9403, %v9571
        %9573 = vmatmul.bf16.gmra.mxu0 %v9011
        %v9574 = vpop.f32.mrf.mxu0
        %v9575 = vadd.f32 %v9406, %v9574
        %v9576 = vpop.f32.mrf.mxu0
        %v9577 = vadd.f32 %v9408, %v9576
        %9578 = vmatmul.bf16.gmra.mxu0 %v9014
        %v9579 = vpop.f32.mrf.mxu0
        %v9580 = vadd.f32 %v9411, %v9579
        %v9581 = vpop.f32.mrf.mxu0
        %v9582 = vadd.f32 %v9413, %v9581
        %9583 = vmatmul.bf16.gmra.mxu0 %v9017
        %v9584 = vpop.f32.mrf.mxu0
        %v9585 = vadd.f32 %v9416, %v9584
        %v9586 = vpop.f32.mrf.mxu0
        %v9587 = vadd.f32 %v9418, %v9586
        %9588 = vmatmul.bf16.gmra.mxu0 %v9020
        %v9589 = vpop.f32.mrf.mxu0
        %v9590 = vadd.f32 %v9421, %v9589
        %v9591 = vpop.f32.mrf.mxu0
        %v9592 = vadd.f32 %v9423, %v9591
        %9593 = vmatmul.bf16.gmra.mxu0 %v9023
        %v9594 = vpop.f32.mrf.mxu0
        %v9595 = vadd.f32 %v9426, %v9594
        %v9596 = vpop.f32.mrf.mxu0
        %v9597 = vadd.f32 %v9428, %v9596
        %9598 = vmatmul.bf16.gmra.mxu0 %v9026
        %v9599 = vpop.f32.mrf.mxu0
        %v9600 = vadd.f32 %v9431, %v9599
        %v9601 = vpop.f32.mrf.mxu0
        %v9602 = vadd.f32 %v9433, %v9601
        %9603 = vmatmul.bf16.gmra.mxu0 %v9029
        %v9604 = vpop.f32.mrf.mxu0
        %v9605 = vadd.f32 %v9436, %v9604
        %v9606 = vpop.f32.mrf.mxu0
        %v9607 = vadd.f32 %v9438, %v9606
        %9608 = vmatmul.bf16.gmra.mxu0 %v9032
        %v9609 = vpop.f32.mrf.mxu0
        %v9610 = vadd.f32 %v9441, %v9609
        %v9611 = vpop.f32.mrf.mxu0
        %v9612 = vadd.f32 %v9443, %v9611
        %9613 = vmatmul.bf16.gmra.mxu0 %v9035
        %v9614 = vpop.f32.mrf.mxu0
        %v9615 = vadd.f32 %v9446, %v9614
        %v9616 = vpop.f32.mrf.mxu0
        %v9617 = vadd.f32 %v9448, %v9616
        %9618 = vmatmul.bf16.gmra.mxu0 %v9038
        %v9619 = vpop.f32.mrf.mxu0
        %v9620 = vadd.f32 %v9451, %v9619
        %v9621 = vpop.f32.mrf.mxu0
        %v9622 = vadd.f32 %v9453, %v9621
        %9623 = vmatmul.bf16.gmra.mxu0 %v9041
        %v9624 = vpop.f32.mrf.mxu0
        %v9625 = vadd.f32 %v9456, %v9624
        %v9626 = vpop.f32.mrf.mxu0
        %v9627 = vadd.f32 %v9458, %v9626
        %9628 = vmatmul.bf16.gmra.mxu0 %v9044
        %v9629 = vpop.f32.mrf.mxu0
        %v9630 = vadd.f32 %v9461, %v9629
        %v9631 = vpop.f32.mrf.mxu0
        %v9632 = vadd.f32 %v9463, %v9631
        %9633 = vmatmul.bf16.gmra.mxu0 %v9047
        %v9634 = vpop.f32.mrf.mxu0
        %v9635 = vadd.f32 %v9466, %v9634
        %v9636 = vpop.f32.mrf.mxu0
        %v9637 = vadd.f32 %v9468, %v9636
        %9638 = vmatmul.bf16.gmra.mxu0 %v9050
        %v9639 = vpop.f32.mrf.mxu0
        %v9640 = vadd.f32 %v9471, %v9639
        %v9641 = vpop.f32.mrf.mxu0
        %v9642 = vadd.f32 %v9473, %v9641
        %9643 = vmatmul.bf16.gmra.mxu0 %v9053
        %v9644 = vpop.f32.mrf.mxu0
        %v9645 = vadd.f32 %v9476, %v9644
        %v9646 = vpop.f32.mrf.mxu0
        %v9647 = vadd.f32 %v9478, %v9646
        %9648 = vmatmul.bf16.gmra.mxu0 %v9056
        %v9649 = vpop.f32.mrf.mxu0
        %v9650 = vadd.f32 %v9481, %v9649
        %v9651 = vpop.f32.mrf.mxu0
        %v9652 = vadd.f32 %v9483, %v9651
        %9653 = vmatmul.bf16.gmra.mxu0 %v9059
        %v9654 = vpop.f32.mrf.mxu0
        %v9655 = vadd.f32 %v9486, %v9654
        %v9656 = vpop.f32.mrf.mxu0
        %v9657 = vadd.f32 %v9488, %v9656
        %9658 = vmatmul.bf16.gmra.mxu0 %v9062
        %v9659 = vpop.f32.mrf.mxu0
        %v9660 = vadd.f32 %v9491, %v9659
        %v9661 = vpop.f32.mrf.mxu0
        %v9662 = vadd.f32 %v9493, %v9661
        %9663 = vmatmul.bf16.gmra.mxu0 %v9065
        %v9664 = vpop.f32.mrf.mxu0
        %v9665 = vadd.f32 %v9496, %v9664
        %v9666 = vpop.f32.mrf.mxu0
        %v9667 = vadd.f32 %v9498, %v9666
        %9668 = vmatmul.bf16.gmra.mxu0 %v9068
        %v9669 = vpop.f32.mrf.mxu0
        %v9670 = vadd.f32 %v9501, %v9669
        %v9671 = vpop.f32.mrf.mxu0
        %v9672 = vadd.f32 %v9503, %v9671
        %9673 = vmatmul.bf16.gmra.mxu0 %v9071
        %v9674 = vpop.f32.mrf.mxu0
        %v9675 = vadd.f32 %v9506, %v9674
        %v9676 = vpop.f32.mrf.mxu0
        %v9677 = vadd.f32 %v9508, %v9676
        %9678 = vdwg.mxu0
        %9679 = vmatpush.bf16.msra.mxu0 0
        %9680 = vmatpush.bf16.msra.mxu0 0
        %9681 = vmatpush.bf16.msra.mxu0 0
        %9682 = vmatpush.bf16.msra.mxu0 0
        %9683 = vmatpush.bf16.msra.mxu0 0
        %9684 = vmatpush.bf16.msra.mxu0 0
        %9685 = vmatpush.bf16.msra.mxu0 %v9226
        %9686 = vmatpush.bf16.msra.mxu0 %v9225
        %9687 = vmatmul.bf16.gmra.mxu0 %v9246
        %v9688 = vpop.f32.mrf.mxu0
        %v9689 = vadd.f32 %v9520, %v9688
        %v9690 = vpop.f32.mrf.mxu0
        %v9691 = vadd.f32 %v9522, %v9690
        %9692 = vmatmul.bf16.gmra.mxu0 %v9249
        %v9693 = vpop.f32.mrf.mxu0
        %v9694 = vadd.f32 %v9525, %v9693
        %v9695 = vpop.f32.mrf.mxu0
        %v9696 = vadd.f32 %v9527, %v9695
        %9697 = vmatmul.bf16.gmra.mxu0 %v9252
        %v9698 = vpop.f32.mrf.mxu0
        %v9699 = vadd.f32 %v9530, %v9698
        %v9700 = vpop.f32.mrf.mxu0
        %v9701 = vadd.f32 %v9532, %v9700
        %9702 = vmatmul.bf16.gmra.mxu0 %v9255
        %v9703 = vpop.f32.mrf.mxu0
        %v9704 = vadd.f32 %v9535, %v9703
        %v9705 = vpop.f32.mrf.mxu0
        %v9706 = vadd.f32 %v9537, %v9705
        %9707 = vmatmul.bf16.gmra.mxu0 %v9258
        %v9708 = vpop.f32.mrf.mxu0
        %v9709 = vadd.f32 %v9540, %v9708
        %v9710 = vpop.f32.mrf.mxu0
        %v9711 = vadd.f32 %v9542, %v9710
        %9712 = vmatmul.bf16.gmra.mxu0 %v9261
        %v9713 = vpop.f32.mrf.mxu0
        %v9714 = vadd.f32 %v9545, %v9713
        %v9715 = vpop.f32.mrf.mxu0
        %v9716 = vadd.f32 %v9547, %v9715
        %9717 = vmatmul.bf16.gmra.mxu0 %v9264
        %v9718 = vpop.f32.mrf.mxu0
        %v9719 = vadd.f32 %v9550, %v9718
        %v9720 = vpop.f32.mrf.mxu0
        %v9721 = vadd.f32 %v9552, %v9720
        %9722 = vmatmul.bf16.gmra.mxu0 %v9267
        %v9723 = vpop.f32.mrf.mxu0
        %v9724 = vadd.f32 %v9555, %v9723
        %v9725 = vpop.f32.mrf.mxu0
        %v9726 = vadd.f32 %v9557, %v9725
        %9727 = vmatmul.bf16.gmra.mxu0 %v9270
        %v9728 = vpop.f32.mrf.mxu0
        %v9729 = vadd.f32 %v9560, %v9728
        %v9730 = vpop.f32.mrf.mxu0
        %v9731 = vadd.f32 %v9562, %v9730
        %9732 = vmatmul.bf16.gmra.mxu0 %v9273
        %v9733 = vpop.f32.mrf.mxu0
        %v9734 = vadd.f32 %v9565, %v9733
        %v9735 = vpop.f32.mrf.mxu0
        %v9736 = vadd.f32 %v9567, %v9735
        %9737 = vmatmul.bf16.gmra.mxu0 %v9276
        %v9738 = vpop.f32.mrf.mxu0
        %v9739 = vadd.f32 %v9570, %v9738
        %v9740 = vpop.f32.mrf.mxu0
        %v9741 = vadd.f32 %v9572, %v9740
        %9742 = vmatmul.bf16.gmra.mxu0 %v9279
        %v9743 = vpop.f32.mrf.mxu0
        %v9744 = vadd.f32 %v9575, %v9743
        %v9745 = vpop.f32.mrf.mxu0
        %v9746 = vadd.f32 %v9577, %v9745
        %9747 = vmatmul.bf16.gmra.mxu0 %v9282
        %v9748 = vpop.f32.mrf.mxu0
        %v9749 = vadd.f32 %v9580, %v9748
        %v9750 = vpop.f32.mrf.mxu0
        %v9751 = vadd.f32 %v9582, %v9750
        %9752 = vmatmul.bf16.gmra.mxu0 %v9285
        %v9753 = vpop.f32.mrf.mxu0
        %v9754 = vadd.f32 %v9585, %v9753
        %v9755 = vpop.f32.mrf.mxu0
        %v9756 = vadd.f32 %v9587, %v9755
        %9757 = vmatmul.bf16.gmra.mxu0 %v9288
        %v9758 = vpop.f32.mrf.mxu0
        %v9759 = vadd.f32 %v9590, %v9758
        %v9760 = vpop.f32.mrf.mxu0
        %v9761 = vadd.f32 %v9592, %v9760
        %9762 = vmatmul.bf16.gmra.mxu0 %v9291
        %v9763 = vpop.f32.mrf.mxu0
        %v9764 = vadd.f32 %v9595, %v9763
        %v9765 = vpop.f32.mrf.mxu0
        %v9766 = vadd.f32 %v9597, %v9765
        %9767 = vmatmul.bf16.gmra.mxu0 %v9294
        %v9768 = vpop.f32.mrf.mxu0
        %v9769 = vadd.f32 %v9600, %v9768
        %v9770 = vpop.f32.mrf.mxu0
        %v9771 = vadd.f32 %v9602, %v9770
        %9772 = vmatmul.bf16.gmra.mxu0 %v9297
        %v9773 = vpop.f32.mrf.mxu0
        %v9774 = vadd.f32 %v9605, %v9773
        %v9775 = vpop.f32.mrf.mxu0
        %v9776 = vadd.f32 %v9607, %v9775
        %9777 = vmatmul.bf16.gmra.mxu0 %v9300
        %v9778 = vpop.f32.mrf.mxu0
        %v9779 = vadd.f32 %v9610, %v9778
        %v9780 = vpop.f32.mrf.mxu0
        %v9781 = vadd.f32 %v9612, %v9780
        %9782 = vmatmul.bf16.gmra.mxu0 %v9303
        %v9783 = vpop.f32.mrf.mxu0
        %v9784 = vadd.f32 %v9615, %v9783
        %v9785 = vpop.f32.mrf.mxu0
        %v9786 = vadd.f32 %v9617, %v9785
        %9787 = vmatmul.bf16.gmra.mxu0 %v9306
        %v9788 = vpop.f32.mrf.mxu0
        %v9789 = vadd.f32 %v9620, %v9788
        %v9790 = vpop.f32.mrf.mxu0
        %v9791 = vadd.f32 %v9622, %v9790
        %9792 = vmatmul.bf16.gmra.mxu0 %v9309
        %v9793 = vpop.f32.mrf.mxu0
        %v9794 = vadd.f32 %v9625, %v9793
        %v9795 = vpop.f32.mrf.mxu0
        %v9796 = vadd.f32 %v9627, %v9795
        %9797 = vmatmul.bf16.gmra.mxu0 %v9312
        %v9798 = vpop.f32.mrf.mxu0
        %v9799 = vadd.f32 %v9630, %v9798
        %v9800 = vpop.f32.mrf.mxu0
        %v9801 = vadd.f32 %v9632, %v9800
        %9802 = vmatmul.bf16.gmra.mxu0 %v9315
        %v9803 = vpop.f32.mrf.mxu0
        %v9804 = vadd.f32 %v9635, %v9803
        %v9805 = vpop.f32.mrf.mxu0
        %v9806 = vadd.f32 %v9637, %v9805
        %9807 = vmatmul.bf16.gmra.mxu0 %v9318
        %v9808 = vpop.f32.mrf.mxu0
        %v9809 = vadd.f32 %v9640, %v9808
        %v9810 = vpop.f32.mrf.mxu0
        %v9811 = vadd.f32 %v9642, %v9810
        %9812 = vmatmul.bf16.gmra.mxu0 %v9321
        %v9813 = vpop.f32.mrf.mxu0
        %v9814 = vadd.f32 %v9645, %v9813
        %v9815 = vpop.f32.mrf.mxu0
        %v9816 = vadd.f32 %v9647, %v9815
        %9817 = vmatmul.bf16.gmra.mxu0 %v9324
        %v9818 = vpop.f32.mrf.mxu0
        %v9819 = vadd.f32 %v9650, %v9818
        %v9820 = vpop.f32.mrf.mxu0
        %v9821 = vadd.f32 %v9652, %v9820
        %9822 = vmatmul.bf16.gmra.mxu0 %v9327
        %v9823 = vpop.f32.mrf.mxu0
        %v9824 = vadd.f32 %v9655, %v9823
        %v9825 = vpop.f32.mrf.mxu0
        %v9826 = vadd.f32 %v9657, %v9825
        %9827 = vmatmul.bf16.gmra.mxu0 %v9330
        %v9828 = vpop.f32.mrf.mxu0
        %v9829 = vadd.f32 %v9660, %v9828
        %v9830 = vpop.f32.mrf.mxu0
        %v9831 = vadd.f32 %v9662, %v9830
        %9832 = vmatmul.bf16.gmra.mxu0 %v9333
        %v9833 = vpop.f32.mrf.mxu0
        %v9834 = vadd.f32 %v9665, %v9833
        %v9835 = vpop.f32.mrf.mxu0
        %v9836 = vadd.f32 %v9667, %v9835
        %9837 = vmatmul.bf16.gmra.mxu0 %v9336
        %v9838 = vpop.f32.mrf.mxu0
        %v9839 = vadd.f32 %v9670, %v9838
        %v9840 = vpop.f32.mrf.mxu0
        %v9841 = vadd.f32 %v9672, %v9840
        %9842 = vmatmul.bf16.gmra.mxu0 %v9339
        %v9843 = vpop.f32.mrf.mxu0
        %v9844 = vadd.f32 %v9675, %v9843
        %v9845 = vpop.f32.mrf.mxu0
        %v9846 = vadd.f32 %v9677, %v9845
        %9847 = vdwg.mxu0
        %v9848 = vmax.f32 %v9689, 0.0
        %v9849 = vmax.f32 %v9691, 0.0
        %v9850 = vmax.f32 %v9694, 0.0
        %v9851 = vmax.f32 %v9696, 0.0
        %v9852 = vmax.f32 %v9699, 0.0
        %v9853 = vmax.f32 %v9701, 0.0
        %v9854 = vmax.f32 %v9704, 0.0
        %v9855 = vmax.f32 %v9706, 0.0
        %v9856 = vmax.f32 %v9709, 0.0
        %v9857 = vmax.f32 %v9711, 0.0
        %v9858 = vmax.f32 %v9714, 0.0
        %v9859 = vmax.f32 %v9716, 0.0
        %v9860 = vmax.f32 %v9719, 0.0
        %v9861 = vmax.f32 %v9721, 0.0
        %v9862 = vmax.f32 %v9724, 0.0
        %v9863 = vmax.f32 %v9726, 0.0
        %v9864 = vmax.f32 %v9729, 0.0
        %v9865 = vmax.f32 %v9731, 0.0
        %v9866 = vmax.f32 %v9734, 0.0
        %v9867 = vmax.f32 %v9736, 0.0
        %v9868 = vmax.f32 %v9739, 0.0
        %v9869 = vmax.f32 %v9741, 0.0
        %v9870 = vmax.f32 %v9744, 0.0
        %v9871 = vmax.f32 %v9746, 0.0
        %v9872 = vmax.f32 %v9749, 0.0
        %v9873 = vmax.f32 %v9751, 0.0
        %v9874 = vmax.f32 %v9754, 0.0
        %v9875 = vmax.f32 %v9756, 0.0
        %v9876 = vmax.f32 %v9759, 0.0
        %v9877 = vmax.f32 %v9761, 0.0
        %v9878 = vmax.f32 %v9764, 0.0
        %v9879 = vmax.f32 %v9766, 0.0
        %v9880 = vmax.f32 %v9769, 0.0
        %v9881 = vmax.f32 %v9771, 0.0
        %v9882 = vmax.f32 %v9774, 0.0
        %v9883 = vmax.f32 %v9776, 0.0
        %v9884 = vmax.f32 %v9779, 0.0
        %v9885 = vmax.f32 %v9781, 0.0
        %v9886 = vmax.f32 %v9784, 0.0
        %v9887 = vmax.f32 %v9786, 0.0
        %v9888 = vmax.f32 %v9789, 0.0
        %v9889 = vmax.f32 %v9791, 0.0
        %v9890 = vmax.f32 %v9794, 0.0
        %v9891 = vmax.f32 %v9796, 0.0
        %v9892 = vmax.f32 %v9799, 0.0
        %v9893 = vmax.f32 %v9801, 0.0
        %v9894 = vmax.f32 %v9804, 0.0
        %v9895 = vmax.f32 %v9806, 0.0
        %v9896 = vmax.f32 %v9809, 0.0
        %v9897 = vmax.f32 %v9811, 0.0
        %v9898 = vmax.f32 %v9814, 0.0
        %v9899 = vmax.f32 %v9816, 0.0
        %v9900 = vmax.f32 %v9819, 0.0
        %v9901 = vmax.f32 %v9821, 0.0
        %v9902 = vmax.f32 %v9824, 0.0
        %v9903 = vmax.f32 %v9826, 0.0
        %v9904 = vmax.f32 %v9829, 0.0
        %v9905 = vmax.f32 %v9831, 0.0
        %v9906 = vmax.f32 %v9834, 0.0
        %v9907 = vmax.f32 %v9836, 0.0
        %v9908 = vmax.f32 %v9839, 0.0
        %v9909 = vmax.f32 %v9841, 0.0
        %v9910 = vmax.f32 %v9844, 0.0
        %v9911 = vmax.f32 %v9846, 0.0
        %v9912 = vpack.c.bf16 %v9848, %v9848
        %v9913 = vpack.c.bf16 %v9849, %v9849
        %v9914 = vpack.c.bf16 %v9850, %v9850
        %v9915 = vpack.c.bf16 %v9851, %v9851
        %v9916 = vpack.c.bf16 %v9852, %v9852
        %v9917 = vpack.c.bf16 %v9853, %v9853
        %v9918 = vpack.c.bf16 %v9854, %v9854
        %v9919 = vpack.c.bf16 %v9855, %v9855
        %v9920 = vpack.c.bf16 %v9856, %v9856
        %v9921 = vpack.c.bf16 %v9857, %v9857
        %v9922 = vpack.c.bf16 %v9858, %v9858
        %v9923 = vpack.c.bf16 %v9859, %v9859
        %v9924 = vpack.c.bf16 %v9860, %v9860
        %v9925 = vpack.c.bf16 %v9861, %v9861
        %v9926 = vpack.c.bf16 %v9862, %v9862
        %v9927 = vpack.c.bf16 %v9863, %v9863
        %v9928 = vpack.c.bf16 %v9864, %v9864
        %v9929 = vpack.c.bf16 %v9865, %v9865
        %v9930 = vpack.c.bf16 %v9866, %v9866
        %v9931 = vpack.c.bf16 %v9867, %v9867
        %v9932 = vpack.c.bf16 %v9868, %v9868
        %v9933 = vpack.c.bf16 %v9869, %v9869
        %v9934 = vpack.c.bf16 %v9870, %v9870
        %v9935 = vpack.c.bf16 %v9871, %v9871
        %v9936 = vpack.c.bf16 %v9872, %v9872
        %v9937 = vpack.c.bf16 %v9873, %v9873
        %v9938 = vpack.c.bf16 %v9874, %v9874
        %v9939 = vpack.c.bf16 %v9875, %v9875
        %v9940 = vpack.c.bf16 %v9876, %v9876
        %v9941 = vpack.c.bf16 %v9877, %v9877
        %v9942 = vpack.c.bf16 %v9878, %v9878
        %v9943 = vpack.c.bf16 %v9879, %v9879
        %v9944 = vpack.c.bf16 %v9880, %v9880
        %v9945 = vpack.c.bf16 %v9881, %v9881
        %v9946 = vpack.c.bf16 %v9882, %v9882
        %v9947 = vpack.c.bf16 %v9883, %v9883
        %v9948 = vpack.c.bf16 %v9884, %v9884
        %v9949 = vpack.c.bf16 %v9885, %v9885
        %v9950 = vpack.c.bf16 %v9886, %v9886
        %v9951 = vpack.c.bf16 %v9887, %v9887
        %v9952 = vpack.c.bf16 %v9888, %v9888
        %v9953 = vpack.c.bf16 %v9889, %v9889
        %v9954 = vpack.c.bf16 %v9890, %v9890
        %v9955 = vpack.c.bf16 %v9891, %v9891
        %v9956 = vpack.c.bf16 %v9892, %v9892
        %v9957 = vpack.c.bf16 %v9893, %v9893
        %v9958 = vpack.c.bf16 %v9894, %v9894
        %v9959 = vpack.c.bf16 %v9895, %v9895
        %v9960 = vpack.c.bf16 %v9896, %v9896
        %v9961 = vpack.c.bf16 %v9897, %v9897
        %v9962 = vpack.c.bf16 %v9898, %v9898
        %v9963 = vpack.c.bf16 %v9899, %v9899
        %v9964 = vpack.c.bf16 %v9900, %v9900
        %v9965 = vpack.c.bf16 %v9901, %v9901
        %v9966 = vpack.c.bf16 %v9902, %v9902
        %v9967 = vpack.c.bf16 %v9903, %v9903
        %v9968 = vpack.c.bf16 %v9904, %v9904
        %v9969 = vpack.c.bf16 %v9905, %v9905
        %v9970 = vpack.c.bf16 %v9906, %v9906
        %v9971 = vpack.c.bf16 %v9907, %v9907
        %v9972 = vpack.c.bf16 %v9908, %v9908
        %v9973 = vpack.c.bf16 %v9909, %v9909
        %v9974 = vpack.c.bf16 %v9910, %v9910
        %v9975 = vpack.c.bf16 %v9911, %v9911
        %v10040 = vunpack.c.l.b16 %v648
        %v10041 = vunpack.c.l.b16 %v649
        %v10042 = vunpack.c.l.b16 %v650
        %v10043 = vunpack.c.l.b16 %v651
        %v10044 = vunpack.c.l.b16 %v652
        %v10045 = vunpack.c.l.b16 %v653
        %v10046 = vunpack.c.l.b16 %v654
        %v10047 = vunpack.c.l.b16 %v655
        %v10048 = vunpack.c.l.b16 %v656
        %v10049 = vunpack.c.l.b16 %v657
        %v10050 = vunpack.c.l.b16 %v658
        %v10051 = vunpack.c.l.b16 %v659
        %v10052 = vunpack.c.l.b16 %v660
        %v10053 = vunpack.c.l.b16 %v661
        %v10054 = vunpack.c.l.b16 %v662
        %v10055 = vunpack.c.l.b16 %v663
        %v10056 = vunpack.c.l.b16 %v664
        %v10057 = vunpack.c.l.b16 %v665
        %v10058 = vunpack.c.l.b16 %v666
        %v10059 = vunpack.c.l.b16 %v667
        %v10060 = vunpack.c.l.b16 %v668
        %v10061 = vunpack.c.l.b16 %v669
        %v10062 = vunpack.c.l.b16 %v670
        %v10063 = vunpack.c.l.b16 %v671
        %v10064 = vunpack.c.l.b16 %v672
        %v10065 = vunpack.c.l.b16 %v673
        %v10066 = vunpack.c.l.b16 %v674
        %v10067 = vunpack.c.l.b16 %v675
        %v10068 = vunpack.c.l.b16 %v676
        %v10069 = vunpack.c.l.b16 %v677
        %v10070 = vunpack.c.l.b16 %v678
        %v10071 = vunpack.c.l.b16 %v679
        %v10072 = vunpack.c.l.b16 %v680
        %v10073 = vunpack.c.l.b16 %v681
        %v10074 = vunpack.c.l.b16 %v682
        %v10075 = vunpack.c.l.b16 %v683
        %v10076 = vunpack.c.l.b16 %v684
        %v10077 = vunpack.c.l.b16 %v685
        %v10078 = vunpack.c.l.b16 %v686
        %v10079 = vunpack.c.l.b16 %v687
        %v10080 = vunpack.c.l.b16 %v688
        %v10081 = vunpack.c.l.b16 %v689
        %v10082 = vunpack.c.l.b16 %v690
        %v10083 = vunpack.c.l.b16 %v691
        %v10084 = vunpack.c.l.b16 %v692
        %v10085 = vunpack.c.l.b16 %v693
        %v10086 = vunpack.c.l.b16 %v694
        %v10087 = vunpack.c.l.b16 %v695
        %v10088 = vunpack.c.l.b16 %v696
        %v10089 = vunpack.c.l.b16 %v697
        %v10090 = vunpack.c.l.b16 %v698
        %v10091 = vunpack.c.l.b16 %v699
        %v10092 = vunpack.c.l.b16 %v700
        %v10093 = vunpack.c.l.b16 %v701
        %v10094 = vunpack.c.l.b16 %v702
        %v10095 = vunpack.c.l.b16 %v703
        %v10096 = vunpack.c.l.b16 %v704
        %v10097 = vunpack.c.l.b16 %v705
        %v10098 = vunpack.c.l.b16 %v706
        %v10099 = vunpack.c.l.b16 %v707
        %v10100 = vunpack.c.l.b16 %v708
        %v10101 = vunpack.c.l.b16 %v709
        %v10102 = vunpack.c.l.b16 %v710
        %v10103 = vunpack.c.l.b16 %v711
        %v10104 = vpack.c.b16 %v10041, %v10040
        %v10105 = vpack.c.b16 %v10043, %v10042
        %v10106 = vpack.c.b16 %v10045, %v10044
        %v10107 = vpack.c.b16 %v10047, %v10046
        %v10108 = vpack.c.b16 %v10049, %v10048
        %v10109 = vpack.c.b16 %v10051, %v10050
        %v10110 = vpack.c.b16 %v10053, %v10052
        %v10111 = vpack.c.b16 %v10055, %v10054
        %v10112 = vpack.c.b16 %v10057, %v10056
        %v10113 = vpack.c.b16 %v10059, %v10058
        %v10114 = vpack.c.b16 %v10061, %v10060
        %v10115 = vpack.c.b16 %v10063, %v10062
        %v10116 = vpack.c.b16 %v10065, %v10064
        %v10117 = vpack.c.b16 %v10067, %v10066
        %v10118 = vpack.c.b16 %v10069, %v10068
        %v10119 = vpack.c.b16 %v10071, %v10070
        %v10120 = vpack.c.b16 %v10073, %v10072
        %v10121 = vpack.c.b16 %v10075, %v10074
        %v10122 = vpack.c.b16 %v10077, %v10076
        %v10123 = vpack.c.b16 %v10079, %v10078
        %v10124 = vpack.c.b16 %v10081, %v10080
        %v10125 = vpack.c.b16 %v10083, %v10082
        %v10126 = vpack.c.b16 %v10085, %v10084
        %v10127 = vpack.c.b16 %v10087, %v10086
        %v10128 = vpack.c.b16 %v10089, %v10088
        %v10129 = vpack.c.b16 %v10091, %v10090
        %v10130 = vpack.c.b16 %v10093, %v10092
        %v10131 = vpack.c.b16 %v10095, %v10094
        %v10132 = vpack.c.b16 %v10097, %v10096
        %v10133 = vpack.c.b16 %v10099, %v10098
        %v10134 = vpack.c.b16 %v10101, %v10100
        %v10135 = vpack.c.b16 %v10103, %v10102
        %v10200 = vunpack.c.l.b16 %v9912
        %v10201 = vunpack.c.l.b16 %v9913
        %v10202 = vunpack.c.l.b16 %v9914
        %v10203 = vunpack.c.l.b16 %v9915
        %v10204 = vunpack.c.l.b16 %v9916
        %v10205 = vunpack.c.l.b16 %v9917
        %v10206 = vunpack.c.l.b16 %v9918
        %v10207 = vunpack.c.l.b16 %v9919
        %v10208 = vunpack.c.l.b16 %v9920
        %v10209 = vunpack.c.l.b16 %v9921
        %v10210 = vunpack.c.l.b16 %v9922
        %v10211 = vunpack.c.l.b16 %v9923
        %v10212 = vunpack.c.l.b16 %v9924
        %v10213 = vunpack.c.l.b16 %v9925
        %v10214 = vunpack.c.l.b16 %v9926
        %v10215 = vunpack.c.l.b16 %v9927
        %v10216 = vunpack.c.l.b16 %v9928
        %v10217 = vunpack.c.l.b16 %v9929
        %v10218 = vunpack.c.l.b16 %v9930
        %v10219 = vunpack.c.l.b16 %v9931
        %v10220 = vunpack.c.l.b16 %v9932
        %v10221 = vunpack.c.l.b16 %v9933
        %v10222 = vunpack.c.l.b16 %v9934
        %v10223 = vunpack.c.l.b16 %v9935
        %v10224 = vunpack.c.l.b16 %v9936
        %v10225 = vunpack.c.l.b16 %v9937
        %v10226 = vunpack.c.l.b16 %v9938
        %v10227 = vunpack.c.l.b16 %v9939
        %v10228 = vunpack.c.l.b16 %v9940
        %v10229 = vunpack.c.l.b16 %v9941
        %v10230 = vunpack.c.l.b16 %v9942
        %v10231 = vunpack.c.l.b16 %v9943
        %v10232 = vunpack.c.l.b16 %v9944
        %v10233 = vunpack.c.l.b16 %v9945
        %v10234 = vunpack.c.l.b16 %v9946
        %v10235 = vunpack.c.l.b16 %v9947
        %v10236 = vunpack.c.l.b16 %v9948
        %v10237 = vunpack.c.l.b16 %v9949
        %v10238 = vunpack.c.l.b16 %v9950
        %v10239 = vunpack.c.l.b16 %v9951
        %v10240 = vunpack.c.l.b16 %v9952
        %v10241 = vunpack.c.l.b16 %v9953
        %v10242 = vunpack.c.l.b16 %v9954
        %v10243 = vunpack.c.l.b16 %v9955
        %v10244 = vunpack.c.l.b16 %v9956
        %v10245 = vunpack.c.l.b16 %v9957
        %v10246 = vunpack.c.l.b16 %v9958
        %v10247 = vunpack.c.l.b16 %v9959
        %v10248 = vunpack.c.l.b16 %v9960
        %v10249 = vunpack.c.l.b16 %v9961
        %v10250 = vunpack.c.l.b16 %v9962
        %v10251 = vunpack.c.l.b16 %v9963
        %v10252 = vunpack.c.l.b16 %v9964
        %v10253 = vunpack.c.l.b16 %v9965
        %v10254 = vunpack.c.l.b16 %v9966
        %v10255 = vunpack.c.l.b16 %v9967
        %v10256 = vunpack.c.l.b16 %v9968
        %v10257 = vunpack.c.l.b16 %v9969
        %v10258 = vunpack.c.l.b16 %v9970
        %v10259 = vunpack.c.l.b16 %v9971
        %v10260 = vunpack.c.l.b16 %v9972
        %v10261 = vunpack.c.l.b16 %v9973
        %v10262 = vunpack.c.l.b16 %v9974
        %v10263 = vunpack.c.l.b16 %v9975
        %v10264 = vpack.c.b16 %v10201, %v10200
        %v10265 = vpack.c.b16 %v10203, %v10202
        %v10266 = vpack.c.b16 %v10205, %v10204
        %v10267 = vpack.c.b16 %v10207, %v10206
        %v10268 = vpack.c.b16 %v10209, %v10208
        %v10269 = vpack.c.b16 %v10211, %v10210
        %v10270 = vpack.c.b16 %v10213, %v10212
        %v10271 = vpack.c.b16 %v10215, %v10214
        %v10272 = vpack.c.b16 %v10217, %v10216
        %v10273 = vpack.c.b16 %v10219, %v10218
        %v10274 = vpack.c.b16 %v10221, %v10220
        %v10275 = vpack.c.b16 %v10223, %v10222
        %v10276 = vpack.c.b16 %v10225, %v10224
        %v10277 = vpack.c.b16 %v10227, %v10226
        %v10278 = vpack.c.b16 %v10229, %v10228
        %v10279 = vpack.c.b16 %v10231, %v10230
        %v10280 = vpack.c.b16 %v10233, %v10232
        %v10281 = vpack.c.b16 %v10235, %v10234
        %v10282 = vpack.c.b16 %v10237, %v10236
        %v10283 = vpack.c.b16 %v10239, %v10238
        %v10284 = vpack.c.b16 %v10241, %v10240
        %v10285 = vpack.c.b16 %v10243, %v10242
        %v10286 = vpack.c.b16 %v10245, %v10244
        %v10287 = vpack.c.b16 %v10247, %v10246
        %v10288 = vpack.c.b16 %v10249, %v10248
        %v10289 = vpack.c.b16 %v10251, %v10250
        %v10290 = vpack.c.b16 %v10253, %v10252
        %v10291 = vpack.c.b16 %v10255, %v10254
        %v10292 = vpack.c.b16 %v10257, %v10256
        %v10293 = vpack.c.b16 %v10259, %v10258
        %v10294 = vpack.c.b16 %v10261, %v10260
        %v10295 = vpack.c.b16 %v10263, %v10262
        %10296 = vrot.lane.b32.xlu0 %v10264, 32
        %v10297 = vpop.permute.xlu0 %10296
        %10298 = vrot.lane.b32.xlu0 %v10265, 32
        %v10299 = vpop.permute.xlu0 %10298
        %10300 = vrot.lane.b32.xlu0 %v10266, 32
        %v10301 = vpop.permute.xlu0 %10300
        %10302 = vrot.lane.b32.xlu0 %v10267, 32
        %v10303 = vpop.permute.xlu0 %10302
        %10304 = vrot.lane.b32.xlu0 %v10268, 32
        %v10305 = vpop.permute.xlu0 %10304
        %10306 = vrot.lane.b32.xlu0 %v10269, 32
        %v10307 = vpop.permute.xlu0 %10306
        %10308 = vrot.lane.b32.xlu0 %v10270, 32
        %v10309 = vpop.permute.xlu0 %10308
        %10310 = vrot.lane.b32.xlu0 %v10271, 32
        %v10311 = vpop.permute.xlu0 %10310
        %10312 = vrot.lane.b32.xlu0 %v10272, 32
        %v10313 = vpop.permute.xlu0 %10312
        %10314 = vrot.lane.b32.xlu0 %v10273, 32
        %v10315 = vpop.permute.xlu0 %10314
        %10316 = vrot.lane.b32.xlu0 %v10274, 32
        %v10317 = vpop.permute.xlu0 %10316
        %10318 = vrot.lane.b32.xlu0 %v10275, 32
        %v10319 = vpop.permute.xlu0 %10318
        %10320 = vrot.lane.b32.xlu0 %v10276, 32
        %v10321 = vpop.permute.xlu0 %10320
        %10322 = vrot.lane.b32.xlu0 %v10277, 32
        %v10323 = vpop.permute.xlu0 %10322
        %10324 = vrot.lane.b32.xlu0 %v10278, 32
        %v10325 = vpop.permute.xlu0 %10324
        %10326 = vrot.lane.b32.xlu0 %v10279, 32
        %v10327 = vpop.permute.xlu0 %10326
        %10328 = vrot.lane.b32.xlu0 %v10280, 32
        %v10329 = vpop.permute.xlu0 %10328
        %10330 = vrot.lane.b32.xlu0 %v10281, 32
        %v10331 = vpop.permute.xlu0 %10330
        %10332 = vrot.lane.b32.xlu0 %v10282, 32
        %v10333 = vpop.permute.xlu0 %10332
        %10334 = vrot.lane.b32.xlu0 %v10283, 32
        %v10335 = vpop.permute.xlu0 %10334
        %10336 = vrot.lane.b32.xlu0 %v10284, 32
        %v10337 = vpop.permute.xlu0 %10336
        %10338 = vrot.lane.b32.xlu0 %v10285, 32
        %v10339 = vpop.permute.xlu0 %10338
        %10340 = vrot.lane.b32.xlu0 %v10286, 32
        %v10341 = vpop.permute.xlu0 %10340
        %10342 = vrot.lane.b32.xlu0 %v10287, 32
        %v10343 = vpop.permute.xlu0 %10342
        %10344 = vrot.lane.b32.xlu0 %v10288, 32
        %v10345 = vpop.permute.xlu0 %10344
        %10346 = vrot.lane.b32.xlu0 %v10289, 32
        %v10347 = vpop.permute.xlu0 %10346
        %10348 = vrot.lane.b32.xlu0 %v10290, 32
        %v10349 = vpop.permute.xlu0 %10348
        %10350 = vrot.lane.b32.xlu0 %v10291, 32
        %v10351 = vpop.permute.xlu0 %10350
        %10352 = vrot.lane.b32.xlu0 %v10292, 32
        %v10353 = vpop.permute.xlu0 %10352
        %10354 = vrot.lane.b32.xlu0 %v10293, 32
        %v10355 = vpop.permute.xlu0 %10354
        %10356 = vrot.lane.b32.xlu0 %v10294, 32
        %v10357 = vpop.permute.xlu0 %10356
        %10358 = vrot.lane.b32.xlu0 %v10295, 32
        %v10359 = vpop.permute.xlu0 %10358
        %v10362 = vsel %vm964, %v10104, %v10297
        %v10365 = vsel %vm964, %v10105, %v10299
        %v10368 = vsel %vm964, %v10106, %v10301
        %v10371 = vsel %vm964, %v10107, %v10303
        %v10374 = vsel %vm964, %v10108, %v10305
        %v10377 = vsel %vm964, %v10109, %v10307
        %v10380 = vsel %vm964, %v10110, %v10309
        %v10383 = vsel %vm964, %v10111, %v10311
        %v10386 = vsel %vm964, %v10112, %v10313
        %v10389 = vsel %vm964, %v10113, %v10315
        %v10392 = vsel %vm964, %v10114, %v10317
        %v10395 = vsel %vm964, %v10115, %v10319
        %v10398 = vsel %vm964, %v10116, %v10321
        %v10401 = vsel %vm964, %v10117, %v10323
        %v10404 = vsel %vm964, %v10118, %v10325
        %v10407 = vsel %vm964, %v10119, %v10327
        %v10410 = vsel %vm964, %v10120, %v10329
        %v10413 = vsel %vm964, %v10121, %v10331
        %v10416 = vsel %vm964, %v10122, %v10333
        %v10419 = vsel %vm964, %v10123, %v10335
        %v10422 = vsel %vm964, %v10124, %v10337
        %v10425 = vsel %vm964, %v10125, %v10339
        %v10428 = vsel %vm964, %v10126, %v10341
        %v10431 = vsel %vm964, %v10127, %v10343
        %v10434 = vsel %vm964, %v10128, %v10345
        %v10437 = vsel %vm964, %v10129, %v10347
        %v10440 = vsel %vm964, %v10130, %v10349
        %v10443 = vsel %vm964, %v10131, %v10351
        %v10446 = vsel %vm964, %v10132, %v10353
        %v10449 = vsel %vm964, %v10133, %v10355
        %v10452 = vsel %vm964, %v10134, %v10357
        %v10455 = vsel %vm964, %v10135, %v10359
        %v10456 = vld [vmem:[%s9] sm:$0xf]
        %v10457 = vld [vmem:[%s9 + $0x4] sm:$0xf]
        %v10458 = vld [vmem:[%s9 + $0x8] sm:$0xf]
        %v10459 = vld [vmem:[%s9 + $0xc] sm:$0xf]
        %v10460 = vld [vmem:[%s9 + $0x10] sm:$0xf]
        %v10461 = vld [vmem:[%s9 + $0x14] sm:$0xf]
        %v10462 = vld [vmem:[%s9 + $0x18] sm:$0xf]
        %v10463 = vld [vmem:[%s9 + $0x1c] sm:$0xf]
        %v10472 = vunpack.c.l.b16 %v10456
        %v10473 = vunpack.c.l.b16 %v10457
        %v10474 = vunpack.c.l.b16 %v10458
        %v10475 = vunpack.c.l.b16 %v10459
        %v10476 = vunpack.c.l.b16 %v10460
        %v10477 = vunpack.c.l.b16 %v10461
        %v10478 = vunpack.c.l.b16 %v10462
        %v10479 = vunpack.c.l.b16 %v10463
        %v10480 = vpack.c.b16 %v10473, %v10472
        %v10481 = vpack.c.b16 %v10475, %v10474
        %v10482 = vpack.c.b16 %v10477, %v10476
        %v10483 = vpack.c.b16 %v10479, %v10478
        %vm10488 = vcmask 523264
        %v10489 = vsel %vm10488, %v10362, 0
        %v10491 = vsel %vm10488, %v10365, 0
        %v10493 = vsel %vm10488, %v10368, 0
        %v10495 = vsel %vm10488, %v10371, 0
        %v10497 = vsel %vm10488, %v10374, 0
        %v10499 = vsel %vm10488, %v10377, 0
        %v10501 = vsel %vm10488, %v10380, 0
        %v10503 = vsel %vm10488, %v10383, 0
        %v10505 = vsel %vm10488, %v10386, 0
        %v10507 = vsel %vm10488, %v10389, 0
        %v10509 = vsel %vm10488, %v10392, 0
        %v10511 = vsel %vm10488, %v10395, 0
        %v10513 = vsel %vm10488, %v10398, 0
        %v10515 = vsel %vm10488, %v10401, 0
        %v10517 = vsel %vm10488, %v10404, 0
        %v10519 = vsel %vm10488, %v10407, 0
        %v10521 = vsel %vm10488, %v10410, 0
        %v10523 = vsel %vm10488, %v10413, 0
        %v10525 = vsel %vm10488, %v10416, 0
        %v10527 = vsel %vm10488, %v10419, 0
        %v10529 = vsel %vm10488, %v10422, 0
        %v10531 = vsel %vm10488, %v10425, 0
        %v10533 = vsel %vm10488, %v10428, 0
        %v10535 = vsel %vm10488, %v10431, 0
        %v10537 = vsel %vm10488, %v10434, 0
        %v10539 = vsel %vm10488, %v10437, 0
        %v10541 = vsel %vm10488, %v10440, 0
        %v10543 = vsel %vm10488, %v10443, 0
        %v10545 = vsel %vm10488, %v10446, 0
        %v10547 = vsel %vm10488, %v10449, 0
        %v10549 = vsel %vm10488, %v10452, 0
        %v10551 = vsel %vm10488, %v10455, 0
        %10553 = vmatpush.bf16.msra.mxu0 0
        %10554 = vmatpush.bf16.msra.mxu0 0
        %10555 = vmatpush.bf16.msra.mxu0 0
        %10556 = vmatpush.bf16.msra.mxu0 0
        %10557 = vmatpush.bf16.msra.mxu0 %v10483
        %10558 = vmatpush.bf16.msra.mxu0 %v10482
        %10559 = vmatpush.bf16.msra.mxu0 %v10481
        %10560 = vmatpush.bf16.msra.mxu0 %v10480
        %10561 = vmatmul.bf16.gmra.mxu0 %v10489
        %v10562 = vpop.f32.mrf.mxu0
        %v10563 = vadd.f32 0.0, %v10562
        %v10564 = vpop.f32.mrf.mxu0
        %v10565 = vadd.f32 0.0, %v10564
        %10566 = vmatmul.bf16.gmra.mxu0 %v10491
        %v10567 = vpop.f32.mrf.mxu0
        %v10568 = vadd.f32 0.0, %v10567
        %v10569 = vpop.f32.mrf.mxu0
        %v10570 = vadd.f32 0.0, %v10569
        %10571 = vmatmul.bf16.gmra.mxu0 %v10493
        %v10572 = vpop.f32.mrf.mxu0
        %v10573 = vadd.f32 0.0, %v10572
        %v10574 = vpop.f32.mrf.mxu0
        %v10575 = vadd.f32 0.0, %v10574
        %10576 = vmatmul.bf16.gmra.mxu0 %v10495
        %v10577 = vpop.f32.mrf.mxu0
        %v10578 = vadd.f32 0.0, %v10577
        %v10579 = vpop.f32.mrf.mxu0
        %v10580 = vadd.f32 0.0, %v10579
        %10581 = vmatmul.bf16.gmra.mxu0 %v10497
        %v10582 = vpop.f32.mrf.mxu0
        %v10583 = vadd.f32 0.0, %v10582
        %v10584 = vpop.f32.mrf.mxu0
        %v10585 = vadd.f32 0.0, %v10584
        %10586 = vmatmul.bf16.gmra.mxu0 %v10499
        %v10587 = vpop.f32.mrf.mxu0
        %v10588 = vadd.f32 0.0, %v10587
        %v10589 = vpop.f32.mrf.mxu0
        %v10590 = vadd.f32 0.0, %v10589
        %10591 = vmatmul.bf16.gmra.mxu0 %v10501
        %v10592 = vpop.f32.mrf.mxu0
        %v10593 = vadd.f32 0.0, %v10592
        %v10594 = vpop.f32.mrf.mxu0
        %v10595 = vadd.f32 0.0, %v10594
        %10596 = vmatmul.bf16.gmra.mxu0 %v10503
        %v10597 = vpop.f32.mrf.mxu0
        %v10598 = vadd.f32 0.0, %v10597
        %v10599 = vpop.f32.mrf.mxu0
        %v10600 = vadd.f32 0.0, %v10599
        %10601 = vmatmul.bf16.gmra.mxu0 %v10505
        %v10602 = vpop.f32.mrf.mxu0
        %v10603 = vadd.f32 0.0, %v10602
        %v10604 = vpop.f32.mrf.mxu0
        %v10605 = vadd.f32 0.0, %v10604
        %10606 = vmatmul.bf16.gmra.mxu0 %v10507
        %v10607 = vpop.f32.mrf.mxu0
        %v10608 = vadd.f32 0.0, %v10607
        %v10609 = vpop.f32.mrf.mxu0
        %v10610 = vadd.f32 0.0, %v10609
        %10611 = vmatmul.bf16.gmra.mxu0 %v10509
        %v10612 = vpop.f32.mrf.mxu0
        %v10613 = vadd.f32 0.0, %v10612
        %v10614 = vpop.f32.mrf.mxu0
        %v10615 = vadd.f32 0.0, %v10614
        %10616 = vmatmul.bf16.gmra.mxu0 %v10511
        %v10617 = vpop.f32.mrf.mxu0
        %v10618 = vadd.f32 0.0, %v10617
        %v10619 = vpop.f32.mrf.mxu0
        %v10620 = vadd.f32 0.0, %v10619
        %10621 = vmatmul.bf16.gmra.mxu0 %v10513
        %v10622 = vpop.f32.mrf.mxu0
        %v10623 = vadd.f32 0.0, %v10622
        %v10624 = vpop.f32.mrf.mxu0
        %v10625 = vadd.f32 0.0, %v10624
        %10626 = vmatmul.bf16.gmra.mxu0 %v10515
        %v10627 = vpop.f32.mrf.mxu0
        %v10628 = vadd.f32 0.0, %v10627
        %v10629 = vpop.f32.mrf.mxu0
        %v10630 = vadd.f32 0.0, %v10629
        %10631 = vmatmul.bf16.gmra.mxu0 %v10517
        %v10632 = vpop.f32.mrf.mxu0
        %v10633 = vadd.f32 0.0, %v10632
        %v10634 = vpop.f32.mrf.mxu0
        %v10635 = vadd.f32 0.0, %v10634
        %10636 = vmatmul.bf16.gmra.mxu0 %v10519
        %v10637 = vpop.f32.mrf.mxu0
        %v10638 = vadd.f32 0.0, %v10637
        %v10639 = vpop.f32.mrf.mxu0
        %v10640 = vadd.f32 0.0, %v10639
        %10641 = vmatmul.bf16.gmra.mxu0 %v10521
        %v10642 = vpop.f32.mrf.mxu0
        %v10643 = vadd.f32 0.0, %v10642
        %v10644 = vpop.f32.mrf.mxu0
        %v10645 = vadd.f32 0.0, %v10644
        %10646 = vmatmul.bf16.gmra.mxu0 %v10523
        %v10647 = vpop.f32.mrf.mxu0
        %v10648 = vadd.f32 0.0, %v10647
        %v10649 = vpop.f32.mrf.mxu0
        %v10650 = vadd.f32 0.0, %v10649
        %10651 = vmatmul.bf16.gmra.mxu0 %v10525
        %v10652 = vpop.f32.mrf.mxu0
        %v10653 = vadd.f32 0.0, %v10652
        %v10654 = vpop.f32.mrf.mxu0
        %v10655 = vadd.f32 0.0, %v10654
        %10656 = vmatmul.bf16.gmra.mxu0 %v10527
        %v10657 = vpop.f32.mrf.mxu0
        %v10658 = vadd.f32 0.0, %v10657
        %v10659 = vpop.f32.mrf.mxu0
        %v10660 = vadd.f32 0.0, %v10659
        %10661 = vmatmul.bf16.gmra.mxu0 %v10529
        %v10662 = vpop.f32.mrf.mxu0
        %v10663 = vadd.f32 0.0, %v10662
        %v10664 = vpop.f32.mrf.mxu0
        %v10665 = vadd.f32 0.0, %v10664
        %10666 = vmatmul.bf16.gmra.mxu0 %v10531
        %v10667 = vpop.f32.mrf.mxu0
        %v10668 = vadd.f32 0.0, %v10667
        %v10669 = vpop.f32.mrf.mxu0
        %v10670 = vadd.f32 0.0, %v10669
        %10671 = vmatmul.bf16.gmra.mxu0 %v10533
        %v10672 = vpop.f32.mrf.mxu0
        %v10673 = vadd.f32 0.0, %v10672
        %v10674 = vpop.f32.mrf.mxu0
        %v10675 = vadd.f32 0.0, %v10674
        %10676 = vmatmul.bf16.gmra.mxu0 %v10535
        %v10677 = vpop.f32.mrf.mxu0
        %v10678 = vadd.f32 0.0, %v10677
        %v10679 = vpop.f32.mrf.mxu0
        %v10680 = vadd.f32 0.0, %v10679
        %10681 = vmatmul.bf16.gmra.mxu0 %v10537
        %v10682 = vpop.f32.mrf.mxu0
        %v10683 = vadd.f32 0.0, %v10682
        %v10684 = vpop.f32.mrf.mxu0
        %v10685 = vadd.f32 0.0, %v10684
        %10686 = vmatmul.bf16.gmra.mxu0 %v10539
        %v10687 = vpop.f32.mrf.mxu0
        %v10688 = vadd.f32 0.0, %v10687
        %v10689 = vpop.f32.mrf.mxu0
        %v10690 = vadd.f32 0.0, %v10689
        %10691 = vmatmul.bf16.gmra.mxu0 %v10541
        %v10692 = vpop.f32.mrf.mxu0
        %v10693 = vadd.f32 0.0, %v10692
        %v10694 = vpop.f32.mrf.mxu0
        %v10695 = vadd.f32 0.0, %v10694
        %10696 = vmatmul.bf16.gmra.mxu0 %v10543
        %v10697 = vpop.f32.mrf.mxu0
        %v10698 = vadd.f32 0.0, %v10697
        %v10699 = vpop.f32.mrf.mxu0
        %v10700 = vadd.f32 0.0, %v10699
        %10701 = vmatmul.bf16.gmra.mxu0 %v10545
        %v10702 = vpop.f32.mrf.mxu0
        %v10703 = vadd.f32 0.0, %v10702
        %v10704 = vpop.f32.mrf.mxu0
        %v10705 = vadd.f32 0.0, %v10704
        %10706 = vmatmul.bf16.gmra.mxu0 %v10547
        %v10707 = vpop.f32.mrf.mxu0
        %v10708 = vadd.f32 0.0, %v10707
        %v10709 = vpop.f32.mrf.mxu0
        %v10710 = vadd.f32 0.0, %v10709
        %10711 = vmatmul.bf16.gmra.mxu0 %v10549
        %v10712 = vpop.f32.mrf.mxu0
        %v10713 = vadd.f32 0.0, %v10712
        %v10714 = vpop.f32.mrf.mxu0
        %v10715 = vadd.f32 0.0, %v10714
        %10716 = vmatmul.bf16.gmra.mxu0 %v10551
        %v10717 = vpop.f32.mrf.mxu0
        %v10718 = vadd.f32 0.0, %v10717
        %v10719 = vpop.f32.mrf.mxu0
        %v10720 = vadd.f32 0.0, %v10719
        %10721 = vdwg.mxu0
        %v10722 = vpack.c.bf16 %v10563, %v10563
        %v10723 = vpack.c.bf16 %v10565, %v10565
        %v10724 = vpack.c.bf16 %v10568, %v10568
        %v10725 = vpack.c.bf16 %v10570, %v10570
        %v10726 = vpack.c.bf16 %v10573, %v10573
        %v10727 = vpack.c.bf16 %v10575, %v10575
        %v10728 = vpack.c.bf16 %v10578, %v10578
        %v10729 = vpack.c.bf16 %v10580, %v10580
        %v10730 = vpack.c.bf16 %v10583, %v10583
        %v10731 = vpack.c.bf16 %v10585, %v10585
        %v10732 = vpack.c.bf16 %v10588, %v10588
        %v10733 = vpack.c.bf16 %v10590, %v10590
        %v10734 = vpack.c.bf16 %v10593, %v10593
        %v10735 = vpack.c.bf16 %v10595, %v10595
        %v10736 = vpack.c.bf16 %v10598, %v10598
        %v10737 = vpack.c.bf16 %v10600, %v10600
        %v10738 = vpack.c.bf16 %v10603, %v10603
        %v10739 = vpack.c.bf16 %v10605, %v10605
        %v10740 = vpack.c.bf16 %v10608, %v10608
        %v10741 = vpack.c.bf16 %v10610, %v10610
        %v10742 = vpack.c.bf16 %v10613, %v10613
        %v10743 = vpack.c.bf16 %v10615, %v10615
        %v10744 = vpack.c.bf16 %v10618, %v10618
        %v10745 = vpack.c.bf16 %v10620, %v10620
        %v10746 = vpack.c.bf16 %v10623, %v10623
        %v10747 = vpack.c.bf16 %v10625, %v10625
        %v10748 = vpack.c.bf16 %v10628, %v10628
        %v10749 = vpack.c.bf16 %v10630, %v10630
        %v10750 = vpack.c.bf16 %v10633, %v10633
        %v10751 = vpack.c.bf16 %v10635, %v10635
        %v10752 = vpack.c.bf16 %v10638, %v10638
        %v10753 = vpack.c.bf16 %v10640, %v10640
        %v10754 = vpack.c.bf16 %v10643, %v10643
        %v10755 = vpack.c.bf16 %v10645, %v10645
        %v10756 = vpack.c.bf16 %v10648, %v10648
        %v10757 = vpack.c.bf16 %v10650, %v10650
        %v10758 = vpack.c.bf16 %v10653, %v10653
        %v10759 = vpack.c.bf16 %v10655, %v10655
        %v10760 = vpack.c.bf16 %v10658, %v10658
        %v10761 = vpack.c.bf16 %v10660, %v10660
        %v10762 = vpack.c.bf16 %v10663, %v10663
        %v10763 = vpack.c.bf16 %v10665, %v10665
        %v10764 = vpack.c.bf16 %v10668, %v10668
        %v10765 = vpack.c.bf16 %v10670, %v10670
        %v10766 = vpack.c.bf16 %v10673, %v10673
        %v10767 = vpack.c.bf16 %v10675, %v10675
        %v10768 = vpack.c.bf16 %v10678, %v10678
        %v10769 = vpack.c.bf16 %v10680, %v10680
        %v10770 = vpack.c.bf16 %v10683, %v10683
        %v10771 = vpack.c.bf16 %v10685, %v10685
        %v10772 = vpack.c.bf16 %v10688, %v10688
        %v10773 = vpack.c.bf16 %v10690, %v10690
        %v10774 = vpack.c.bf16 %v10693, %v10693
        %v10775 = vpack.c.bf16 %v10695, %v10695
        %v10776 = vpack.c.bf16 %v10698, %v10698
        %v10777 = vpack.c.bf16 %v10700, %v10700
        %v10778 = vpack.c.bf16 %v10703, %v10703
        %v10779 = vpack.c.bf16 %v10705, %v10705
        %v10780 = vpack.c.bf16 %v10708, %v10708
        %v10781 = vpack.c.bf16 %v10710, %v10710
        %v10782 = vpack.c.bf16 %v10713, %v10713
        %v10783 = vpack.c.bf16 %v10715, %v10715
        %v10784 = vpack.c.bf16 %v10718, %v10718
        %v10785 = vpack.c.bf16 %v10720, %v10720
        %10786 = vst [vmem:[%s380] sm:$0xf] %v10722
        %10787 = vst [vmem:[%s380 + $0x4] sm:$0xf] %v10723
        %10788 = vst [vmem:[%s380 + $0x8] sm:$0xf] %v10724
        %10789 = vst [vmem:[%s380 + $0xc] sm:$0xf] %v10725
        %10790 = vst [vmem:[%s380 + $0x10] sm:$0xf] %v10726
        %10791 = vst [vmem:[%s380 + $0x14] sm:$0xf] %v10727
        %10792 = vst [vmem:[%s380 + $0x18] sm:$0xf] %v10728
        %10793 = vst [vmem:[%s380 + $0x1c] sm:$0xf] %v10729
        %10794 = vst [vmem:[%s380 + $0x20] sm:$0xf] %v10730
        %10795 = vst [vmem:[%s380 + $0x24] sm:$0xf] %v10731
        %10796 = vst [vmem:[%s380 + $0x28] sm:$0xf] %v10732
        %10797 = vst [vmem:[%s380 + $0x2c] sm:$0xf] %v10733
        %10798 = vst [vmem:[%s380 + $0x30] sm:$0xf] %v10734
        %10799 = vst [vmem:[%s380 + $0x34] sm:$0xf] %v10735
        %10800 = vst [vmem:[%s380 + $0x38] sm:$0xf] %v10736
        %10801 = vst [vmem:[%s380 + $0x3c] sm:$0xf] %v10737
        %10802 = vst [vmem:[%s380 + $0x40] sm:$0xf] %v10738
        %10803 = vst [vmem:[%s380 + $0x44] sm:$0xf] %v10739
        %10804 = vst [vmem:[%s380 + $0x48] sm:$0xf] %v10740
        %10805 = vst [vmem:[%s380 + $0x4c] sm:$0xf] %v10741
        %10806 = vst [vmem:[%s380 + $0x50] sm:$0xf] %v10742
        %10807 = vst [vmem:[%s380 + $0x54] sm:$0xf] %v10743
        %10808 = vst [vmem:[%s380 + $0x58] sm:$0xf] %v10744
        %10809 = vst [vmem:[%s380 + $0x5c] sm:$0xf] %v10745
        %10810 = vst [vmem:[%s380 + $0x60] sm:$0xf] %v10746
        %10811 = vst [vmem:[%s380 + $0x64] sm:$0xf] %v10747
        %10812 = vst [vmem:[%s380 + $0x68] sm:$0xf] %v10748
        %10813 = vst [vmem:[%s380 + $0x6c] sm:$0xf] %v10749
        %10814 = vst [vmem:[%s380 + $0x70] sm:$0xf] %v10750
        %10815 = vst [vmem:[%s380 + $0x74] sm:$0xf] %v10751
        %10816 = vst [vmem:[%s380 + $0x78] sm:$0xf] %v10752
        %10817 = vst [vmem:[%s380 + $0x7c] sm:$0xf] %v10753
        %10818 = vst [vmem:[%s380 + $0x80] sm:$0xf] %v10754
        %10819 = vst [vmem:[%s380 + $0x84] sm:$0xf] %v10755
        %10820 = vst [vmem:[%s380 + $0x88] sm:$0xf] %v10756
        %10821 = vst [vmem:[%s380 + $0x8c] sm:$0xf] %v10757
        %10822 = vst [vmem:[%s380 + $0x90] sm:$0xf] %v10758
        %10823 = vst [vmem:[%s380 + $0x94] sm:$0xf] %v10759
        %10824 = vst [vmem:[%s380 + $0x98] sm:$0xf] %v10760
        %10825 = vst [vmem:[%s380 + $0x9c] sm:$0xf] %v10761
        %10826 = vst [vmem:[%s380 + $0xa0] sm:$0xf] %v10762
        %10827 = vst [vmem:[%s380 + $0xa4] sm:$0xf] %v10763
        %10828 = vst [vmem:[%s380 + $0xa8] sm:$0xf] %v10764
        %10829 = vst [vmem:[%s380 + $0xac] sm:$0xf] %v10765
        %10830 = vst [vmem:[%s380 + $0xb0] sm:$0xf] %v10766
        %10831 = vst [vmem:[%s380 + $0xb4] sm:$0xf] %v10767
        %10832 = vst [vmem:[%s380 + $0xb8] sm:$0xf] %v10768
        %10833 = vst [vmem:[%s380 + $0xbc] sm:$0xf] %v10769
        %10834 = vst [vmem:[%s380 + $0xc0] sm:$0xf] %v10770
        %10835 = vst [vmem:[%s380 + $0xc4] sm:$0xf] %v10771
        %10836 = vst [vmem:[%s380 + $0xc8] sm:$0xf] %v10772
        %10837 = vst [vmem:[%s380 + $0xcc] sm:$0xf] %v10773
        %10838 = vst [vmem:[%s380 + $0xd0] sm:$0xf] %v10774
        %10839 = vst [vmem:[%s380 + $0xd4] sm:$0xf] %v10775
        %10840 = vst [vmem:[%s380 + $0xd8] sm:$0xf] %v10776
        %10841 = vst [vmem:[%s380 + $0xdc] sm:$0xf] %v10777
        %10842 = vst [vmem:[%s380 + $0xe0] sm:$0xf] %v10778
        %10843 = vst [vmem:[%s380 + $0xe4] sm:$0xf] %v10779
        %10844 = vst [vmem:[%s380 + $0xe8] sm:$0xf] %v10780
        %10845 = vst [vmem:[%s380 + $0xec] sm:$0xf] %v10781
        %10846 = vst [vmem:[%s380 + $0xf0] sm:$0xf] %v10782
        %10847 = vst [vmem:[%s380 + $0xf4] sm:$0xf] %v10783
        %10848 = vst [vmem:[%s380 + $0xf8] sm:$0xf] %v10784
        %10849 = vst [vmem:[%s380 + $0xfc] sm:$0xf] %v10785
        %s10850 = sand.u32 %s250, 1
        %s10851 = scalar_lea.sflag [#allocation6], %s10850
        %s10852 = sand.u32 %s250, 1
        %s10853 = smul.addr %s10852, 256
        %s10854 = scalar_lea.vmem [#allocation7], %s10853
        // Predicated region
        $region65: #{tpu_custom_call.1} parent=59 // pred_check
          %p10855 = pneg %p260
        $region66: #{tpu_custom_call.1} parent=59 // pred_check_branch
          %10857 = sbr.rel (%p10855) target = $region68
        $region67: #{tpu_custom_call.1} parent=59 // pred_region
          %s10858 = smul.u32 2, %s27
          %10860 = vsyncadd %s10851, 0
          %s10861 = smul.addr %s10858, 32
          %s10862 = smul.addr %s10861, 4
          %s10863 = scalar_lea.hbm %s10, %s10862
          %s10864 = sshll.u32 %s10854, 4
          %s10865 = int_to_ptr.vmem [resolvable:$true] %s10864
          %s10866 = sshll.u32 %s10863, 4
          %s10867 = int_to_ptr.hbm [resolvable:$true] %s10866
          %10872 = dma.vmem_to_hbm [thread:$0]  %s10865, 4096, %s10867, %s10851, 64, 64, 4
        $region68: #{tpu_custom_call.1} parent=59 // pred_fallthru
          _
      $region60: #{tpu_custom_call.1} parent=5 // pred_fallthru
        _
      %p10873 = scmp.le.s32.totalorder 2, %s22
      // Predicated region
      $region69: #{tpu_custom_call.1} parent=5 // pred_check
        %p10874 = pneg %p10873
      $region70: #{tpu_custom_call.1} parent=5 // pred_check_branch
        %10876 = sbr.rel (%p10874) target = $region72
      $region71: #{tpu_custom_call.1} parent=5 // pred_region
        %s10877 = ssub.s32 %s22, 2
        // Predicated region
        $region73: #{tpu_custom_call.1} parent=71 // pred_check
          %p10878 = pneg %p266
        $region74: #{tpu_custom_call.1} parent=71 // pred_check_branch
          %10880 = sbr.rel (%p10878) target = $region76
        $region75: #{tpu_custom_call.1} parent=71 // pred_region
          %s10881 = sand.u32 %s251, 1
          %s10882 = scalar_lea.sflag [#allocation6], %s10881
          %s10883 = sand.u32 %s251, 1
          %s10884 = smul.addr %s10883, 256
          %s10885 = scalar_lea.vmem [#allocation7], %s10884
          %10887 = dma.done %s10882, 4096
        $region76: #{tpu_custom_call.1} parent=71 // pred_fallthru
          _
      $region72: #{tpu_custom_call.1} parent=5 // pred_fallthru
        _
    $region6: #{tpu_custom_call.1} parent=1 // loop_footer
      %s26 = sadd.s32 1, %s22
    $region7: #{tpu_custom_call.1} parent=1 // loop_footer_branch
      %21 = sbr.rel target = $region3
    $region8: #{tpu_custom_call.1} parent=1 // loop_exit
      _
    %10888 = vsyncpa [#allocation5], 1
    %s10889 = scalar_lea.sflag [#allocation5], 1
    %10890 = vsyncpa %s10889, 1
    %10891 = vsyncpa [#allocation6], 1
    %s10892 = scalar_lea.sflag [#allocation6], 1
    %10893 = vsyncpa %s10892, 1

</llo_original>
